<compile_context>
chip_gen: v7x
topology: tpu7x:2x2x1
jax: 0.10.0
libtpu: 0.0.40
codegen_flags: <defaults>
</compile_context>

<pallas_src>
import functools

import jax
import jax.numpy as jnp
import numpy as np
from jax import lax
from jax.experimental import pallas as pl
from jax.experimental.pallas import tpu as pltpu


# ----------------------------------------------------------------------------
# Fused Pallas kernel (one batch element per grid step)
# ----------------------------------------------------------------------------

def _vdsr_fused_kernel(x_ref, w_ref, b_ref, sub_ref, add_ref, o_ref,
                       xbuf, abuf, bbuf, *, H, W, F, L, C):
    """Fused VDSR forward for one image.

    x_ref:   (1, H, W, F)    input image, NHWC, channels zero-padded to F
    w_ref:   (L, 3, 3F, F)   per-layer, per-dy grouped conv weights
                             (dx and Cin merged on the K axis), zero-padded
    b_ref:   (L, 1, F)       biases, zero-padded
    sub_ref: (2, 1, 1, F)    sub_mean affine [scale, shift]
    add_ref: (2, 1, F)       add_mean affine [scale, shift]
    o_ref:   (1, H, W, C)    output image, NHWC
    xbuf/abuf/bbuf: (H+2, W+2, F) f32 VMEM scratch (zero-padded activations)
    """
    # Zero-fill scratch once: provides the conv zero border and zeroes the
    # channel-padding lanes.  Interiors are fully overwritten before reads.
    xbuf[...] = jnp.zeros_like(xbuf)
    abuf[...] = jnp.zeros_like(abuf)
    bbuf[...] = jnp.zeros_like(bbuf)

    # sub_mean: y = x * (1/std) - rgb_range*mean/std, into the padded skip
    # buffer interior.  Padded channels stay 0 (scale/shift padding is 0).
    xbuf[1:H + 1, 1:W + 1, :] = x_ref[0] * sub_ref[0] + sub_ref[1]

    bufs = (xbuf, abuf, bbuf)
    src = 0
    for l in range(L):
        s = bufs[src][...]                                      # (H+2, W+2, F)
        # im2col along dx once per layer: (H+2, W, 3F); each output pixel's
        # 3 horizontal taps end up contiguous on the K (lane) axis.
        wide = jnp.concatenate(
            [s[:, dx:dx + W, :] for dx in range(3)], axis=2)
        acc = jnp.zeros((H * W, F), jnp.float32)
        for dy in range(3):                                     # 3 fat MXU dots
            slab = wide[dy:dy + H].reshape(H * W, 3 * F)        # (H*W, 3F)
            acc = acc + jnp.dot(slab, w_ref[l, dy],
                                preferred_element_type=jnp.float32)
        acc = acc + b_ref[l]                                    # (1, F) bias

        if l < L - 1:
            acc = jnp.maximum(acc, 0.0)                         # ReLU
            dst = 1 + (l % 2)                                   # ping-pong a/b
            bufs[dst][1:H + 1, 1:W + 1, :] = acc.reshape(H, W, F)
            src = dst
        else:
            # skip connection (res += x) + add_mean, write n_colors channels.
            x_skip = xbuf[1:H + 1, 1:W + 1, :].reshape(H * W, F)
            res = (acc + x_skip) * add_ref[0] + add_ref[1]
            o_ref[0] = res[:, :C].reshape(H, W, C).astype(o_ref.dtype)


# ----------------------------------------------------------------------------
# Wrapper: parameter packing + pallas_call
# ----------------------------------------------------------------------------

def _rgb_stats(n_colors):
    if n_colors == 3:
        mean = jnp.array([0.4488, 0.4371, 0.4040], jnp.float32)
    else:
        mean = jnp.zeros((n_colors,), jnp.float32)
    std = jnp.ones((n_colors,), jnp.float32)
    return mean, std


def vdsr_forward(x_nchw, params, rgb_range):
    N, C, H, W = x_nchw.shape
    L = len(params)
    # Uniform channel width F (>= every layer's cin/cout, multiple of 8).
    F = max([C] + [w.shape[2] for w, _ in params] + [w.shape[3] for w, _ in params])
    F = max(8, ((F + 7) // 8) * 8)

    # Pack weights: zero-pad channels to F, group (dx, cin) on the K axis.
    w_list, b_list = [], []
    for w, b in params:
        cin, cout = w.shape[2], w.shape[3]
        wp = jnp.zeros((3, 3, F, F), jnp.float32).at[:, :, :cin, :cout].set(w)
        w_list.append(wp.reshape(3, 3 * F, F))                  # [dy, dx*F+ci, co]
        b_list.append(jnp.zeros((F,), jnp.float32).at[:cout].set(b))
    w_all = jnp.stack(w_list)                                   # (L, 3, 3F, F)
    b_all = jnp.stack(b_list)[:, None, :]                       # (L, 1, F)

    rgb_mean, rgb_std = _rgb_stats(C)
    inv_std = 1.0 / rgb_std
    sub_scale = jnp.zeros((F,), jnp.float32).at[:C].set(inv_std)
    sub_shift = jnp.zeros((F,), jnp.float32).at[:C].set(-rgb_range * rgb_mean * inv_std)
    add_scale = jnp.zeros((F,), jnp.float32).at[:C].set(inv_std)
    add_shift = jnp.zeros((F,), jnp.float32).at[:C].set(rgb_range * rgb_mean * inv_std)
    sub_aff = jnp.stack([sub_scale, sub_shift]).reshape(2, 1, 1, F)
    add_aff = jnp.stack([add_scale, add_shift]).reshape(2, 1, F)

    # NCHW -> NHWC (tiny, one-time) and zero-pad channels to F.
    x_nhwc = jnp.transpose(x_nchw, (0, 2, 3, 1))
    x_nhwc = jnp.pad(x_nhwc, ((0, 0), (0, 0), (0, 0), (0, F - C)))

    kernel = functools.partial(_vdsr_fused_kernel, H=H, W=W, F=F, L=L, C=C)
    out_nhwc = pl.pallas_call(
        kernel,
        out_shape=jax.ShapeDtypeStruct((N, H, W, C), x_nchw.dtype),
        grid_spec=pltpu.PrefetchScalarGridSpec(
            num_scalar_prefetch=0,
            grid=(N,),
            in_specs=[
                pl.BlockSpec((1, H, W, F), lambda n: (n, 0, 0, 0)),
                pl.BlockSpec((L, 3, 3 * F, F), lambda n: (0, 0, 0, 0)),
                pl.BlockSpec((L, 1, F), lambda n: (0, 0, 0)),
                pl.BlockSpec((2, 1, 1, F), lambda n: (0, 0, 0, 0)),
                pl.BlockSpec((2, 1, F), lambda n: (0, 0, 0)),
            ],
            out_specs=pl.BlockSpec((1, H, W, C), lambda n: (n, 0, 0, 0)),
            scratch_shapes=[
                pltpu.VMEM((H + 2, W + 2, F), jnp.float32),
                pltpu.VMEM((H + 2, W + 2, F), jnp.float32),
                pltpu.VMEM((H + 2, W + 2, F), jnp.float32),
            ],
        ),
        compiler_params=pltpu.CompilerParams(
            dimension_semantics=("parallel",)),
    )(x_nhwc, w_all, b_all, sub_aff, add_aff)
    return jnp.transpose(out_nhwc, (0, 3, 1, 2))                # NHWC -> NCHW


# ----------------------------------------------------------------------------
# Parameters (deterministic synthetic init, PyTorch-default-like uniform)
# ----------------------------------------------------------------------------

def init_vdsr_params(key, n_resblocks, n_feats, n_colors):
    chans = [n_colors] + [n_feats] * (n_resblocks - 1) + [n_colors]
    params = []
    for i in range(n_resblocks):
        cin, cout = chans[i], chans[i + 1]
        key, kw, kb = jax.random.split(key, 3)
        bound = 1.0 / np.sqrt(cin * 9)
        w = jax.random.uniform(kw, (3, 3, cin, cout), jnp.float32, -bound, bound)
        b = jax.random.uniform(kb, (cout,), jnp.float32, -bound, bound)
        params.append((w, b))
    return params


# ----------------------------------------------------------------------------
# Pure-JAX reference
# ----------------------------------------------------------------------------

def vdsr_reference(x_nchw, params, rgb_range):
    C = x_nchw.shape[1]
    rgb_mean, rgb_std = _rgb_stats(C)
    scale = (1.0 / rgb_std).reshape(1, 1, 1, C)
    sub_shift = (-rgb_range * rgb_mean / rgb_std).reshape(1, 1, 1, C)
    add_shift = (rgb_range * rgb_mean / rgb_std).reshape(1, 1, 1, C)

    x = jnp.transpose(x_nchw, (0, 2, 3, 1))
    x = x * scale + sub_shift
    res = x
    n = len(params)
    for i, (w, b) in enumerate(params):
        res = lax.conv_general_dilated(
            res, w, window_strides=(1, 1), padding="SAME",
            dimension_numbers=("NHWC", "HWIO", "NHWC")) + b.reshape(1, 1, 1, -1)
        if i < n - 1:
            res = jnp.maximum(res, 0.0)
    out = (res + x) * scale + add_shift
    return jnp.transpose(out, (0, 3, 1, 2))


# ----------------------------------------------------------------------------

if __name__ == "__main__":
    # args: n_resblocks=4, n_feats=16, n_colors=3, rgb_range=255
    n_resblocks, n_feats, n_colors = 4, 16, 3
    rgb_range = 255.0

    key = jax.random.PRNGKey(0)
    kx, kp = jax.random.split(key)
    x = jax.random.uniform(kx, (2, n_colors, 16, 16), jnp.float32) * rgb_range
    params = init_vdsr_params(kp, n_resblocks, n_feats, n_colors)

    fwd = jax.jit(lambda inp: vdsr_forward(inp, params, rgb_range))
    out = fwd(x)
    jax.block_until_ready(out)

    ref = vdsr_reference(x, params, rgb_range)
    assert out.shape == x.shape and out.dtype == x.dtype
    np.testing.assert_allclose(np.asarray(out), np.asarray(ref),
                               rtol=2e-4, atol=2e-3)
    print("KERNEL_OK")
</pallas_src>

<mosaic_0001>
module attributes {stable_mosaic.version = 11 : i64} {
  func.func @_vdsr_fused_kernel(%arg0: i32, %arg1: memref<1x16x16x16xf32, #tpu.memory_space<vmem>>, %arg2: memref<4x3x48x16xf32, #tpu.memory_space<vmem>>, %arg3: memref<4x1x16xf32, #tpu.memory_space<vmem>>, %arg4: memref<2x1x1x16xf32, #tpu.memory_space<vmem>>, %arg5: memref<2x1x16xf32, #tpu.memory_space<vmem>>, %arg6: memref<1x16x16x3xf32, #tpu.memory_space<vmem>>, %arg7: memref<18x18x16xf32, #tpu.memory_space<vmem>>, %arg8: memref<18x18x16xf32, #tpu.memory_space<vmem>>, %arg9: memref<18x18x16xf32, #tpu.memory_space<vmem>>) attributes {dimension_semantics = [#tpu.dimension_semantics<parallel>], iteration_bounds = array<i64: 2>, scalar_prefetch = 0 : i64, scratch_operands = 3 : i64, tpu.core_type = #tpu.core_type<tc>, window_params = [{transform_indices = @transform_0, window_bounds = array<i64: 1, 16, 16, 16>}, {pipeline_mode = #tpu.pipeline_mode<synchronous>, transform_indices = @transform_1, window_bounds = array<i64: 4, 3, 48, 16>}, {pipeline_mode = #tpu.pipeline_mode<synchronous>, transform_indices = @transform_2, window_bounds = array<i64: 4, 1, 16>}, {pipeline_mode = #tpu.pipeline_mode<synchronous>, transform_indices = @transform_3, window_bounds = array<i64: 2, 1, 1, 16>}, {pipeline_mode = #tpu.pipeline_mode<synchronous>, transform_indices = @transform_4, window_bounds = array<i64: 2, 1, 16>}, {transform_indices = @transform_5, window_bounds = array<i64: 1, 16, 16, 3>}]} {
    %cst = arith.constant 0.000000e+00 : f32
    %0 = vector.broadcast %cst : f32 to vector<18x18x16xf32>
    %c0 = arith.constant 0 : index
    %c0_0 = arith.constant 0 : index
    %c0_1 = arith.constant 0 : index
    %1 = vector.load %arg7[%c0, %c0_0, %c0_1] : memref<18x18x16xf32, #tpu.memory_space<vmem>>, vector<18x18x16xf32>
    tpu.vector_store %arg7[%c0, %c0_0, %c0_1], %0 {strides = array<i32>} : memref<18x18x16xf32, #tpu.memory_space<vmem>>, vector<18x18x16xf32>,
    %cst_2 = arith.constant 0.000000e+00 : f32
    %2 = vector.broadcast %cst_2 : f32 to vector<18x18x16xf32>
    %c0_3 = arith.constant 0 : index
    %c0_4 = arith.constant 0 : index
    %c0_5 = arith.constant 0 : index
    %3 = vector.load %arg8[%c0_3, %c0_4, %c0_5] : memref<18x18x16xf32, #tpu.memory_space<vmem>>, vector<18x18x16xf32>
    tpu.vector_store %arg8[%c0_3, %c0_4, %c0_5], %2 {strides = array<i32>} : memref<18x18x16xf32, #tpu.memory_space<vmem>>, vector<18x18x16xf32>,
    %cst_6 = arith.constant 0.000000e+00 : f32
    %4 = vector.broadcast %cst_6 : f32 to vector<18x18x16xf32>
    %c0_7 = arith.constant 0 : index
    %c0_8 = arith.constant 0 : index
    %c0_9 = arith.constant 0 : index
    %5 = vector.load %arg9[%c0_7, %c0_8, %c0_9] : memref<18x18x16xf32, #tpu.memory_space<vmem>>, vector<18x18x16xf32>
    tpu.vector_store %arg9[%c0_7, %c0_8, %c0_9], %4 {strides = array<i32>} : memref<18x18x16xf32, #tpu.memory_space<vmem>>, vector<18x18x16xf32>,
    %c0_10 = arith.constant 0 : index
    %c0_11 = arith.constant 0 : index
    %c0_12 = arith.constant 0 : index
    %c0_13 = arith.constant 0 : index
    %6 = vector.load %arg1[%c0_10, %c0_11, %c0_12, %c0_13] : memref<1x16x16x16xf32, #tpu.memory_space<vmem>>, vector<1x16x16x16xf32>
    %7 = vector.shape_cast %6 : vector<1x16x16x16xf32> to vector<16x16x16xf32>
    %c0_14 = arith.constant 0 : index
    %c0_15 = arith.constant 0 : index
    %c0_16 = arith.constant 0 : index
    %c0_17 = arith.constant 0 : index
    %8 = vector.load %arg4[%c0_14, %c0_15, %c0_16, %c0_17] : memref<2x1x1x16xf32, #tpu.memory_space<vmem>>, vector<1x1x1x16xf32>
    %9 = vector.shape_cast %8 : vector<1x1x1x16xf32> to vector<1x1x16xf32>
    %10 = vector.broadcast %9 : vector<1x1x16xf32> to vector<16x16x16xf32>
    %11 = arith.mulf %7, %10 : vector<16x16x16xf32>
    %c1 = arith.constant 1 : index
    %c0_18 = arith.constant 0 : index
    %c0_19 = arith.constant 0 : index
    %c0_20 = arith.constant 0 : index
    %12 = vector.load %arg4[%c1, %c0_18, %c0_19, %c0_20] : memref<2x1x1x16xf32, #tpu.memory_space<vmem>>, vector<1x1x1x16xf32>
    %13 = vector.shape_cast %12 : vector<1x1x1x16xf32> to vector<1x1x16xf32>
    %14 = vector.broadcast %13 : vector<1x1x16xf32> to vector<16x16x16xf32>
    %15 = arith.addf %11, %14 : vector<16x16x16xf32>
    %c1_21 = arith.constant 1 : index
    %c1_22 = arith.constant 1 : index
    %c0_23 = arith.constant 0 : index
    %16 = vector.load %arg7[%c1_21, %c1_22, %c0_23] : memref<18x18x16xf32, #tpu.memory_space<vmem>>, vector<16x16x16xf32>
    tpu.vector_store %arg7[%c1_21, %c1_22, %c0_23], %15 {strides = array<i32>} : memref<18x18x16xf32, #tpu.memory_space<vmem>>, vector<16x16x16xf32>,
    %c0_24 = arith.constant 0 : index
    %c0_25 = arith.constant 0 : index
    %c0_26 = arith.constant 0 : index
    %17 = vector.load %arg7[%c0_24, %c0_25, %c0_26] : memref<18x18x16xf32, #tpu.memory_space<vmem>>, vector<18x18x16xf32>
    %18 = vector.extract_strided_slice %17 {offsets = [0, 0, 0], sizes = [18, 16, 16], strides = [1, 1, 1]} : vector<18x18x16xf32> to vector<18x16x16xf32>
    %19 = vector.extract_strided_slice %17 {offsets = [0, 1, 0], sizes = [18, 16, 16], strides = [1, 1, 1]} : vector<18x18x16xf32> to vector<18x16x16xf32>
    %20 = vector.extract_strided_slice %17 {offsets = [0, 2, 0], sizes = [18, 16, 16], strides = [1, 1, 1]} : vector<18x18x16xf32> to vector<18x16x16xf32>
    %21 = tpu.concatenate %18, %19, %20 in 2 : vector<18x16x16xf32>, vector<18x16x16xf32>, vector<18x16x16xf32> -> vector<18x16x48xf32>
    %cst_27 = arith.constant 0.000000e+00 : f32
    %22 = vector.broadcast %cst_27 : f32 to vector<256x16xf32>
    %23 = vector.extract_strided_slice %21 {offsets = [0, 0, 0], sizes = [16, 16, 48], strides = [1, 1, 1]} : vector<18x16x48xf32> to vector<16x16x48xf32>
    %24 = vector.shape_cast %23 : vector<16x16x48xf32> to vector<256x48xf32>
    %c0_28 = arith.constant 0 : index
    %c0_29 = arith.constant 0 : index
    %c0_30 = arith.constant 0 : index
    %c0_31 = arith.constant 0 : index
    %25 = vector.load %arg2[%c0_28, %c0_29, %c0_30, %c0_31] : memref<4x3x48x16xf32, #tpu.memory_space<vmem>>, vector<1x1x48x16xf32>
    %26 = vector.shape_cast %25 : vector<1x1x48x16xf32> to vector<48x16xf32>
    %cst_32 = arith.constant dense<0.000000e+00> : vector<256x16xf32>
    %27 = tpu.matmul %24, %26, %cst_32 {dimension_numbers = #tpu.dot_dimension_numbers<[1], [0], [0], [1], [0, 0, 1, 1], [], []>} : vector<256x48xf32>, vector<48x16xf32>, vector<256x16xf32> -> vector<256x16xf32>
    %28 = arith.addf %22, %27 : vector<256x16xf32>
    %29 = vector.extract_strided_slice %21 {offsets = [1, 0, 0], sizes = [16, 16, 48], strides = [1, 1, 1]} : vector<18x16x48xf32> to vector<16x16x48xf32>
    %30 = vector.shape_cast %29 : vector<16x16x48xf32> to vector<256x48xf32>
    %c0_33 = arith.constant 0 : index
    %c1_34 = arith.constant 1 : index
    %c0_35 = arith.constant 0 : index
    %c0_36 = arith.constant 0 : index
    %31 = vector.load %arg2[%c0_33, %c1_34, %c0_35, %c0_36] : memref<4x3x48x16xf32, #tpu.memory_space<vmem>>, vector<1x1x48x16xf32>
    %32 = vector.shape_cast %31 : vector<1x1x48x16xf32> to vector<48x16xf32>
    %cst_37 = arith.constant dense<0.000000e+00> : vector<256x16xf32>
    %33 = tpu.matmul %30, %32, %cst_37 {dimension_numbers = #tpu.dot_dimension_numbers<[1], [0], [0], [1], [0, 0, 1, 1], [], []>} : vector<256x48xf32>, vector<48x16xf32>, vector<256x16xf32> -> vector<256x16xf32>
    %34 = arith.addf %28, %33 : vector<256x16xf32>
    %35 = vector.extract_strided_slice %21 {offsets = [2, 0, 0], sizes = [16, 16, 48], strides = [1, 1, 1]} : vector<18x16x48xf32> to vector<16x16x48xf32>
    %36 = vector.shape_cast %35 : vector<16x16x48xf32> to vector<256x48xf32>
    %c0_38 = arith.constant 0 : index
    %c2 = arith.constant 2 : index
    %c0_39 = arith.constant 0 : index
    %c0_40 = arith.constant 0 : index
    %37 = vector.load %arg2[%c0_38, %c2, %c0_39, %c0_40] : memref<4x3x48x16xf32, #tpu.memory_space<vmem>>, vector<1x1x48x16xf32>
    %38 = vector.shape_cast %37 : vector<1x1x48x16xf32> to vector<48x16xf32>
    %cst_41 = arith.constant dense<0.000000e+00> : vector<256x16xf32>
    %39 = tpu.matmul %36, %38, %cst_41 {dimension_numbers = #tpu.dot_dimension_numbers<[1], [0], [0], [1], [0, 0, 1, 1], [], []>} : vector<256x48xf32>, vector<48x16xf32>, vector<256x16xf32> -> vector<256x16xf32>
    %40 = arith.addf %34, %39 : vector<256x16xf32>
    %c0_42 = arith.constant 0 : index
    %c0_43 = arith.constant 0 : index
    %c0_44 = arith.constant 0 : index
    %41 = vector.load %arg3[%c0_42, %c0_43, %c0_44] : memref<4x1x16xf32, #tpu.memory_space<vmem>>, vector<1x1x16xf32>
    %42 = vector.shape_cast %41 : vector<1x1x16xf32> to vector<1x16xf32>
    %43 = vector.broadcast %42 : vector<1x16xf32> to vector<256x16xf32>
    %44 = arith.addf %40, %43 : vector<256x16xf32>
    %cst_45 = arith.constant 0.000000e+00 : f32
    %45 = vector.broadcast %cst_45 : f32 to vector<256x16xf32>
    %46 = arith.maximumf %44, %45 : vector<256x16xf32>
    %47 = vector.shape_cast %46 : vector<256x16xf32> to vector<16x16x16xf32>
    %c1_46 = arith.constant 1 : index
    %c1_47 = arith.constant 1 : index
    %c0_48 = arith.constant 0 : index
    %48 = vector.load %arg8[%c1_46, %c1_47, %c0_48] : memref<18x18x16xf32, #tpu.memory_space<vmem>>, vector<16x16x16xf32>
    tpu.vector_store %arg8[%c1_46, %c1_47, %c0_48], %47 {strides = array<i32>} : memref<18x18x16xf32, #tpu.memory_space<vmem>>, vector<16x16x16xf32>,
    %c0_49 = arith.constant 0 : index
    %c0_50 = arith.constant 0 : index
    %c0_51 = arith.constant 0 : index
    %49 = vector.load %arg8[%c0_49, %c0_50, %c0_51] : memref<18x18x16xf32, #tpu.memory_space<vmem>>, vector<18x18x16xf32>
    %50 = vector.extract_strided_slice %49 {offsets = [0, 0, 0], sizes = [18, 16, 16], strides = [1, 1, 1]} : vector<18x18x16xf32> to vector<18x16x16xf32>
    %51 = vector.extract_strided_slice %49 {offsets = [0, 1, 0], sizes = [18, 16, 16], strides = [1, 1, 1]} : vector<18x18x16xf32> to vector<18x16x16xf32>
    %52 = vector.extract_strided_slice %49 {offsets = [0, 2, 0], sizes = [18, 16, 16], strides = [1, 1, 1]} : vector<18x18x16xf32> to vector<18x16x16xf32>
    %53 = tpu.concatenate %50, %51, %52 in 2 : vector<18x16x16xf32>, vector<18x16x16xf32>, vector<18x16x16xf32> -> vector<18x16x48xf32>
    %cst_52 = arith.constant 0.000000e+00 : f32
    %54 = vector.broadcast %cst_52 : f32 to vector<256x16xf32>
    %55 = vector.extract_strided_slice %53 {offsets = [0, 0, 0], sizes = [16, 16, 48], strides = [1, 1, 1]} : vector<18x16x48xf32> to vector<16x16x48xf32>
    %56 = vector.shape_cast %55 : vector<16x16x48xf32> to vector<256x48xf32>
    %c1_53 = arith.constant 1 : index
    %c0_54 = arith.constant 0 : index
    %c0_55 = arith.constant 0 : index
    %c0_56 = arith.constant 0 : index
    %57 = vector.load %arg2[%c1_53, %c0_54, %c0_55, %c0_56] : memref<4x3x48x16xf32, #tpu.memory_space<vmem>>, vector<1x1x48x16xf32>
    %58 = vector.shape_cast %57 : vector<1x1x48x16xf32> to vector<48x16xf32>
    %cst_57 = arith.constant dense<0.000000e+00> : vector<256x16xf32>
    %59 = tpu.matmul %56, %58, %cst_57 {dimension_numbers = #tpu.dot_dimension_numbers<[1], [0], [0], [1], [0, 0, 1, 1], [], []>} : vector<256x48xf32>, vector<48x16xf32>, vector<256x16xf32> -> vector<256x16xf32>
    %60 = arith.addf %54, %59 : vector<256x16xf32>
    %61 = vector.extract_strided_slice %53 {offsets = [1, 0, 0], sizes = [16, 16, 48], strides = [1, 1, 1]} : vector<18x16x48xf32> to vector<16x16x48xf32>
    %62 = vector.shape_cast %61 : vector<16x16x48xf32> to vector<256x48xf32>
    %c1_58 = arith.constant 1 : index
    %c1_59 = arith.constant 1 : index
    %c0_60 = arith.constant 0 : index
    %c0_61 = arith.constant 0 : index
    %63 = vector.load %arg2[%c1_58, %c1_59, %c0_60, %c0_61] : memref<4x3x48x16xf32, #tpu.memory_space<vmem>>, vector<1x1x48x16xf32>
    %64 = vector.shape_cast %63 : vector<1x1x48x16xf32> to vector<48x16xf32>
    %cst_62 = arith.constant dense<0.000000e+00> : vector<256x16xf32>
    %65 = tpu.matmul %62, %64, %cst_62 {dimension_numbers = #tpu.dot_dimension_numbers<[1], [0], [0], [1], [0, 0, 1, 1], [], []>} : vector<256x48xf32>, vector<48x16xf32>, vector<256x16xf32> -> vector<256x16xf32>
    %66 = arith.addf %60, %65 : vector<256x16xf32>
    %67 = vector.extract_strided_slice %53 {offsets = [2, 0, 0], sizes = [16, 16, 48], strides = [1, 1, 1]} : vector<18x16x48xf32> to vector<16x16x48xf32>
    %68 = vector.shape_cast %67 : vector<16x16x48xf32> to vector<256x48xf32>
    %c1_63 = arith.constant 1 : index
    %c2_64 = arith.constant 2 : index
    %c0_65 = arith.constant 0 : index
    %c0_66 = arith.constant 0 : index
    %69 = vector.load %arg2[%c1_63, %c2_64, %c0_65, %c0_66] : memref<4x3x48x16xf32, #tpu.memory_space<vmem>>, vector<1x1x48x16xf32>
    %70 = vector.shape_cast %69 : vector<1x1x48x16xf32> to vector<48x16xf32>
    %cst_67 = arith.constant dense<0.000000e+00> : vector<256x16xf32>
    %71 = tpu.matmul %68, %70, %cst_67 {dimension_numbers = #tpu.dot_dimension_numbers<[1], [0], [0], [1], [0, 0, 1, 1], [], []>} : vector<256x48xf32>, vector<48x16xf32>, vector<256x16xf32> -> vector<256x16xf32>
    %72 = arith.addf %66, %71 : vector<256x16xf32>
    %c1_68 = arith.constant 1 : index
    %c0_69 = arith.constant 0 : index
    %c0_70 = arith.constant 0 : index
    %73 = vector.load %arg3[%c1_68, %c0_69, %c0_70] : memref<4x1x16xf32, #tpu.memory_space<vmem>>, vector<1x1x16xf32>
    %74 = vector.shape_cast %73 : vector<1x1x16xf32> to vector<1x16xf32>
    %75 = vector.broadcast %74 : vector<1x16xf32> to vector<256x16xf32>
    %76 = arith.addf %72, %75 : vector<256x16xf32>
    %cst_71 = arith.constant 0.000000e+00 : f32
    %77 = vector.broadcast %cst_71 : f32 to vector<256x16xf32>
    %78 = arith.maximumf %76, %77 : vector<256x16xf32>
    %79 = vector.shape_cast %78 : vector<256x16xf32> to vector<16x16x16xf32>
    %c1_72 = arith.constant 1 : index
    %c1_73 = arith.constant 1 : index
    %c0_74 = arith.constant 0 : index
    %80 = vector.load %arg9[%c1_72, %c1_73, %c0_74] : memref<18x18x16xf32, #tpu.memory_space<vmem>>, vector<16x16x16xf32>
    tpu.vector_store %arg9[%c1_72, %c1_73, %c0_74], %79 {strides = array<i32>} : memref<18x18x16xf32, #tpu.memory_space<vmem>>, vector<16x16x16xf32>,
    %c0_75 = arith.constant 0 : index
    %c0_76 = arith.constant 0 : index
    %c0_77 = arith.constant 0 : index
    %81 = vector.load %arg9[%c0_75, %c0_76, %c0_77] : memref<18x18x16xf32, #tpu.memory_space<vmem>>, vector<18x18x16xf32>
    %82 = vector.extract_strided_slice %81 {offsets = [0, 0, 0], sizes = [18, 16, 16], strides = [1, 1, 1]} : vector<18x18x16xf32> to vector<18x16x16xf32>
    %83 = vector.extract_strided_slice %81 {offsets = [0, 1, 0], sizes = [18, 16, 16], strides = [1, 1, 1]} : vector<18x18x16xf32> to vector<18x16x16xf32>
    %84 = vector.extract_strided_slice %81 {offsets = [0, 2, 0], sizes = [18, 16, 16], strides = [1, 1, 1]} : vector<18x18x16xf32> to vector<18x16x16xf32>
    %85 = tpu.concatenate %82, %83, %84 in 2 : vector<18x16x16xf32>, vector<18x16x16xf32>, vector<18x16x16xf32> -> vector<18x16x48xf32>
    %cst_78 = arith.constant 0.000000e+00 : f32
    %86 = vector.broadcast %cst_78 : f32 to vector<256x16xf32>
    %87 = vector.extract_strided_slice %85 {offsets = [0, 0, 0], sizes = [16, 16, 48], strides = [1, 1, 1]} : vector<18x16x48xf32> to vector<16x16x48xf32>
    %88 = vector.shape_cast %87 : vector<16x16x48xf32> to vector<256x48xf32>
    %c2_79 = arith.constant 2 : index
    %c0_80 = arith.constant 0 : index
    %c0_81 = arith.constant 0 : index
    %c0_82 = arith.constant 0 : index
    %89 = vector.load %arg2[%c2_79, %c0_80, %c0_81, %c0_82] : memref<4x3x48x16xf32, #tpu.memory_space<vmem>>, vector<1x1x48x16xf32>
    %90 = vector.shape_cast %89 : vector<1x1x48x16xf32> to vector<48x16xf32>
    %cst_83 = arith.constant dense<0.000000e+00> : vector<256x16xf32>
    %91 = tpu.matmul %88, %90, %cst_83 {dimension_numbers = #tpu.dot_dimension_numbers<[1], [0], [0], [1], [0, 0, 1, 1], [], []>} : vector<256x48xf32>, vector<48x16xf32>, vector<256x16xf32> -> vector<256x16xf32>
    %92 = arith.addf %86, %91 : vector<256x16xf32>
    %93 = vector.extract_strided_slice %85 {offsets = [1, 0, 0], sizes = [16, 16, 48], strides = [1, 1, 1]} : vector<18x16x48xf32> to vector<16x16x48xf32>
    %94 = vector.shape_cast %93 : vector<16x16x48xf32> to vector<256x48xf32>
    %c2_84 = arith.constant 2 : index
    %c1_85 = arith.constant 1 : index
    %c0_86 = arith.constant 0 : index
    %c0_87 = arith.constant 0 : index
    %95 = vector.load %arg2[%c2_84, %c1_85, %c0_86, %c0_87] : memref<4x3x48x16xf32, #tpu.memory_space<vmem>>, vector<1x1x48x16xf32>
    %96 = vector.shape_cast %95 : vector<1x1x48x16xf32> to vector<48x16xf32>
    %cst_88 = arith.constant dense<0.000000e+00> : vector<256x16xf32>
    %97 = tpu.matmul %94, %96, %cst_88 {dimension_numbers = #tpu.dot_dimension_numbers<[1], [0], [0], [1], [0, 0, 1, 1], [], []>} : vector<256x48xf32>, vector<48x16xf32>, vector<256x16xf32> -> vector<256x16xf32>
    %98 = arith.addf %92, %97 : vector<256x16xf32>
    %99 = vector.extract_strided_slice %85 {offsets = [2, 0, 0], sizes = [16, 16, 48], strides = [1, 1, 1]} : vector<18x16x48xf32> to vector<16x16x48xf32>
    %100 = vector.shape_cast %99 : vector<16x16x48xf32> to vector<256x48xf32>
    %c2_89 = arith.constant 2 : index
    %c2_90 = arith.constant 2 : index
    %c0_91 = arith.constant 0 : index
    %c0_92 = arith.constant 0 : index
    %101 = vector.load %arg2[%c2_89, %c2_90, %c0_91, %c0_92] : memref<4x3x48x16xf32, #tpu.memory_space<vmem>>, vector<1x1x48x16xf32>
    %102 = vector.shape_cast %101 : vector<1x1x48x16xf32> to vector<48x16xf32>
    %cst_93 = arith.constant dense<0.000000e+00> : vector<256x16xf32>
    %103 = tpu.matmul %100, %102, %cst_93 {dimension_numbers = #tpu.dot_dimension_numbers<[1], [0], [0], [1], [0, 0, 1, 1], [], []>} : vector<256x48xf32>, vector<48x16xf32>, vector<256x16xf32> -> vector<256x16xf32>
    %104 = arith.addf %98, %103 : vector<256x16xf32>
    %c2_94 = arith.constant 2 : index
    %c0_95 = arith.constant 0 : index
    %c0_96 = arith.constant 0 : index
    %105 = vector.load %arg3[%c2_94, %c0_95, %c0_96] : memref<4x1x16xf32, #tpu.memory_space<vmem>>, vector<1x1x16xf32>
    %106 = vector.shape_cast %105 : vector<1x1x16xf32> to vector<1x16xf32>
    %107 = vector.broadcast %106 : vector<1x16xf32> to vector<256x16xf32>
    %108 = arith.addf %104, %107 : vector<256x16xf32>
    %cst_97 = arith.constant 0.000000e+00 : f32
    %109 = vector.broadcast %cst_97 : f32 to vector<256x16xf32>
    %110 = arith.maximumf %108, %109 : vector<256x16xf32>
    %111 = vector.shape_cast %110 : vector<256x16xf32> to vector<16x16x16xf32>
    %c1_98 = arith.constant 1 : index
    %c1_99 = arith.constant 1 : index
    %c0_100 = arith.constant 0 : index
    %112 = vector.load %arg8[%c1_98, %c1_99, %c0_100] : memref<18x18x16xf32, #tpu.memory_space<vmem>>, vector<16x16x16xf32>
    tpu.vector_store %arg8[%c1_98, %c1_99, %c0_100], %111 {strides = array<i32>} : memref<18x18x16xf32, #tpu.memory_space<vmem>>, vector<16x16x16xf32>,
    %c0_101 = arith.constant 0 : index
    %c0_102 = arith.constant 0 : index
    %c0_103 = arith.constant 0 : index
    %113 = vector.load %arg8[%c0_101, %c0_102, %c0_103] : memref<18x18x16xf32, #tpu.memory_space<vmem>>, vector<18x18x16xf32>
    %114 = vector.extract_strided_slice %113 {offsets = [0, 0, 0], sizes = [18, 16, 16], strides = [1, 1, 1]} : vector<18x18x16xf32> to vector<18x16x16xf32>
    %115 = vector.extract_strided_slice %113 {offsets = [0, 1, 0], sizes = [18, 16, 16], strides = [1, 1, 1]} : vector<18x18x16xf32> to vector<18x16x16xf32>
    %116 = vector.extract_strided_slice %113 {offsets = [0, 2, 0], sizes = [18, 16, 16], strides = [1, 1, 1]} : vector<18x18x16xf32> to vector<18x16x16xf32>
    %117 = tpu.concatenate %114, %115, %116 in 2 : vector<18x16x16xf32>, vector<18x16x16xf32>, vector<18x16x16xf32> -> vector<18x16x48xf32>
    %cst_104 = arith.constant 0.000000e+00 : f32
    %118 = vector.broadcast %cst_104 : f32 to vector<256x16xf32>
    %119 = vector.extract_strided_slice %117 {offsets = [0, 0, 0], sizes = [16, 16, 48], strides = [1, 1, 1]} : vector<18x16x48xf32> to vector<16x16x48xf32>
    %120 = vector.shape_cast %119 : vector<16x16x48xf32> to vector<256x48xf32>
    %c3 = arith.constant 3 : index
    %c0_105 = arith.constant 0 : index
    %c0_106 = arith.constant 0 : index
    %c0_107 = arith.constant 0 : index
    %121 = vector.load %arg2[%c3, %c0_105, %c0_106, %c0_107] : memref<4x3x48x16xf32, #tpu.memory_space<vmem>>, vector<1x1x48x16xf32>
    %122 = vector.shape_cast %121 : vector<1x1x48x16xf32> to vector<48x16xf32>
    %cst_108 = arith.constant dense<0.000000e+00> : vector<256x16xf32>
    %123 = tpu.matmul %120, %122, %cst_108 {dimension_numbers = #tpu.dot_dimension_numbers<[1], [0], [0], [1], [0, 0, 1, 1], [], []>} : vector<256x48xf32>, vector<48x16xf32>, vector<256x16xf32> -> vector<256x16xf32>
    %124 = arith.addf %118, %123 : vector<256x16xf32>
    %125 = vector.extract_strided_slice %117 {offsets = [1, 0, 0], sizes = [16, 16, 48], strides = [1, 1, 1]} : vector<18x16x48xf32> to vector<16x16x48xf32>
    %126 = vector.shape_cast %125 : vector<16x16x48xf32> to vector<256x48xf32>
    %c3_109 = arith.constant 3 : index
    %c1_110 = arith.constant 1 : index
    %c0_111 = arith.constant 0 : index
    %c0_112 = arith.constant 0 : index
    %127 = vector.load %arg2[%c3_109, %c1_110, %c0_111, %c0_112] : memref<4x3x48x16xf32, #tpu.memory_space<vmem>>, vector<1x1x48x16xf32>
    %128 = vector.shape_cast %127 : vector<1x1x48x16xf32> to vector<48x16xf32>
    %cst_113 = arith.constant dense<0.000000e+00> : vector<256x16xf32>
    %129 = tpu.matmul %126, %128, %cst_113 {dimension_numbers = #tpu.dot_dimension_numbers<[1], [0], [0], [1], [0, 0, 1, 1], [], []>} : vector<256x48xf32>, vector<48x16xf32>, vector<256x16xf32> -> vector<256x16xf32>
    %130 = arith.addf %124, %129 : vector<256x16xf32>
    %131 = vector.extract_strided_slice %117 {offsets = [2, 0, 0], sizes = [16, 16, 48], strides = [1, 1, 1]} : vector<18x16x48xf32> to vector<16x16x48xf32>
    %132 = vector.shape_cast %131 : vector<16x16x48xf32> to vector<256x48xf32>
    %c3_114 = arith.constant 3 : index
    %c2_115 = arith.constant 2 : index
    %c0_116 = arith.constant 0 : index
    %c0_117 = arith.constant 0 : index
    %133 = vector.load %arg2[%c3_114, %c2_115, %c0_116, %c0_117] : memref<4x3x48x16xf32, #tpu.memory_space<vmem>>, vector<1x1x48x16xf32>
    %134 = vector.shape_cast %133 : vector<1x1x48x16xf32> to vector<48x16xf32>
    %cst_118 = arith.constant dense<0.000000e+00> : vector<256x16xf32>
    %135 = tpu.matmul %132, %134, %cst_118 {dimension_numbers = #tpu.dot_dimension_numbers<[1], [0], [0], [1], [0, 0, 1, 1], [], []>} : vector<256x48xf32>, vector<48x16xf32>, vector<256x16xf32> -> vector<256x16xf32>
    %136 = arith.addf %130, %135 : vector<256x16xf32>
    %c3_119 = arith.constant 3 : index
    %c0_120 = arith.constant 0 : index
    %c0_121 = arith.constant 0 : index
    %137 = vector.load %arg3[%c3_119, %c0_120, %c0_121] : memref<4x1x16xf32, #tpu.memory_space<vmem>>, vector<1x1x16xf32>
    %138 = vector.shape_cast %137 : vector<1x1x16xf32> to vector<1x16xf32>
    %139 = vector.broadcast %138 : vector<1x16xf32> to vector<256x16xf32>
    %140 = arith.addf %136, %139 : vector<256x16xf32>
    %c1_122 = arith.constant 1 : index
    %c1_123 = arith.constant 1 : index
    %c0_124 = arith.constant 0 : index
    %141 = vector.load %arg7[%c1_122, %c1_123, %c0_124] : memref<18x18x16xf32, #tpu.memory_space<vmem>>, vector<16x16x16xf32>
    %142 = vector.shape_cast %141 : vector<16x16x16xf32> to vector<256x16xf32>
    %143 = arith.addf %140, %142 : vector<256x16xf32>
    %c0_125 = arith.constant 0 : index
    %c0_126 = arith.constant 0 : index
    %c0_127 = arith.constant 0 : index
    %144 = vector.load %arg5[%c0_125, %c0_126, %c0_127] : memref<2x1x16xf32, #tpu.memory_space<vmem>>, vector<1x1x16xf32>
    %145 = vector.shape_cast %144 : vector<1x1x16xf32> to vector<1x16xf32>
    %146 = vector.broadcast %145 : vector<1x16xf32> to vector<256x16xf32>
    %147 = arith.mulf %143, %146 : vector<256x16xf32>
    %c1_128 = arith.constant 1 : index
    %c0_129 = arith.constant 0 : index
    %c0_130 = arith.constant 0 : index
    %148 = vector.load %arg5[%c1_128, %c0_129, %c0_130] : memref<2x1x16xf32, #tpu.memory_space<vmem>>, vector<1x1x16xf32>
    %149 = vector.shape_cast %148 : vector<1x1x16xf32> to vector<1x16xf32>
    %150 = vector.broadcast %149 : vector<1x16xf32> to vector<256x16xf32>
    %151 = arith.addf %147, %150 : vector<256x16xf32>
    %152 = vector.extract_strided_slice %151 {offsets = [0, 0], sizes = [256, 3], strides = [1, 1]} : vector<256x16xf32> to vector<256x3xf32>
    %153 = vector.shape_cast %152 : vector<256x3xf32> to vector<16x16x3xf32>
    %c0_131 = arith.constant 0 : index
    %c0_132 = arith.constant 0 : index
    %c0_133 = arith.constant 0 : index
    %c0_134 = arith.constant 0 : index
    %154 = vector.load %arg6[%c0_131, %c0_132, %c0_133, %c0_134] : memref<1x16x16x3xf32, #tpu.memory_space<vmem>>, vector<1x16x16x3xf32>
    %155 = vector.shape_cast %154 : vector<1x16x16x3xf32> to vector<16x16x3xf32>
    %156 = vector.shape_cast %153 : vector<16x16x3xf32> to vector<1x16x16x3xf32>
    tpu.vector_store %arg6[%c0_131, %c0_132, %c0_133, %c0_134], %156 {strides = array<i32>} : memref<1x16x16x3xf32, #tpu.memory_space<vmem>>, vector<1x16x16x3xf32>,
    return
  }
  func.func @transform_0(%arg0: i32) -> (i32, i32, i32, i32) {
    %c0_i32 = arith.constant 0 : i32
    %c0_i32_0 = arith.constant 0 : i32
    %c0_i32_1 = arith.constant 0 : i32
    %c0_i32_2 = arith.constant 0 : i32
    return %arg0, %c0_i32, %c0_i32_0, %c0_i32_1 : i32, i32, i32, i32
  }
  func.func @transform_1(%arg0: i32) -> (i32, i32, i32, i32) {
    %c0_i32 = arith.constant 0 : i32
    %c0_i32_0 = arith.constant 0 : i32
    %c0_i32_1 = arith.constant 0 : i32
    %c0_i32_2 = arith.constant 0 : i32
    %c0_i32_3 = arith.constant 0 : i32
    return %c0_i32, %c0_i32_0, %c0_i32_1, %c0_i32_2 : i32, i32, i32, i32
  }
  func.func @transform_2(%arg0: i32) -> (i32, i32, i32) {
    %c0_i32 = arith.constant 0 : i32
    %c0_i32_0 = arith.constant 0 : i32
    %c0_i32_1 = arith.constant 0 : i32
    %c0_i32_2 = arith.constant 0 : i32
    return %c0_i32, %c0_i32_0, %c0_i32_1 : i32, i32, i32
  }
  func.func @transform_3(%arg0: i32) -> (i32, i32, i32, i32) {
    %c0_i32 = arith.constant 0 : i32
    %c0_i32_0 = arith.constant 0 : i32
    %c0_i32_1 = arith.constant 0 : i32
    %c0_i32_2 = arith.constant 0 : i32
    %c0_i32_3 = arith.constant 0 : i32
    return %c0_i32, %c0_i32_0, %c0_i32_1, %c0_i32_2 : i32, i32, i32, i32
  }
  func.func @transform_4(%arg0: i32) -> (i32, i32, i32) {
    %c0_i32 = arith.constant 0 : i32
    %c0_i32_0 = arith.constant 0 : i32
    %c0_i32_1 = arith.constant 0 : i32
    %c0_i32_2 = arith.constant 0 : i32
    return %c0_i32, %c0_i32_0, %c0_i32_1 : i32, i32, i32
  }
  func.func @transform_5(%arg0: i32) -> (i32, i32, i32, i32) {
    %c0_i32 = arith.constant 0 : i32
    %c0_i32_0 = arith.constant 0 : i32
    %c0_i32_1 = arith.constant 0 : i32
    %c0_i32_2 = arith.constant 0 : i32
    return %arg0, %c0_i32, %c0_i32_0, %c0_i32_1 : i32, i32, i32, i32
  }
}

</mosaic_0001>

<llo_original>
// kernel: _lambda_.1
$region0: #{_lambda_.1}
  #allocation0 [shape = 'u32[]', space=smem, size = 0x4, offset = 0x4, fixed_abs, tag = 'smem constant byte address 0x4 - core index']
  #allocation1 [shape = 'u32[144,128]{1,0:T(1,128)}', space=vmem, size = 0x12000, scoped, tag = 'internal scratch']
  #allocation2 [shape = 'f32[18,18,16]{2,1,0:T(8,128)}', space=vmem, size = 0x36000, scoped, tag = 'scratch operand']
  #allocation3 [shape = 'f32[18,18,16]{2,1,0:T(8,128)}', space=vmem, size = 0x36000, scoped, tag = 'scratch operand']
  #allocation4 [shape = 'f32[18,18,16]{2,1,0:T(8,128)}', space=vmem, size = 0x36000, scoped, tag = 'scratch operand']
  %s0 = inlined_call_operand.vmem [shape: f32[2,16,16,16], index: 0, kind: input, shape index: {}]
  %s1 = inlined_call_operand.vmem [shape: f32[4,3,48,16], index: 1, kind: input, shape index: {}]
  %s2 = inlined_call_operand.vmem [shape: f32[4,1,16], index: 2, kind: input, shape index: {}]
  %s3 = inlined_call_operand.vmem [shape: f32[2,1,1,16], index: 3, kind: input, shape index: {}]
  %s4 = inlined_call_operand.vmem [shape: f32[2,1,16], index: 4, kind: input, shape index: {}]
  %s5 = inlined_call_operand.vmem [shape: f32[2,16,16,3], index: 5, kind: output, shape index: {}]
  %s6 = sld [smem:[#allocation0]]
  $region53: #{_lambda_.1} parent=0
    _
  %s8 = ssub.s32 1, %s6
  %s9 = scalar_select 0, %s8, %s6
  loop: start=0, step=1, limit=4
  $region2: #{_lambda_.1} parent=0 // loop_pre_header
    _
  $region3: #{_lambda_.1} parent=0 // loop_header
    %s11 = sphi 0, %s15
    %p12 = scmp.ge.s32.totalorder %s11, 4
    %s21 = sphi 0, %s23
    %s24 = sphi 0, %s21
    %s25 = sphi 0, %s24
    %s41 = sphi 0, %s25
    %s45 = sphi 0, %s45
    %s47 = sphi 0, %s45
    %s48 = sphi 0, %s47
    %s62 = sphi 0, %s48
    %s66 = sphi 0, %s66
    %s68 = sphi 0, %s66
    %s69 = sphi 0, %s68
    %s83 = sphi 0, %s69
    %s87 = sphi 0, %s87
    %s89 = sphi 0, %s87
    %s90 = sphi 0, %s89
    %s104 = sphi 0, %s90
    %s108 = sphi 0, %s108
    %s110 = sphi 0, %s108
    %s111 = sphi 0, %s110
    %s125 = sphi 0, %s111
    %s131 = sphi 0, %s133
    %s134 = sphi 0, %s131
    %s135 = sphi 0, %s134
    %s151 = sphi 0, %s135
  $region4: #{_lambda_.1} parent=0 // loop_header_branch
    %14 = sbr.rel (%p12) target = $region8
  $region5: #{_lambda_.1} parent=0 // loop_body
    %s16 = ssub.s32 %s11, 1
    %s17 = ssub.s32 %s11, 2
    %s18 = sadd.s32 %s11, 1
    %s19 = ssub.s32 %s11, %s18
    %p20 = scmp.eq.s32.totalorder %s19, 0
    %s22 = sadd.s32 %s21, 1
    %s23 = scalar_select %p20, %s21, %s22
    %p26 = pneg %p20
    %p27 = scmp.eq.s32.totalorder %s11, 1
    %p28 = por %p26, %p27
    %p29 = scmp.ne.s32.totalorder %s21, %s24
    %p30 = scmp.eq.s32.totalorder %s11, 0
    %p31 = por %p29, %p30
    %p32 = scmp.ne.s32.totalorder %s21, %s24
    %p33 = scmp.eq.s32.totalorder %s16, 1
    %p34 = por %p32, %p33
    %p35 = scmp.ne.s32.totalorder %s24, %s25
    %p36 = scmp.eq.s32.totalorder %s16, 0
    %p37 = por %p35, %p36
    %p38 = scmp.ne.s32.totalorder %s24, %s25
    %p39 = scmp.eq.s32.totalorder %s17, 1
    %p40 = por %p38, %p39
    %p42 = scmp.ne.s32.totalorder %s25, %s41
    %p43 = scmp.eq.s32.totalorder %s17, 0
    %p44 = por %p42, %p43
    %s46 = sadd.s32 %s45, 1
    %p49 = scmp.eq.s32.totalorder %s11, 1
    %p50 = scmp.ne.s32.totalorder %s45, %s47
    %p51 = scmp.eq.s32.totalorder %s11, 0
    %p52 = por %p50, %p51
    %p53 = scmp.ne.s32.totalorder %s45, %s47
    %p54 = scmp.eq.s32.totalorder %s16, 1
    %p55 = por %p53, %p54
    %p56 = scmp.ne.s32.totalorder %s47, %s48
    %p57 = scmp.eq.s32.totalorder %s16, 0
    %p58 = por %p56, %p57
    %p59 = scmp.ne.s32.totalorder %s47, %s48
    %p60 = scmp.eq.s32.totalorder %s17, 1
    %p61 = por %p59, %p60
    %p63 = scmp.ne.s32.totalorder %s48, %s62
    %p64 = scmp.eq.s32.totalorder %s17, 0
    %p65 = por %p63, %p64
    %s67 = sadd.s32 %s66, 1
    %p70 = scmp.eq.s32.totalorder %s11, 1
    %p71 = scmp.ne.s32.totalorder %s66, %s68
    %p72 = scmp.eq.s32.totalorder %s11, 0
    %p73 = por %p71, %p72
    %p74 = scmp.ne.s32.totalorder %s66, %s68
    %p75 = scmp.eq.s32.totalorder %s16, 1
    %p76 = por %p74, %p75
    %p77 = scmp.ne.s32.totalorder %s68, %s69
    %p78 = scmp.eq.s32.totalorder %s16, 0
    %p79 = por %p77, %p78
    %p80 = scmp.ne.s32.totalorder %s68, %s69
    %p81 = scmp.eq.s32.totalorder %s17, 1
    %p82 = por %p80, %p81
    %p84 = scmp.ne.s32.totalorder %s69, %s83
    %p85 = scmp.eq.s32.totalorder %s17, 0
    %p86 = por %p84, %p85
    %s88 = sadd.s32 %s87, 1
    %p91 = scmp.eq.s32.totalorder %s11, 1
    %p92 = scmp.ne.s32.totalorder %s87, %s89
    %p93 = scmp.eq.s32.totalorder %s11, 0
    %p94 = por %p92, %p93
    %p95 = scmp.ne.s32.totalorder %s87, %s89
    %p96 = scmp.eq.s32.totalorder %s16, 1
    %p97 = por %p95, %p96
    %p98 = scmp.ne.s32.totalorder %s89, %s90
    %p99 = scmp.eq.s32.totalorder %s16, 0
    %p100 = por %p98, %p99
    %p101 = scmp.ne.s32.totalorder %s89, %s90
    %p102 = scmp.eq.s32.totalorder %s17, 1
    %p103 = por %p101, %p102
    %p105 = scmp.ne.s32.totalorder %s90, %s104
    %p106 = scmp.eq.s32.totalorder %s17, 0
    %p107 = por %p105, %p106
    %s109 = sadd.s32 %s108, 1
    %p112 = scmp.eq.s32.totalorder %s11, 1
    %p113 = scmp.ne.s32.totalorder %s108, %s110
    %p114 = scmp.eq.s32.totalorder %s11, 0
    %p115 = por %p113, %p114
    %p116 = scmp.ne.s32.totalorder %s108, %s110
    %p117 = scmp.eq.s32.totalorder %s16, 1
    %p118 = por %p116, %p117
    %p119 = scmp.ne.s32.totalorder %s110, %s111
    %p120 = scmp.eq.s32.totalorder %s16, 0
    %p121 = por %p119, %p120
    %p122 = scmp.ne.s32.totalorder %s110, %s111
    %p123 = scmp.eq.s32.totalorder %s17, 1
    %p124 = por %p122, %p123
    %p126 = scmp.ne.s32.totalorder %s111, %s125
    %p127 = scmp.eq.s32.totalorder %s17, 0
    %p128 = por %p126, %p127
    %s129 = ssub.s32 %s11, %s18
    %p130 = scmp.eq.s32.totalorder %s129, 0
    %s132 = sadd.s32 %s131, 1
    %s133 = scalar_select %p130, %s131, %s132
    %p136 = pneg %p130
    %p137 = scmp.eq.s32.totalorder %s11, 1
    %p138 = por %p136, %p137
    %p139 = scmp.ne.s32.totalorder %s131, %s134
    %p140 = scmp.eq.s32.totalorder %s11, 0
    %p141 = por %p139, %p140
    %p142 = scmp.ne.s32.totalorder %s131, %s134
    %p143 = scmp.eq.s32.totalorder %s16, 1
    %p144 = por %p142, %p143
    %p145 = scmp.ne.s32.totalorder %s134, %s135
    %p146 = scmp.eq.s32.totalorder %s16, 0
    %p147 = por %p145, %p146
    %p148 = scmp.ne.s32.totalorder %s134, %s135
    %p149 = scmp.eq.s32.totalorder %s17, 1
    %p150 = por %p148, %p149
    %p152 = scmp.ne.s32.totalorder %s135, %s151
    %p153 = scmp.eq.s32.totalorder %s17, 0
    %p154 = por %p152, %p153
    %p155 = scmp.le.s32.totalorder 1, %s11
    %p156 = scmp.lt.s32.totalorder %s11, 3
    %p157 = pnand %p155, %p156
    %p158 = pneg %p157
    // Predicated region
    $region9: #{_lambda_.1} parent=5 // pred_check
      _
    $region10: #{_lambda_.1} parent=5 // pred_check_branch
      %160 = sbr.rel (%p157) target = $region12
    $region11: #{_lambda_.1} parent=5 // pred_region
      %s161 = ssub.s32 %s11, 1
      // Predicated region
      $region13: #{_lambda_.1} parent=11 // pred_check
        %p162 = pneg %p58
      $region14: #{_lambda_.1} parent=11 // pred_check_branch
        %164 = sbr.rel (%p162) target = $region16
      $region15: #{_lambda_.1} parent=11 // pred_region
        _
      $region16: #{_lambda_.1} parent=11 // pred_fallthru
        _
      // Predicated region
      $region17: #{_lambda_.1} parent=11 // pred_check
        %p165 = pneg %p79
      $region18: #{_lambda_.1} parent=11 // pred_check_branch
        %167 = sbr.rel (%p165) target = $region20
      $region19: #{_lambda_.1} parent=11 // pred_region
        _
      $region20: #{_lambda_.1} parent=11 // pred_fallthru
        _
      // Predicated region
      $region21: #{_lambda_.1} parent=11 // pred_check
        %p168 = pneg %p100
      $region22: #{_lambda_.1} parent=11 // pred_check_branch
        %170 = sbr.rel (%p168) target = $region24
      $region23: #{_lambda_.1} parent=11 // pred_region
        _
      $region24: #{_lambda_.1} parent=11 // pred_fallthru
        _
      // Predicated region
      $region25: #{_lambda_.1} parent=11 // pred_check
        %p171 = pneg %p121
      $region26: #{_lambda_.1} parent=11 // pred_check_branch
        %173 = sbr.rel (%p171) target = $region28
      $region27: #{_lambda_.1} parent=11 // pred_region
        _
      $region28: #{_lambda_.1} parent=11 // pred_fallthru
        _
    $region12: #{_lambda_.1} parent=5 // pred_fallthru
      _
    %p174 = scmp.lt.s32.totalorder %s11, 2
    // Predicated region
    $region29: #{_lambda_.1} parent=5 // pred_check
      %p175 = pneg %p174
    $region30: #{_lambda_.1} parent=5 // pred_check_branch
      %177 = sbr.rel (%p175) target = $region32
    $region31: #{_lambda_.1} parent=5 // pred_region
      // Predicated region
      $region33: #{_lambda_.1} parent=31 // pred_check
        %p178 = pneg %p31
      $region34: #{_lambda_.1} parent=31 // pred_check_branch
        %180 = sbr.rel (%p178) target = $region36
      $region35: #{_lambda_.1} parent=31 // pred_region
        %p181 = scmp.lt.s32.totalorder %s11, 1
        %s182 = scalar_select %p181, %s11, 1
        %s183 = smul.addr %s182, 32
        %s184 = smul.addr %s183, 8
        %s185 = scalar_lea.vmem %s0, %s184
      $region36: #{_lambda_.1} parent=31 // pred_fallthru
        _
    $region32: #{_lambda_.1} parent=5 // pred_fallthru
      _
    %p186 = scmp.le.s32.totalorder 1, %s11
    %p187 = scmp.lt.s32.totalorder %s11, 3
    %p188 = pnand %p186, %p187
    %p189 = pneg %p188
    // Predicated region
    $region37: #{_lambda_.1} parent=5 // pred_check
      _
    $region38: #{_lambda_.1} parent=5 // pred_check_branch
      %191 = sbr.rel (%p188) target = $region40
    $region39: #{_lambda_.1} parent=5 // pred_region
      %s192 = ssub.s32 %s11, 1
      %p193 = scmp.lt.s32.totalorder %s16, 1
      %s194 = scalar_select %p193, %s16, 1
      %s195 = smul.addr %s194, 32
      %s196 = smul.addr %s195, 8
      %s197 = scalar_lea.vmem %s0, %s196
      %p198 = pneg %p37
      %p199 = pneg %p34
      %p200 = pneg %p58
      %p201 = pneg %p55
      %p202 = pneg %p79
      %p203 = pneg %p76
      %p204 = pneg %p100
      %p205 = pneg %p97
      %p206 = pneg %p121
      %p207 = pneg %p118
      %p208 = pneg %p147
      %p209 = pneg %p144
      %p210 = scmp.lt.s32.totalorder %s16, 1
      %s211 = scalar_select %p210, %s16, 1
      %s212 = smul.addr %s211, 32
      %s213 = smul.addr %s212, 8
      %s214 = scalar_lea.vmem %s5, %s213
      %p215 = scmp.lt.s32.totalorder %s16, 1
      %s216 = scalar_select %p215, %s16, 1
      %s217 = smul.addr %s216, 32
      %s218 = smul.addr %s217, 8
      %s219 = scalar_lea.vmem %s0, %s218
      %p220 = scmp.lt.s32.totalorder %s16, 1
      %s221 = scalar_select %p220, %s16, 1
      %s222 = smul.addr %s221, 32
      %s223 = smul.addr %s222, 8
      %s224 = scalar_lea.vmem %s5, %s223
      %vm225 = vcmask 130048
      %226 = vst.msk [vmem:[#allocation2] sm:$0xff] %vm225, 0.0
      %227 = vst.msk [vmem:[#allocation2 + $0x8] sm:$0xff] %vm225, 0.0
      %vm228 = vcmask 123904
      %229 = vst.msk [vmem:[#allocation2 + $0x10] sm:$0x3] %vm228, 0.0
      %230 = vst.msk [vmem:[#allocation2 + $0x18] sm:$0xff] %vm225, 0.0
      %231 = vst.msk [vmem:[#allocation2 + $0x20] sm:$0xff] %vm225, 0.0
      %232 = vst.msk [vmem:[#allocation2 + $0x28] sm:$0x3] %vm228, 0.0
      %233 = vst.msk [vmem:[#allocation2 + $0x30] sm:$0xff] %vm225, 0.0
      %234 = vst.msk [vmem:[#allocation2 + $0x38] sm:$0xff] %vm225, 0.0
      %235 = vst.msk [vmem:[#allocation2 + $0x40] sm:$0x3] %vm228, 0.0
      %236 = vst.msk [vmem:[#allocation2 + $0x48] sm:$0xff] %vm225, 0.0
      %237 = vst.msk [vmem:[#allocation2 + $0x50] sm:$0xff] %vm225, 0.0
      %238 = vst.msk [vmem:[#allocation2 + $0x58] sm:$0x3] %vm228, 0.0
      %239 = vst.msk [vmem:[#allocation2 + $0x60] sm:$0xff] %vm225, 0.0
      %240 = vst.msk [vmem:[#allocation2 + $0x68] sm:$0xff] %vm225, 0.0
      %241 = vst.msk [vmem:[#allocation2 + $0x70] sm:$0x3] %vm228, 0.0
      %242 = vst.msk [vmem:[#allocation2 + $0x78] sm:$0xff] %vm225, 0.0
      %243 = vst.msk [vmem:[#allocation2 + $0x80] sm:$0xff] %vm225, 0.0
      %244 = vst.msk [vmem:[#allocation2 + $0x88] sm:$0x3] %vm228, 0.0
      %245 = vst.msk [vmem:[#allocation2 + $0x90] sm:$0xff] %vm225, 0.0
      %246 = vst.msk [vmem:[#allocation2 + $0x98] sm:$0xff] %vm225, 0.0
      %247 = vst.msk [vmem:[#allocation2 + $0xa0] sm:$0x3] %vm228, 0.0
      %248 = vst.msk [vmem:[#allocation2 + $0xa8] sm:$0xff] %vm225, 0.0
      %249 = vst.msk [vmem:[#allocation2 + $0xb0] sm:$0xff] %vm225, 0.0
      %250 = vst.msk [vmem:[#allocation2 + $0xb8] sm:$0x3] %vm228, 0.0
      %251 = vst.msk [vmem:[#allocation2 + $0xc0] sm:$0xff] %vm225, 0.0
      %252 = vst.msk [vmem:[#allocation2 + $0xc8] sm:$0xff] %vm225, 0.0
      %253 = vst.msk [vmem:[#allocation2 + $0xd0] sm:$0x3] %vm228, 0.0
      %254 = vst.msk [vmem:[#allocation2 + $0xd8] sm:$0xff] %vm225, 0.0
      %255 = vst.msk [vmem:[#allocation2 + $0xe0] sm:$0xff] %vm225, 0.0
      %256 = vst.msk [vmem:[#allocation2 + $0xe8] sm:$0x3] %vm228, 0.0
      %257 = vst.msk [vmem:[#allocation2 + $0xf0] sm:$0xff] %vm225, 0.0
      %258 = vst.msk [vmem:[#allocation2 + $0xf8] sm:$0xff] %vm225, 0.0
      %259 = vst.msk [vmem:[#allocation2 + $0x100] sm:$0x3] %vm228, 0.0
      %260 = vst.msk [vmem:[#allocation2 + $0x108] sm:$0xff] %vm225, 0.0
      %261 = vst.msk [vmem:[#allocation2 + $0x110] sm:$0xff] %vm225, 0.0
      %262 = vst.msk [vmem:[#allocation2 + $0x118] sm:$0x3] %vm228, 0.0
      %263 = vst.msk [vmem:[#allocation2 + $0x120] sm:$0xff] %vm225, 0.0
      %264 = vst.msk [vmem:[#allocation2 + $0x128] sm:$0xff] %vm225, 0.0
      %265 = vst.msk [vmem:[#allocation2 + $0x130] sm:$0x3] %vm228, 0.0
      %266 = vst.msk [vmem:[#allocation2 + $0x138] sm:$0xff] %vm225, 0.0
      %267 = vst.msk [vmem:[#allocation2 + $0x140] sm:$0xff] %vm225, 0.0
      %268 = vst.msk [vmem:[#allocation2 + $0x148] sm:$0x3] %vm228, 0.0
      %269 = vst.msk [vmem:[#allocation2 + $0x150] sm:$0xff] %vm225, 0.0
      %270 = vst.msk [vmem:[#allocation2 + $0x158] sm:$0xff] %vm225, 0.0
      %271 = vst.msk [vmem:[#allocation2 + $0x160] sm:$0x3] %vm228, 0.0
      %272 = vst.msk [vmem:[#allocation2 + $0x168] sm:$0xff] %vm225, 0.0
      %273 = vst.msk [vmem:[#allocation2 + $0x170] sm:$0xff] %vm225, 0.0
      %274 = vst.msk [vmem:[#allocation2 + $0x178] sm:$0x3] %vm228, 0.0
      %275 = vst.msk [vmem:[#allocation2 + $0x180] sm:$0xff] %vm225, 0.0
      %276 = vst.msk [vmem:[#allocation2 + $0x188] sm:$0xff] %vm225, 0.0
      %277 = vst.msk [vmem:[#allocation2 + $0x190] sm:$0x3] %vm228, 0.0
      %278 = vst.msk [vmem:[#allocation2 + $0x198] sm:$0xff] %vm225, 0.0
      %279 = vst.msk [vmem:[#allocation2 + $0x1a0] sm:$0xff] %vm225, 0.0
      %280 = vst.msk [vmem:[#allocation2 + $0x1a8] sm:$0x3] %vm228, 0.0
      %281 = vst.msk [vmem:[#allocation3] sm:$0xff] %vm225, 0.0
      %282 = vst.msk [vmem:[#allocation3 + $0x8] sm:$0xff] %vm225, 0.0
      %283 = vst.msk [vmem:[#allocation3 + $0x10] sm:$0x3] %vm228, 0.0
      %284 = vst.msk [vmem:[#allocation3 + $0x18] sm:$0xff] %vm225, 0.0
      %285 = vst.msk [vmem:[#allocation3 + $0x20] sm:$0xff] %vm225, 0.0
      %286 = vst.msk [vmem:[#allocation3 + $0x28] sm:$0x3] %vm228, 0.0
      %287 = vst.msk [vmem:[#allocation3 + $0x30] sm:$0xff] %vm225, 0.0
      %288 = vst.msk [vmem:[#allocation3 + $0x38] sm:$0xff] %vm225, 0.0
      %289 = vst.msk [vmem:[#allocation3 + $0x40] sm:$0x3] %vm228, 0.0
      %290 = vst.msk [vmem:[#allocation3 + $0x48] sm:$0xff] %vm225, 0.0
      %291 = vst.msk [vmem:[#allocation3 + $0x50] sm:$0xff] %vm225, 0.0
      %292 = vst.msk [vmem:[#allocation3 + $0x58] sm:$0x3] %vm228, 0.0
      %293 = vst.msk [vmem:[#allocation3 + $0x60] sm:$0xff] %vm225, 0.0
      %294 = vst.msk [vmem:[#allocation3 + $0x68] sm:$0xff] %vm225, 0.0
      %295 = vst.msk [vmem:[#allocation3 + $0x70] sm:$0x3] %vm228, 0.0
      %296 = vst.msk [vmem:[#allocation3 + $0x78] sm:$0xff] %vm225, 0.0
      %297 = vst.msk [vmem:[#allocation3 + $0x80] sm:$0xff] %vm225, 0.0
      %298 = vst.msk [vmem:[#allocation3 + $0x88] sm:$0x3] %vm228, 0.0
      %299 = vst.msk [vmem:[#allocation3 + $0x90] sm:$0xff] %vm225, 0.0
      %300 = vst.msk [vmem:[#allocation3 + $0x98] sm:$0xff] %vm225, 0.0
      %301 = vst.msk [vmem:[#allocation3 + $0xa0] sm:$0x3] %vm228, 0.0
      %302 = vst.msk [vmem:[#allocation3 + $0xa8] sm:$0xff] %vm225, 0.0
      %303 = vst.msk [vmem:[#allocation3 + $0xb0] sm:$0xff] %vm225, 0.0
      %304 = vst.msk [vmem:[#allocation3 + $0xb8] sm:$0x3] %vm228, 0.0
      %305 = vst.msk [vmem:[#allocation3 + $0xc0] sm:$0xff] %vm225, 0.0
      %306 = vst.msk [vmem:[#allocation3 + $0xc8] sm:$0xff] %vm225, 0.0
      %307 = vst.msk [vmem:[#allocation3 + $0xd0] sm:$0x3] %vm228, 0.0
      %308 = vst.msk [vmem:[#allocation3 + $0xd8] sm:$0xff] %vm225, 0.0
      %309 = vst.msk [vmem:[#allocation3 + $0xe0] sm:$0xff] %vm225, 0.0
      %310 = vst.msk [vmem:[#allocation3 + $0xe8] sm:$0x3] %vm228, 0.0
      %311 = vst.msk [vmem:[#allocation3 + $0xf0] sm:$0xff] %vm225, 0.0
      %312 = vst.msk [vmem:[#allocation3 + $0xf8] sm:$0xff] %vm225, 0.0
      %313 = vst.msk [vmem:[#allocation3 + $0x100] sm:$0x3] %vm228, 0.0
      %314 = vst.msk [vmem:[#allocation3 + $0x108] sm:$0xff] %vm225, 0.0
      %315 = vst.msk [vmem:[#allocation3 + $0x110] sm:$0xff] %vm225, 0.0
      %316 = vst.msk [vmem:[#allocation3 + $0x118] sm:$0x3] %vm228, 0.0
      %317 = vst.msk [vmem:[#allocation3 + $0x120] sm:$0xff] %vm225, 0.0
      %318 = vst.msk [vmem:[#allocation3 + $0x128] sm:$0xff] %vm225, 0.0
      %319 = vst.msk [vmem:[#allocation3 + $0x130] sm:$0x3] %vm228, 0.0
      %320 = vst.msk [vmem:[#allocation3 + $0x138] sm:$0xff] %vm225, 0.0
      %321 = vst.msk [vmem:[#allocation3 + $0x140] sm:$0xff] %vm225, 0.0
      %322 = vst.msk [vmem:[#allocation3 + $0x148] sm:$0x3] %vm228, 0.0
      %323 = vst.msk [vmem:[#allocation3 + $0x150] sm:$0xff] %vm225, 0.0
      %324 = vst.msk [vmem:[#allocation3 + $0x158] sm:$0xff] %vm225, 0.0
      %325 = vst.msk [vmem:[#allocation3 + $0x160] sm:$0x3] %vm228, 0.0
      %326 = vst.msk [vmem:[#allocation3 + $0x168] sm:$0xff] %vm225, 0.0
      %327 = vst.msk [vmem:[#allocation3 + $0x170] sm:$0xff] %vm225, 0.0
      %328 = vst.msk [vmem:[#allocation3 + $0x178] sm:$0x3] %vm228, 0.0
      %329 = vst.msk [vmem:[#allocation3 + $0x180] sm:$0xff] %vm225, 0.0
      %330 = vst.msk [vmem:[#allocation3 + $0x188] sm:$0xff] %vm225, 0.0
      %331 = vst.msk [vmem:[#allocation3 + $0x190] sm:$0x3] %vm228, 0.0
      %332 = vst.msk [vmem:[#allocation3 + $0x198] sm:$0xff] %vm225, 0.0
      %333 = vst.msk [vmem:[#allocation3 + $0x1a0] sm:$0xff] %vm225, 0.0
      %334 = vst.msk [vmem:[#allocation3 + $0x1a8] sm:$0x3] %vm228, 0.0
      %335 = vst.msk [vmem:[#allocation4] sm:$0xff] %vm225, 0.0
      %336 = vst.msk [vmem:[#allocation4 + $0x8] sm:$0xff] %vm225, 0.0
      %337 = vst.msk [vmem:[#allocation4 + $0x10] sm:$0x3] %vm228, 0.0
      %338 = vst.msk [vmem:[#allocation4 + $0x18] sm:$0xff] %vm225, 0.0
      %339 = vst.msk [vmem:[#allocation4 + $0x20] sm:$0xff] %vm225, 0.0
      %340 = vst.msk [vmem:[#allocation4 + $0x28] sm:$0x3] %vm228, 0.0
      %341 = vst.msk [vmem:[#allocation4 + $0x30] sm:$0xff] %vm225, 0.0
      %342 = vst.msk [vmem:[#allocation4 + $0x38] sm:$0xff] %vm225, 0.0
      %343 = vst.msk [vmem:[#allocation4 + $0x40] sm:$0x3] %vm228, 0.0
      %344 = vst.msk [vmem:[#allocation4 + $0x48] sm:$0xff] %vm225, 0.0
      %345 = vst.msk [vmem:[#allocation4 + $0x50] sm:$0xff] %vm225, 0.0
      %346 = vst.msk [vmem:[#allocation4 + $0x58] sm:$0x3] %vm228, 0.0
      %347 = vst.msk [vmem:[#allocation4 + $0x60] sm:$0xff] %vm225, 0.0
      %348 = vst.msk [vmem:[#allocation4 + $0x68] sm:$0xff] %vm225, 0.0
      %349 = vst.msk [vmem:[#allocation4 + $0x70] sm:$0x3] %vm228, 0.0
      %350 = vst.msk [vmem:[#allocation4 + $0x78] sm:$0xff] %vm225, 0.0
      %351 = vst.msk [vmem:[#allocation4 + $0x80] sm:$0xff] %vm225, 0.0
      %352 = vst.msk [vmem:[#allocation4 + $0x88] sm:$0x3] %vm228, 0.0
      %353 = vst.msk [vmem:[#allocation4 + $0x90] sm:$0xff] %vm225, 0.0
      %354 = vst.msk [vmem:[#allocation4 + $0x98] sm:$0xff] %vm225, 0.0
      %355 = vst.msk [vmem:[#allocation4 + $0xa0] sm:$0x3] %vm228, 0.0
      %356 = vst.msk [vmem:[#allocation4 + $0xa8] sm:$0xff] %vm225, 0.0
      %357 = vst.msk [vmem:[#allocation4 + $0xb0] sm:$0xff] %vm225, 0.0
      %358 = vst.msk [vmem:[#allocation4 + $0xb8] sm:$0x3] %vm228, 0.0
      %359 = vst.msk [vmem:[#allocation4 + $0xc0] sm:$0xff] %vm225, 0.0
      %360 = vst.msk [vmem:[#allocation4 + $0xc8] sm:$0xff] %vm225, 0.0
      %361 = vst.msk [vmem:[#allocation4 + $0xd0] sm:$0x3] %vm228, 0.0
      %362 = vst.msk [vmem:[#allocation4 + $0xd8] sm:$0xff] %vm225, 0.0
      %363 = vst.msk [vmem:[#allocation4 + $0xe0] sm:$0xff] %vm225, 0.0
      %364 = vst.msk [vmem:[#allocation4 + $0xe8] sm:$0x3] %vm228, 0.0
      %365 = vst.msk [vmem:[#allocation4 + $0xf0] sm:$0xff] %vm225, 0.0
      %366 = vst.msk [vmem:[#allocation4 + $0xf8] sm:$0xff] %vm225, 0.0
      %367 = vst.msk [vmem:[#allocation4 + $0x100] sm:$0x3] %vm228, 0.0
      %368 = vst.msk [vmem:[#allocation4 + $0x108] sm:$0xff] %vm225, 0.0
      %369 = vst.msk [vmem:[#allocation4 + $0x110] sm:$0xff] %vm225, 0.0
      %370 = vst.msk [vmem:[#allocation4 + $0x118] sm:$0x3] %vm228, 0.0
      %371 = vst.msk [vmem:[#allocation4 + $0x120] sm:$0xff] %vm225, 0.0
      %372 = vst.msk [vmem:[#allocation4 + $0x128] sm:$0xff] %vm225, 0.0
      %373 = vst.msk [vmem:[#allocation4 + $0x130] sm:$0x3] %vm228, 0.0
      %374 = vst.msk [vmem:[#allocation4 + $0x138] sm:$0xff] %vm225, 0.0
      %375 = vst.msk [vmem:[#allocation4 + $0x140] sm:$0xff] %vm225, 0.0
      %376 = vst.msk [vmem:[#allocation4 + $0x148] sm:$0x3] %vm228, 0.0
      %377 = vst.msk [vmem:[#allocation4 + $0x150] sm:$0xff] %vm225, 0.0
      %378 = vst.msk [vmem:[#allocation4 + $0x158] sm:$0xff] %vm225, 0.0
      %379 = vst.msk [vmem:[#allocation4 + $0x160] sm:$0x3] %vm228, 0.0
      %380 = vst.msk [vmem:[#allocation4 + $0x168] sm:$0xff] %vm225, 0.0
      %381 = vst.msk [vmem:[#allocation4 + $0x170] sm:$0xff] %vm225, 0.0
      %382 = vst.msk [vmem:[#allocation4 + $0x178] sm:$0x3] %vm228, 0.0
      %383 = vst.msk [vmem:[#allocation4 + $0x180] sm:$0xff] %vm225, 0.0
      %384 = vst.msk [vmem:[#allocation4 + $0x188] sm:$0xff] %vm225, 0.0
      %385 = vst.msk [vmem:[#allocation4 + $0x190] sm:$0x3] %vm228, 0.0
      %386 = vst.msk [vmem:[#allocation4 + $0x198] sm:$0xff] %vm225, 0.0
      %387 = vst.msk [vmem:[#allocation4 + $0x1a0] sm:$0xff] %vm225, 0.0
      %388 = vst.msk [vmem:[#allocation4 + $0x1a8] sm:$0x3] %vm228, 0.0
      %v389 = vld [vmem:[%s219] sm:$0xff]
      %v390 = vld [vmem:[%s219 + $0x8] sm:$0xff]
      %v391 = vld [vmem:[%s219 + $0x10] sm:$0xff]
      %v392 = vld [vmem:[%s219 + $0x18] sm:$0xff]
      %v393 = vld [vmem:[%s219 + $0x20] sm:$0xff]
      %v394 = vld [vmem:[%s219 + $0x28] sm:$0xff]
      %v395 = vld [vmem:[%s219 + $0x30] sm:$0xff]
      %v396 = vld [vmem:[%s219 + $0x38] sm:$0xff]
      %v397 = vld [vmem:[%s219 + $0x40] sm:$0xff]
      %v398 = vld [vmem:[%s219 + $0x48] sm:$0xff]
      %v399 = vld [vmem:[%s219 + $0x50] sm:$0xff]
      %v400 = vld [vmem:[%s219 + $0x58] sm:$0xff]
      %v401 = vld [vmem:[%s219 + $0x60] sm:$0xff]
      %v402 = vld [vmem:[%s219 + $0x68] sm:$0xff]
      %v403 = vld [vmem:[%s219 + $0x70] sm:$0xff]
      %v404 = vld [vmem:[%s219 + $0x78] sm:$0xff]
      %v405 = vld [vmem:[%s219 + $0x80] sm:$0xff]
      %v406 = vld [vmem:[%s219 + $0x88] sm:$0xff]
      %v407 = vld [vmem:[%s219 + $0x90] sm:$0xff]
      %v408 = vld [vmem:[%s219 + $0x98] sm:$0xff]
      %v409 = vld [vmem:[%s219 + $0xa0] sm:$0xff]
      %v410 = vld [vmem:[%s219 + $0xa8] sm:$0xff]
      %v411 = vld [vmem:[%s219 + $0xb0] sm:$0xff]
      %v412 = vld [vmem:[%s219 + $0xb8] sm:$0xff]
      %v413 = vld [vmem:[%s219 + $0xc0] sm:$0xff]
      %v414 = vld [vmem:[%s219 + $0xc8] sm:$0xff]
      %v415 = vld [vmem:[%s219 + $0xd0] sm:$0xff]
      %v416 = vld [vmem:[%s219 + $0xd8] sm:$0xff]
      %v417 = vld [vmem:[%s219 + $0xe0] sm:$0xff]
      %v418 = vld [vmem:[%s219 + $0xe8] sm:$0xff]
      %v419 = vld [vmem:[%s219 + $0xf0] sm:$0xff]
      %v420 = vld [vmem:[%s219 + $0xf8] sm:$0xff]
      %v421 = vld [vmem:[%s3] sm:$0x1]
      %v423 = vlaneseq
      %v424 = vshrl.u32 %v423, 7
      %v425 = vsub.s32 0, %v424
      %v426 = vrot.slane %v421, %v425
      %v428 = vmul.f32 %v389, %v426
      %v429 = vmul.f32 %v390, %v426
      %v430 = vmul.f32 %v391, %v426
      %v431 = vmul.f32 %v392, %v426
      %v432 = vmul.f32 %v393, %v426
      %v433 = vmul.f32 %v394, %v426
      %v434 = vmul.f32 %v395, %v426
      %v435 = vmul.f32 %v396, %v426
      %v436 = vmul.f32 %v397, %v426
      %v437 = vmul.f32 %v398, %v426
      %v438 = vmul.f32 %v399, %v426
      %v439 = vmul.f32 %v400, %v426
      %v440 = vmul.f32 %v401, %v426
      %v441 = vmul.f32 %v402, %v426
      %v442 = vmul.f32 %v403, %v426
      %v443 = vmul.f32 %v404, %v426
      %v444 = vmul.f32 %v405, %v426
      %v445 = vmul.f32 %v406, %v426
      %v446 = vmul.f32 %v407, %v426
      %v447 = vmul.f32 %v408, %v426
      %v448 = vmul.f32 %v409, %v426
      %v449 = vmul.f32 %v410, %v426
      %v450 = vmul.f32 %v411, %v426
      %v451 = vmul.f32 %v412, %v426
      %v452 = vmul.f32 %v413, %v426
      %v453 = vmul.f32 %v414, %v426
      %v454 = vmul.f32 %v415, %v426
      %v455 = vmul.f32 %v416, %v426
      %v456 = vmul.f32 %v417, %v426
      %v457 = vmul.f32 %v418, %v426
      %v458 = vmul.f32 %v419, %v426
      %v459 = vmul.f32 %v420, %v426
      %s460 = scalar_lea.vmem %s3, 1
      %v461 = vld [vmem:[%s460] sm:$0x1]
      %v463 = vlaneseq
      %v464 = vshrl.u32 %v463, 7
      %v465 = vsub.s32 0, %v464
      %v466 = vrot.slane %v461, %v465
      %v468 = vadd.f32 %v428, %v466
      %v469 = vadd.f32 %v429, %v466
      %v470 = vadd.f32 %v430, %v466
      %v471 = vadd.f32 %v431, %v466
      %v472 = vadd.f32 %v432, %v466
      %v473 = vadd.f32 %v433, %v466
      %v474 = vadd.f32 %v434, %v466
      %v475 = vadd.f32 %v435, %v466
      %v476 = vadd.f32 %v436, %v466
      %v477 = vadd.f32 %v437, %v466
      %v478 = vadd.f32 %v438, %v466
      %v479 = vadd.f32 %v439, %v466
      %v480 = vadd.f32 %v440, %v466
      %v481 = vadd.f32 %v441, %v466
      %v482 = vadd.f32 %v442, %v466
      %v483 = vadd.f32 %v443, %v466
      %v484 = vadd.f32 %v444, %v466
      %v485 = vadd.f32 %v445, %v466
      %v486 = vadd.f32 %v446, %v466
      %v487 = vadd.f32 %v447, %v466
      %v488 = vadd.f32 %v448, %v466
      %v489 = vadd.f32 %v449, %v466
      %v490 = vadd.f32 %v450, %v466
      %v491 = vadd.f32 %v451, %v466
      %v492 = vadd.f32 %v452, %v466
      %v493 = vadd.f32 %v453, %v466
      %v494 = vadd.f32 %v454, %v466
      %v495 = vadd.f32 %v455, %v466
      %v496 = vadd.f32 %v456, %v466
      %v497 = vadd.f32 %v457, %v466
      %v498 = vadd.f32 %v458, %v466
      %v499 = vadd.f32 %v459, %v466
      %s500 = scalar_lea.vmem [#allocation2], 24
      %501 = vst.msk [vmem:[%s500 + $0x1] sm:$0xff] %vm225, %v468
      %502 = vst.msk [vmem:[%s500 + $0x9] sm:$0xff] %vm225, %v469
      %503 = vst.msk [vmem:[%s500 + $0x19] sm:$0xff] %vm225, %v470
      %504 = vst.msk [vmem:[%s500 + $0x21] sm:$0xff] %vm225, %v471
      %505 = vst.msk [vmem:[%s500 + $0x31] sm:$0xff] %vm225, %v472
      %506 = vst.msk [vmem:[%s500 + $0x39] sm:$0xff] %vm225, %v473
      %507 = vst.msk [vmem:[%s500 + $0x49] sm:$0xff] %vm225, %v474
      %508 = vst.msk [vmem:[%s500 + $0x51] sm:$0xff] %vm225, %v475
      %509 = vst.msk [vmem:[%s500 + $0x61] sm:$0xff] %vm225, %v476
      %510 = vst.msk [vmem:[%s500 + $0x69] sm:$0xff] %vm225, %v477
      %511 = vst.msk [vmem:[%s500 + $0x79] sm:$0xff] %vm225, %v478
      %512 = vst.msk [vmem:[%s500 + $0x81] sm:$0xff] %vm225, %v479
      %513 = vst.msk [vmem:[%s500 + $0x91] sm:$0xff] %vm225, %v480
      %514 = vst.msk [vmem:[%s500 + $0x99] sm:$0xff] %vm225, %v481
      %515 = vst.msk [vmem:[%s500 + $0xa9] sm:$0xff] %vm225, %v482
      %516 = vst.msk [vmem:[%s500 + $0xb1] sm:$0xff] %vm225, %v483
      %517 = vst.msk [vmem:[%s500 + $0xc1] sm:$0xff] %vm225, %v484
      %518 = vst.msk [vmem:[%s500 + $0xc9] sm:$0xff] %vm225, %v485
      %519 = vst.msk [vmem:[%s500 + $0xd9] sm:$0xff] %vm225, %v486
      %520 = vst.msk [vmem:[%s500 + $0xe1] sm:$0xff] %vm225, %v487
      %521 = vst.msk [vmem:[%s500 + $0xf1] sm:$0xff] %vm225, %v488
      %522 = vst.msk [vmem:[%s500 + $0xf9] sm:$0xff] %vm225, %v489
      %523 = vst.msk [vmem:[%s500 + $0x109] sm:$0xff] %vm225, %v490
      %524 = vst.msk [vmem:[%s500 + $0x111] sm:$0xff] %vm225, %v491
      %525 = vst.msk [vmem:[%s500 + $0x121] sm:$0xff] %vm225, %v492
      %526 = vst.msk [vmem:[%s500 + $0x129] sm:$0xff] %vm225, %v493
      %527 = vst.msk [vmem:[%s500 + $0x139] sm:$0xff] %vm225, %v494
      %528 = vst.msk [vmem:[%s500 + $0x141] sm:$0xff] %vm225, %v495
      %529 = vst.msk [vmem:[%s500 + $0x151] sm:$0xff] %vm225, %v496
      %530 = vst.msk [vmem:[%s500 + $0x159] sm:$0xff] %vm225, %v497
      %531 = vst.msk [vmem:[%s500 + $0x169] sm:$0xff] %vm225, %v498
      %532 = vst.msk [vmem:[%s500 + $0x171] sm:$0xff] %vm225, %v499
      %v533 = vld [vmem:[#allocation2] sm:$0xff]
      %v534 = vld [vmem:[#allocation2 + $0x8] sm:$0xff]
      %v535 = vld [vmem:[#allocation2 + $0x10] sm:$0x3]
      %v536 = vld [vmem:[#allocation2 + $0x18] sm:$0xff]
      %v537 = vld [vmem:[#allocation2 + $0x20] sm:$0xff]
      %v538 = vld [vmem:[#allocation2 + $0x28] sm:$0x3]
      %v539 = vld [vmem:[#allocation2 + $0x30] sm:$0xff]
      %v540 = vld [vmem:[#allocation2 + $0x38] sm:$0xff]
      %v541 = vld [vmem:[#allocation2 + $0x40] sm:$0x3]
      %v542 = vld [vmem:[#allocation2 + $0x48] sm:$0xff]
      %v543 = vld [vmem:[#allocation2 + $0x50] sm:$0xff]
      %v544 = vld [vmem:[#allocation2 + $0x58] sm:$0x3]
      %v545 = vld [vmem:[#allocation2 + $0x60] sm:$0xff]
      %v546 = vld [vmem:[#allocation2 + $0x68] sm:$0xff]
      %v547 = vld [vmem:[#allocation2 + $0x70] sm:$0x3]
      %v548 = vld [vmem:[#allocation2 + $0x78] sm:$0xff]
      %v549 = vld [vmem:[#allocation2 + $0x80] sm:$0xff]
      %v550 = vld [vmem:[#allocation2 + $0x88] sm:$0x3]
      %v551 = vld [vmem:[#allocation2 + $0x90] sm:$0xff]
      %v552 = vld [vmem:[#allocation2 + $0x98] sm:$0xff]
      %v553 = vld [vmem:[#allocation2 + $0xa0] sm:$0x3]
      %v554 = vld [vmem:[#allocation2 + $0xa8] sm:$0xff]
      %v555 = vld [vmem:[#allocation2 + $0xb0] sm:$0xff]
      %v556 = vld [vmem:[#allocation2 + $0xb8] sm:$0x3]
      %v557 = vld [vmem:[#allocation2 + $0xc0] sm:$0xff]
      %v558 = vld [vmem:[#allocation2 + $0xc8] sm:$0xff]
      %v559 = vld [vmem:[#allocation2 + $0xd0] sm:$0x3]
      %v560 = vld [vmem:[#allocation2 + $0xd8] sm:$0xff]
      %v561 = vld [vmem:[#allocation2 + $0xe0] sm:$0xff]
      %v562 = vld [vmem:[#allocation2 + $0xe8] sm:$0x3]
      %v563 = vld [vmem:[#allocation2 + $0xf0] sm:$0xff]
      %v564 = vld [vmem:[#allocation2 + $0xf8] sm:$0xff]
      %v565 = vld [vmem:[#allocation2 + $0x100] sm:$0x3]
      %v566 = vld [vmem:[#allocation2 + $0x108] sm:$0xff]
      %v567 = vld [vmem:[#allocation2 + $0x110] sm:$0xff]
      %v568 = vld [vmem:[#allocation2 + $0x118] sm:$0x3]
      %v569 = vld [vmem:[#allocation2 + $0x120] sm:$0xff]
      %v570 = vld [vmem:[#allocation2 + $0x128] sm:$0xff]
      %v571 = vld [vmem:[#allocation2 + $0x130] sm:$0x3]
      %v572 = vld [vmem:[#allocation2 + $0x138] sm:$0xff]
      %v573 = vld [vmem:[#allocation2 + $0x140] sm:$0xff]
      %v574 = vld [vmem:[#allocation2 + $0x148] sm:$0x3]
      %v575 = vld [vmem:[#allocation2 + $0x150] sm:$0xff]
      %v576 = vld [vmem:[#allocation2 + $0x158] sm:$0xff]
      %v577 = vld [vmem:[#allocation2 + $0x160] sm:$0x3]
      %v578 = vld [vmem:[#allocation2 + $0x168] sm:$0xff]
      %v579 = vld [vmem:[#allocation2 + $0x170] sm:$0xff]
      %v580 = vld [vmem:[#allocation2 + $0x178] sm:$0x3]
      %v581 = vld [vmem:[#allocation2 + $0x180] sm:$0xff]
      %v582 = vld [vmem:[#allocation2 + $0x188] sm:$0xff]
      %v583 = vld [vmem:[#allocation2 + $0x190] sm:$0x3]
      %v584 = vld [vmem:[#allocation2 + $0x198] sm:$0xff]
      %v585 = vld [vmem:[#allocation2 + $0x1a0] sm:$0xff]
      %v586 = vld [vmem:[#allocation2 + $0x1a8] sm:$0x3]
      %vm641 = vcmask 1046528
      %v642 = vrot.slane %v533, 1
      %v643 = vrot.slane %v534, 1
      %v644 = vsel %vm641, %v642, %v643
      %v645 = vrot.slane %v535, 1
      %v646 = vsel %vm641, %v643, %v645
      %v647 = vrot.slane %v536, 1
      %v648 = vrot.slane %v537, 1
      %v649 = vsel %vm641, %v647, %v648
      %v650 = vrot.slane %v538, 1
      %v651 = vsel %vm641, %v648, %v650
      %v652 = vrot.slane %v539, 1
      %v653 = vrot.slane %v540, 1
      %v654 = vsel %vm641, %v652, %v653
      %v655 = vrot.slane %v541, 1
      %v656 = vsel %vm641, %v653, %v655
      %v657 = vrot.slane %v542, 1
      %v658 = vrot.slane %v543, 1
      %v659 = vsel %vm641, %v657, %v658
      %v660 = vrot.slane %v544, 1
      %v661 = vsel %vm641, %v658, %v660
      %v662 = vrot.slane %v545, 1
      %v663 = vrot.slane %v546, 1
      %v664 = vsel %vm641, %v662, %v663
      %v665 = vrot.slane %v547, 1
      %v666 = vsel %vm641, %v663, %v665
      %v667 = vrot.slane %v548, 1
      %v668 = vrot.slane %v549, 1
      %v669 = vsel %vm641, %v667, %v668
      %v670 = vrot.slane %v550, 1
      %v671 = vsel %vm641, %v668, %v670
      %v672 = vrot.slane %v551, 1
      %v673 = vrot.slane %v552, 1
      %v674 = vsel %vm641, %v672, %v673
      %v675 = vrot.slane %v553, 1
      %v676 = vsel %vm641, %v673, %v675
      %v677 = vrot.slane %v554, 1
      %v678 = vrot.slane %v555, 1
      %v679 = vsel %vm641, %v677, %v678
      %v680 = vrot.slane %v556, 1
      %v681 = vsel %vm641, %v678, %v680
      %v682 = vrot.slane %v557, 1
      %v683 = vrot.slane %v558, 1
      %v684 = vsel %vm641, %v682, %v683
      %v685 = vrot.slane %v559, 1
      %v686 = vsel %vm641, %v683, %v685
      %v687 = vrot.slane %v560, 1
      %v688 = vrot.slane %v561, 1
      %v689 = vsel %vm641, %v687, %v688
      %v690 = vrot.slane %v562, 1
      %v691 = vsel %vm641, %v688, %v690
      %v692 = vrot.slane %v563, 1
      %v693 = vrot.slane %v564, 1
      %v694 = vsel %vm641, %v692, %v693
      %v695 = vrot.slane %v565, 1
      %v696 = vsel %vm641, %v693, %v695
      %v697 = vrot.slane %v566, 1
      %v698 = vrot.slane %v567, 1
      %v699 = vsel %vm641, %v697, %v698
      %v700 = vrot.slane %v568, 1
      %v701 = vsel %vm641, %v698, %v700
      %v702 = vrot.slane %v569, 1
      %v703 = vrot.slane %v570, 1
      %v704 = vsel %vm641, %v702, %v703
      %v705 = vrot.slane %v571, 1
      %v706 = vsel %vm641, %v703, %v705
      %v707 = vrot.slane %v572, 1
      %v708 = vrot.slane %v573, 1
      %v709 = vsel %vm641, %v707, %v708
      %v710 = vrot.slane %v574, 1
      %v711 = vsel %vm641, %v708, %v710
      %v712 = vrot.slane %v575, 1
      %v713 = vrot.slane %v576, 1
      %v714 = vsel %vm641, %v712, %v713
      %v715 = vrot.slane %v577, 1
      %v716 = vsel %vm641, %v713, %v715
      %v717 = vrot.slane %v578, 1
      %v718 = vrot.slane %v579, 1
      %v719 = vsel %vm641, %v717, %v718
      %v720 = vrot.slane %v580, 1
      %v721 = vsel %vm641, %v718, %v720
      %v722 = vrot.slane %v581, 1
      %v723 = vrot.slane %v582, 1
      %v724 = vsel %vm641, %v722, %v723
      %v725 = vrot.slane %v583, 1
      %v726 = vsel %vm641, %v723, %v725
      %v727 = vrot.slane %v584, 1
      %v728 = vrot.slane %v585, 1
      %v729 = vsel %vm641, %v727, %v728
      %v730 = vrot.slane %v586, 1
      %v731 = vsel %vm641, %v728, %v730
      %732 = vrot.lane.b32.xlu0 %v644, 16
      %v733 = vpop.permute.xlu0 %732
      %734 = vrot.lane.b32.xlu0 %v646, 16
      %v735 = vpop.permute.xlu0 %734
      %736 = vrot.lane.b32.xlu0 %v649, 16
      %v737 = vpop.permute.xlu0 %736
      %738 = vrot.lane.b32.xlu0 %v651, 16
      %v739 = vpop.permute.xlu0 %738
      %740 = vrot.lane.b32.xlu0 %v654, 16
      %v741 = vpop.permute.xlu0 %740
      %742 = vrot.lane.b32.xlu0 %v656, 16
      %v743 = vpop.permute.xlu0 %742
      %744 = vrot.lane.b32.xlu0 %v659, 16
      %v745 = vpop.permute.xlu0 %744
      %746 = vrot.lane.b32.xlu0 %v661, 16
      %v747 = vpop.permute.xlu0 %746
      %748 = vrot.lane.b32.xlu0 %v664, 16
      %v749 = vpop.permute.xlu0 %748
      %750 = vrot.lane.b32.xlu0 %v666, 16
      %v751 = vpop.permute.xlu0 %750
      %752 = vrot.lane.b32.xlu0 %v669, 16
      %v753 = vpop.permute.xlu0 %752
      %754 = vrot.lane.b32.xlu0 %v671, 16
      %v755 = vpop.permute.xlu0 %754
      %756 = vrot.lane.b32.xlu0 %v674, 16
      %v757 = vpop.permute.xlu0 %756
      %758 = vrot.lane.b32.xlu0 %v676, 16
      %v759 = vpop.permute.xlu0 %758
      %760 = vrot.lane.b32.xlu0 %v679, 16
      %v761 = vpop.permute.xlu0 %760
      %762 = vrot.lane.b32.xlu0 %v681, 16
      %v763 = vpop.permute.xlu0 %762
      %764 = vrot.lane.b32.xlu0 %v684, 16
      %v765 = vpop.permute.xlu0 %764
      %766 = vrot.lane.b32.xlu0 %v686, 16
      %v767 = vpop.permute.xlu0 %766
      %768 = vrot.lane.b32.xlu0 %v689, 16
      %v769 = vpop.permute.xlu0 %768
      %770 = vrot.lane.b32.xlu0 %v691, 16
      %v771 = vpop.permute.xlu0 %770
      %772 = vrot.lane.b32.xlu0 %v694, 16
      %v773 = vpop.permute.xlu0 %772
      %774 = vrot.lane.b32.xlu0 %v696, 16
      %v775 = vpop.permute.xlu0 %774
      %776 = vrot.lane.b32.xlu0 %v699, 16
      %v777 = vpop.permute.xlu0 %776
      %778 = vrot.lane.b32.xlu0 %v701, 16
      %v779 = vpop.permute.xlu0 %778
      %780 = vrot.lane.b32.xlu0 %v704, 16
      %v781 = vpop.permute.xlu0 %780
      %782 = vrot.lane.b32.xlu0 %v706, 16
      %v783 = vpop.permute.xlu0 %782
      %784 = vrot.lane.b32.xlu0 %v709, 16
      %v785 = vpop.permute.xlu0 %784
      %786 = vrot.lane.b32.xlu0 %v711, 16
      %v787 = vpop.permute.xlu0 %786
      %788 = vrot.lane.b32.xlu0 %v714, 16
      %v789 = vpop.permute.xlu0 %788
      %790 = vrot.lane.b32.xlu0 %v716, 16
      %v791 = vpop.permute.xlu0 %790
      %792 = vrot.lane.b32.xlu0 %v719, 16
      %v793 = vpop.permute.xlu0 %792
      %794 = vrot.lane.b32.xlu0 %v721, 16
      %v795 = vpop.permute.xlu0 %794
      %796 = vrot.lane.b32.xlu0 %v724, 16
      %v797 = vpop.permute.xlu0 %796
      %798 = vrot.lane.b32.xlu0 %v726, 16
      %v799 = vpop.permute.xlu0 %798
      %800 = vrot.lane.b32.xlu0 %v729, 16
      %v801 = vpop.permute.xlu0 %800
      %802 = vrot.lane.b32.xlu0 %v731, 16
      %v803 = vpop.permute.xlu0 %802
      %vm840 = vcmask 1045504
      %v841 = vrot.slane %v533, 2
      %v842 = vrot.slane %v534, 2
      %v843 = vsel %vm840, %v841, %v842
      %v844 = vrot.slane %v535, 2
      %v845 = vsel %vm840, %v842, %v844
      %v846 = vrot.slane %v536, 2
      %v847 = vrot.slane %v537, 2
      %v848 = vsel %vm840, %v846, %v847
      %v849 = vrot.slane %v538, 2
      %v850 = vsel %vm840, %v847, %v849
      %v851 = vrot.slane %v539, 2
      %v852 = vrot.slane %v540, 2
      %v853 = vsel %vm840, %v851, %v852
      %v854 = vrot.slane %v541, 2
      %v855 = vsel %vm840, %v852, %v854
      %v856 = vrot.slane %v542, 2
      %v857 = vrot.slane %v543, 2
      %v858 = vsel %vm840, %v856, %v857
      %v859 = vrot.slane %v544, 2
      %v860 = vsel %vm840, %v857, %v859
      %v861 = vrot.slane %v545, 2
      %v862 = vrot.slane %v546, 2
      %v863 = vsel %vm840, %v861, %v862
      %v864 = vrot.slane %v547, 2
      %v865 = vsel %vm840, %v862, %v864
      %v866 = vrot.slane %v548, 2
      %v867 = vrot.slane %v549, 2
      %v868 = vsel %vm840, %v866, %v867
      %v869 = vrot.slane %v550, 2
      %v870 = vsel %vm840, %v867, %v869
      %v871 = vrot.slane %v551, 2
      %v872 = vrot.slane %v552, 2
      %v873 = vsel %vm840, %v871, %v872
      %v874 = vrot.slane %v553, 2
      %v875 = vsel %vm840, %v872, %v874
      %v876 = vrot.slane %v554, 2
      %v877 = vrot.slane %v555, 2
      %v878 = vsel %vm840, %v876, %v877
      %v879 = vrot.slane %v556, 2
      %v880 = vsel %vm840, %v877, %v879
      %v881 = vrot.slane %v557, 2
      %v882 = vrot.slane %v558, 2
      %v883 = vsel %vm840, %v881, %v882
      %v884 = vrot.slane %v559, 2
      %v885 = vsel %vm840, %v882, %v884
      %v886 = vrot.slane %v560, 2
      %v887 = vrot.slane %v561, 2
      %v888 = vsel %vm840, %v886, %v887
      %v889 = vrot.slane %v562, 2
      %v890 = vsel %vm840, %v887, %v889
      %v891 = vrot.slane %v563, 2
      %v892 = vrot.slane %v564, 2
      %v893 = vsel %vm840, %v891, %v892
      %v894 = vrot.slane %v565, 2
      %v895 = vsel %vm840, %v892, %v894
      %v896 = vrot.slane %v566, 2
      %v897 = vrot.slane %v567, 2
      %v898 = vsel %vm840, %v896, %v897
      %v899 = vrot.slane %v568, 2
      %v900 = vsel %vm840, %v897, %v899
      %v901 = vrot.slane %v569, 2
      %v902 = vrot.slane %v570, 2
      %v903 = vsel %vm840, %v901, %v902
      %v904 = vrot.slane %v571, 2
      %v905 = vsel %vm840, %v902, %v904
      %v906 = vrot.slane %v572, 2
      %v907 = vrot.slane %v573, 2
      %v908 = vsel %vm840, %v906, %v907
      %v909 = vrot.slane %v574, 2
      %v910 = vsel %vm840, %v907, %v909
      %v911 = vrot.slane %v575, 2
      %v912 = vrot.slane %v576, 2
      %v913 = vsel %vm840, %v911, %v912
      %v914 = vrot.slane %v577, 2
      %v915 = vsel %vm840, %v912, %v914
      %v916 = vrot.slane %v578, 2
      %v917 = vrot.slane %v579, 2
      %v918 = vsel %vm840, %v916, %v917
      %v919 = vrot.slane %v580, 2
      %v920 = vsel %vm840, %v917, %v919
      %v921 = vrot.slane %v581, 2
      %v922 = vrot.slane %v582, 2
      %v923 = vsel %vm840, %v921, %v922
      %v924 = vrot.slane %v583, 2
      %v925 = vsel %vm840, %v922, %v924
      %v926 = vrot.slane %v584, 2
      %v927 = vrot.slane %v585, 2
      %v928 = vsel %vm840, %v926, %v927
      %v929 = vrot.slane %v586, 2
      %v930 = vsel %vm840, %v927, %v929
      %931 = vrot.lane.b32.xlu0 %v843, 32
      %v932 = vpop.permute.xlu0 %931
      %933 = vrot.lane.b32.xlu0 %v845, 32
      %v934 = vpop.permute.xlu0 %933
      %935 = vrot.lane.b32.xlu0 %v848, 32
      %v936 = vpop.permute.xlu0 %935
      %937 = vrot.lane.b32.xlu0 %v850, 32
      %v938 = vpop.permute.xlu0 %937
      %939 = vrot.lane.b32.xlu0 %v853, 32
      %v940 = vpop.permute.xlu0 %939
      %941 = vrot.lane.b32.xlu0 %v855, 32
      %v942 = vpop.permute.xlu0 %941
      %943 = vrot.lane.b32.xlu0 %v858, 32
      %v944 = vpop.permute.xlu0 %943
      %945 = vrot.lane.b32.xlu0 %v860, 32
      %v946 = vpop.permute.xlu0 %945
      %947 = vrot.lane.b32.xlu0 %v863, 32
      %v948 = vpop.permute.xlu0 %947
      %949 = vrot.lane.b32.xlu0 %v865, 32
      %v950 = vpop.permute.xlu0 %949
      %951 = vrot.lane.b32.xlu0 %v868, 32
      %v952 = vpop.permute.xlu0 %951
      %953 = vrot.lane.b32.xlu0 %v870, 32
      %v954 = vpop.permute.xlu0 %953
      %955 = vrot.lane.b32.xlu0 %v873, 32
      %v956 = vpop.permute.xlu0 %955
      %957 = vrot.lane.b32.xlu0 %v875, 32
      %v958 = vpop.permute.xlu0 %957
      %959 = vrot.lane.b32.xlu0 %v878, 32
      %v960 = vpop.permute.xlu0 %959
      %961 = vrot.lane.b32.xlu0 %v880, 32
      %v962 = vpop.permute.xlu0 %961
      %963 = vrot.lane.b32.xlu0 %v883, 32
      %v964 = vpop.permute.xlu0 %963
      %965 = vrot.lane.b32.xlu0 %v885, 32
      %v966 = vpop.permute.xlu0 %965
      %967 = vrot.lane.b32.xlu0 %v888, 32
      %v968 = vpop.permute.xlu0 %967
      %969 = vrot.lane.b32.xlu0 %v890, 32
      %v970 = vpop.permute.xlu0 %969
      %971 = vrot.lane.b32.xlu0 %v893, 32
      %v972 = vpop.permute.xlu0 %971
      %973 = vrot.lane.b32.xlu0 %v895, 32
      %v974 = vpop.permute.xlu0 %973
      %975 = vrot.lane.b32.xlu0 %v898, 32
      %v976 = vpop.permute.xlu0 %975
      %977 = vrot.lane.b32.xlu0 %v900, 32
      %v978 = vpop.permute.xlu0 %977
      %979 = vrot.lane.b32.xlu0 %v903, 32
      %v980 = vpop.permute.xlu0 %979
      %981 = vrot.lane.b32.xlu0 %v905, 32
      %v982 = vpop.permute.xlu0 %981
      %983 = vrot.lane.b32.xlu0 %v908, 32
      %v984 = vpop.permute.xlu0 %983
      %985 = vrot.lane.b32.xlu0 %v910, 32
      %v986 = vpop.permute.xlu0 %985
      %987 = vrot.lane.b32.xlu0 %v913, 32
      %v988 = vpop.permute.xlu0 %987
      %989 = vrot.lane.b32.xlu0 %v915, 32
      %v990 = vpop.permute.xlu0 %989
      %991 = vrot.lane.b32.xlu0 %v918, 32
      %v992 = vpop.permute.xlu0 %991
      %993 = vrot.lane.b32.xlu0 %v920, 32
      %v994 = vpop.permute.xlu0 %993
      %995 = vrot.lane.b32.xlu0 %v923, 32
      %v996 = vpop.permute.xlu0 %995
      %997 = vrot.lane.b32.xlu0 %v925, 32
      %v998 = vpop.permute.xlu0 %997
      %999 = vrot.lane.b32.xlu0 %v928, 32
      %v1000 = vpop.permute.xlu0 %999
      %1001 = vrot.lane.b32.xlu0 %v930, 32
      %v1002 = vpop.permute.xlu0 %1001
      %v1039 = vsel %vm225, %v533, %v733
      %v1040 = vsel %vm225, %v534, %v735
      %v1041 = vsel %vm225, %v536, %v737
      %v1042 = vsel %vm225, %v537, %v739
      %v1043 = vsel %vm225, %v539, %v741
      %v1044 = vsel %vm225, %v540, %v743
      %v1045 = vsel %vm225, %v542, %v745
      %v1046 = vsel %vm225, %v543, %v747
      %v1047 = vsel %vm225, %v545, %v749
      %v1048 = vsel %vm225, %v546, %v751
      %v1049 = vsel %vm225, %v548, %v753
      %v1050 = vsel %vm225, %v549, %v755
      %v1051 = vsel %vm225, %v551, %v757
      %v1052 = vsel %vm225, %v552, %v759
      %v1053 = vsel %vm225, %v554, %v761
      %v1054 = vsel %vm225, %v555, %v763
      %v1055 = vsel %vm225, %v557, %v765
      %v1056 = vsel %vm225, %v558, %v767
      %v1057 = vsel %vm225, %v560, %v769
      %v1058 = vsel %vm225, %v561, %v771
      %v1059 = vsel %vm225, %v563, %v773
      %v1060 = vsel %vm225, %v564, %v775
      %v1061 = vsel %vm225, %v566, %v777
      %v1062 = vsel %vm225, %v567, %v779
      %v1063 = vsel %vm225, %v569, %v781
      %v1064 = vsel %vm225, %v570, %v783
      %v1065 = vsel %vm225, %v572, %v785
      %v1066 = vsel %vm225, %v573, %v787
      %v1067 = vsel %vm225, %v575, %v789
      %v1068 = vsel %vm225, %v576, %v791
      %v1069 = vsel %vm225, %v578, %v793
      %v1070 = vsel %vm225, %v579, %v795
      %v1071 = vsel %vm225, %v581, %v797
      %v1072 = vsel %vm225, %v582, %v799
      %v1073 = vsel %vm225, %v584, %v801
      %v1074 = vsel %vm225, %v585, %v803
      %vm1075 = vcmask 261120
      %v1076 = vsel %vm1075, %v1039, %v932
      %v1077 = vsel %vm1075, %v1040, %v934
      %v1078 = vsel %vm1075, %v1041, %v936
      %v1079 = vsel %vm1075, %v1042, %v938
      %v1080 = vsel %vm1075, %v1043, %v940
      %v1081 = vsel %vm1075, %v1044, %v942
      %v1082 = vsel %vm1075, %v1045, %v944
      %v1083 = vsel %vm1075, %v1046, %v946
      %v1084 = vsel %vm1075, %v1047, %v948
      %v1085 = vsel %vm1075, %v1048, %v950
      %v1086 = vsel %vm1075, %v1049, %v952
      %v1087 = vsel %vm1075, %v1050, %v954
      %v1088 = vsel %vm1075, %v1051, %v956
      %v1089 = vsel %vm1075, %v1052, %v958
      %v1090 = vsel %vm1075, %v1053, %v960
      %v1091 = vsel %vm1075, %v1054, %v962
      %v1092 = vsel %vm1075, %v1055, %v964
      %v1093 = vsel %vm1075, %v1056, %v966
      %v1094 = vsel %vm1075, %v1057, %v968
      %v1095 = vsel %vm1075, %v1058, %v970
      %v1096 = vsel %vm1075, %v1059, %v972
      %v1097 = vsel %vm1075, %v1060, %v974
      %v1098 = vsel %vm1075, %v1061, %v976
      %v1099 = vsel %vm1075, %v1062, %v978
      %v1100 = vsel %vm1075, %v1063, %v980
      %v1101 = vsel %vm1075, %v1064, %v982
      %v1102 = vsel %vm1075, %v1065, %v984
      %v1103 = vsel %vm1075, %v1066, %v986
      %v1104 = vsel %vm1075, %v1067, %v988
      %v1105 = vsel %vm1075, %v1068, %v990
      %v1106 = vsel %vm1075, %v1069, %v992
      %v1107 = vsel %vm1075, %v1070, %v994
      %v1108 = vsel %vm1075, %v1071, %v996
      %v1109 = vsel %vm1075, %v1072, %v998
      %v1110 = vsel %vm1075, %v1073, %v1000
      %v1111 = vsel %vm1075, %v1074, %v1002
      %v1112 = vld [vmem:[%s1] sm:$0xff]
      %v1113 = vld [vmem:[%s1 + $0x8] sm:$0xff]
      %v1114 = vld [vmem:[%s1 + $0x10] sm:$0xff]
      %v1115 = vld [vmem:[%s1 + $0x18] sm:$0xff]
      %v1116 = vld [vmem:[%s1 + $0x20] sm:$0xff]
      %v1117 = vld [vmem:[%s1 + $0x28] sm:$0xff]
      %s1118 = scalar_lea.vmem %s1, 48
      %v1119 = vld [vmem:[%s1118] sm:$0xff]
      %v1120 = vld [vmem:[%s1118 + $0x8] sm:$0xff]
      %v1121 = vld [vmem:[%s1118 + $0x10] sm:$0xff]
      %v1122 = vld [vmem:[%s1118 + $0x18] sm:$0xff]
      %v1123 = vld [vmem:[%s1118 + $0x20] sm:$0xff]
      %v1124 = vld [vmem:[%s1118 + $0x28] sm:$0xff]
      %vm1125 = vcmask 392192
      %v1127 = vsel %vm1125, %v1078, 0
      %v1130 = vsel %vm1125, %v1079, 0
      %v1133 = vsel %vm1125, %v1080, 0
      %v1136 = vsel %vm1125, %v1081, 0
      %v1139 = vsel %vm1125, %v1082, 0
      %v1142 = vsel %vm1125, %v1083, 0
      %v1145 = vsel %vm1125, %v1084, 0
      %v1148 = vsel %vm1125, %v1085, 0
      %v1151 = vsel %vm1125, %v1086, 0
      %v1154 = vsel %vm1125, %v1087, 0
      %v1157 = vsel %vm1125, %v1088, 0
      %v1160 = vsel %vm1125, %v1089, 0
      %v1163 = vsel %vm1125, %v1090, 0
      %v1166 = vsel %vm1125, %v1091, 0
      %v1169 = vsel %vm1125, %v1092, 0
      %v1172 = vsel %vm1125, %v1093, 0
      %v1175 = vsel %vm1125, %v1094, 0
      %v1178 = vsel %vm1125, %v1095, 0
      %v1181 = vsel %vm1125, %v1096, 0
      %v1184 = vsel %vm1125, %v1097, 0
      %v1187 = vsel %vm1125, %v1098, 0
      %v1190 = vsel %vm1125, %v1099, 0
      %v1193 = vsel %vm1125, %v1100, 0
      %v1196 = vsel %vm1125, %v1101, 0
      %v1199 = vsel %vm1125, %v1102, 0
      %v1202 = vsel %vm1125, %v1103, 0
      %v1205 = vsel %vm1125, %v1104, 0
      %v1208 = vsel %vm1125, %v1105, 0
      %v1211 = vsel %vm1125, %v1106, 0
      %v1214 = vsel %vm1125, %v1107, 0
      %v1217 = vsel %vm1125, %v1108, 0
      %v1220 = vsel %vm1125, %v1109, 0
      %1222 = vmatprep.subr.mxu0 0.0
      %1223 = vmatpush1.msra.mxu0 %v1119
      %1224 = vmatprep.subr.mxu0 0.0
      %1225 = vmatpush1.msra.mxu0 %v1120
      %1226 = vmatprep.subr.mxu0 0.0
      %1227 = vmatpush1.msra.mxu0 %v1121
      %1228 = vmatprep.subr.mxu0 0.0
      %1229 = vmatpush1.msra.mxu0 %v1122
      %1230 = vmatprep.subr.mxu0 0.0
      %1231 = vmatpush1.msra.mxu0 %v1123
      %1232 = vmatprep.subr.mxu0 0.0
      %1233 = vmatpush1.msra.mxu0 %v1124
      %1234 = vmatprep.subr.mxu0 0.0
      %1235 = vmatpush1.msra.mxu0 0.0
      %1236 = vmatprep.subr.mxu0 0.0
      %1237 = vmatpush1.msra.mxu0 0.0
      %1238 = vmatprep.subr.mxu0 0.0
      %1239 = vmatpush1.msra.mxu0 0.0
      %1240 = vmatprep.subr.mxu0 0.0
      %1241 = vmatpush1.msra.mxu0 0.0
      %1242 = vmatprep.subr.mxu0 0.0
      %1243 = vmatpush1.msra.mxu0 0.0
      %1244 = vmatprep.subr.mxu0 0.0
      %1245 = vmatpush1.msra.mxu0 0.0
      %1246 = vmatprep.subr.mxu0 0.0
      %1247 = vmatpush1.msra.mxu0 0.0
      %1248 = vmatprep.subr.mxu0 0.0
      %1249 = vmatpush1.msra.mxu0 0.0
      %1250 = vmatprep.subr.mxu0 0.0
      %1251 = vmatpush1.msra.mxu0 0.0
      %1252 = vmatprep.subr.mxu0 0.0
      %1253 = vmatpush1.msra.mxu0 0.0
      %1254 = vmatprep.subr.mxu0 0.0
      %1255 = vmatpush1.msra.mxu0 0.0
      %1256 = vmatprep.subr.mxu0 0.0
      %1257 = vmatpush1.msra.mxu0 0.0
      %1258 = vmatprep.subr.mxu0 0.0
      %1259 = vmatpush1.msra.mxu0 0.0
      %1260 = vmatprep.subr.mxu0 0.0
      %1261 = vmatpush1.msra.mxu0 0.0
      %1262 = vmatprep.subr.mxu0 0.0
      %1263 = vmatpush1.msra.mxu0 0.0
      %1264 = vmatprep.subr.mxu0 0.0
      %1265 = vmatpush1.msra.mxu0 0.0
      %1266 = vmatprep.subr.mxu0 0.0
      %1267 = vmatpush1.msra.mxu0 0.0
      %1268 = vmatprep.subr.mxu0 0.0
      %1269 = vmatpush1.msra.mxu0 0.0
      %1270 = vmatprep.subr.mxu0 0.0
      %1271 = vmatpush1.msra.mxu0 0.0
      %1272 = vmatprep.subr.mxu0 0.0
      %1273 = vmatpush1.msra.mxu0 0.0
      %1274 = vmatprep.subr.mxu0 0.0
      %1275 = vmatpush1.msra.mxu0 0.0
      %1276 = vmatprep.subr.mxu0 0.0
      %1277 = vmatpush1.msra.mxu0 0.0
      %1278 = vmatprep.subr.mxu0 0.0
      %1279 = vmatpush1.msra.mxu0 0.0
      %1280 = vmatprep.subr.mxu0 0.0
      %1281 = vmatpush1.msra.mxu0 0.0
      %1282 = vmatprep.subr.mxu0 0.0
      %1283 = vmatpush1.msra.mxu0 0.0
      %1284 = vmatprep.subr.mxu0 0.0
      %1285 = vmatpush1.msra.mxu0 0.0
      %1286 = vmatprep.mubr.f32.mxu0 0.0
      %1287 = vmatmul.mubr.f32.gmra.mrb[0].mxu0 %v1127
      %v1288 = vpop.f32.mrb[0].mxu0
      %v1289 = vadd.f32 0.0, %v1288
      %v1290 = vpop.f32.mrb[0].mxu0
      %1291 = vmatprep.mubr.f32.mxu0 0.0
      %1292 = vmatmul.mubr.f32.gmra.mrb[0].mxu0 %v1130
      %v1293 = vpop.f32.mrb[0].mxu0
      %v1294 = vadd.f32 0.0, %v1293
      %v1295 = vpop.f32.mrb[0].mxu0
      %1296 = vmatprep.mubr.f32.mxu0 0.0
      %1297 = vmatmul.mubr.f32.gmra.mrb[0].mxu0 %v1133
      %v1298 = vpop.f32.mrb[0].mxu0
      %v1299 = vadd.f32 0.0, %v1298
      %v1300 = vpop.f32.mrb[0].mxu0
      %1301 = vmatprep.mubr.f32.mxu0 0.0
      %1302 = vmatmul.mubr.f32.gmra.mrb[0].mxu0 %v1136
      %v1303 = vpop.f32.mrb[0].mxu0
      %v1304 = vadd.f32 0.0, %v1303
      %v1305 = vpop.f32.mrb[0].mxu0
      %1306 = vmatprep.mubr.f32.mxu0 0.0
      %1307 = vmatmul.mubr.f32.gmra.mrb[0].mxu0 %v1139
      %v1308 = vpop.f32.mrb[0].mxu0
      %v1309 = vadd.f32 0.0, %v1308
      %v1310 = vpop.f32.mrb[0].mxu0
      %1311 = vmatprep.mubr.f32.mxu0 0.0
      %1312 = vmatmul.mubr.f32.gmra.mrb[0].mxu0 %v1142
      %v1313 = vpop.f32.mrb[0].mxu0
      %v1314 = vadd.f32 0.0, %v1313
      %v1315 = vpop.f32.mrb[0].mxu0
      %1316 = vmatprep.mubr.f32.mxu0 0.0
      %1317 = vmatmul.mubr.f32.gmra.mrb[0].mxu0 %v1145
      %v1318 = vpop.f32.mrb[0].mxu0
      %v1319 = vadd.f32 0.0, %v1318
      %v1320 = vpop.f32.mrb[0].mxu0
      %1321 = vmatprep.mubr.f32.mxu0 0.0
      %1322 = vmatmul.mubr.f32.gmra.mrb[0].mxu0 %v1148
      %v1323 = vpop.f32.mrb[0].mxu0
      %v1324 = vadd.f32 0.0, %v1323
      %v1325 = vpop.f32.mrb[0].mxu0
      %1326 = vmatprep.mubr.f32.mxu0 0.0
      %1327 = vmatmul.mubr.f32.gmra.mrb[0].mxu0 %v1151
      %v1328 = vpop.f32.mrb[0].mxu0
      %v1329 = vadd.f32 0.0, %v1328
      %v1330 = vpop.f32.mrb[0].mxu0
      %1331 = vmatprep.mubr.f32.mxu0 0.0
      %1332 = vmatmul.mubr.f32.gmra.mrb[0].mxu0 %v1154
      %v1333 = vpop.f32.mrb[0].mxu0
      %v1334 = vadd.f32 0.0, %v1333
      %v1335 = vpop.f32.mrb[0].mxu0
      %1336 = vmatprep.mubr.f32.mxu0 0.0
      %1337 = vmatmul.mubr.f32.gmra.mrb[0].mxu0 %v1157
      %v1338 = vpop.f32.mrb[0].mxu0
      %v1339 = vadd.f32 0.0, %v1338
      %v1340 = vpop.f32.mrb[0].mxu0
      %1341 = vmatprep.mubr.f32.mxu0 0.0
      %1342 = vmatmul.mubr.f32.gmra.mrb[0].mxu0 %v1160
      %v1343 = vpop.f32.mrb[0].mxu0
      %v1344 = vadd.f32 0.0, %v1343
      %v1345 = vpop.f32.mrb[0].mxu0
      %1346 = vmatprep.mubr.f32.mxu0 0.0
      %1347 = vmatmul.mubr.f32.gmra.mrb[0].mxu0 %v1163
      %v1348 = vpop.f32.mrb[0].mxu0
      %v1349 = vadd.f32 0.0, %v1348
      %v1350 = vpop.f32.mrb[0].mxu0
      %1351 = vmatprep.mubr.f32.mxu0 0.0
      %1352 = vmatmul.mubr.f32.gmra.mrb[0].mxu0 %v1166
      %v1353 = vpop.f32.mrb[0].mxu0
      %v1354 = vadd.f32 0.0, %v1353
      %v1355 = vpop.f32.mrb[0].mxu0
      %1356 = vmatprep.mubr.f32.mxu0 0.0
      %1357 = vmatmul.mubr.f32.gmra.mrb[0].mxu0 %v1169
      %v1358 = vpop.f32.mrb[0].mxu0
      %v1359 = vadd.f32 0.0, %v1358
      %v1360 = vpop.f32.mrb[0].mxu0
      %1361 = vmatprep.mubr.f32.mxu0 0.0
      %1362 = vmatmul.mubr.f32.gmra.mrb[0].mxu0 %v1172
      %v1363 = vpop.f32.mrb[0].mxu0
      %v1364 = vadd.f32 0.0, %v1363
      %v1365 = vpop.f32.mrb[0].mxu0
      %1366 = vmatprep.mubr.f32.mxu0 0.0
      %1367 = vmatmul.mubr.f32.gmra.mrb[0].mxu0 %v1175
      %v1368 = vpop.f32.mrb[0].mxu0
      %v1369 = vadd.f32 0.0, %v1368
      %v1370 = vpop.f32.mrb[0].mxu0
      %1371 = vmatprep.mubr.f32.mxu0 0.0
      %1372 = vmatmul.mubr.f32.gmra.mrb[0].mxu0 %v1178
      %v1373 = vpop.f32.mrb[0].mxu0
      %v1374 = vadd.f32 0.0, %v1373
      %v1375 = vpop.f32.mrb[0].mxu0
      %1376 = vmatprep.mubr.f32.mxu0 0.0
      %1377 = vmatmul.mubr.f32.gmra.mrb[0].mxu0 %v1181
      %v1378 = vpop.f32.mrb[0].mxu0
      %v1379 = vadd.f32 0.0, %v1378
      %v1380 = vpop.f32.mrb[0].mxu0
      %1381 = vmatprep.mubr.f32.mxu0 0.0
      %1382 = vmatmul.mubr.f32.gmra.mrb[0].mxu0 %v1184
      %v1383 = vpop.f32.mrb[0].mxu0
      %v1384 = vadd.f32 0.0, %v1383
      %v1385 = vpop.f32.mrb[0].mxu0
      %1386 = vmatprep.mubr.f32.mxu0 0.0
      %1387 = vmatmul.mubr.f32.gmra.mrb[0].mxu0 %v1187
      %v1388 = vpop.f32.mrb[0].mxu0
      %v1389 = vadd.f32 0.0, %v1388
      %v1390 = vpop.f32.mrb[0].mxu0
      %1391 = vmatprep.mubr.f32.mxu0 0.0
      %1392 = vmatmul.mubr.f32.gmra.mrb[0].mxu0 %v1190
      %v1393 = vpop.f32.mrb[0].mxu0
      %v1394 = vadd.f32 0.0, %v1393
      %v1395 = vpop.f32.mrb[0].mxu0
      %1396 = vmatprep.mubr.f32.mxu0 0.0
      %1397 = vmatmul.mubr.f32.gmra.mrb[0].mxu0 %v1193
      %v1398 = vpop.f32.mrb[0].mxu0
      %v1399 = vadd.f32 0.0, %v1398
      %v1400 = vpop.f32.mrb[0].mxu0
      %1401 = vmatprep.mubr.f32.mxu0 0.0
      %1402 = vmatmul.mubr.f32.gmra.mrb[0].mxu0 %v1196
      %v1403 = vpop.f32.mrb[0].mxu0
      %v1404 = vadd.f32 0.0, %v1403
      %v1405 = vpop.f32.mrb[0].mxu0
      %1406 = vmatprep.mubr.f32.mxu0 0.0
      %1407 = vmatmul.mubr.f32.gmra.mrb[0].mxu0 %v1199
      %v1408 = vpop.f32.mrb[0].mxu0
      %v1409 = vadd.f32 0.0, %v1408
      %v1410 = vpop.f32.mrb[0].mxu0
      %1411 = vmatprep.mubr.f32.mxu0 0.0
      %1412 = vmatmul.mubr.f32.gmra.mrb[0].mxu0 %v1202
      %v1413 = vpop.f32.mrb[0].mxu0
      %v1414 = vadd.f32 0.0, %v1413
      %v1415 = vpop.f32.mrb[0].mxu0
      %1416 = vmatprep.mubr.f32.mxu0 0.0
      %1417 = vmatmul.mubr.f32.gmra.mrb[0].mxu0 %v1205
      %v1418 = vpop.f32.mrb[0].mxu0
      %v1419 = vadd.f32 0.0, %v1418
      %v1420 = vpop.f32.mrb[0].mxu0
      %1421 = vmatprep.mubr.f32.mxu0 0.0
      %1422 = vmatmul.mubr.f32.gmra.mrb[0].mxu0 %v1208
      %v1423 = vpop.f32.mrb[0].mxu0
      %v1424 = vadd.f32 0.0, %v1423
      %v1425 = vpop.f32.mrb[0].mxu0
      %1426 = vmatprep.mubr.f32.mxu0 0.0
      %1427 = vmatmul.mubr.f32.gmra.mrb[0].mxu0 %v1211
      %v1428 = vpop.f32.mrb[0].mxu0
      %v1429 = vadd.f32 0.0, %v1428
      %v1430 = vpop.f32.mrb[0].mxu0
      %1431 = vmatprep.mubr.f32.mxu0 0.0
      %1432 = vmatmul.mubr.f32.gmra.mrb[0].mxu0 %v1214
      %v1433 = vpop.f32.mrb[0].mxu0
      %v1434 = vadd.f32 0.0, %v1433
      %v1435 = vpop.f32.mrb[0].mxu0
      %1436 = vmatprep.mubr.f32.mxu0 0.0
      %1437 = vmatmul.mubr.f32.gmra.mrb[0].mxu0 %v1217
      %v1438 = vpop.f32.mrb[0].mxu0
      %v1439 = vadd.f32 0.0, %v1438
      %v1440 = vpop.f32.mrb[0].mxu0
      %1441 = vmatprep.mubr.f32.mxu0 0.0
      %1442 = vmatmul.mubr.f32.gmra.mrb[0].mxu0 %v1220
      %v1443 = vpop.f32.mrb[0].mxu0
      %v1444 = vadd.f32 0.0, %v1443
      %v1445 = vpop.f32.mrb[0].mxu0
      %1446 = vdwg.mxu0
      %v1448 = vsel %vm1125, %v1076, 0
      %v1451 = vsel %vm1125, %v1077, 0
      %1453 = vmatprep.subr.mxu0 0.0
      %1454 = vmatpush1.msra.mxu0 %v1112
      %1455 = vmatprep.subr.mxu0 0.0
      %1456 = vmatpush1.msra.mxu0 %v1113
      %1457 = vmatprep.subr.mxu0 0.0
      %1458 = vmatpush1.msra.mxu0 %v1114
      %1459 = vmatprep.subr.mxu0 0.0
      %1460 = vmatpush1.msra.mxu0 %v1115
      %1461 = vmatprep.subr.mxu0 0.0
      %1462 = vmatpush1.msra.mxu0 %v1116
      %1463 = vmatprep.subr.mxu0 0.0
      %1464 = vmatpush1.msra.mxu0 %v1117
      %1465 = vmatprep.subr.mxu0 0.0
      %1466 = vmatpush1.msra.mxu0 0.0
      %1467 = vmatprep.subr.mxu0 0.0
      %1468 = vmatpush1.msra.mxu0 0.0
      %1469 = vmatprep.subr.mxu0 0.0
      %1470 = vmatpush1.msra.mxu0 0.0
      %1471 = vmatprep.subr.mxu0 0.0
      %1472 = vmatpush1.msra.mxu0 0.0
      %1473 = vmatprep.subr.mxu0 0.0
      %1474 = vmatpush1.msra.mxu0 0.0
      %1475 = vmatprep.subr.mxu0 0.0
      %1476 = vmatpush1.msra.mxu0 0.0
      %1477 = vmatprep.subr.mxu0 0.0
      %1478 = vmatpush1.msra.mxu0 0.0
      %1479 = vmatprep.subr.mxu0 0.0
      %1480 = vmatpush1.msra.mxu0 0.0
      %1481 = vmatprep.subr.mxu0 0.0
      %1482 = vmatpush1.msra.mxu0 0.0
      %1483 = vmatprep.subr.mxu0 0.0
      %1484 = vmatpush1.msra.mxu0 0.0
      %1485 = vmatprep.subr.mxu0 0.0
      %1486 = vmatpush1.msra.mxu0 0.0
      %1487 = vmatprep.subr.mxu0 0.0
      %1488 = vmatpush1.msra.mxu0 0.0
      %1489 = vmatprep.subr.mxu0 0.0
      %1490 = vmatpush1.msra.mxu0 0.0
      %1491 = vmatprep.subr.mxu0 0.0
      %1492 = vmatpush1.msra.mxu0 0.0
      %1493 = vmatprep.subr.mxu0 0.0
      %1494 = vmatpush1.msra.mxu0 0.0
      %1495 = vmatprep.subr.mxu0 0.0
      %1496 = vmatpush1.msra.mxu0 0.0
      %1497 = vmatprep.subr.mxu0 0.0
      %1498 = vmatpush1.msra.mxu0 0.0
      %1499 = vmatprep.subr.mxu0 0.0
      %1500 = vmatpush1.msra.mxu0 0.0
      %1501 = vmatprep.subr.mxu0 0.0
      %1502 = vmatpush1.msra.mxu0 0.0
      %1503 = vmatprep.subr.mxu0 0.0
      %1504 = vmatpush1.msra.mxu0 0.0
      %1505 = vmatprep.subr.mxu0 0.0
      %1506 = vmatpush1.msra.mxu0 0.0
      %1507 = vmatprep.subr.mxu0 0.0
      %1508 = vmatpush1.msra.mxu0 0.0
      %1509 = vmatprep.subr.mxu0 0.0
      %1510 = vmatpush1.msra.mxu0 0.0
      %1511 = vmatprep.subr.mxu0 0.0
      %1512 = vmatpush1.msra.mxu0 0.0
      %1513 = vmatprep.subr.mxu0 0.0
      %1514 = vmatpush1.msra.mxu0 0.0
      %1515 = vmatprep.subr.mxu0 0.0
      %1516 = vmatpush1.msra.mxu0 0.0
      %1517 = vmatprep.mubr.f32.mxu0 0.0
      %1518 = vmatmul.mubr.f32.gmra.mrb[0].mxu0 %v1448
      %v1519 = vpop.f32.mrb[0].mxu0
      %v1520 = vadd.f32 %v1289, %v1519
      %v1521 = vpop.f32.mrb[0].mxu0
      %1522 = vmatprep.mubr.f32.mxu0 0.0
      %1523 = vmatmul.mubr.f32.gmra.mrb[0].mxu0 %v1451
      %v1524 = vpop.f32.mrb[0].mxu0
      %v1525 = vadd.f32 %v1294, %v1524
      %v1526 = vpop.f32.mrb[0].mxu0
      %1527 = vmatprep.mubr.f32.mxu0 0.0
      %1528 = vmatmul.mubr.f32.gmra.mrb[0].mxu0 %v1127
      %v1529 = vpop.f32.mrb[0].mxu0
      %v1530 = vadd.f32 %v1299, %v1529
      %v1531 = vpop.f32.mrb[0].mxu0
      %1532 = vmatprep.mubr.f32.mxu0 0.0
      %1533 = vmatmul.mubr.f32.gmra.mrb[0].mxu0 %v1130
      %v1534 = vpop.f32.mrb[0].mxu0
      %v1535 = vadd.f32 %v1304, %v1534
      %v1536 = vpop.f32.mrb[0].mxu0
      %1537 = vmatprep.mubr.f32.mxu0 0.0
      %1538 = vmatmul.mubr.f32.gmra.mrb[0].mxu0 %v1133
      %v1539 = vpop.f32.mrb[0].mxu0
      %v1540 = vadd.f32 %v1309, %v1539
      %v1541 = vpop.f32.mrb[0].mxu0
      %1542 = vmatprep.mubr.f32.mxu0 0.0
      %1543 = vmatmul.mubr.f32.gmra.mrb[0].mxu0 %v1136
      %v1544 = vpop.f32.mrb[0].mxu0
      %v1545 = vadd.f32 %v1314, %v1544
      %v1546 = vpop.f32.mrb[0].mxu0
      %1547 = vmatprep.mubr.f32.mxu0 0.0
      %1548 = vmatmul.mubr.f32.gmra.mrb[0].mxu0 %v1139
      %v1549 = vpop.f32.mrb[0].mxu0
      %v1550 = vadd.f32 %v1319, %v1549
      %v1551 = vpop.f32.mrb[0].mxu0
      %1552 = vmatprep.mubr.f32.mxu0 0.0
      %1553 = vmatmul.mubr.f32.gmra.mrb[0].mxu0 %v1142
      %v1554 = vpop.f32.mrb[0].mxu0
      %v1555 = vadd.f32 %v1324, %v1554
      %v1556 = vpop.f32.mrb[0].mxu0
      %1557 = vmatprep.mubr.f32.mxu0 0.0
      %1558 = vmatmul.mubr.f32.gmra.mrb[0].mxu0 %v1145
      %v1559 = vpop.f32.mrb[0].mxu0
      %v1560 = vadd.f32 %v1329, %v1559
      %v1561 = vpop.f32.mrb[0].mxu0
      %1562 = vmatprep.mubr.f32.mxu0 0.0
      %1563 = vmatmul.mubr.f32.gmra.mrb[0].mxu0 %v1148
      %v1564 = vpop.f32.mrb[0].mxu0
      %v1565 = vadd.f32 %v1334, %v1564
      %v1566 = vpop.f32.mrb[0].mxu0
      %1567 = vmatprep.mubr.f32.mxu0 0.0
      %1568 = vmatmul.mubr.f32.gmra.mrb[0].mxu0 %v1151
      %v1569 = vpop.f32.mrb[0].mxu0
      %v1570 = vadd.f32 %v1339, %v1569
      %v1571 = vpop.f32.mrb[0].mxu0
      %1572 = vmatprep.mubr.f32.mxu0 0.0
      %1573 = vmatmul.mubr.f32.gmra.mrb[0].mxu0 %v1154
      %v1574 = vpop.f32.mrb[0].mxu0
      %v1575 = vadd.f32 %v1344, %v1574
      %v1576 = vpop.f32.mrb[0].mxu0
      %1577 = vmatprep.mubr.f32.mxu0 0.0
      %1578 = vmatmul.mubr.f32.gmra.mrb[0].mxu0 %v1157
      %v1579 = vpop.f32.mrb[0].mxu0
      %v1580 = vadd.f32 %v1349, %v1579
      %v1581 = vpop.f32.mrb[0].mxu0
      %1582 = vmatprep.mubr.f32.mxu0 0.0
      %1583 = vmatmul.mubr.f32.gmra.mrb[0].mxu0 %v1160
      %v1584 = vpop.f32.mrb[0].mxu0
      %v1585 = vadd.f32 %v1354, %v1584
      %v1586 = vpop.f32.mrb[0].mxu0
      %1587 = vmatprep.mubr.f32.mxu0 0.0
      %1588 = vmatmul.mubr.f32.gmra.mrb[0].mxu0 %v1163
      %v1589 = vpop.f32.mrb[0].mxu0
      %v1590 = vadd.f32 %v1359, %v1589
      %v1591 = vpop.f32.mrb[0].mxu0
      %1592 = vmatprep.mubr.f32.mxu0 0.0
      %1593 = vmatmul.mubr.f32.gmra.mrb[0].mxu0 %v1166
      %v1594 = vpop.f32.mrb[0].mxu0
      %v1595 = vadd.f32 %v1364, %v1594
      %v1596 = vpop.f32.mrb[0].mxu0
      %1597 = vmatprep.mubr.f32.mxu0 0.0
      %1598 = vmatmul.mubr.f32.gmra.mrb[0].mxu0 %v1169
      %v1599 = vpop.f32.mrb[0].mxu0
      %v1600 = vadd.f32 %v1369, %v1599
      %v1601 = vpop.f32.mrb[0].mxu0
      %1602 = vmatprep.mubr.f32.mxu0 0.0
      %1603 = vmatmul.mubr.f32.gmra.mrb[0].mxu0 %v1172
      %v1604 = vpop.f32.mrb[0].mxu0
      %v1605 = vadd.f32 %v1374, %v1604
      %v1606 = vpop.f32.mrb[0].mxu0
      %1607 = vmatprep.mubr.f32.mxu0 0.0
      %1608 = vmatmul.mubr.f32.gmra.mrb[0].mxu0 %v1175
      %v1609 = vpop.f32.mrb[0].mxu0
      %v1610 = vadd.f32 %v1379, %v1609
      %v1611 = vpop.f32.mrb[0].mxu0
      %1612 = vmatprep.mubr.f32.mxu0 0.0
      %1613 = vmatmul.mubr.f32.gmra.mrb[0].mxu0 %v1178
      %v1614 = vpop.f32.mrb[0].mxu0
      %v1615 = vadd.f32 %v1384, %v1614
      %v1616 = vpop.f32.mrb[0].mxu0
      %1617 = vmatprep.mubr.f32.mxu0 0.0
      %1618 = vmatmul.mubr.f32.gmra.mrb[0].mxu0 %v1181
      %v1619 = vpop.f32.mrb[0].mxu0
      %v1620 = vadd.f32 %v1389, %v1619
      %v1621 = vpop.f32.mrb[0].mxu0
      %1622 = vmatprep.mubr.f32.mxu0 0.0
      %1623 = vmatmul.mubr.f32.gmra.mrb[0].mxu0 %v1184
      %v1624 = vpop.f32.mrb[0].mxu0
      %v1625 = vadd.f32 %v1394, %v1624
      %v1626 = vpop.f32.mrb[0].mxu0
      %1627 = vmatprep.mubr.f32.mxu0 0.0
      %1628 = vmatmul.mubr.f32.gmra.mrb[0].mxu0 %v1187
      %v1629 = vpop.f32.mrb[0].mxu0
      %v1630 = vadd.f32 %v1399, %v1629
      %v1631 = vpop.f32.mrb[0].mxu0
      %1632 = vmatprep.mubr.f32.mxu0 0.0
      %1633 = vmatmul.mubr.f32.gmra.mrb[0].mxu0 %v1190
      %v1634 = vpop.f32.mrb[0].mxu0
      %v1635 = vadd.f32 %v1404, %v1634
      %v1636 = vpop.f32.mrb[0].mxu0
      %1637 = vmatprep.mubr.f32.mxu0 0.0
      %1638 = vmatmul.mubr.f32.gmra.mrb[0].mxu0 %v1193
      %v1639 = vpop.f32.mrb[0].mxu0
      %v1640 = vadd.f32 %v1409, %v1639
      %v1641 = vpop.f32.mrb[0].mxu0
      %1642 = vmatprep.mubr.f32.mxu0 0.0
      %1643 = vmatmul.mubr.f32.gmra.mrb[0].mxu0 %v1196
      %v1644 = vpop.f32.mrb[0].mxu0
      %v1645 = vadd.f32 %v1414, %v1644
      %v1646 = vpop.f32.mrb[0].mxu0
      %1647 = vmatprep.mubr.f32.mxu0 0.0
      %1648 = vmatmul.mubr.f32.gmra.mrb[0].mxu0 %v1199
      %v1649 = vpop.f32.mrb[0].mxu0
      %v1650 = vadd.f32 %v1419, %v1649
      %v1651 = vpop.f32.mrb[0].mxu0
      %1652 = vmatprep.mubr.f32.mxu0 0.0
      %1653 = vmatmul.mubr.f32.gmra.mrb[0].mxu0 %v1202
      %v1654 = vpop.f32.mrb[0].mxu0
      %v1655 = vadd.f32 %v1424, %v1654
      %v1656 = vpop.f32.mrb[0].mxu0
      %1657 = vmatprep.mubr.f32.mxu0 0.0
      %1658 = vmatmul.mubr.f32.gmra.mrb[0].mxu0 %v1205
      %v1659 = vpop.f32.mrb[0].mxu0
      %v1660 = vadd.f32 %v1429, %v1659
      %v1661 = vpop.f32.mrb[0].mxu0
      %1662 = vmatprep.mubr.f32.mxu0 0.0
      %1663 = vmatmul.mubr.f32.gmra.mrb[0].mxu0 %v1208
      %v1664 = vpop.f32.mrb[0].mxu0
      %v1665 = vadd.f32 %v1434, %v1664
      %v1666 = vpop.f32.mrb[0].mxu0
      %1667 = vmatprep.mubr.f32.mxu0 0.0
      %1668 = vmatmul.mubr.f32.gmra.mrb[0].mxu0 %v1211
      %v1669 = vpop.f32.mrb[0].mxu0
      %v1670 = vadd.f32 %v1439, %v1669
      %v1671 = vpop.f32.mrb[0].mxu0
      %1672 = vmatprep.mubr.f32.mxu0 0.0
      %1673 = vmatmul.mubr.f32.gmra.mrb[0].mxu0 %v1214
      %v1674 = vpop.f32.mrb[0].mxu0
      %v1675 = vadd.f32 %v1444, %v1674
      %v1676 = vpop.f32.mrb[0].mxu0
      %1677 = vdwg.mxu0
      %s1678 = scalar_lea.vmem %s1, 96
      %v1679 = vld [vmem:[%s1678] sm:$0xff]
      %v1680 = vld [vmem:[%s1678 + $0x8] sm:$0xff]
      %v1681 = vld [vmem:[%s1678 + $0x10] sm:$0xff]
      %v1682 = vld [vmem:[%s1678 + $0x18] sm:$0xff]
      %v1683 = vld [vmem:[%s1678 + $0x20] sm:$0xff]
      %v1684 = vld [vmem:[%s1678 + $0x28] sm:$0xff]
      %v1686 = vsel %vm1125, %v1110, 0
      %v1689 = vsel %vm1125, %v1111, 0
      %1691 = vmatprep.subr.mxu0 0.0
      %1692 = vmatpush1.msra.mxu0 %v1679
      %1693 = vmatprep.subr.mxu0 0.0
      %1694 = vmatpush1.msra.mxu0 %v1680
      %1695 = vmatprep.subr.mxu0 0.0
      %1696 = vmatpush1.msra.mxu0 %v1681
      %1697 = vmatprep.subr.mxu0 0.0
      %1698 = vmatpush1.msra.mxu0 %v1682
      %1699 = vmatprep.subr.mxu0 0.0
      %1700 = vmatpush1.msra.mxu0 %v1683
      %1701 = vmatprep.subr.mxu0 0.0
      %1702 = vmatpush1.msra.mxu0 %v1684
      %1703 = vmatprep.subr.mxu0 0.0
      %1704 = vmatpush1.msra.mxu0 0.0
      %1705 = vmatprep.subr.mxu0 0.0
      %1706 = vmatpush1.msra.mxu0 0.0
      %1707 = vmatprep.subr.mxu0 0.0
      %1708 = vmatpush1.msra.mxu0 0.0
      %1709 = vmatprep.subr.mxu0 0.0
      %1710 = vmatpush1.msra.mxu0 0.0
      %1711 = vmatprep.subr.mxu0 0.0
      %1712 = vmatpush1.msra.mxu0 0.0
      %1713 = vmatprep.subr.mxu0 0.0
      %1714 = vmatpush1.msra.mxu0 0.0
      %1715 = vmatprep.subr.mxu0 0.0
      %1716 = vmatpush1.msra.mxu0 0.0
      %1717 = vmatprep.subr.mxu0 0.0
      %1718 = vmatpush1.msra.mxu0 0.0
      %1719 = vmatprep.subr.mxu0 0.0
      %1720 = vmatpush1.msra.mxu0 0.0
      %1721 = vmatprep.subr.mxu0 0.0
      %1722 = vmatpush1.msra.mxu0 0.0
      %1723 = vmatprep.subr.mxu0 0.0
      %1724 = vmatpush1.msra.mxu0 0.0
      %1725 = vmatprep.subr.mxu0 0.0
      %1726 = vmatpush1.msra.mxu0 0.0
      %1727 = vmatprep.subr.mxu0 0.0
      %1728 = vmatpush1.msra.mxu0 0.0
      %1729 = vmatprep.subr.mxu0 0.0
      %1730 = vmatpush1.msra.mxu0 0.0
      %1731 = vmatprep.subr.mxu0 0.0
      %1732 = vmatpush1.msra.mxu0 0.0
      %1733 = vmatprep.subr.mxu0 0.0
      %1734 = vmatpush1.msra.mxu0 0.0
      %1735 = vmatprep.subr.mxu0 0.0
      %1736 = vmatpush1.msra.mxu0 0.0
      %1737 = vmatprep.subr.mxu0 0.0
      %1738 = vmatpush1.msra.mxu0 0.0
      %1739 = vmatprep.subr.mxu0 0.0
      %1740 = vmatpush1.msra.mxu0 0.0
      %1741 = vmatprep.subr.mxu0 0.0
      %1742 = vmatpush1.msra.mxu0 0.0
      %1743 = vmatprep.subr.mxu0 0.0
      %1744 = vmatpush1.msra.mxu0 0.0
      %1745 = vmatprep.subr.mxu0 0.0
      %1746 = vmatpush1.msra.mxu0 0.0
      %1747 = vmatprep.subr.mxu0 0.0
      %1748 = vmatpush1.msra.mxu0 0.0
      %1749 = vmatprep.subr.mxu0 0.0
      %1750 = vmatpush1.msra.mxu0 0.0
      %1751 = vmatprep.subr.mxu0 0.0
      %1752 = vmatpush1.msra.mxu0 0.0
      %1753 = vmatprep.subr.mxu0 0.0
      %1754 = vmatpush1.msra.mxu0 0.0
      %1755 = vmatprep.mubr.f32.mxu0 0.0
      %1756 = vmatmul.mubr.f32.gmra.mrb[0].mxu0 %v1133
      %v1757 = vpop.f32.mrb[0].mxu0
      %v1758 = vadd.f32 0.0, %v1757
      %v1759 = vpop.f32.mrb[0].mxu0
      %1760 = vmatprep.mubr.f32.mxu0 0.0
      %1761 = vmatmul.mubr.f32.gmra.mrb[0].mxu0 %v1136
      %v1762 = vpop.f32.mrb[0].mxu0
      %v1763 = vadd.f32 0.0, %v1762
      %v1764 = vpop.f32.mrb[0].mxu0
      %1765 = vmatprep.mubr.f32.mxu0 0.0
      %1766 = vmatmul.mubr.f32.gmra.mrb[0].mxu0 %v1139
      %v1767 = vpop.f32.mrb[0].mxu0
      %v1768 = vadd.f32 0.0, %v1767
      %v1769 = vpop.f32.mrb[0].mxu0
      %1770 = vmatprep.mubr.f32.mxu0 0.0
      %1771 = vmatmul.mubr.f32.gmra.mrb[0].mxu0 %v1142
      %v1772 = vpop.f32.mrb[0].mxu0
      %v1773 = vadd.f32 0.0, %v1772
      %v1774 = vpop.f32.mrb[0].mxu0
      %1775 = vmatprep.mubr.f32.mxu0 0.0
      %1776 = vmatmul.mubr.f32.gmra.mrb[0].mxu0 %v1145
      %v1777 = vpop.f32.mrb[0].mxu0
      %v1778 = vadd.f32 0.0, %v1777
      %v1779 = vpop.f32.mrb[0].mxu0
      %1780 = vmatprep.mubr.f32.mxu0 0.0
      %1781 = vmatmul.mubr.f32.gmra.mrb[0].mxu0 %v1148
      %v1782 = vpop.f32.mrb[0].mxu0
      %v1783 = vadd.f32 0.0, %v1782
      %v1784 = vpop.f32.mrb[0].mxu0
      %1785 = vmatprep.mubr.f32.mxu0 0.0
      %1786 = vmatmul.mubr.f32.gmra.mrb[0].mxu0 %v1151
      %v1787 = vpop.f32.mrb[0].mxu0
      %v1788 = vadd.f32 0.0, %v1787
      %v1789 = vpop.f32.mrb[0].mxu0
      %1790 = vmatprep.mubr.f32.mxu0 0.0
      %1791 = vmatmul.mubr.f32.gmra.mrb[0].mxu0 %v1154
      %v1792 = vpop.f32.mrb[0].mxu0
      %v1793 = vadd.f32 0.0, %v1792
      %v1794 = vpop.f32.mrb[0].mxu0
      %1795 = vmatprep.mubr.f32.mxu0 0.0
      %1796 = vmatmul.mubr.f32.gmra.mrb[0].mxu0 %v1157
      %v1797 = vpop.f32.mrb[0].mxu0
      %v1798 = vadd.f32 0.0, %v1797
      %v1799 = vpop.f32.mrb[0].mxu0
      %1800 = vmatprep.mubr.f32.mxu0 0.0
      %1801 = vmatmul.mubr.f32.gmra.mrb[0].mxu0 %v1160
      %v1802 = vpop.f32.mrb[0].mxu0
      %v1803 = vadd.f32 0.0, %v1802
      %v1804 = vpop.f32.mrb[0].mxu0
      %1805 = vmatprep.mubr.f32.mxu0 0.0
      %1806 = vmatmul.mubr.f32.gmra.mrb[0].mxu0 %v1163
      %v1807 = vpop.f32.mrb[0].mxu0
      %v1808 = vadd.f32 0.0, %v1807
      %v1809 = vpop.f32.mrb[0].mxu0
      %1810 = vmatprep.mubr.f32.mxu0 0.0
      %1811 = vmatmul.mubr.f32.gmra.mrb[0].mxu0 %v1166
      %v1812 = vpop.f32.mrb[0].mxu0
      %v1813 = vadd.f32 0.0, %v1812
      %v1814 = vpop.f32.mrb[0].mxu0
      %1815 = vmatprep.mubr.f32.mxu0 0.0
      %1816 = vmatmul.mubr.f32.gmra.mrb[0].mxu0 %v1169
      %v1817 = vpop.f32.mrb[0].mxu0
      %v1818 = vadd.f32 0.0, %v1817
      %v1819 = vpop.f32.mrb[0].mxu0
      %1820 = vmatprep.mubr.f32.mxu0 0.0
      %1821 = vmatmul.mubr.f32.gmra.mrb[0].mxu0 %v1172
      %v1822 = vpop.f32.mrb[0].mxu0
      %v1823 = vadd.f32 0.0, %v1822
      %v1824 = vpop.f32.mrb[0].mxu0
      %1825 = vmatprep.mubr.f32.mxu0 0.0
      %1826 = vmatmul.mubr.f32.gmra.mrb[0].mxu0 %v1175
      %v1827 = vpop.f32.mrb[0].mxu0
      %v1828 = vadd.f32 0.0, %v1827
      %v1829 = vpop.f32.mrb[0].mxu0
      %1830 = vmatprep.mubr.f32.mxu0 0.0
      %1831 = vmatmul.mubr.f32.gmra.mrb[0].mxu0 %v1178
      %v1832 = vpop.f32.mrb[0].mxu0
      %v1833 = vadd.f32 0.0, %v1832
      %v1834 = vpop.f32.mrb[0].mxu0
      %1835 = vmatprep.mubr.f32.mxu0 0.0
      %1836 = vmatmul.mubr.f32.gmra.mrb[0].mxu0 %v1181
      %v1837 = vpop.f32.mrb[0].mxu0
      %v1838 = vadd.f32 0.0, %v1837
      %v1839 = vpop.f32.mrb[0].mxu0
      %1840 = vmatprep.mubr.f32.mxu0 0.0
      %1841 = vmatmul.mubr.f32.gmra.mrb[0].mxu0 %v1184
      %v1842 = vpop.f32.mrb[0].mxu0
      %v1843 = vadd.f32 0.0, %v1842
      %v1844 = vpop.f32.mrb[0].mxu0
      %1845 = vmatprep.mubr.f32.mxu0 0.0
      %1846 = vmatmul.mubr.f32.gmra.mrb[0].mxu0 %v1187
      %v1847 = vpop.f32.mrb[0].mxu0
      %v1848 = vadd.f32 0.0, %v1847
      %v1849 = vpop.f32.mrb[0].mxu0
      %1850 = vmatprep.mubr.f32.mxu0 0.0
      %1851 = vmatmul.mubr.f32.gmra.mrb[0].mxu0 %v1190
      %v1852 = vpop.f32.mrb[0].mxu0
      %v1853 = vadd.f32 0.0, %v1852
      %v1854 = vpop.f32.mrb[0].mxu0
      %1855 = vmatprep.mubr.f32.mxu0 0.0
      %1856 = vmatmul.mubr.f32.gmra.mrb[0].mxu0 %v1193
      %v1857 = vpop.f32.mrb[0].mxu0
      %v1858 = vadd.f32 0.0, %v1857
      %v1859 = vpop.f32.mrb[0].mxu0
      %1860 = vmatprep.mubr.f32.mxu0 0.0
      %1861 = vmatmul.mubr.f32.gmra.mrb[0].mxu0 %v1196
      %v1862 = vpop.f32.mrb[0].mxu0
      %v1863 = vadd.f32 0.0, %v1862
      %v1864 = vpop.f32.mrb[0].mxu0
      %1865 = vmatprep.mubr.f32.mxu0 0.0
      %1866 = vmatmul.mubr.f32.gmra.mrb[0].mxu0 %v1199
      %v1867 = vpop.f32.mrb[0].mxu0
      %v1868 = vadd.f32 0.0, %v1867
      %v1869 = vpop.f32.mrb[0].mxu0
      %1870 = vmatprep.mubr.f32.mxu0 0.0
      %1871 = vmatmul.mubr.f32.gmra.mrb[0].mxu0 %v1202
      %v1872 = vpop.f32.mrb[0].mxu0
      %v1873 = vadd.f32 0.0, %v1872
      %v1874 = vpop.f32.mrb[0].mxu0
      %1875 = vmatprep.mubr.f32.mxu0 0.0
      %1876 = vmatmul.mubr.f32.gmra.mrb[0].mxu0 %v1205
      %v1877 = vpop.f32.mrb[0].mxu0
      %v1878 = vadd.f32 0.0, %v1877
      %v1879 = vpop.f32.mrb[0].mxu0
      %1880 = vmatprep.mubr.f32.mxu0 0.0
      %1881 = vmatmul.mubr.f32.gmra.mrb[0].mxu0 %v1208
      %v1882 = vpop.f32.mrb[0].mxu0
      %v1883 = vadd.f32 0.0, %v1882
      %v1884 = vpop.f32.mrb[0].mxu0
      %1885 = vmatprep.mubr.f32.mxu0 0.0
      %1886 = vmatmul.mubr.f32.gmra.mrb[0].mxu0 %v1211
      %v1887 = vpop.f32.mrb[0].mxu0
      %v1888 = vadd.f32 0.0, %v1887
      %v1889 = vpop.f32.mrb[0].mxu0
      %1890 = vmatprep.mubr.f32.mxu0 0.0
      %1891 = vmatmul.mubr.f32.gmra.mrb[0].mxu0 %v1214
      %v1892 = vpop.f32.mrb[0].mxu0
      %v1893 = vadd.f32 0.0, %v1892
      %v1894 = vpop.f32.mrb[0].mxu0
      %1895 = vmatprep.mubr.f32.mxu0 0.0
      %1896 = vmatmul.mubr.f32.gmra.mrb[0].mxu0 %v1217
      %v1897 = vpop.f32.mrb[0].mxu0
      %v1898 = vadd.f32 0.0, %v1897
      %v1899 = vpop.f32.mrb[0].mxu0
      %1900 = vmatprep.mubr.f32.mxu0 0.0
      %1901 = vmatmul.mubr.f32.gmra.mrb[0].mxu0 %v1220
      %v1902 = vpop.f32.mrb[0].mxu0
      %v1903 = vadd.f32 0.0, %v1902
      %v1904 = vpop.f32.mrb[0].mxu0
      %1905 = vmatprep.mubr.f32.mxu0 0.0
      %1906 = vmatmul.mubr.f32.gmra.mrb[0].mxu0 %v1686
      %v1907 = vpop.f32.mrb[0].mxu0
      %v1908 = vadd.f32 0.0, %v1907
      %v1909 = vpop.f32.mrb[0].mxu0
      %1910 = vmatprep.mubr.f32.mxu0 0.0
      %1911 = vmatmul.mubr.f32.gmra.mrb[0].mxu0 %v1689
      %v1912 = vpop.f32.mrb[0].mxu0
      %v1913 = vadd.f32 0.0, %v1912
      %v1914 = vpop.f32.mrb[0].mxu0
      %1915 = vdwg.mxu0
      %v1916 = vadd.f32 %v1520, %v1758
      %v1917 = vadd.f32 %v1525, %v1763
      %v1918 = vadd.f32 %v1530, %v1768
      %v1919 = vadd.f32 %v1535, %v1773
      %v1920 = vadd.f32 %v1540, %v1778
      %v1921 = vadd.f32 %v1545, %v1783
      %v1922 = vadd.f32 %v1550, %v1788
      %v1923 = vadd.f32 %v1555, %v1793
      %v1924 = vadd.f32 %v1560, %v1798
      %v1925 = vadd.f32 %v1565, %v1803
      %v1926 = vadd.f32 %v1570, %v1808
      %v1927 = vadd.f32 %v1575, %v1813
      %v1928 = vadd.f32 %v1580, %v1818
      %v1929 = vadd.f32 %v1585, %v1823
      %v1930 = vadd.f32 %v1590, %v1828
      %v1931 = vadd.f32 %v1595, %v1833
      %v1932 = vadd.f32 %v1600, %v1838
      %v1933 = vadd.f32 %v1605, %v1843
      %v1934 = vadd.f32 %v1610, %v1848
      %v1935 = vadd.f32 %v1615, %v1853
      %v1936 = vadd.f32 %v1620, %v1858
      %v1937 = vadd.f32 %v1625, %v1863
      %v1938 = vadd.f32 %v1630, %v1868
      %v1939 = vadd.f32 %v1635, %v1873
      %v1940 = vadd.f32 %v1640, %v1878
      %v1941 = vadd.f32 %v1645, %v1883
      %v1942 = vadd.f32 %v1650, %v1888
      %v1943 = vadd.f32 %v1655, %v1893
      %v1944 = vadd.f32 %v1660, %v1898
      %v1945 = vadd.f32 %v1665, %v1903
      %v1946 = vadd.f32 %v1670, %v1908
      %v1947 = vadd.f32 %v1675, %v1913
      %v1948 = vld [vmem:[%s2] sm:$0x1]
      %v1950 = vlaneseq
      %v1951 = vshrl.u32 %v1950, 7
      %v1952 = vsub.s32 0, %v1951
      %v1953 = vrot.slane %v1948, %v1952
      %v1955 = vadd.f32 %v1916, %v1953
      %v1956 = vadd.f32 %v1917, %v1953
      %v1957 = vadd.f32 %v1918, %v1953
      %v1958 = vadd.f32 %v1919, %v1953
      %v1959 = vadd.f32 %v1920, %v1953
      %v1960 = vadd.f32 %v1921, %v1953
      %v1961 = vadd.f32 %v1922, %v1953
      %v1962 = vadd.f32 %v1923, %v1953
      %v1963 = vadd.f32 %v1924, %v1953
      %v1964 = vadd.f32 %v1925, %v1953
      %v1965 = vadd.f32 %v1926, %v1953
      %v1966 = vadd.f32 %v1927, %v1953
      %v1967 = vadd.f32 %v1928, %v1953
      %v1968 = vadd.f32 %v1929, %v1953
      %v1969 = vadd.f32 %v1930, %v1953
      %v1970 = vadd.f32 %v1931, %v1953
      %v1971 = vadd.f32 %v1932, %v1953
      %v1972 = vadd.f32 %v1933, %v1953
      %v1973 = vadd.f32 %v1934, %v1953
      %v1974 = vadd.f32 %v1935, %v1953
      %v1975 = vadd.f32 %v1936, %v1953
      %v1976 = vadd.f32 %v1937, %v1953
      %v1977 = vadd.f32 %v1938, %v1953
      %v1978 = vadd.f32 %v1939, %v1953
      %v1979 = vadd.f32 %v1940, %v1953
      %v1980 = vadd.f32 %v1941, %v1953
      %v1981 = vadd.f32 %v1942, %v1953
      %v1982 = vadd.f32 %v1943, %v1953
      %v1983 = vadd.f32 %v1944, %v1953
      %v1984 = vadd.f32 %v1945, %v1953
      %v1985 = vadd.f32 %v1946, %v1953
      %v1986 = vadd.f32 %v1947, %v1953
      %v1987 = vmax.f32 %v1955, 0.0
      %v1988 = vmax.f32 %v1956, 0.0
      %v1989 = vmax.f32 %v1957, 0.0
      %v1990 = vmax.f32 %v1958, 0.0
      %v1991 = vmax.f32 %v1959, 0.0
      %v1992 = vmax.f32 %v1960, 0.0
      %v1993 = vmax.f32 %v1961, 0.0
      %v1994 = vmax.f32 %v1962, 0.0
      %v1995 = vmax.f32 %v1963, 0.0
      %v1996 = vmax.f32 %v1964, 0.0
      %v1997 = vmax.f32 %v1965, 0.0
      %v1998 = vmax.f32 %v1966, 0.0
      %v1999 = vmax.f32 %v1967, 0.0
      %v2000 = vmax.f32 %v1968, 0.0
      %v2001 = vmax.f32 %v1969, 0.0
      %v2002 = vmax.f32 %v1970, 0.0
      %v2003 = vmax.f32 %v1971, 0.0
      %v2004 = vmax.f32 %v1972, 0.0
      %v2005 = vmax.f32 %v1973, 0.0
      %v2006 = vmax.f32 %v1974, 0.0
      %v2007 = vmax.f32 %v1975, 0.0
      %v2008 = vmax.f32 %v1976, 0.0
      %v2009 = vmax.f32 %v1977, 0.0
      %v2010 = vmax.f32 %v1978, 0.0
      %v2011 = vmax.f32 %v1979, 0.0
      %v2012 = vmax.f32 %v1980, 0.0
      %v2013 = vmax.f32 %v1981, 0.0
      %v2014 = vmax.f32 %v1982, 0.0
      %v2015 = vmax.f32 %v1983, 0.0
      %v2016 = vmax.f32 %v1984, 0.0
      %v2017 = vmax.f32 %v1985, 0.0
      %v2018 = vmax.f32 %v1986, 0.0
      %s2019 = scalar_lea.vmem [#allocation3], 24
      %2020 = vst.msk [vmem:[%s2019 + $0x1] sm:$0xff] %vm225, %v1987
      %2021 = vst.msk [vmem:[%s2019 + $0x9] sm:$0xff] %vm225, %v1988
      %2022 = vst.msk [vmem:[%s2019 + $0x19] sm:$0xff] %vm225, %v1989
      %2023 = vst.msk [vmem:[%s2019 + $0x21] sm:$0xff] %vm225, %v1990
      %2024 = vst.msk [vmem:[%s2019 + $0x31] sm:$0xff] %vm225, %v1991
      %2025 = vst.msk [vmem:[%s2019 + $0x39] sm:$0xff] %vm225, %v1992
      %2026 = vst.msk [vmem:[%s2019 + $0x49] sm:$0xff] %vm225, %v1993
      %2027 = vst.msk [vmem:[%s2019 + $0x51] sm:$0xff] %vm225, %v1994
      %2028 = vst.msk [vmem:[%s2019 + $0x61] sm:$0xff] %vm225, %v1995
      %2029 = vst.msk [vmem:[%s2019 + $0x69] sm:$0xff] %vm225, %v1996
      %2030 = vst.msk [vmem:[%s2019 + $0x79] sm:$0xff] %vm225, %v1997
      %2031 = vst.msk [vmem:[%s2019 + $0x81] sm:$0xff] %vm225, %v1998
      %2032 = vst.msk [vmem:[%s2019 + $0x91] sm:$0xff] %vm225, %v1999
      %2033 = vst.msk [vmem:[%s2019 + $0x99] sm:$0xff] %vm225, %v2000
      %2034 = vst.msk [vmem:[%s2019 + $0xa9] sm:$0xff] %vm225, %v2001
      %2035 = vst.msk [vmem:[%s2019 + $0xb1] sm:$0xff] %vm225, %v2002
      %2036 = vst.msk [vmem:[%s2019 + $0xc1] sm:$0xff] %vm225, %v2003
      %2037 = vst.msk [vmem:[%s2019 + $0xc9] sm:$0xff] %vm225, %v2004
      %2038 = vst.msk [vmem:[%s2019 + $0xd9] sm:$0xff] %vm225, %v2005
      %2039 = vst.msk [vmem:[%s2019 + $0xe1] sm:$0xff] %vm225, %v2006
      %2040 = vst.msk [vmem:[%s2019 + $0xf1] sm:$0xff] %vm225, %v2007
      %2041 = vst.msk [vmem:[%s2019 + $0xf9] sm:$0xff] %vm225, %v2008
      %2042 = vst.msk [vmem:[%s2019 + $0x109] sm:$0xff] %vm225, %v2009
      %2043 = vst.msk [vmem:[%s2019 + $0x111] sm:$0xff] %vm225, %v2010
      %2044 = vst.msk [vmem:[%s2019 + $0x121] sm:$0xff] %vm225, %v2011
      %2045 = vst.msk [vmem:[%s2019 + $0x129] sm:$0xff] %vm225, %v2012
      %2046 = vst.msk [vmem:[%s2019 + $0x139] sm:$0xff] %vm225, %v2013
      %2047 = vst.msk [vmem:[%s2019 + $0x141] sm:$0xff] %vm225, %v2014
      %2048 = vst.msk [vmem:[%s2019 + $0x151] sm:$0xff] %vm225, %v2015
      %2049 = vst.msk [vmem:[%s2019 + $0x159] sm:$0xff] %vm225, %v2016
      %2050 = vst.msk [vmem:[%s2019 + $0x169] sm:$0xff] %vm225, %v2017
      %2051 = vst.msk [vmem:[%s2019 + $0x171] sm:$0xff] %vm225, %v2018
      %v2052 = vld [vmem:[#allocation3] sm:$0xff]
      %v2053 = vld [vmem:[#allocation3 + $0x8] sm:$0xff]
      %v2054 = vld [vmem:[#allocation3 + $0x10] sm:$0x3]
      %v2055 = vld [vmem:[#allocation3 + $0x18] sm:$0xff]
      %v2056 = vld [vmem:[#allocation3 + $0x20] sm:$0xff]
      %v2057 = vld [vmem:[#allocation3 + $0x28] sm:$0x3]
      %v2058 = vld [vmem:[#allocation3 + $0x30] sm:$0xff]
      %v2059 = vld [vmem:[#allocation3 + $0x38] sm:$0xff]
      %v2060 = vld [vmem:[#allocation3 + $0x40] sm:$0x3]
      %v2061 = vld [vmem:[#allocation3 + $0x48] sm:$0xff]
      %v2062 = vld [vmem:[#allocation3 + $0x50] sm:$0xff]
      %v2063 = vld [vmem:[#allocation3 + $0x58] sm:$0x3]
      %v2064 = vld [vmem:[#allocation3 + $0x60] sm:$0xff]
      %v2065 = vld [vmem:[#allocation3 + $0x68] sm:$0xff]
      %v2066 = vld [vmem:[#allocation3 + $0x70] sm:$0x3]
      %v2067 = vld [vmem:[#allocation3 + $0x78] sm:$0xff]
      %v2068 = vld [vmem:[#allocation3 + $0x80] sm:$0xff]
      %v2069 = vld [vmem:[#allocation3 + $0x88] sm:$0x3]
      %v2070 = vld [vmem:[#allocation3 + $0x90] sm:$0xff]
      %v2071 = vld [vmem:[#allocation3 + $0x98] sm:$0xff]
      %v2072 = vld [vmem:[#allocation3 + $0xa0] sm:$0x3]
      %v2073 = vld [vmem:[#allocation3 + $0xa8] sm:$0xff]
      %v2074 = vld [vmem:[#allocation3 + $0xb0] sm:$0xff]
      %v2075 = vld [vmem:[#allocation3 + $0xb8] sm:$0x3]
      %v2076 = vld [vmem:[#allocation3 + $0xc0] sm:$0xff]
      %v2077 = vld [vmem:[#allocation3 + $0xc8] sm:$0xff]
      %v2078 = vld [vmem:[#allocation3 + $0xd0] sm:$0x3]
      %v2079 = vld [vmem:[#allocation3 + $0xd8] sm:$0xff]
      %v2080 = vld [vmem:[#allocation3 + $0xe0] sm:$0xff]
      %v2081 = vld [vmem:[#allocation3 + $0xe8] sm:$0x3]
      %v2082 = vld [vmem:[#allocation3 + $0xf0] sm:$0xff]
      %v2083 = vld [vmem:[#allocation3 + $0xf8] sm:$0xff]
      %v2084 = vld [vmem:[#allocation3 + $0x100] sm:$0x3]
      %v2085 = vld [vmem:[#allocation3 + $0x108] sm:$0xff]
      %v2086 = vld [vmem:[#allocation3 + $0x110] sm:$0xff]
      %v2087 = vld [vmem:[#allocation3 + $0x118] sm:$0x3]
      %v2088 = vld [vmem:[#allocation3 + $0x120] sm:$0xff]
      %v2089 = vld [vmem:[#allocation3 + $0x128] sm:$0xff]
      %v2090 = vld [vmem:[#allocation3 + $0x130] sm:$0x3]
      %v2091 = vld [vmem:[#allocation3 + $0x138] sm:$0xff]
      %v2092 = vld [vmem:[#allocation3 + $0x140] sm:$0xff]
      %v2093 = vld [vmem:[#allocation3 + $0x148] sm:$0x3]
      %v2094 = vld [vmem:[#allocation3 + $0x150] sm:$0xff]
      %v2095 = vld [vmem:[#allocation3 + $0x158] sm:$0xff]
      %v2096 = vld [vmem:[#allocation3 + $0x160] sm:$0x3]
      %v2097 = vld [vmem:[#allocation3 + $0x168] sm:$0xff]
      %v2098 = vld [vmem:[#allocation3 + $0x170] sm:$0xff]
      %v2099 = vld [vmem:[#allocation3 + $0x178] sm:$0x3]
      %v2100 = vld [vmem:[#allocation3 + $0x180] sm:$0xff]
      %v2101 = vld [vmem:[#allocation3 + $0x188] sm:$0xff]
      %v2102 = vld [vmem:[#allocation3 + $0x190] sm:$0x3]
      %v2103 = vld [vmem:[#allocation3 + $0x198] sm:$0xff]
      %v2104 = vld [vmem:[#allocation3 + $0x1a0] sm:$0xff]
      %v2105 = vld [vmem:[#allocation3 + $0x1a8] sm:$0x3]
      %v2160 = vrot.slane %v2052, 1
      %v2161 = vrot.slane %v2053, 1
      %v2162 = vsel %vm641, %v2160, %v2161
      %v2163 = vrot.slane %v2054, 1
      %v2164 = vsel %vm641, %v2161, %v2163
      %v2165 = vrot.slane %v2055, 1
      %v2166 = vrot.slane %v2056, 1
      %v2167 = vsel %vm641, %v2165, %v2166
      %v2168 = vrot.slane %v2057, 1
      %v2169 = vsel %vm641, %v2166, %v2168
      %v2170 = vrot.slane %v2058, 1
      %v2171 = vrot.slane %v2059, 1
      %v2172 = vsel %vm641, %v2170, %v2171
      %v2173 = vrot.slane %v2060, 1
      %v2174 = vsel %vm641, %v2171, %v2173
      %v2175 = vrot.slane %v2061, 1
      %v2176 = vrot.slane %v2062, 1
      %v2177 = vsel %vm641, %v2175, %v2176
      %v2178 = vrot.slane %v2063, 1
      %v2179 = vsel %vm641, %v2176, %v2178
      %v2180 = vrot.slane %v2064, 1
      %v2181 = vrot.slane %v2065, 1
      %v2182 = vsel %vm641, %v2180, %v2181
      %v2183 = vrot.slane %v2066, 1
      %v2184 = vsel %vm641, %v2181, %v2183
      %v2185 = vrot.slane %v2067, 1
      %v2186 = vrot.slane %v2068, 1
      %v2187 = vsel %vm641, %v2185, %v2186
      %v2188 = vrot.slane %v2069, 1
      %v2189 = vsel %vm641, %v2186, %v2188
      %v2190 = vrot.slane %v2070, 1
      %v2191 = vrot.slane %v2071, 1
      %v2192 = vsel %vm641, %v2190, %v2191
      %v2193 = vrot.slane %v2072, 1
      %v2194 = vsel %vm641, %v2191, %v2193
      %v2195 = vrot.slane %v2073, 1
      %v2196 = vrot.slane %v2074, 1
      %v2197 = vsel %vm641, %v2195, %v2196
      %v2198 = vrot.slane %v2075, 1
      %v2199 = vsel %vm641, %v2196, %v2198
      %v2200 = vrot.slane %v2076, 1
      %v2201 = vrot.slane %v2077, 1
      %v2202 = vsel %vm641, %v2200, %v2201
      %v2203 = vrot.slane %v2078, 1
      %v2204 = vsel %vm641, %v2201, %v2203
      %v2205 = vrot.slane %v2079, 1
      %v2206 = vrot.slane %v2080, 1
      %v2207 = vsel %vm641, %v2205, %v2206
      %v2208 = vrot.slane %v2081, 1
      %v2209 = vsel %vm641, %v2206, %v2208
      %v2210 = vrot.slane %v2082, 1
      %v2211 = vrot.slane %v2083, 1
      %v2212 = vsel %vm641, %v2210, %v2211
      %v2213 = vrot.slane %v2084, 1
      %v2214 = vsel %vm641, %v2211, %v2213
      %v2215 = vrot.slane %v2085, 1
      %v2216 = vrot.slane %v2086, 1
      %v2217 = vsel %vm641, %v2215, %v2216
      %v2218 = vrot.slane %v2087, 1
      %v2219 = vsel %vm641, %v2216, %v2218
      %v2220 = vrot.slane %v2088, 1
      %v2221 = vrot.slane %v2089, 1
      %v2222 = vsel %vm641, %v2220, %v2221
      %v2223 = vrot.slane %v2090, 1
      %v2224 = vsel %vm641, %v2221, %v2223
      %v2225 = vrot.slane %v2091, 1
      %v2226 = vrot.slane %v2092, 1
      %v2227 = vsel %vm641, %v2225, %v2226
      %v2228 = vrot.slane %v2093, 1
      %v2229 = vsel %vm641, %v2226, %v2228
      %v2230 = vrot.slane %v2094, 1
      %v2231 = vrot.slane %v2095, 1
      %v2232 = vsel %vm641, %v2230, %v2231
      %v2233 = vrot.slane %v2096, 1
      %v2234 = vsel %vm641, %v2231, %v2233
      %v2235 = vrot.slane %v2097, 1
      %v2236 = vrot.slane %v2098, 1
      %v2237 = vsel %vm641, %v2235, %v2236
      %v2238 = vrot.slane %v2099, 1
      %v2239 = vsel %vm641, %v2236, %v2238
      %v2240 = vrot.slane %v2100, 1
      %v2241 = vrot.slane %v2101, 1
      %v2242 = vsel %vm641, %v2240, %v2241
      %v2243 = vrot.slane %v2102, 1
      %v2244 = vsel %vm641, %v2241, %v2243
      %v2245 = vrot.slane %v2103, 1
      %v2246 = vrot.slane %v2104, 1
      %v2247 = vsel %vm641, %v2245, %v2246
      %v2248 = vrot.slane %v2105, 1
      %v2249 = vsel %vm641, %v2246, %v2248
      %2250 = vrot.lane.b32.xlu0 %v2162, 16
      %v2251 = vpop.permute.xlu0 %2250
      %2252 = vrot.lane.b32.xlu0 %v2164, 16
      %v2253 = vpop.permute.xlu0 %2252
      %2254 = vrot.lane.b32.xlu0 %v2167, 16
      %v2255 = vpop.permute.xlu0 %2254
      %2256 = vrot.lane.b32.xlu0 %v2169, 16
      %v2257 = vpop.permute.xlu0 %2256
      %2258 = vrot.lane.b32.xlu0 %v2172, 16
      %v2259 = vpop.permute.xlu0 %2258
      %2260 = vrot.lane.b32.xlu0 %v2174, 16
      %v2261 = vpop.permute.xlu0 %2260
      %2262 = vrot.lane.b32.xlu0 %v2177, 16
      %v2263 = vpop.permute.xlu0 %2262
      %2264 = vrot.lane.b32.xlu0 %v2179, 16
      %v2265 = vpop.permute.xlu0 %2264
      %2266 = vrot.lane.b32.xlu0 %v2182, 16
      %v2267 = vpop.permute.xlu0 %2266
      %2268 = vrot.lane.b32.xlu0 %v2184, 16
      %v2269 = vpop.permute.xlu0 %2268
      %2270 = vrot.lane.b32.xlu0 %v2187, 16
      %v2271 = vpop.permute.xlu0 %2270
      %2272 = vrot.lane.b32.xlu0 %v2189, 16
      %v2273 = vpop.permute.xlu0 %2272
      %2274 = vrot.lane.b32.xlu0 %v2192, 16
      %v2275 = vpop.permute.xlu0 %2274
      %2276 = vrot.lane.b32.xlu0 %v2194, 16
      %v2277 = vpop.permute.xlu0 %2276
      %2278 = vrot.lane.b32.xlu0 %v2197, 16
      %v2279 = vpop.permute.xlu0 %2278
      %2280 = vrot.lane.b32.xlu0 %v2199, 16
      %v2281 = vpop.permute.xlu0 %2280
      %2282 = vrot.lane.b32.xlu0 %v2202, 16
      %v2283 = vpop.permute.xlu0 %2282
      %2284 = vrot.lane.b32.xlu0 %v2204, 16
      %v2285 = vpop.permute.xlu0 %2284
      %2286 = vrot.lane.b32.xlu0 %v2207, 16
      %v2287 = vpop.permute.xlu0 %2286
      %2288 = vrot.lane.b32.xlu0 %v2209, 16
      %v2289 = vpop.permute.xlu0 %2288
      %2290 = vrot.lane.b32.xlu0 %v2212, 16
      %v2291 = vpop.permute.xlu0 %2290
      %2292 = vrot.lane.b32.xlu0 %v2214, 16
      %v2293 = vpop.permute.xlu0 %2292
      %2294 = vrot.lane.b32.xlu0 %v2217, 16
      %v2295 = vpop.permute.xlu0 %2294
      %2296 = vrot.lane.b32.xlu0 %v2219, 16
      %v2297 = vpop.permute.xlu0 %2296
      %2298 = vrot.lane.b32.xlu0 %v2222, 16
      %v2299 = vpop.permute.xlu0 %2298
      %2300 = vrot.lane.b32.xlu0 %v2224, 16
      %v2301 = vpop.permute.xlu0 %2300
      %2302 = vrot.lane.b32.xlu0 %v2227, 16
      %v2303 = vpop.permute.xlu0 %2302
      %2304 = vrot.lane.b32.xlu0 %v2229, 16
      %v2305 = vpop.permute.xlu0 %2304
      %2306 = vrot.lane.b32.xlu0 %v2232, 16
      %v2307 = vpop.permute.xlu0 %2306
      %2308 = vrot.lane.b32.xlu0 %v2234, 16
      %v2309 = vpop.permute.xlu0 %2308
      %2310 = vrot.lane.b32.xlu0 %v2237, 16
      %v2311 = vpop.permute.xlu0 %2310
      %2312 = vrot.lane.b32.xlu0 %v2239, 16
      %v2313 = vpop.permute.xlu0 %2312
      %2314 = vrot.lane.b32.xlu0 %v2242, 16
      %v2315 = vpop.permute.xlu0 %2314
      %2316 = vrot.lane.b32.xlu0 %v2244, 16
      %v2317 = vpop.permute.xlu0 %2316
      %2318 = vrot.lane.b32.xlu0 %v2247, 16
      %v2319 = vpop.permute.xlu0 %2318
      %2320 = vrot.lane.b32.xlu0 %v2249, 16
      %v2321 = vpop.permute.xlu0 %2320
      %v2358 = vrot.slane %v2052, 2
      %v2359 = vrot.slane %v2053, 2
      %v2360 = vsel %vm840, %v2358, %v2359
      %v2361 = vrot.slane %v2054, 2
      %v2362 = vsel %vm840, %v2359, %v2361
      %v2363 = vrot.slane %v2055, 2
      %v2364 = vrot.slane %v2056, 2
      %v2365 = vsel %vm840, %v2363, %v2364
      %v2366 = vrot.slane %v2057, 2
      %v2367 = vsel %vm840, %v2364, %v2366
      %v2368 = vrot.slane %v2058, 2
      %v2369 = vrot.slane %v2059, 2
      %v2370 = vsel %vm840, %v2368, %v2369
      %v2371 = vrot.slane %v2060, 2
      %v2372 = vsel %vm840, %v2369, %v2371
      %v2373 = vrot.slane %v2061, 2
      %v2374 = vrot.slane %v2062, 2
      %v2375 = vsel %vm840, %v2373, %v2374
      %v2376 = vrot.slane %v2063, 2
      %v2377 = vsel %vm840, %v2374, %v2376
      %v2378 = vrot.slane %v2064, 2
      %v2379 = vrot.slane %v2065, 2
      %v2380 = vsel %vm840, %v2378, %v2379
      %v2381 = vrot.slane %v2066, 2
      %v2382 = vsel %vm840, %v2379, %v2381
      %v2383 = vrot.slane %v2067, 2
      %v2384 = vrot.slane %v2068, 2
      %v2385 = vsel %vm840, %v2383, %v2384
      %v2386 = vrot.slane %v2069, 2
      %v2387 = vsel %vm840, %v2384, %v2386
      %v2388 = vrot.slane %v2070, 2
      %v2389 = vrot.slane %v2071, 2
      %v2390 = vsel %vm840, %v2388, %v2389
      %v2391 = vrot.slane %v2072, 2
      %v2392 = vsel %vm840, %v2389, %v2391
      %v2393 = vrot.slane %v2073, 2
      %v2394 = vrot.slane %v2074, 2
      %v2395 = vsel %vm840, %v2393, %v2394
      %v2396 = vrot.slane %v2075, 2
      %v2397 = vsel %vm840, %v2394, %v2396
      %v2398 = vrot.slane %v2076, 2
      %v2399 = vrot.slane %v2077, 2
      %v2400 = vsel %vm840, %v2398, %v2399
      %v2401 = vrot.slane %v2078, 2
      %v2402 = vsel %vm840, %v2399, %v2401
      %v2403 = vrot.slane %v2079, 2
      %v2404 = vrot.slane %v2080, 2
      %v2405 = vsel %vm840, %v2403, %v2404
      %v2406 = vrot.slane %v2081, 2
      %v2407 = vsel %vm840, %v2404, %v2406
      %v2408 = vrot.slane %v2082, 2
      %v2409 = vrot.slane %v2083, 2
      %v2410 = vsel %vm840, %v2408, %v2409
      %v2411 = vrot.slane %v2084, 2
      %v2412 = vsel %vm840, %v2409, %v2411
      %v2413 = vrot.slane %v2085, 2
      %v2414 = vrot.slane %v2086, 2
      %v2415 = vsel %vm840, %v2413, %v2414
      %v2416 = vrot.slane %v2087, 2
      %v2417 = vsel %vm840, %v2414, %v2416
      %v2418 = vrot.slane %v2088, 2
      %v2419 = vrot.slane %v2089, 2
      %v2420 = vsel %vm840, %v2418, %v2419
      %v2421 = vrot.slane %v2090, 2
      %v2422 = vsel %vm840, %v2419, %v2421
      %v2423 = vrot.slane %v2091, 2
      %v2424 = vrot.slane %v2092, 2
      %v2425 = vsel %vm840, %v2423, %v2424
      %v2426 = vrot.slane %v2093, 2
      %v2427 = vsel %vm840, %v2424, %v2426
      %v2428 = vrot.slane %v2094, 2
      %v2429 = vrot.slane %v2095, 2
      %v2430 = vsel %vm840, %v2428, %v2429
      %v2431 = vrot.slane %v2096, 2
      %v2432 = vsel %vm840, %v2429, %v2431
      %v2433 = vrot.slane %v2097, 2
      %v2434 = vrot.slane %v2098, 2
      %v2435 = vsel %vm840, %v2433, %v2434
      %v2436 = vrot.slane %v2099, 2
      %v2437 = vsel %vm840, %v2434, %v2436
      %v2438 = vrot.slane %v2100, 2
      %v2439 = vrot.slane %v2101, 2
      %v2440 = vsel %vm840, %v2438, %v2439
      %v2441 = vrot.slane %v2102, 2
      %v2442 = vsel %vm840, %v2439, %v2441
      %v2443 = vrot.slane %v2103, 2
      %v2444 = vrot.slane %v2104, 2
      %v2445 = vsel %vm840, %v2443, %v2444
      %v2446 = vrot.slane %v2105, 2
      %v2447 = vsel %vm840, %v2444, %v2446
      %2448 = vrot.lane.b32.xlu0 %v2360, 32
      %v2449 = vpop.permute.xlu0 %2448
      %2450 = vrot.lane.b32.xlu0 %v2362, 32
      %v2451 = vpop.permute.xlu0 %2450
      %2452 = vrot.lane.b32.xlu0 %v2365, 32
      %v2453 = vpop.permute.xlu0 %2452
      %2454 = vrot.lane.b32.xlu0 %v2367, 32
      %v2455 = vpop.permute.xlu0 %2454
      %2456 = vrot.lane.b32.xlu0 %v2370, 32
      %v2457 = vpop.permute.xlu0 %2456
      %2458 = vrot.lane.b32.xlu0 %v2372, 32
      %v2459 = vpop.permute.xlu0 %2458
      %2460 = vrot.lane.b32.xlu0 %v2375, 32
      %v2461 = vpop.permute.xlu0 %2460
      %2462 = vrot.lane.b32.xlu0 %v2377, 32
      %v2463 = vpop.permute.xlu0 %2462
      %2464 = vrot.lane.b32.xlu0 %v2380, 32
      %v2465 = vpop.permute.xlu0 %2464
      %2466 = vrot.lane.b32.xlu0 %v2382, 32
      %v2467 = vpop.permute.xlu0 %2466
      %2468 = vrot.lane.b32.xlu0 %v2385, 32
      %v2469 = vpop.permute.xlu0 %2468
      %2470 = vrot.lane.b32.xlu0 %v2387, 32
      %v2471 = vpop.permute.xlu0 %2470
      %2472 = vrot.lane.b32.xlu0 %v2390, 32
      %v2473 = vpop.permute.xlu0 %2472
      %2474 = vrot.lane.b32.xlu0 %v2392, 32
      %v2475 = vpop.permute.xlu0 %2474
      %2476 = vrot.lane.b32.xlu0 %v2395, 32
      %v2477 = vpop.permute.xlu0 %2476
      %2478 = vrot.lane.b32.xlu0 %v2397, 32
      %v2479 = vpop.permute.xlu0 %2478
      %2480 = vrot.lane.b32.xlu0 %v2400, 32
      %v2481 = vpop.permute.xlu0 %2480
      %2482 = vrot.lane.b32.xlu0 %v2402, 32
      %v2483 = vpop.permute.xlu0 %2482
      %2484 = vrot.lane.b32.xlu0 %v2405, 32
      %v2485 = vpop.permute.xlu0 %2484
      %2486 = vrot.lane.b32.xlu0 %v2407, 32
      %v2487 = vpop.permute.xlu0 %2486
      %2488 = vrot.lane.b32.xlu0 %v2410, 32
      %v2489 = vpop.permute.xlu0 %2488
      %2490 = vrot.lane.b32.xlu0 %v2412, 32
      %v2491 = vpop.permute.xlu0 %2490
      %2492 = vrot.lane.b32.xlu0 %v2415, 32
      %v2493 = vpop.permute.xlu0 %2492
      %2494 = vrot.lane.b32.xlu0 %v2417, 32
      %v2495 = vpop.permute.xlu0 %2494
      %2496 = vrot.lane.b32.xlu0 %v2420, 32
      %v2497 = vpop.permute.xlu0 %2496
      %2498 = vrot.lane.b32.xlu0 %v2422, 32
      %v2499 = vpop.permute.xlu0 %2498
      %2500 = vrot.lane.b32.xlu0 %v2425, 32
      %v2501 = vpop.permute.xlu0 %2500
      %2502 = vrot.lane.b32.xlu0 %v2427, 32
      %v2503 = vpop.permute.xlu0 %2502
      %2504 = vrot.lane.b32.xlu0 %v2430, 32
      %v2505 = vpop.permute.xlu0 %2504
      %2506 = vrot.lane.b32.xlu0 %v2432, 32
      %v2507 = vpop.permute.xlu0 %2506
      %2508 = vrot.lane.b32.xlu0 %v2435, 32
      %v2509 = vpop.permute.xlu0 %2508
      %2510 = vrot.lane.b32.xlu0 %v2437, 32
      %v2511 = vpop.permute.xlu0 %2510
      %2512 = vrot.lane.b32.xlu0 %v2440, 32
      %v2513 = vpop.permute.xlu0 %2512
      %2514 = vrot.lane.b32.xlu0 %v2442, 32
      %v2515 = vpop.permute.xlu0 %2514
      %2516 = vrot.lane.b32.xlu0 %v2445, 32
      %v2517 = vpop.permute.xlu0 %2516
      %2518 = vrot.lane.b32.xlu0 %v2447, 32
      %v2519 = vpop.permute.xlu0 %2518
      %v2556 = vsel %vm225, %v2052, %v2251
      %v2557 = vsel %vm225, %v2053, %v2253
      %v2558 = vsel %vm225, %v2055, %v2255
      %v2559 = vsel %vm225, %v2056, %v2257
      %v2560 = vsel %vm225, %v2058, %v2259
      %v2561 = vsel %vm225, %v2059, %v2261
      %v2562 = vsel %vm225, %v2061, %v2263
      %v2563 = vsel %vm225, %v2062, %v2265
      %v2564 = vsel %vm225, %v2064, %v2267
      %v2565 = vsel %vm225, %v2065, %v2269
      %v2566 = vsel %vm225, %v2067, %v2271
      %v2567 = vsel %vm225, %v2068, %v2273
      %v2568 = vsel %vm225, %v2070, %v2275
      %v2569 = vsel %vm225, %v2071, %v2277
      %v2570 = vsel %vm225, %v2073, %v2279
      %v2571 = vsel %vm225, %v2074, %v2281
      %v2572 = vsel %vm225, %v2076, %v2283
      %v2573 = vsel %vm225, %v2077, %v2285
      %v2574 = vsel %vm225, %v2079, %v2287
      %v2575 = vsel %vm225, %v2080, %v2289
      %v2576 = vsel %vm225, %v2082, %v2291
      %v2577 = vsel %vm225, %v2083, %v2293
      %v2578 = vsel %vm225, %v2085, %v2295
      %v2579 = vsel %vm225, %v2086, %v2297
      %v2580 = vsel %vm225, %v2088, %v2299
      %v2581 = vsel %vm225, %v2089, %v2301
      %v2582 = vsel %vm225, %v2091, %v2303
      %v2583 = vsel %vm225, %v2092, %v2305
      %v2584 = vsel %vm225, %v2094, %v2307
      %v2585 = vsel %vm225, %v2095, %v2309
      %v2586 = vsel %vm225, %v2097, %v2311
      %v2587 = vsel %vm225, %v2098, %v2313
      %v2588 = vsel %vm225, %v2100, %v2315
      %v2589 = vsel %vm225, %v2101, %v2317
      %v2590 = vsel %vm225, %v2103, %v2319
      %v2591 = vsel %vm225, %v2104, %v2321
      %v2592 = vsel %vm1075, %v2556, %v2449
      %v2593 = vsel %vm1075, %v2557, %v2451
      %v2594 = vsel %vm1075, %v2558, %v2453
      %v2595 = vsel %vm1075, %v2559, %v2455
      %v2596 = vsel %vm1075, %v2560, %v2457
      %v2597 = vsel %vm1075, %v2561, %v2459
      %v2598 = vsel %vm1075, %v2562, %v2461
      %v2599 = vsel %vm1075, %v2563, %v2463
      %v2600 = vsel %vm1075, %v2564, %v2465
      %v2601 = vsel %vm1075, %v2565, %v2467
      %v2602 = vsel %vm1075, %v2566, %v2469
      %v2603 = vsel %vm1075, %v2567, %v2471
      %v2604 = vsel %vm1075, %v2568, %v2473
      %v2605 = vsel %vm1075, %v2569, %v2475
      %v2606 = vsel %vm1075, %v2570, %v2477
      %v2607 = vsel %vm1075, %v2571, %v2479
      %v2608 = vsel %vm1075, %v2572, %v2481
      %v2609 = vsel %vm1075, %v2573, %v2483
      %v2610 = vsel %vm1075, %v2574, %v2485
      %v2611 = vsel %vm1075, %v2575, %v2487
      %v2612 = vsel %vm1075, %v2576, %v2489
      %v2613 = vsel %vm1075, %v2577, %v2491
      %v2614 = vsel %vm1075, %v2578, %v2493
      %v2615 = vsel %vm1075, %v2579, %v2495
      %v2616 = vsel %vm1075, %v2580, %v2497
      %v2617 = vsel %vm1075, %v2581, %v2499
      %v2618 = vsel %vm1075, %v2582, %v2501
      %v2619 = vsel %vm1075, %v2583, %v2503
      %v2620 = vsel %vm1075, %v2584, %v2505
      %v2621 = vsel %vm1075, %v2585, %v2507
      %v2622 = vsel %vm1075, %v2586, %v2509
      %v2623 = vsel %vm1075, %v2587, %v2511
      %v2624 = vsel %vm1075, %v2588, %v2513
      %v2625 = vsel %vm1075, %v2589, %v2515
      %v2626 = vsel %vm1075, %v2590, %v2517
      %v2627 = vsel %vm1075, %v2591, %v2519
      %s2628 = scalar_lea.vmem %s1, 144
      %v2629 = vld [vmem:[%s2628] sm:$0xff]
      %v2630 = vld [vmem:[%s2628 + $0x8] sm:$0xff]
      %v2631 = vld [vmem:[%s2628 + $0x10] sm:$0xff]
      %v2632 = vld [vmem:[%s2628 + $0x18] sm:$0xff]
      %v2633 = vld [vmem:[%s2628 + $0x20] sm:$0xff]
      %v2634 = vld [vmem:[%s2628 + $0x28] sm:$0xff]
      %s2635 = scalar_lea.vmem %s1, 192
      %v2636 = vld [vmem:[%s2635] sm:$0xff]
      %v2637 = vld [vmem:[%s2635 + $0x8] sm:$0xff]
      %v2638 = vld [vmem:[%s2635 + $0x10] sm:$0xff]
      %v2639 = vld [vmem:[%s2635 + $0x18] sm:$0xff]
      %v2640 = vld [vmem:[%s2635 + $0x20] sm:$0xff]
      %v2641 = vld [vmem:[%s2635 + $0x28] sm:$0xff]
      %v2643 = vsel %vm1125, %v2594, 0
      %v2646 = vsel %vm1125, %v2595, 0
      %v2649 = vsel %vm1125, %v2596, 0
      %v2652 = vsel %vm1125, %v2597, 0
      %v2655 = vsel %vm1125, %v2598, 0
      %v2658 = vsel %vm1125, %v2599, 0
      %v2661 = vsel %vm1125, %v2600, 0
      %v2664 = vsel %vm1125, %v2601, 0
      %v2667 = vsel %vm1125, %v2602, 0
      %v2670 = vsel %vm1125, %v2603, 0
      %v2673 = vsel %vm1125, %v2604, 0
      %v2676 = vsel %vm1125, %v2605, 0
      %v2679 = vsel %vm1125, %v2606, 0
      %v2682 = vsel %vm1125, %v2607, 0
      %v2685 = vsel %vm1125, %v2608, 0
      %v2688 = vsel %vm1125, %v2609, 0
      %v2691 = vsel %vm1125, %v2610, 0
      %v2694 = vsel %vm1125, %v2611, 0
      %v2697 = vsel %vm1125, %v2612, 0
      %v2700 = vsel %vm1125, %v2613, 0
      %v2703 = vsel %vm1125, %v2614, 0
      %v2706 = vsel %vm1125, %v2615, 0
      %v2709 = vsel %vm1125, %v2616, 0
      %v2712 = vsel %vm1125, %v2617, 0
      %v2715 = vsel %vm1125, %v2618, 0
      %v2718 = vsel %vm1125, %v2619, 0
      %v2721 = vsel %vm1125, %v2620, 0
      %v2724 = vsel %vm1125, %v2621, 0
      %v2727 = vsel %vm1125, %v2622, 0
      %v2730 = vsel %vm1125, %v2623, 0
      %v2733 = vsel %vm1125, %v2624, 0
      %v2736 = vsel %vm1125, %v2625, 0
      %2738 = vmatprep.subr.mxu0 0.0
      %2739 = vmatpush1.msra.mxu0 %v2636
      %2740 = vmatprep.subr.mxu0 0.0
      %2741 = vmatpush1.msra.mxu0 %v2637
      %2742 = vmatprep.subr.mxu0 0.0
      %2743 = vmatpush1.msra.mxu0 %v2638
      %2744 = vmatprep.subr.mxu0 0.0
      %2745 = vmatpush1.msra.mxu0 %v2639
      %2746 = vmatprep.subr.mxu0 0.0
      %2747 = vmatpush1.msra.mxu0 %v2640
      %2748 = vmatprep.subr.mxu0 0.0
      %2749 = vmatpush1.msra.mxu0 %v2641
      %2750 = vmatprep.subr.mxu0 0.0
      %2751 = vmatpush1.msra.mxu0 0.0
      %2752 = vmatprep.subr.mxu0 0.0
      %2753 = vmatpush1.msra.mxu0 0.0
      %2754 = vmatprep.subr.mxu0 0.0
      %2755 = vmatpush1.msra.mxu0 0.0
      %2756 = vmatprep.subr.mxu0 0.0
      %2757 = vmatpush1.msra.mxu0 0.0
      %2758 = vmatprep.subr.mxu0 0.0
      %2759 = vmatpush1.msra.mxu0 0.0
      %2760 = vmatprep.subr.mxu0 0.0
      %2761 = vmatpush1.msra.mxu0 0.0
      %2762 = vmatprep.subr.mxu0 0.0
      %2763 = vmatpush1.msra.mxu0 0.0
      %2764 = vmatprep.subr.mxu0 0.0
      %2765 = vmatpush1.msra.mxu0 0.0
      %2766 = vmatprep.subr.mxu0 0.0
      %2767 = vmatpush1.msra.mxu0 0.0
      %2768 = vmatprep.subr.mxu0 0.0
      %2769 = vmatpush1.msra.mxu0 0.0
      %2770 = vmatprep.subr.mxu0 0.0
      %2771 = vmatpush1.msra.mxu0 0.0
      %2772 = vmatprep.subr.mxu0 0.0
      %2773 = vmatpush1.msra.mxu0 0.0
      %2774 = vmatprep.subr.mxu0 0.0
      %2775 = vmatpush1.msra.mxu0 0.0
      %2776 = vmatprep.subr.mxu0 0.0
      %2777 = vmatpush1.msra.mxu0 0.0
      %2778 = vmatprep.subr.mxu0 0.0
      %2779 = vmatpush1.msra.mxu0 0.0
      %2780 = vmatprep.subr.mxu0 0.0
      %2781 = vmatpush1.msra.mxu0 0.0
      %2782 = vmatprep.subr.mxu0 0.0
      %2783 = vmatpush1.msra.mxu0 0.0
      %2784 = vmatprep.subr.mxu0 0.0
      %2785 = vmatpush1.msra.mxu0 0.0
      %2786 = vmatprep.subr.mxu0 0.0
      %2787 = vmatpush1.msra.mxu0 0.0
      %2788 = vmatprep.subr.mxu0 0.0
      %2789 = vmatpush1.msra.mxu0 0.0
      %2790 = vmatprep.subr.mxu0 0.0
      %2791 = vmatpush1.msra.mxu0 0.0
      %2792 = vmatprep.subr.mxu0 0.0
      %2793 = vmatpush1.msra.mxu0 0.0
      %2794 = vmatprep.subr.mxu0 0.0
      %2795 = vmatpush1.msra.mxu0 0.0
      %2796 = vmatprep.subr.mxu0 0.0
      %2797 = vmatpush1.msra.mxu0 0.0
      %2798 = vmatprep.subr.mxu0 0.0
      %2799 = vmatpush1.msra.mxu0 0.0
      %2800 = vmatprep.subr.mxu0 0.0
      %2801 = vmatpush1.msra.mxu0 0.0
      %2802 = vmatprep.mubr.f32.mxu0 0.0
      %2803 = vmatmul.mubr.f32.gmra.mrb[0].mxu0 %v2643
      %v2804 = vpop.f32.mrb[0].mxu0
      %v2805 = vadd.f32 0.0, %v2804
      %v2806 = vpop.f32.mrb[0].mxu0
      %2807 = vmatprep.mubr.f32.mxu0 0.0
      %2808 = vmatmul.mubr.f32.gmra.mrb[0].mxu0 %v2646
      %v2809 = vpop.f32.mrb[0].mxu0
      %v2810 = vadd.f32 0.0, %v2809
      %v2811 = vpop.f32.mrb[0].mxu0
      %2812 = vmatprep.mubr.f32.mxu0 0.0
      %2813 = vmatmul.mubr.f32.gmra.mrb[0].mxu0 %v2649
      %v2814 = vpop.f32.mrb[0].mxu0
      %v2815 = vadd.f32 0.0, %v2814
      %v2816 = vpop.f32.mrb[0].mxu0
      %2817 = vmatprep.mubr.f32.mxu0 0.0
      %2818 = vmatmul.mubr.f32.gmra.mrb[0].mxu0 %v2652
      %v2819 = vpop.f32.mrb[0].mxu0
      %v2820 = vadd.f32 0.0, %v2819
      %v2821 = vpop.f32.mrb[0].mxu0
      %2822 = vmatprep.mubr.f32.mxu0 0.0
      %2823 = vmatmul.mubr.f32.gmra.mrb[0].mxu0 %v2655
      %v2824 = vpop.f32.mrb[0].mxu0
      %v2825 = vadd.f32 0.0, %v2824
      %v2826 = vpop.f32.mrb[0].mxu0
      %2827 = vmatprep.mubr.f32.mxu0 0.0
      %2828 = vmatmul.mubr.f32.gmra.mrb[0].mxu0 %v2658
      %v2829 = vpop.f32.mrb[0].mxu0
      %v2830 = vadd.f32 0.0, %v2829
      %v2831 = vpop.f32.mrb[0].mxu0
      %2832 = vmatprep.mubr.f32.mxu0 0.0
      %2833 = vmatmul.mubr.f32.gmra.mrb[0].mxu0 %v2661
      %v2834 = vpop.f32.mrb[0].mxu0
      %v2835 = vadd.f32 0.0, %v2834
      %v2836 = vpop.f32.mrb[0].mxu0
      %2837 = vmatprep.mubr.f32.mxu0 0.0
      %2838 = vmatmul.mubr.f32.gmra.mrb[0].mxu0 %v2664
      %v2839 = vpop.f32.mrb[0].mxu0
      %v2840 = vadd.f32 0.0, %v2839
      %v2841 = vpop.f32.mrb[0].mxu0
      %2842 = vmatprep.mubr.f32.mxu0 0.0
      %2843 = vmatmul.mubr.f32.gmra.mrb[0].mxu0 %v2667
      %v2844 = vpop.f32.mrb[0].mxu0
      %v2845 = vadd.f32 0.0, %v2844
      %v2846 = vpop.f32.mrb[0].mxu0
      %2847 = vmatprep.mubr.f32.mxu0 0.0
      %2848 = vmatmul.mubr.f32.gmra.mrb[0].mxu0 %v2670
      %v2849 = vpop.f32.mrb[0].mxu0
      %v2850 = vadd.f32 0.0, %v2849
      %v2851 = vpop.f32.mrb[0].mxu0
      %2852 = vmatprep.mubr.f32.mxu0 0.0
      %2853 = vmatmul.mubr.f32.gmra.mrb[0].mxu0 %v2673
      %v2854 = vpop.f32.mrb[0].mxu0
      %v2855 = vadd.f32 0.0, %v2854
      %v2856 = vpop.f32.mrb[0].mxu0
      %2857 = vmatprep.mubr.f32.mxu0 0.0
      %2858 = vmatmul.mubr.f32.gmra.mrb[0].mxu0 %v2676
      %v2859 = vpop.f32.mrb[0].mxu0
      %v2860 = vadd.f32 0.0, %v2859
      %v2861 = vpop.f32.mrb[0].mxu0
      %2862 = vmatprep.mubr.f32.mxu0 0.0
      %2863 = vmatmul.mubr.f32.gmra.mrb[0].mxu0 %v2679
      %v2864 = vpop.f32.mrb[0].mxu0
      %v2865 = vadd.f32 0.0, %v2864
      %v2866 = vpop.f32.mrb[0].mxu0
      %2867 = vmatprep.mubr.f32.mxu0 0.0
      %2868 = vmatmul.mubr.f32.gmra.mrb[0].mxu0 %v2682
      %v2869 = vpop.f32.mrb[0].mxu0
      %v2870 = vadd.f32 0.0, %v2869
      %v2871 = vpop.f32.mrb[0].mxu0
      %2872 = vmatprep.mubr.f32.mxu0 0.0
      %2873 = vmatmul.mubr.f32.gmra.mrb[0].mxu0 %v2685
      %v2874 = vpop.f32.mrb[0].mxu0
      %v2875 = vadd.f32 0.0, %v2874
      %v2876 = vpop.f32.mrb[0].mxu0
      %2877 = vmatprep.mubr.f32.mxu0 0.0
      %2878 = vmatmul.mubr.f32.gmra.mrb[0].mxu0 %v2688
      %v2879 = vpop.f32.mrb[0].mxu0
      %v2880 = vadd.f32 0.0, %v2879
      %v2881 = vpop.f32.mrb[0].mxu0
      %2882 = vmatprep.mubr.f32.mxu0 0.0
      %2883 = vmatmul.mubr.f32.gmra.mrb[0].mxu0 %v2691
      %v2884 = vpop.f32.mrb[0].mxu0
      %v2885 = vadd.f32 0.0, %v2884
      %v2886 = vpop.f32.mrb[0].mxu0
      %2887 = vmatprep.mubr.f32.mxu0 0.0
      %2888 = vmatmul.mubr.f32.gmra.mrb[0].mxu0 %v2694
      %v2889 = vpop.f32.mrb[0].mxu0
      %v2890 = vadd.f32 0.0, %v2889
      %v2891 = vpop.f32.mrb[0].mxu0
      %2892 = vmatprep.mubr.f32.mxu0 0.0
      %2893 = vmatmul.mubr.f32.gmra.mrb[0].mxu0 %v2697
      %v2894 = vpop.f32.mrb[0].mxu0
      %v2895 = vadd.f32 0.0, %v2894
      %v2896 = vpop.f32.mrb[0].mxu0
      %2897 = vmatprep.mubr.f32.mxu0 0.0
      %2898 = vmatmul.mubr.f32.gmra.mrb[0].mxu0 %v2700
      %v2899 = vpop.f32.mrb[0].mxu0
      %v2900 = vadd.f32 0.0, %v2899
      %v2901 = vpop.f32.mrb[0].mxu0
      %2902 = vmatprep.mubr.f32.mxu0 0.0
      %2903 = vmatmul.mubr.f32.gmra.mrb[0].mxu0 %v2703
      %v2904 = vpop.f32.mrb[0].mxu0
      %v2905 = vadd.f32 0.0, %v2904
      %v2906 = vpop.f32.mrb[0].mxu0
      %2907 = vmatprep.mubr.f32.mxu0 0.0
      %2908 = vmatmul.mubr.f32.gmra.mrb[0].mxu0 %v2706
      %v2909 = vpop.f32.mrb[0].mxu0
      %v2910 = vadd.f32 0.0, %v2909
      %v2911 = vpop.f32.mrb[0].mxu0
      %2912 = vmatprep.mubr.f32.mxu0 0.0
      %2913 = vmatmul.mubr.f32.gmra.mrb[0].mxu0 %v2709
      %v2914 = vpop.f32.mrb[0].mxu0
      %v2915 = vadd.f32 0.0, %v2914
      %v2916 = vpop.f32.mrb[0].mxu0
      %2917 = vmatprep.mubr.f32.mxu0 0.0
      %2918 = vmatmul.mubr.f32.gmra.mrb[0].mxu0 %v2712
      %v2919 = vpop.f32.mrb[0].mxu0
      %v2920 = vadd.f32 0.0, %v2919
      %v2921 = vpop.f32.mrb[0].mxu0
      %2922 = vmatprep.mubr.f32.mxu0 0.0
      %2923 = vmatmul.mubr.f32.gmra.mrb[0].mxu0 %v2715
      %v2924 = vpop.f32.mrb[0].mxu0
      %v2925 = vadd.f32 0.0, %v2924
      %v2926 = vpop.f32.mrb[0].mxu0
      %2927 = vmatprep.mubr.f32.mxu0 0.0
      %2928 = vmatmul.mubr.f32.gmra.mrb[0].mxu0 %v2718
      %v2929 = vpop.f32.mrb[0].mxu0
      %v2930 = vadd.f32 0.0, %v2929
      %v2931 = vpop.f32.mrb[0].mxu0
      %2932 = vmatprep.mubr.f32.mxu0 0.0
      %2933 = vmatmul.mubr.f32.gmra.mrb[0].mxu0 %v2721
      %v2934 = vpop.f32.mrb[0].mxu0
      %v2935 = vadd.f32 0.0, %v2934
      %v2936 = vpop.f32.mrb[0].mxu0
      %2937 = vmatprep.mubr.f32.mxu0 0.0
      %2938 = vmatmul.mubr.f32.gmra.mrb[0].mxu0 %v2724
      %v2939 = vpop.f32.mrb[0].mxu0
      %v2940 = vadd.f32 0.0, %v2939
      %v2941 = vpop.f32.mrb[0].mxu0
      %2942 = vmatprep.mubr.f32.mxu0 0.0
      %2943 = vmatmul.mubr.f32.gmra.mrb[0].mxu0 %v2727
      %v2944 = vpop.f32.mrb[0].mxu0
      %v2945 = vadd.f32 0.0, %v2944
      %v2946 = vpop.f32.mrb[0].mxu0
      %2947 = vmatprep.mubr.f32.mxu0 0.0
      %2948 = vmatmul.mubr.f32.gmra.mrb[0].mxu0 %v2730
      %v2949 = vpop.f32.mrb[0].mxu0
      %v2950 = vadd.f32 0.0, %v2949
      %v2951 = vpop.f32.mrb[0].mxu0
      %2952 = vmatprep.mubr.f32.mxu0 0.0
      %2953 = vmatmul.mubr.f32.gmra.mrb[0].mxu0 %v2733
      %v2954 = vpop.f32.mrb[0].mxu0
      %v2955 = vadd.f32 0.0, %v2954
      %v2956 = vpop.f32.mrb[0].mxu0
      %2957 = vmatprep.mubr.f32.mxu0 0.0
      %2958 = vmatmul.mubr.f32.gmra.mrb[0].mxu0 %v2736
      %v2959 = vpop.f32.mrb[0].mxu0
      %v2960 = vadd.f32 0.0, %v2959
      %v2961 = vpop.f32.mrb[0].mxu0
      %2962 = vdwg.mxu0
      %v2964 = vsel %vm1125, %v2592, 0
      %v2967 = vsel %vm1125, %v2593, 0
      %2969 = vmatprep.subr.mxu0 0.0
      %2970 = vmatpush1.msra.mxu0 %v2629
      %2971 = vmatprep.subr.mxu0 0.0
      %2972 = vmatpush1.msra.mxu0 %v2630
      %2973 = vmatprep.subr.mxu0 0.0
      %2974 = vmatpush1.msra.mxu0 %v2631
      %2975 = vmatprep.subr.mxu0 0.0
      %2976 = vmatpush1.msra.mxu0 %v2632
      %2977 = vmatprep.subr.mxu0 0.0
      %2978 = vmatpush1.msra.mxu0 %v2633
      %2979 = vmatprep.subr.mxu0 0.0
      %2980 = vmatpush1.msra.mxu0 %v2634
      %2981 = vmatprep.subr.mxu0 0.0
      %2982 = vmatpush1.msra.mxu0 0.0
      %2983 = vmatprep.subr.mxu0 0.0
      %2984 = vmatpush1.msra.mxu0 0.0
      %2985 = vmatprep.subr.mxu0 0.0
      %2986 = vmatpush1.msra.mxu0 0.0
      %2987 = vmatprep.subr.mxu0 0.0
      %2988 = vmatpush1.msra.mxu0 0.0
      %2989 = vmatprep.subr.mxu0 0.0
      %2990 = vmatpush1.msra.mxu0 0.0
      %2991 = vmatprep.subr.mxu0 0.0
      %2992 = vmatpush1.msra.mxu0 0.0
      %2993 = vmatprep.subr.mxu0 0.0
      %2994 = vmatpush1.msra.mxu0 0.0
      %2995 = vmatprep.subr.mxu0 0.0
      %2996 = vmatpush1.msra.mxu0 0.0
      %2997 = vmatprep.subr.mxu0 0.0
      %2998 = vmatpush1.msra.mxu0 0.0
      %2999 = vmatprep.subr.mxu0 0.0
      %3000 = vmatpush1.msra.mxu0 0.0
      %3001 = vmatprep.subr.mxu0 0.0
      %3002 = vmatpush1.msra.mxu0 0.0
      %3003 = vmatprep.subr.mxu0 0.0
      %3004 = vmatpush1.msra.mxu0 0.0
      %3005 = vmatprep.subr.mxu0 0.0
      %3006 = vmatpush1.msra.mxu0 0.0
      %3007 = vmatprep.subr.mxu0 0.0
      %3008 = vmatpush1.msra.mxu0 0.0
      %3009 = vmatprep.subr.mxu0 0.0
      %3010 = vmatpush1.msra.mxu0 0.0
      %3011 = vmatprep.subr.mxu0 0.0
      %3012 = vmatpush1.msra.mxu0 0.0
      %3013 = vmatprep.subr.mxu0 0.0
      %3014 = vmatpush1.msra.mxu0 0.0
      %3015 = vmatprep.subr.mxu0 0.0
      %3016 = vmatpush1.msra.mxu0 0.0
      %3017 = vmatprep.subr.mxu0 0.0
      %3018 = vmatpush1.msra.mxu0 0.0
      %3019 = vmatprep.subr.mxu0 0.0
      %3020 = vmatpush1.msra.mxu0 0.0
      %3021 = vmatprep.subr.mxu0 0.0
      %3022 = vmatpush1.msra.mxu0 0.0
      %3023 = vmatprep.subr.mxu0 0.0
      %3024 = vmatpush1.msra.mxu0 0.0
      %3025 = vmatprep.subr.mxu0 0.0
      %3026 = vmatpush1.msra.mxu0 0.0
      %3027 = vmatprep.subr.mxu0 0.0
      %3028 = vmatpush1.msra.mxu0 0.0
      %3029 = vmatprep.subr.mxu0 0.0
      %3030 = vmatpush1.msra.mxu0 0.0
      %3031 = vmatprep.subr.mxu0 0.0
      %3032 = vmatpush1.msra.mxu0 0.0
      %3033 = vmatprep.mubr.f32.mxu0 0.0
      %3034 = vmatmul.mubr.f32.gmra.mrb[0].mxu0 %v2964
      %v3035 = vpop.f32.mrb[0].mxu0
      %v3036 = vadd.f32 %v2805, %v3035
      %v3037 = vpop.f32.mrb[0].mxu0
      %3038 = vmatprep.mubr.f32.mxu0 0.0
      %3039 = vmatmul.mubr.f32.gmra.mrb[0].mxu0 %v2967
      %v3040 = vpop.f32.mrb[0].mxu0
      %v3041 = vadd.f32 %v2810, %v3040
      %v3042 = vpop.f32.mrb[0].mxu0
      %3043 = vmatprep.mubr.f32.mxu0 0.0
      %3044 = vmatmul.mubr.f32.gmra.mrb[0].mxu0 %v2643
      %v3045 = vpop.f32.mrb[0].mxu0
      %v3046 = vadd.f32 %v2815, %v3045
      %v3047 = vpop.f32.mrb[0].mxu0
      %3048 = vmatprep.mubr.f32.mxu0 0.0
      %3049 = vmatmul.mubr.f32.gmra.mrb[0].mxu0 %v2646
      %v3050 = vpop.f32.mrb[0].mxu0
      %v3051 = vadd.f32 %v2820, %v3050
      %v3052 = vpop.f32.mrb[0].mxu0
      %3053 = vmatprep.mubr.f32.mxu0 0.0
      %3054 = vmatmul.mubr.f32.gmra.mrb[0].mxu0 %v2649
      %v3055 = vpop.f32.mrb[0].mxu0
      %v3056 = vadd.f32 %v2825, %v3055
      %v3057 = vpop.f32.mrb[0].mxu0
      %3058 = vmatprep.mubr.f32.mxu0 0.0
      %3059 = vmatmul.mubr.f32.gmra.mrb[0].mxu0 %v2652
      %v3060 = vpop.f32.mrb[0].mxu0
      %v3061 = vadd.f32 %v2830, %v3060
      %v3062 = vpop.f32.mrb[0].mxu0
      %3063 = vmatprep.mubr.f32.mxu0 0.0
      %3064 = vmatmul.mubr.f32.gmra.mrb[0].mxu0 %v2655
      %v3065 = vpop.f32.mrb[0].mxu0
      %v3066 = vadd.f32 %v2835, %v3065
      %v3067 = vpop.f32.mrb[0].mxu0
      %3068 = vmatprep.mubr.f32.mxu0 0.0
      %3069 = vmatmul.mubr.f32.gmra.mrb[0].mxu0 %v2658
      %v3070 = vpop.f32.mrb[0].mxu0
      %v3071 = vadd.f32 %v2840, %v3070
      %v3072 = vpop.f32.mrb[0].mxu0
      %3073 = vmatprep.mubr.f32.mxu0 0.0
      %3074 = vmatmul.mubr.f32.gmra.mrb[0].mxu0 %v2661
      %v3075 = vpop.f32.mrb[0].mxu0
      %v3076 = vadd.f32 %v2845, %v3075
      %v3077 = vpop.f32.mrb[0].mxu0
      %3078 = vmatprep.mubr.f32.mxu0 0.0
      %3079 = vmatmul.mubr.f32.gmra.mrb[0].mxu0 %v2664
      %v3080 = vpop.f32.mrb[0].mxu0
      %v3081 = vadd.f32 %v2850, %v3080
      %v3082 = vpop.f32.mrb[0].mxu0
      %3083 = vmatprep.mubr.f32.mxu0 0.0
      %3084 = vmatmul.mubr.f32.gmra.mrb[0].mxu0 %v2667
      %v3085 = vpop.f32.mrb[0].mxu0
      %v3086 = vadd.f32 %v2855, %v3085
      %v3087 = vpop.f32.mrb[0].mxu0
      %3088 = vmatprep.mubr.f32.mxu0 0.0
      %3089 = vmatmul.mubr.f32.gmra.mrb[0].mxu0 %v2670
      %v3090 = vpop.f32.mrb[0].mxu0
      %v3091 = vadd.f32 %v2860, %v3090
      %v3092 = vpop.f32.mrb[0].mxu0
      %3093 = vmatprep.mubr.f32.mxu0 0.0
      %3094 = vmatmul.mubr.f32.gmra.mrb[0].mxu0 %v2673
      %v3095 = vpop.f32.mrb[0].mxu0
      %v3096 = vadd.f32 %v2865, %v3095
      %v3097 = vpop.f32.mrb[0].mxu0
      %3098 = vmatprep.mubr.f32.mxu0 0.0
      %3099 = vmatmul.mubr.f32.gmra.mrb[0].mxu0 %v2676
      %v3100 = vpop.f32.mrb[0].mxu0
      %v3101 = vadd.f32 %v2870, %v3100
      %v3102 = vpop.f32.mrb[0].mxu0
      %3103 = vmatprep.mubr.f32.mxu0 0.0
      %3104 = vmatmul.mubr.f32.gmra.mrb[0].mxu0 %v2679
      %v3105 = vpop.f32.mrb[0].mxu0
      %v3106 = vadd.f32 %v2875, %v3105
      %v3107 = vpop.f32.mrb[0].mxu0
      %3108 = vmatprep.mubr.f32.mxu0 0.0
      %3109 = vmatmul.mubr.f32.gmra.mrb[0].mxu0 %v2682
      %v3110 = vpop.f32.mrb[0].mxu0
      %v3111 = vadd.f32 %v2880, %v3110
      %v3112 = vpop.f32.mrb[0].mxu0
      %3113 = vmatprep.mubr.f32.mxu0 0.0
      %3114 = vmatmul.mubr.f32.gmra.mrb[0].mxu0 %v2685
      %v3115 = vpop.f32.mrb[0].mxu0
      %v3116 = vadd.f32 %v2885, %v3115
      %v3117 = vpop.f32.mrb[0].mxu0
      %3118 = vmatprep.mubr.f32.mxu0 0.0
      %3119 = vmatmul.mubr.f32.gmra.mrb[0].mxu0 %v2688
      %v3120 = vpop.f32.mrb[0].mxu0
      %v3121 = vadd.f32 %v2890, %v3120
      %v3122 = vpop.f32.mrb[0].mxu0
      %3123 = vmatprep.mubr.f32.mxu0 0.0
      %3124 = vmatmul.mubr.f32.gmra.mrb[0].mxu0 %v2691
      %v3125 = vpop.f32.mrb[0].mxu0
      %v3126 = vadd.f32 %v2895, %v3125
      %v3127 = vpop.f32.mrb[0].mxu0
      %3128 = vmatprep.mubr.f32.mxu0 0.0
      %3129 = vmatmul.mubr.f32.gmra.mrb[0].mxu0 %v2694
      %v3130 = vpop.f32.mrb[0].mxu0
      %v3131 = vadd.f32 %v2900, %v3130
      %v3132 = vpop.f32.mrb[0].mxu0
      %3133 = vmatprep.mubr.f32.mxu0 0.0
      %3134 = vmatmul.mubr.f32.gmra.mrb[0].mxu0 %v2697
      %v3135 = vpop.f32.mrb[0].mxu0
      %v3136 = vadd.f32 %v2905, %v3135
      %v3137 = vpop.f32.mrb[0].mxu0
      %3138 = vmatprep.mubr.f32.mxu0 0.0
      %3139 = vmatmul.mubr.f32.gmra.mrb[0].mxu0 %v2700
      %v3140 = vpop.f32.mrb[0].mxu0
      %v3141 = vadd.f32 %v2910, %v3140
      %v3142 = vpop.f32.mrb[0].mxu0
      %3143 = vmatprep.mubr.f32.mxu0 0.0
      %3144 = vmatmul.mubr.f32.gmra.mrb[0].mxu0 %v2703
      %v3145 = vpop.f32.mrb[0].mxu0
      %v3146 = vadd.f32 %v2915, %v3145
      %v3147 = vpop.f32.mrb[0].mxu0
      %3148 = vmatprep.mubr.f32.mxu0 0.0
      %3149 = vmatmul.mubr.f32.gmra.mrb[0].mxu0 %v2706
      %v3150 = vpop.f32.mrb[0].mxu0
      %v3151 = vadd.f32 %v2920, %v3150
      %v3152 = vpop.f32.mrb[0].mxu0
      %3153 = vmatprep.mubr.f32.mxu0 0.0
      %3154 = vmatmul.mubr.f32.gmra.mrb[0].mxu0 %v2709
      %v3155 = vpop.f32.mrb[0].mxu0
      %v3156 = vadd.f32 %v2925, %v3155
      %v3157 = vpop.f32.mrb[0].mxu0
      %3158 = vmatprep.mubr.f32.mxu0 0.0
      %3159 = vmatmul.mubr.f32.gmra.mrb[0].mxu0 %v2712
      %v3160 = vpop.f32.mrb[0].mxu0
      %v3161 = vadd.f32 %v2930, %v3160
      %v3162 = vpop.f32.mrb[0].mxu0
      %3163 = vmatprep.mubr.f32.mxu0 0.0
      %3164 = vmatmul.mubr.f32.gmra.mrb[0].mxu0 %v2715
      %v3165 = vpop.f32.mrb[0].mxu0
      %v3166 = vadd.f32 %v2935, %v3165
      %v3167 = vpop.f32.mrb[0].mxu0
      %3168 = vmatprep.mubr.f32.mxu0 0.0
      %3169 = vmatmul.mubr.f32.gmra.mrb[0].mxu0 %v2718
      %v3170 = vpop.f32.mrb[0].mxu0
      %v3171 = vadd.f32 %v2940, %v3170
      %v3172 = vpop.f32.mrb[0].mxu0
      %3173 = vmatprep.mubr.f32.mxu0 0.0
      %3174 = vmatmul.mubr.f32.gmra.mrb[0].mxu0 %v2721
      %v3175 = vpop.f32.mrb[0].mxu0
      %v3176 = vadd.f32 %v2945, %v3175
      %v3177 = vpop.f32.mrb[0].mxu0
      %3178 = vmatprep.mubr.f32.mxu0 0.0
      %3179 = vmatmul.mubr.f32.gmra.mrb[0].mxu0 %v2724
      %v3180 = vpop.f32.mrb[0].mxu0
      %v3181 = vadd.f32 %v2950, %v3180
      %v3182 = vpop.f32.mrb[0].mxu0
      %3183 = vmatprep.mubr.f32.mxu0 0.0
      %3184 = vmatmul.mubr.f32.gmra.mrb[0].mxu0 %v2727
      %v3185 = vpop.f32.mrb[0].mxu0
      %v3186 = vadd.f32 %v2955, %v3185
      %v3187 = vpop.f32.mrb[0].mxu0
      %3188 = vmatprep.mubr.f32.mxu0 0.0
      %3189 = vmatmul.mubr.f32.gmra.mrb[0].mxu0 %v2730
      %v3190 = vpop.f32.mrb[0].mxu0
      %v3191 = vadd.f32 %v2960, %v3190
      %v3192 = vpop.f32.mrb[0].mxu0
      %3193 = vdwg.mxu0
      %s3194 = scalar_lea.vmem %s1, 240
      %v3195 = vld [vmem:[%s3194] sm:$0xff]
      %v3196 = vld [vmem:[%s3194 + $0x8] sm:$0xff]
      %v3197 = vld [vmem:[%s3194 + $0x10] sm:$0xff]
      %v3198 = vld [vmem:[%s3194 + $0x18] sm:$0xff]
      %v3199 = vld [vmem:[%s3194 + $0x20] sm:$0xff]
      %v3200 = vld [vmem:[%s3194 + $0x28] sm:$0xff]
      %v3202 = vsel %vm1125, %v2626, 0
      %v3205 = vsel %vm1125, %v2627, 0
      %3207 = vmatprep.subr.mxu0 0.0
      %3208 = vmatpush1.msra.mxu0 %v3195
      %3209 = vmatprep.subr.mxu0 0.0
      %3210 = vmatpush1.msra.mxu0 %v3196
      %3211 = vmatprep.subr.mxu0 0.0
      %3212 = vmatpush1.msra.mxu0 %v3197
      %3213 = vmatprep.subr.mxu0 0.0
      %3214 = vmatpush1.msra.mxu0 %v3198
      %3215 = vmatprep.subr.mxu0 0.0
      %3216 = vmatpush1.msra.mxu0 %v3199
      %3217 = vmatprep.subr.mxu0 0.0
      %3218 = vmatpush1.msra.mxu0 %v3200
      %3219 = vmatprep.subr.mxu0 0.0
      %3220 = vmatpush1.msra.mxu0 0.0
      %3221 = vmatprep.subr.mxu0 0.0
      %3222 = vmatpush1.msra.mxu0 0.0
      %3223 = vmatprep.subr.mxu0 0.0
      %3224 = vmatpush1.msra.mxu0 0.0
      %3225 = vmatprep.subr.mxu0 0.0
      %3226 = vmatpush1.msra.mxu0 0.0
      %3227 = vmatprep.subr.mxu0 0.0
      %3228 = vmatpush1.msra.mxu0 0.0
      %3229 = vmatprep.subr.mxu0 0.0
      %3230 = vmatpush1.msra.mxu0 0.0
      %3231 = vmatprep.subr.mxu0 0.0
      %3232 = vmatpush1.msra.mxu0 0.0
      %3233 = vmatprep.subr.mxu0 0.0
      %3234 = vmatpush1.msra.mxu0 0.0
      %3235 = vmatprep.subr.mxu0 0.0
      %3236 = vmatpush1.msra.mxu0 0.0
      %3237 = vmatprep.subr.mxu0 0.0
      %3238 = vmatpush1.msra.mxu0 0.0
      %3239 = vmatprep.subr.mxu0 0.0
      %3240 = vmatpush1.msra.mxu0 0.0
      %3241 = vmatprep.subr.mxu0 0.0
      %3242 = vmatpush1.msra.mxu0 0.0
      %3243 = vmatprep.subr.mxu0 0.0
      %3244 = vmatpush1.msra.mxu0 0.0
      %3245 = vmatprep.subr.mxu0 0.0
      %3246 = vmatpush1.msra.mxu0 0.0
      %3247 = vmatprep.subr.mxu0 0.0
      %3248 = vmatpush1.msra.mxu0 0.0
      %3249 = vmatprep.subr.mxu0 0.0
      %3250 = vmatpush1.msra.mxu0 0.0
      %3251 = vmatprep.subr.mxu0 0.0
      %3252 = vmatpush1.msra.mxu0 0.0
      %3253 = vmatprep.subr.mxu0 0.0
      %3254 = vmatpush1.msra.mxu0 0.0
      %3255 = vmatprep.subr.mxu0 0.0
      %3256 = vmatpush1.msra.mxu0 0.0
      %3257 = vmatprep.subr.mxu0 0.0
      %3258 = vmatpush1.msra.mxu0 0.0
      %3259 = vmatprep.subr.mxu0 0.0
      %3260 = vmatpush1.msra.mxu0 0.0
      %3261 = vmatprep.subr.mxu0 0.0
      %3262 = vmatpush1.msra.mxu0 0.0
      %3263 = vmatprep.subr.mxu0 0.0
      %3264 = vmatpush1.msra.mxu0 0.0
      %3265 = vmatprep.subr.mxu0 0.0
      %3266 = vmatpush1.msra.mxu0 0.0
      %3267 = vmatprep.subr.mxu0 0.0
      %3268 = vmatpush1.msra.mxu0 0.0
      %3269 = vmatprep.subr.mxu0 0.0
      %3270 = vmatpush1.msra.mxu0 0.0
      %3271 = vmatprep.mubr.f32.mxu0 0.0
      %3272 = vmatmul.mubr.f32.gmra.mrb[0].mxu0 %v2649
      %v3273 = vpop.f32.mrb[0].mxu0
      %v3274 = vadd.f32 0.0, %v3273
      %v3275 = vpop.f32.mrb[0].mxu0
      %3276 = vmatprep.mubr.f32.mxu0 0.0
      %3277 = vmatmul.mubr.f32.gmra.mrb[0].mxu0 %v2652
      %v3278 = vpop.f32.mrb[0].mxu0
      %v3279 = vadd.f32 0.0, %v3278
      %v3280 = vpop.f32.mrb[0].mxu0
      %3281 = vmatprep.mubr.f32.mxu0 0.0
      %3282 = vmatmul.mubr.f32.gmra.mrb[0].mxu0 %v2655
      %v3283 = vpop.f32.mrb[0].mxu0
      %v3284 = vadd.f32 0.0, %v3283
      %v3285 = vpop.f32.mrb[0].mxu0
      %3286 = vmatprep.mubr.f32.mxu0 0.0
      %3287 = vmatmul.mubr.f32.gmra.mrb[0].mxu0 %v2658
      %v3288 = vpop.f32.mrb[0].mxu0
      %v3289 = vadd.f32 0.0, %v3288
      %v3290 = vpop.f32.mrb[0].mxu0
      %3291 = vmatprep.mubr.f32.mxu0 0.0
      %3292 = vmatmul.mubr.f32.gmra.mrb[0].mxu0 %v2661
      %v3293 = vpop.f32.mrb[0].mxu0
      %v3294 = vadd.f32 0.0, %v3293
      %v3295 = vpop.f32.mrb[0].mxu0
      %3296 = vmatprep.mubr.f32.mxu0 0.0
      %3297 = vmatmul.mubr.f32.gmra.mrb[0].mxu0 %v2664
      %v3298 = vpop.f32.mrb[0].mxu0
      %v3299 = vadd.f32 0.0, %v3298
      %v3300 = vpop.f32.mrb[0].mxu0
      %3301 = vmatprep.mubr.f32.mxu0 0.0
      %3302 = vmatmul.mubr.f32.gmra.mrb[0].mxu0 %v2667
      %v3303 = vpop.f32.mrb[0].mxu0
      %v3304 = vadd.f32 0.0, %v3303
      %v3305 = vpop.f32.mrb[0].mxu0
      %3306 = vmatprep.mubr.f32.mxu0 0.0
      %3307 = vmatmul.mubr.f32.gmra.mrb[0].mxu0 %v2670
      %v3308 = vpop.f32.mrb[0].mxu0
      %v3309 = vadd.f32 0.0, %v3308
      %v3310 = vpop.f32.mrb[0].mxu0
      %3311 = vmatprep.mubr.f32.mxu0 0.0
      %3312 = vmatmul.mubr.f32.gmra.mrb[0].mxu0 %v2673
      %v3313 = vpop.f32.mrb[0].mxu0
      %v3314 = vadd.f32 0.0, %v3313
      %v3315 = vpop.f32.mrb[0].mxu0
      %3316 = vmatprep.mubr.f32.mxu0 0.0
      %3317 = vmatmul.mubr.f32.gmra.mrb[0].mxu0 %v2676
      %v3318 = vpop.f32.mrb[0].mxu0
      %v3319 = vadd.f32 0.0, %v3318
      %v3320 = vpop.f32.mrb[0].mxu0
      %3321 = vmatprep.mubr.f32.mxu0 0.0
      %3322 = vmatmul.mubr.f32.gmra.mrb[0].mxu0 %v2679
      %v3323 = vpop.f32.mrb[0].mxu0
      %v3324 = vadd.f32 0.0, %v3323
      %v3325 = vpop.f32.mrb[0].mxu0
      %3326 = vmatprep.mubr.f32.mxu0 0.0
      %3327 = vmatmul.mubr.f32.gmra.mrb[0].mxu0 %v2682
      %v3328 = vpop.f32.mrb[0].mxu0
      %v3329 = vadd.f32 0.0, %v3328
      %v3330 = vpop.f32.mrb[0].mxu0
      %3331 = vmatprep.mubr.f32.mxu0 0.0
      %3332 = vmatmul.mubr.f32.gmra.mrb[0].mxu0 %v2685
      %v3333 = vpop.f32.mrb[0].mxu0
      %v3334 = vadd.f32 0.0, %v3333
      %v3335 = vpop.f32.mrb[0].mxu0
      %3336 = vmatprep.mubr.f32.mxu0 0.0
      %3337 = vmatmul.mubr.f32.gmra.mrb[0].mxu0 %v2688
      %v3338 = vpop.f32.mrb[0].mxu0
      %v3339 = vadd.f32 0.0, %v3338
      %v3340 = vpop.f32.mrb[0].mxu0
      %3341 = vmatprep.mubr.f32.mxu0 0.0
      %3342 = vmatmul.mubr.f32.gmra.mrb[0].mxu0 %v2691
      %v3343 = vpop.f32.mrb[0].mxu0
      %v3344 = vadd.f32 0.0, %v3343
      %v3345 = vpop.f32.mrb[0].mxu0
      %3346 = vmatprep.mubr.f32.mxu0 0.0
      %3347 = vmatmul.mubr.f32.gmra.mrb[0].mxu0 %v2694
      %v3348 = vpop.f32.mrb[0].mxu0
      %v3349 = vadd.f32 0.0, %v3348
      %v3350 = vpop.f32.mrb[0].mxu0
      %3351 = vmatprep.mubr.f32.mxu0 0.0
      %3352 = vmatmul.mubr.f32.gmra.mrb[0].mxu0 %v2697
      %v3353 = vpop.f32.mrb[0].mxu0
      %v3354 = vadd.f32 0.0, %v3353
      %v3355 = vpop.f32.mrb[0].mxu0
      %3356 = vmatprep.mubr.f32.mxu0 0.0
      %3357 = vmatmul.mubr.f32.gmra.mrb[0].mxu0 %v2700
      %v3358 = vpop.f32.mrb[0].mxu0
      %v3359 = vadd.f32 0.0, %v3358
      %v3360 = vpop.f32.mrb[0].mxu0
      %3361 = vmatprep.mubr.f32.mxu0 0.0
      %3362 = vmatmul.mubr.f32.gmra.mrb[0].mxu0 %v2703
      %v3363 = vpop.f32.mrb[0].mxu0
      %v3364 = vadd.f32 0.0, %v3363
      %v3365 = vpop.f32.mrb[0].mxu0
      %3366 = vmatprep.mubr.f32.mxu0 0.0
      %3367 = vmatmul.mubr.f32.gmra.mrb[0].mxu0 %v2706
      %v3368 = vpop.f32.mrb[0].mxu0
      %v3369 = vadd.f32 0.0, %v3368
      %v3370 = vpop.f32.mrb[0].mxu0
      %3371 = vmatprep.mubr.f32.mxu0 0.0
      %3372 = vmatmul.mubr.f32.gmra.mrb[0].mxu0 %v2709
      %v3373 = vpop.f32.mrb[0].mxu0
      %v3374 = vadd.f32 0.0, %v3373
      %v3375 = vpop.f32.mrb[0].mxu0
      %3376 = vmatprep.mubr.f32.mxu0 0.0
      %3377 = vmatmul.mubr.f32.gmra.mrb[0].mxu0 %v2712
      %v3378 = vpop.f32.mrb[0].mxu0
      %v3379 = vadd.f32 0.0, %v3378
      %v3380 = vpop.f32.mrb[0].mxu0
      %3381 = vmatprep.mubr.f32.mxu0 0.0
      %3382 = vmatmul.mubr.f32.gmra.mrb[0].mxu0 %v2715
      %v3383 = vpop.f32.mrb[0].mxu0
      %v3384 = vadd.f32 0.0, %v3383
      %v3385 = vpop.f32.mrb[0].mxu0
      %3386 = vmatprep.mubr.f32.mxu0 0.0
      %3387 = vmatmul.mubr.f32.gmra.mrb[0].mxu0 %v2718
      %v3388 = vpop.f32.mrb[0].mxu0
      %v3389 = vadd.f32 0.0, %v3388
      %v3390 = vpop.f32.mrb[0].mxu0
      %3391 = vmatprep.mubr.f32.mxu0 0.0
      %3392 = vmatmul.mubr.f32.gmra.mrb[0].mxu0 %v2721
      %v3393 = vpop.f32.mrb[0].mxu0
      %v3394 = vadd.f32 0.0, %v3393
      %v3395 = vpop.f32.mrb[0].mxu0
      %3396 = vmatprep.mubr.f32.mxu0 0.0
      %3397 = vmatmul.mubr.f32.gmra.mrb[0].mxu0 %v2724
      %v3398 = vpop.f32.mrb[0].mxu0
      %v3399 = vadd.f32 0.0, %v3398
      %v3400 = vpop.f32.mrb[0].mxu0
      %3401 = vmatprep.mubr.f32.mxu0 0.0
      %3402 = vmatmul.mubr.f32.gmra.mrb[0].mxu0 %v2727
      %v3403 = vpop.f32.mrb[0].mxu0
      %v3404 = vadd.f32 0.0, %v3403
      %v3405 = vpop.f32.mrb[0].mxu0
      %3406 = vmatprep.mubr.f32.mxu0 0.0
      %3407 = vmatmul.mubr.f32.gmra.mrb[0].mxu0 %v2730
      %v3408 = vpop.f32.mrb[0].mxu0
      %v3409 = vadd.f32 0.0, %v3408
      %v3410 = vpop.f32.mrb[0].mxu0
      %3411 = vmatprep.mubr.f32.mxu0 0.0
      %3412 = vmatmul.mubr.f32.gmra.mrb[0].mxu0 %v2733
      %v3413 = vpop.f32.mrb[0].mxu0
      %v3414 = vadd.f32 0.0, %v3413
      %v3415 = vpop.f32.mrb[0].mxu0
      %3416 = vmatprep.mubr.f32.mxu0 0.0
      %3417 = vmatmul.mubr.f32.gmra.mrb[0].mxu0 %v2736
      %v3418 = vpop.f32.mrb[0].mxu0
      %v3419 = vadd.f32 0.0, %v3418
      %v3420 = vpop.f32.mrb[0].mxu0
      %3421 = vmatprep.mubr.f32.mxu0 0.0
      %3422 = vmatmul.mubr.f32.gmra.mrb[0].mxu0 %v3202
      %v3423 = vpop.f32.mrb[0].mxu0
      %v3424 = vadd.f32 0.0, %v3423
      %v3425 = vpop.f32.mrb[0].mxu0
      %3426 = vmatprep.mubr.f32.mxu0 0.0
      %3427 = vmatmul.mubr.f32.gmra.mrb[0].mxu0 %v3205
      %v3428 = vpop.f32.mrb[0].mxu0
      %v3429 = vadd.f32 0.0, %v3428
      %v3430 = vpop.f32.mrb[0].mxu0
      %3431 = vdwg.mxu0
      %v3432 = vadd.f32 %v3036, %v3274
      %v3433 = vadd.f32 %v3041, %v3279
      %v3434 = vadd.f32 %v3046, %v3284
      %v3435 = vadd.f32 %v3051, %v3289
      %v3436 = vadd.f32 %v3056, %v3294
      %v3437 = vadd.f32 %v3061, %v3299
      %v3438 = vadd.f32 %v3066, %v3304
      %v3439 = vadd.f32 %v3071, %v3309
      %v3440 = vadd.f32 %v3076, %v3314
      %v3441 = vadd.f32 %v3081, %v3319
      %v3442 = vadd.f32 %v3086, %v3324
      %v3443 = vadd.f32 %v3091, %v3329
      %v3444 = vadd.f32 %v3096, %v3334
      %v3445 = vadd.f32 %v3101, %v3339
      %v3446 = vadd.f32 %v3106, %v3344
      %v3447 = vadd.f32 %v3111, %v3349
      %v3448 = vadd.f32 %v3116, %v3354
      %v3449 = vadd.f32 %v3121, %v3359
      %v3450 = vadd.f32 %v3126, %v3364
      %v3451 = vadd.f32 %v3131, %v3369
      %v3452 = vadd.f32 %v3136, %v3374
      %v3453 = vadd.f32 %v3141, %v3379
      %v3454 = vadd.f32 %v3146, %v3384
      %v3455 = vadd.f32 %v3151, %v3389
      %v3456 = vadd.f32 %v3156, %v3394
      %v3457 = vadd.f32 %v3161, %v3399
      %v3458 = vadd.f32 %v3166, %v3404
      %v3459 = vadd.f32 %v3171, %v3409
      %v3460 = vadd.f32 %v3176, %v3414
      %v3461 = vadd.f32 %v3181, %v3419
      %v3462 = vadd.f32 %v3186, %v3424
      %v3463 = vadd.f32 %v3191, %v3429
      %s3464 = scalar_lea.vmem %s2, 1
      %v3465 = vld [vmem:[%s3464] sm:$0x1]
      %v3467 = vlaneseq
      %v3468 = vshrl.u32 %v3467, 7
      %v3469 = vsub.s32 0, %v3468
      %v3470 = vrot.slane %v3465, %v3469
      %v3472 = vadd.f32 %v3432, %v3470
      %v3473 = vadd.f32 %v3433, %v3470
      %v3474 = vadd.f32 %v3434, %v3470
      %v3475 = vadd.f32 %v3435, %v3470
      %v3476 = vadd.f32 %v3436, %v3470
      %v3477 = vadd.f32 %v3437, %v3470
      %v3478 = vadd.f32 %v3438, %v3470
      %v3479 = vadd.f32 %v3439, %v3470
      %v3480 = vadd.f32 %v3440, %v3470
      %v3481 = vadd.f32 %v3441, %v3470
      %v3482 = vadd.f32 %v3442, %v3470
      %v3483 = vadd.f32 %v3443, %v3470
      %v3484 = vadd.f32 %v3444, %v3470
      %v3485 = vadd.f32 %v3445, %v3470
      %v3486 = vadd.f32 %v3446, %v3470
      %v3487 = vadd.f32 %v3447, %v3470
      %v3488 = vadd.f32 %v3448, %v3470
      %v3489 = vadd.f32 %v3449, %v3470
      %v3490 = vadd.f32 %v3450, %v3470
      %v3491 = vadd.f32 %v3451, %v3470
      %v3492 = vadd.f32 %v3452, %v3470
      %v3493 = vadd.f32 %v3453, %v3470
      %v3494 = vadd.f32 %v3454, %v3470
      %v3495 = vadd.f32 %v3455, %v3470
      %v3496 = vadd.f32 %v3456, %v3470
      %v3497 = vadd.f32 %v3457, %v3470
      %v3498 = vadd.f32 %v3458, %v3470
      %v3499 = vadd.f32 %v3459, %v3470
      %v3500 = vadd.f32 %v3460, %v3470
      %v3501 = vadd.f32 %v3461, %v3470
      %v3502 = vadd.f32 %v3462, %v3470
      %v3503 = vadd.f32 %v3463, %v3470
      %v3504 = vmax.f32 %v3472, 0.0
      %v3505 = vmax.f32 %v3473, 0.0
      %v3506 = vmax.f32 %v3474, 0.0
      %v3507 = vmax.f32 %v3475, 0.0
      %v3508 = vmax.f32 %v3476, 0.0
      %v3509 = vmax.f32 %v3477, 0.0
      %v3510 = vmax.f32 %v3478, 0.0
      %v3511 = vmax.f32 %v3479, 0.0
      %v3512 = vmax.f32 %v3480, 0.0
      %v3513 = vmax.f32 %v3481, 0.0
      %v3514 = vmax.f32 %v3482, 0.0
      %v3515 = vmax.f32 %v3483, 0.0
      %v3516 = vmax.f32 %v3484, 0.0
      %v3517 = vmax.f32 %v3485, 0.0
      %v3518 = vmax.f32 %v3486, 0.0
      %v3519 = vmax.f32 %v3487, 0.0
      %v3520 = vmax.f32 %v3488, 0.0
      %v3521 = vmax.f32 %v3489, 0.0
      %v3522 = vmax.f32 %v3490, 0.0
      %v3523 = vmax.f32 %v3491, 0.0
      %v3524 = vmax.f32 %v3492, 0.0
      %v3525 = vmax.f32 %v3493, 0.0
      %v3526 = vmax.f32 %v3494, 0.0
      %v3527 = vmax.f32 %v3495, 0.0
      %v3528 = vmax.f32 %v3496, 0.0
      %v3529 = vmax.f32 %v3497, 0.0
      %v3530 = vmax.f32 %v3498, 0.0
      %v3531 = vmax.f32 %v3499, 0.0
      %v3532 = vmax.f32 %v3500, 0.0
      %v3533 = vmax.f32 %v3501, 0.0
      %v3534 = vmax.f32 %v3502, 0.0
      %v3535 = vmax.f32 %v3503, 0.0
      %s3536 = scalar_lea.vmem [#allocation4], 24
      %3537 = vst.msk [vmem:[%s3536 + $0x1] sm:$0xff] %vm225, %v3504
      %3538 = vst.msk [vmem:[%s3536 + $0x9] sm:$0xff] %vm225, %v3505
      %3539 = vst.msk [vmem:[%s3536 + $0x19] sm:$0xff] %vm225, %v3506
      %3540 = vst.msk [vmem:[%s3536 + $0x21] sm:$0xff] %vm225, %v3507
      %3541 = vst.msk [vmem:[%s3536 + $0x31] sm:$0xff] %vm225, %v3508
      %3542 = vst.msk [vmem:[%s3536 + $0x39] sm:$0xff] %vm225, %v3509
      %3543 = vst.msk [vmem:[%s3536 + $0x49] sm:$0xff] %vm225, %v3510
      %3544 = vst.msk [vmem:[%s3536 + $0x51] sm:$0xff] %vm225, %v3511
      %3545 = vst.msk [vmem:[%s3536 + $0x61] sm:$0xff] %vm225, %v3512
      %3546 = vst.msk [vmem:[%s3536 + $0x69] sm:$0xff] %vm225, %v3513
      %3547 = vst.msk [vmem:[%s3536 + $0x79] sm:$0xff] %vm225, %v3514
      %3548 = vst.msk [vmem:[%s3536 + $0x81] sm:$0xff] %vm225, %v3515
      %3549 = vst.msk [vmem:[%s3536 + $0x91] sm:$0xff] %vm225, %v3516
      %3550 = vst.msk [vmem:[%s3536 + $0x99] sm:$0xff] %vm225, %v3517
      %3551 = vst.msk [vmem:[%s3536 + $0xa9] sm:$0xff] %vm225, %v3518
      %3552 = vst.msk [vmem:[%s3536 + $0xb1] sm:$0xff] %vm225, %v3519
      %3553 = vst.msk [vmem:[%s3536 + $0xc1] sm:$0xff] %vm225, %v3520
      %3554 = vst.msk [vmem:[%s3536 + $0xc9] sm:$0xff] %vm225, %v3521
      %3555 = vst.msk [vmem:[%s3536 + $0xd9] sm:$0xff] %vm225, %v3522
      %3556 = vst.msk [vmem:[%s3536 + $0xe1] sm:$0xff] %vm225, %v3523
      %3557 = vst.msk [vmem:[%s3536 + $0xf1] sm:$0xff] %vm225, %v3524
      %3558 = vst.msk [vmem:[%s3536 + $0xf9] sm:$0xff] %vm225, %v3525
      %3559 = vst.msk [vmem:[%s3536 + $0x109] sm:$0xff] %vm225, %v3526
      %3560 = vst.msk [vmem:[%s3536 + $0x111] sm:$0xff] %vm225, %v3527
      %3561 = vst.msk [vmem:[%s3536 + $0x121] sm:$0xff] %vm225, %v3528
      %3562 = vst.msk [vmem:[%s3536 + $0x129] sm:$0xff] %vm225, %v3529
      %3563 = vst.msk [vmem:[%s3536 + $0x139] sm:$0xff] %vm225, %v3530
      %3564 = vst.msk [vmem:[%s3536 + $0x141] sm:$0xff] %vm225, %v3531
      %3565 = vst.msk [vmem:[%s3536 + $0x151] sm:$0xff] %vm225, %v3532
      %3566 = vst.msk [vmem:[%s3536 + $0x159] sm:$0xff] %vm225, %v3533
      %3567 = vst.msk [vmem:[%s3536 + $0x169] sm:$0xff] %vm225, %v3534
      %3568 = vst.msk [vmem:[%s3536 + $0x171] sm:$0xff] %vm225, %v3535
      %v3569 = vld [vmem:[#allocation4] sm:$0xff]
      %v3570 = vld [vmem:[#allocation4 + $0x8] sm:$0xff]
      %v3571 = vld [vmem:[#allocation4 + $0x10] sm:$0x3]
      %v3572 = vld [vmem:[#allocation4 + $0x18] sm:$0xff]
      %v3573 = vld [vmem:[#allocation4 + $0x20] sm:$0xff]
      %v3574 = vld [vmem:[#allocation4 + $0x28] sm:$0x3]
      %v3575 = vld [vmem:[#allocation4 + $0x30] sm:$0xff]
      %v3576 = vld [vmem:[#allocation4 + $0x38] sm:$0xff]
      %v3577 = vld [vmem:[#allocation4 + $0x40] sm:$0x3]
      %v3578 = vld [vmem:[#allocation4 + $0x48] sm:$0xff]
      %v3579 = vld [vmem:[#allocation4 + $0x50] sm:$0xff]
      %v3580 = vld [vmem:[#allocation4 + $0x58] sm:$0x3]
      %v3581 = vld [vmem:[#allocation4 + $0x60] sm:$0xff]
      %v3582 = vld [vmem:[#allocation4 + $0x68] sm:$0xff]
      %v3583 = vld [vmem:[#allocation4 + $0x70] sm:$0x3]
      %v3584 = vld [vmem:[#allocation4 + $0x78] sm:$0xff]
      %v3585 = vld [vmem:[#allocation4 + $0x80] sm:$0xff]
      %v3586 = vld [vmem:[#allocation4 + $0x88] sm:$0x3]
      %v3587 = vld [vmem:[#allocation4 + $0x90] sm:$0xff]
      %v3588 = vld [vmem:[#allocation4 + $0x98] sm:$0xff]
      %v3589 = vld [vmem:[#allocation4 + $0xa0] sm:$0x3]
      %v3590 = vld [vmem:[#allocation4 + $0xa8] sm:$0xff]
      %v3591 = vld [vmem:[#allocation4 + $0xb0] sm:$0xff]
      %v3592 = vld [vmem:[#allocation4 + $0xb8] sm:$0x3]
      %v3593 = vld [vmem:[#allocation4 + $0xc0] sm:$0xff]
      %v3594 = vld [vmem:[#allocation4 + $0xc8] sm:$0xff]
      %v3595 = vld [vmem:[#allocation4 + $0xd0] sm:$0x3]
      %v3596 = vld [vmem:[#allocation4 + $0xd8] sm:$0xff]
      %v3597 = vld [vmem:[#allocation4 + $0xe0] sm:$0xff]
      %v3598 = vld [vmem:[#allocation4 + $0xe8] sm:$0x3]
      %v3599 = vld [vmem:[#allocation4 + $0xf0] sm:$0xff]
      %v3600 = vld [vmem:[#allocation4 + $0xf8] sm:$0xff]
      %v3601 = vld [vmem:[#allocation4 + $0x100] sm:$0x3]
      %v3602 = vld [vmem:[#allocation4 + $0x108] sm:$0xff]
      %v3603 = vld [vmem:[#allocation4 + $0x110] sm:$0xff]
      %v3604 = vld [vmem:[#allocation4 + $0x118] sm:$0x3]
      %v3605 = vld [vmem:[#allocation4 + $0x120] sm:$0xff]
      %v3606 = vld [vmem:[#allocation4 + $0x128] sm:$0xff]
      %v3607 = vld [vmem:[#allocation4 + $0x130] sm:$0x3]
      %v3608 = vld [vmem:[#allocation4 + $0x138] sm:$0xff]
      %v3609 = vld [vmem:[#allocation4 + $0x140] sm:$0xff]
      %v3610 = vld [vmem:[#allocation4 + $0x148] sm:$0x3]
      %v3611 = vld [vmem:[#allocation4 + $0x150] sm:$0xff]
      %v3612 = vld [vmem:[#allocation4 + $0x158] sm:$0xff]
      %v3613 = vld [vmem:[#allocation4 + $0x160] sm:$0x3]
      %v3614 = vld [vmem:[#allocation4 + $0x168] sm:$0xff]
      %v3615 = vld [vmem:[#allocation4 + $0x170] sm:$0xff]
      %v3616 = vld [vmem:[#allocation4 + $0x178] sm:$0x3]
      %v3617 = vld [vmem:[#allocation4 + $0x180] sm:$0xff]
      %v3618 = vld [vmem:[#allocation4 + $0x188] sm:$0xff]
      %v3619 = vld [vmem:[#allocation4 + $0x190] sm:$0x3]
      %v3620 = vld [vmem:[#allocation4 + $0x198] sm:$0xff]
      %v3621 = vld [vmem:[#allocation4 + $0x1a0] sm:$0xff]
      %v3622 = vld [vmem:[#allocation4 + $0x1a8] sm:$0x3]
      %v3677 = vrot.slane %v3569, 1
      %v3678 = vrot.slane %v3570, 1
      %v3679 = vsel %vm641, %v3677, %v3678
      %v3680 = vrot.slane %v3571, 1
      %v3681 = vsel %vm641, %v3678, %v3680
      %v3682 = vrot.slane %v3572, 1
      %v3683 = vrot.slane %v3573, 1
      %v3684 = vsel %vm641, %v3682, %v3683
      %v3685 = vrot.slane %v3574, 1
      %v3686 = vsel %vm641, %v3683, %v3685
      %v3687 = vrot.slane %v3575, 1
      %v3688 = vrot.slane %v3576, 1
      %v3689 = vsel %vm641, %v3687, %v3688
      %v3690 = vrot.slane %v3577, 1
      %v3691 = vsel %vm641, %v3688, %v3690
      %v3692 = vrot.slane %v3578, 1
      %v3693 = vrot.slane %v3579, 1
      %v3694 = vsel %vm641, %v3692, %v3693
      %v3695 = vrot.slane %v3580, 1
      %v3696 = vsel %vm641, %v3693, %v3695
      %v3697 = vrot.slane %v3581, 1
      %v3698 = vrot.slane %v3582, 1
      %v3699 = vsel %vm641, %v3697, %v3698
      %v3700 = vrot.slane %v3583, 1
      %v3701 = vsel %vm641, %v3698, %v3700
      %v3702 = vrot.slane %v3584, 1
      %v3703 = vrot.slane %v3585, 1
      %v3704 = vsel %vm641, %v3702, %v3703
      %v3705 = vrot.slane %v3586, 1
      %v3706 = vsel %vm641, %v3703, %v3705
      %v3707 = vrot.slane %v3587, 1
      %v3708 = vrot.slane %v3588, 1
      %v3709 = vsel %vm641, %v3707, %v3708
      %v3710 = vrot.slane %v3589, 1
      %v3711 = vsel %vm641, %v3708, %v3710
      %v3712 = vrot.slane %v3590, 1
      %v3713 = vrot.slane %v3591, 1
      %v3714 = vsel %vm641, %v3712, %v3713
      %v3715 = vrot.slane %v3592, 1
      %v3716 = vsel %vm641, %v3713, %v3715
      %v3717 = vrot.slane %v3593, 1
      %v3718 = vrot.slane %v3594, 1
      %v3719 = vsel %vm641, %v3717, %v3718
      %v3720 = vrot.slane %v3595, 1
      %v3721 = vsel %vm641, %v3718, %v3720
      %v3722 = vrot.slane %v3596, 1
      %v3723 = vrot.slane %v3597, 1
      %v3724 = vsel %vm641, %v3722, %v3723
      %v3725 = vrot.slane %v3598, 1
      %v3726 = vsel %vm641, %v3723, %v3725
      %v3727 = vrot.slane %v3599, 1
      %v3728 = vrot.slane %v3600, 1
      %v3729 = vsel %vm641, %v3727, %v3728
      %v3730 = vrot.slane %v3601, 1
      %v3731 = vsel %vm641, %v3728, %v3730
      %v3732 = vrot.slane %v3602, 1
      %v3733 = vrot.slane %v3603, 1
      %v3734 = vsel %vm641, %v3732, %v3733
      %v3735 = vrot.slane %v3604, 1
      %v3736 = vsel %vm641, %v3733, %v3735
      %v3737 = vrot.slane %v3605, 1
      %v3738 = vrot.slane %v3606, 1
      %v3739 = vsel %vm641, %v3737, %v3738
      %v3740 = vrot.slane %v3607, 1
      %v3741 = vsel %vm641, %v3738, %v3740
      %v3742 = vrot.slane %v3608, 1
      %v3743 = vrot.slane %v3609, 1
      %v3744 = vsel %vm641, %v3742, %v3743
      %v3745 = vrot.slane %v3610, 1
      %v3746 = vsel %vm641, %v3743, %v3745
      %v3747 = vrot.slane %v3611, 1
      %v3748 = vrot.slane %v3612, 1
      %v3749 = vsel %vm641, %v3747, %v3748
      %v3750 = vrot.slane %v3613, 1
      %v3751 = vsel %vm641, %v3748, %v3750
      %v3752 = vrot.slane %v3614, 1
      %v3753 = vrot.slane %v3615, 1
      %v3754 = vsel %vm641, %v3752, %v3753
      %v3755 = vrot.slane %v3616, 1
      %v3756 = vsel %vm641, %v3753, %v3755
      %v3757 = vrot.slane %v3617, 1
      %v3758 = vrot.slane %v3618, 1
      %v3759 = vsel %vm641, %v3757, %v3758
      %v3760 = vrot.slane %v3619, 1
      %v3761 = vsel %vm641, %v3758, %v3760
      %v3762 = vrot.slane %v3620, 1
      %v3763 = vrot.slane %v3621, 1
      %v3764 = vsel %vm641, %v3762, %v3763
      %v3765 = vrot.slane %v3622, 1
      %v3766 = vsel %vm641, %v3763, %v3765
      %3767 = vrot.lane.b32.xlu0 %v3679, 16
      %v3768 = vpop.permute.xlu0 %3767
      %3769 = vrot.lane.b32.xlu0 %v3681, 16
      %v3770 = vpop.permute.xlu0 %3769
      %3771 = vrot.lane.b32.xlu0 %v3684, 16
      %v3772 = vpop.permute.xlu0 %3771
      %3773 = vrot.lane.b32.xlu0 %v3686, 16
      %v3774 = vpop.permute.xlu0 %3773
      %3775 = vrot.lane.b32.xlu0 %v3689, 16
      %v3776 = vpop.permute.xlu0 %3775
      %3777 = vrot.lane.b32.xlu0 %v3691, 16
      %v3778 = vpop.permute.xlu0 %3777
      %3779 = vrot.lane.b32.xlu0 %v3694, 16
      %v3780 = vpop.permute.xlu0 %3779
      %3781 = vrot.lane.b32.xlu0 %v3696, 16
      %v3782 = vpop.permute.xlu0 %3781
      %3783 = vrot.lane.b32.xlu0 %v3699, 16
      %v3784 = vpop.permute.xlu0 %3783
      %3785 = vrot.lane.b32.xlu0 %v3701, 16
      %v3786 = vpop.permute.xlu0 %3785
      %3787 = vrot.lane.b32.xlu0 %v3704, 16
      %v3788 = vpop.permute.xlu0 %3787
      %3789 = vrot.lane.b32.xlu0 %v3706, 16
      %v3790 = vpop.permute.xlu0 %3789
      %3791 = vrot.lane.b32.xlu0 %v3709, 16
      %v3792 = vpop.permute.xlu0 %3791
      %3793 = vrot.lane.b32.xlu0 %v3711, 16
      %v3794 = vpop.permute.xlu0 %3793
      %3795 = vrot.lane.b32.xlu0 %v3714, 16
      %v3796 = vpop.permute.xlu0 %3795
      %3797 = vrot.lane.b32.xlu0 %v3716, 16
      %v3798 = vpop.permute.xlu0 %3797
      %3799 = vrot.lane.b32.xlu0 %v3719, 16
      %v3800 = vpop.permute.xlu0 %3799
      %3801 = vrot.lane.b32.xlu0 %v3721, 16
      %v3802 = vpop.permute.xlu0 %3801
      %3803 = vrot.lane.b32.xlu0 %v3724, 16
      %v3804 = vpop.permute.xlu0 %3803
      %3805 = vrot.lane.b32.xlu0 %v3726, 16
      %v3806 = vpop.permute.xlu0 %3805
      %3807 = vrot.lane.b32.xlu0 %v3729, 16
      %v3808 = vpop.permute.xlu0 %3807
      %3809 = vrot.lane.b32.xlu0 %v3731, 16
      %v3810 = vpop.permute.xlu0 %3809
      %3811 = vrot.lane.b32.xlu0 %v3734, 16
      %v3812 = vpop.permute.xlu0 %3811
      %3813 = vrot.lane.b32.xlu0 %v3736, 16
      %v3814 = vpop.permute.xlu0 %3813
      %3815 = vrot.lane.b32.xlu0 %v3739, 16
      %v3816 = vpop.permute.xlu0 %3815
      %3817 = vrot.lane.b32.xlu0 %v3741, 16
      %v3818 = vpop.permute.xlu0 %3817
      %3819 = vrot.lane.b32.xlu0 %v3744, 16
      %v3820 = vpop.permute.xlu0 %3819
      %3821 = vrot.lane.b32.xlu0 %v3746, 16
      %v3822 = vpop.permute.xlu0 %3821
      %3823 = vrot.lane.b32.xlu0 %v3749, 16
      %v3824 = vpop.permute.xlu0 %3823
      %3825 = vrot.lane.b32.xlu0 %v3751, 16
      %v3826 = vpop.permute.xlu0 %3825
      %3827 = vrot.lane.b32.xlu0 %v3754, 16
      %v3828 = vpop.permute.xlu0 %3827
      %3829 = vrot.lane.b32.xlu0 %v3756, 16
      %v3830 = vpop.permute.xlu0 %3829
      %3831 = vrot.lane.b32.xlu0 %v3759, 16
      %v3832 = vpop.permute.xlu0 %3831
      %3833 = vrot.lane.b32.xlu0 %v3761, 16
      %v3834 = vpop.permute.xlu0 %3833
      %3835 = vrot.lane.b32.xlu0 %v3764, 16
      %v3836 = vpop.permute.xlu0 %3835
      %3837 = vrot.lane.b32.xlu0 %v3766, 16
      %v3838 = vpop.permute.xlu0 %3837
      %v3875 = vrot.slane %v3569, 2
      %v3876 = vrot.slane %v3570, 2
      %v3877 = vsel %vm840, %v3875, %v3876
      %v3878 = vrot.slane %v3571, 2
      %v3879 = vsel %vm840, %v3876, %v3878
      %v3880 = vrot.slane %v3572, 2
      %v3881 = vrot.slane %v3573, 2
      %v3882 = vsel %vm840, %v3880, %v3881
      %v3883 = vrot.slane %v3574, 2
      %v3884 = vsel %vm840, %v3881, %v3883
      %v3885 = vrot.slane %v3575, 2
      %v3886 = vrot.slane %v3576, 2
      %v3887 = vsel %vm840, %v3885, %v3886
      %v3888 = vrot.slane %v3577, 2
      %v3889 = vsel %vm840, %v3886, %v3888
      %v3890 = vrot.slane %v3578, 2
      %v3891 = vrot.slane %v3579, 2
      %v3892 = vsel %vm840, %v3890, %v3891
      %v3893 = vrot.slane %v3580, 2
      %v3894 = vsel %vm840, %v3891, %v3893
      %v3895 = vrot.slane %v3581, 2
      %v3896 = vrot.slane %v3582, 2
      %v3897 = vsel %vm840, %v3895, %v3896
      %v3898 = vrot.slane %v3583, 2
      %v3899 = vsel %vm840, %v3896, %v3898
      %v3900 = vrot.slane %v3584, 2
      %v3901 = vrot.slane %v3585, 2
      %v3902 = vsel %vm840, %v3900, %v3901
      %v3903 = vrot.slane %v3586, 2
      %v3904 = vsel %vm840, %v3901, %v3903
      %v3905 = vrot.slane %v3587, 2
      %v3906 = vrot.slane %v3588, 2
      %v3907 = vsel %vm840, %v3905, %v3906
      %v3908 = vrot.slane %v3589, 2
      %v3909 = vsel %vm840, %v3906, %v3908
      %v3910 = vrot.slane %v3590, 2
      %v3911 = vrot.slane %v3591, 2
      %v3912 = vsel %vm840, %v3910, %v3911
      %v3913 = vrot.slane %v3592, 2
      %v3914 = vsel %vm840, %v3911, %v3913
      %v3915 = vrot.slane %v3593, 2
      %v3916 = vrot.slane %v3594, 2
      %v3917 = vsel %vm840, %v3915, %v3916
      %v3918 = vrot.slane %v3595, 2
      %v3919 = vsel %vm840, %v3916, %v3918
      %v3920 = vrot.slane %v3596, 2
      %v3921 = vrot.slane %v3597, 2
      %v3922 = vsel %vm840, %v3920, %v3921
      %v3923 = vrot.slane %v3598, 2
      %v3924 = vsel %vm840, %v3921, %v3923
      %v3925 = vrot.slane %v3599, 2
      %v3926 = vrot.slane %v3600, 2
      %v3927 = vsel %vm840, %v3925, %v3926
      %v3928 = vrot.slane %v3601, 2
      %v3929 = vsel %vm840, %v3926, %v3928
      %v3930 = vrot.slane %v3602, 2
      %v3931 = vrot.slane %v3603, 2
      %v3932 = vsel %vm840, %v3930, %v3931
      %v3933 = vrot.slane %v3604, 2
      %v3934 = vsel %vm840, %v3931, %v3933
      %v3935 = vrot.slane %v3605, 2
      %v3936 = vrot.slane %v3606, 2
      %v3937 = vsel %vm840, %v3935, %v3936
      %v3938 = vrot.slane %v3607, 2
      %v3939 = vsel %vm840, %v3936, %v3938
      %v3940 = vrot.slane %v3608, 2
      %v3941 = vrot.slane %v3609, 2
      %v3942 = vsel %vm840, %v3940, %v3941
      %v3943 = vrot.slane %v3610, 2
      %v3944 = vsel %vm840, %v3941, %v3943
      %v3945 = vrot.slane %v3611, 2
      %v3946 = vrot.slane %v3612, 2
      %v3947 = vsel %vm840, %v3945, %v3946
      %v3948 = vrot.slane %v3613, 2
      %v3949 = vsel %vm840, %v3946, %v3948
      %v3950 = vrot.slane %v3614, 2
      %v3951 = vrot.slane %v3615, 2
      %v3952 = vsel %vm840, %v3950, %v3951
      %v3953 = vrot.slane %v3616, 2
      %v3954 = vsel %vm840, %v3951, %v3953
      %v3955 = vrot.slane %v3617, 2
      %v3956 = vrot.slane %v3618, 2
      %v3957 = vsel %vm840, %v3955, %v3956
      %v3958 = vrot.slane %v3619, 2
      %v3959 = vsel %vm840, %v3956, %v3958
      %v3960 = vrot.slane %v3620, 2
      %v3961 = vrot.slane %v3621, 2
      %v3962 = vsel %vm840, %v3960, %v3961
      %v3963 = vrot.slane %v3622, 2
      %v3964 = vsel %vm840, %v3961, %v3963
      %3965 = vrot.lane.b32.xlu0 %v3877, 32
      %v3966 = vpop.permute.xlu0 %3965
      %3967 = vrot.lane.b32.xlu0 %v3879, 32
      %v3968 = vpop.permute.xlu0 %3967
      %3969 = vrot.lane.b32.xlu0 %v3882, 32
      %v3970 = vpop.permute.xlu0 %3969
      %3971 = vrot.lane.b32.xlu0 %v3884, 32
      %v3972 = vpop.permute.xlu0 %3971
      %3973 = vrot.lane.b32.xlu0 %v3887, 32
      %v3974 = vpop.permute.xlu0 %3973
      %3975 = vrot.lane.b32.xlu0 %v3889, 32
      %v3976 = vpop.permute.xlu0 %3975
      %3977 = vrot.lane.b32.xlu0 %v3892, 32
      %v3978 = vpop.permute.xlu0 %3977
      %3979 = vrot.lane.b32.xlu0 %v3894, 32
      %v3980 = vpop.permute.xlu0 %3979
      %3981 = vrot.lane.b32.xlu0 %v3897, 32
      %v3982 = vpop.permute.xlu0 %3981
      %3983 = vrot.lane.b32.xlu0 %v3899, 32
      %v3984 = vpop.permute.xlu0 %3983
      %3985 = vrot.lane.b32.xlu0 %v3902, 32
      %v3986 = vpop.permute.xlu0 %3985
      %3987 = vrot.lane.b32.xlu0 %v3904, 32
      %v3988 = vpop.permute.xlu0 %3987
      %3989 = vrot.lane.b32.xlu0 %v3907, 32
      %v3990 = vpop.permute.xlu0 %3989
      %3991 = vrot.lane.b32.xlu0 %v3909, 32
      %v3992 = vpop.permute.xlu0 %3991
      %3993 = vrot.lane.b32.xlu0 %v3912, 32
      %v3994 = vpop.permute.xlu0 %3993
      %3995 = vrot.lane.b32.xlu0 %v3914, 32
      %v3996 = vpop.permute.xlu0 %3995
      %3997 = vrot.lane.b32.xlu0 %v3917, 32
      %v3998 = vpop.permute.xlu0 %3997
      %3999 = vrot.lane.b32.xlu0 %v3919, 32
      %v4000 = vpop.permute.xlu0 %3999
      %4001 = vrot.lane.b32.xlu0 %v3922, 32
      %v4002 = vpop.permute.xlu0 %4001
      %4003 = vrot.lane.b32.xlu0 %v3924, 32
      %v4004 = vpop.permute.xlu0 %4003
      %4005 = vrot.lane.b32.xlu0 %v3927, 32
      %v4006 = vpop.permute.xlu0 %4005
      %4007 = vrot.lane.b32.xlu0 %v3929, 32
      %v4008 = vpop.permute.xlu0 %4007
      %4009 = vrot.lane.b32.xlu0 %v3932, 32
      %v4010 = vpop.permute.xlu0 %4009
      %4011 = vrot.lane.b32.xlu0 %v3934, 32
      %v4012 = vpop.permute.xlu0 %4011
      %4013 = vrot.lane.b32.xlu0 %v3937, 32
      %v4014 = vpop.permute.xlu0 %4013
      %4015 = vrot.lane.b32.xlu0 %v3939, 32
      %v4016 = vpop.permute.xlu0 %4015
      %4017 = vrot.lane.b32.xlu0 %v3942, 32
      %v4018 = vpop.permute.xlu0 %4017
      %4019 = vrot.lane.b32.xlu0 %v3944, 32
      %v4020 = vpop.permute.xlu0 %4019
      %4021 = vrot.lane.b32.xlu0 %v3947, 32
      %v4022 = vpop.permute.xlu0 %4021
      %4023 = vrot.lane.b32.xlu0 %v3949, 32
      %v4024 = vpop.permute.xlu0 %4023
      %4025 = vrot.lane.b32.xlu0 %v3952, 32
      %v4026 = vpop.permute.xlu0 %4025
      %4027 = vrot.lane.b32.xlu0 %v3954, 32
      %v4028 = vpop.permute.xlu0 %4027
      %4029 = vrot.lane.b32.xlu0 %v3957, 32
      %v4030 = vpop.permute.xlu0 %4029
      %4031 = vrot.lane.b32.xlu0 %v3959, 32
      %v4032 = vpop.permute.xlu0 %4031
      %4033 = vrot.lane.b32.xlu0 %v3962, 32
      %v4034 = vpop.permute.xlu0 %4033
      %4035 = vrot.lane.b32.xlu0 %v3964, 32
      %v4036 = vpop.permute.xlu0 %4035
      %v4073 = vsel %vm225, %v3569, %v3768
      %v4074 = vsel %vm225, %v3570, %v3770
      %v4075 = vsel %vm225, %v3572, %v3772
      %v4076 = vsel %vm225, %v3573, %v3774
      %v4077 = vsel %vm225, %v3575, %v3776
      %v4078 = vsel %vm225, %v3576, %v3778
      %v4079 = vsel %vm225, %v3578, %v3780
      %v4080 = vsel %vm225, %v3579, %v3782
      %v4081 = vsel %vm225, %v3581, %v3784
      %v4082 = vsel %vm225, %v3582, %v3786
      %v4083 = vsel %vm225, %v3584, %v3788
      %v4084 = vsel %vm225, %v3585, %v3790
      %v4085 = vsel %vm225, %v3587, %v3792
      %v4086 = vsel %vm225, %v3588, %v3794
      %v4087 = vsel %vm225, %v3590, %v3796
      %v4088 = vsel %vm225, %v3591, %v3798
      %v4089 = vsel %vm225, %v3593, %v3800
      %v4090 = vsel %vm225, %v3594, %v3802
      %v4091 = vsel %vm225, %v3596, %v3804
      %v4092 = vsel %vm225, %v3597, %v3806
      %v4093 = vsel %vm225, %v3599, %v3808
      %v4094 = vsel %vm225, %v3600, %v3810
      %v4095 = vsel %vm225, %v3602, %v3812
      %v4096 = vsel %vm225, %v3603, %v3814
      %v4097 = vsel %vm225, %v3605, %v3816
      %v4098 = vsel %vm225, %v3606, %v3818
      %v4099 = vsel %vm225, %v3608, %v3820
      %v4100 = vsel %vm225, %v3609, %v3822
      %v4101 = vsel %vm225, %v3611, %v3824
      %v4102 = vsel %vm225, %v3612, %v3826
      %v4103 = vsel %vm225, %v3614, %v3828
      %v4104 = vsel %vm225, %v3615, %v3830
      %v4105 = vsel %vm225, %v3617, %v3832
      %v4106 = vsel %vm225, %v3618, %v3834
      %v4107 = vsel %vm225, %v3620, %v3836
      %v4108 = vsel %vm225, %v3621, %v3838
      %v4109 = vsel %vm1075, %v4073, %v3966
      %v4110 = vsel %vm1075, %v4074, %v3968
      %v4111 = vsel %vm1075, %v4075, %v3970
      %v4112 = vsel %vm1075, %v4076, %v3972
      %v4113 = vsel %vm1075, %v4077, %v3974
      %v4114 = vsel %vm1075, %v4078, %v3976
      %v4115 = vsel %vm1075, %v4079, %v3978
      %v4116 = vsel %vm1075, %v4080, %v3980
      %v4117 = vsel %vm1075, %v4081, %v3982
      %v4118 = vsel %vm1075, %v4082, %v3984
      %v4119 = vsel %vm1075, %v4083, %v3986
      %v4120 = vsel %vm1075, %v4084, %v3988
      %v4121 = vsel %vm1075, %v4085, %v3990
      %v4122 = vsel %vm1075, %v4086, %v3992
      %v4123 = vsel %vm1075, %v4087, %v3994
      %v4124 = vsel %vm1075, %v4088, %v3996
      %v4125 = vsel %vm1075, %v4089, %v3998
      %v4126 = vsel %vm1075, %v4090, %v4000
      %v4127 = vsel %vm1075, %v4091, %v4002
      %v4128 = vsel %vm1075, %v4092, %v4004
      %v4129 = vsel %vm1075, %v4093, %v4006
      %v4130 = vsel %vm1075, %v4094, %v4008
      %v4131 = vsel %vm1075, %v4095, %v4010
      %v4132 = vsel %vm1075, %v4096, %v4012
      %v4133 = vsel %vm1075, %v4097, %v4014
      %v4134 = vsel %vm1075, %v4098, %v4016
      %v4135 = vsel %vm1075, %v4099, %v4018
      %v4136 = vsel %vm1075, %v4100, %v4020
      %v4137 = vsel %vm1075, %v4101, %v4022
      %v4138 = vsel %vm1075, %v4102, %v4024
      %v4139 = vsel %vm1075, %v4103, %v4026
      %v4140 = vsel %vm1075, %v4104, %v4028
      %v4141 = vsel %vm1075, %v4105, %v4030
      %v4142 = vsel %vm1075, %v4106, %v4032
      %v4143 = vsel %vm1075, %v4107, %v4034
      %v4144 = vsel %vm1075, %v4108, %v4036
      %s4145 = scalar_lea.vmem %s1, 288
      %v4146 = vld [vmem:[%s4145] sm:$0xff]
      %v4147 = vld [vmem:[%s4145 + $0x8] sm:$0xff]
      %v4148 = vld [vmem:[%s4145 + $0x10] sm:$0xff]
      %v4149 = vld [vmem:[%s4145 + $0x18] sm:$0xff]
      %v4150 = vld [vmem:[%s4145 + $0x20] sm:$0xff]
      %v4151 = vld [vmem:[%s4145 + $0x28] sm:$0xff]
      %s4152 = scalar_lea.vmem %s1, 336
      %v4153 = vld [vmem:[%s4152] sm:$0xff]
      %v4154 = vld [vmem:[%s4152 + $0x8] sm:$0xff]
      %v4155 = vld [vmem:[%s4152 + $0x10] sm:$0xff]
      %v4156 = vld [vmem:[%s4152 + $0x18] sm:$0xff]
      %v4157 = vld [vmem:[%s4152 + $0x20] sm:$0xff]
      %v4158 = vld [vmem:[%s4152 + $0x28] sm:$0xff]
      %v4160 = vsel %vm1125, %v4111, 0
      %v4163 = vsel %vm1125, %v4112, 0
      %v4166 = vsel %vm1125, %v4113, 0
      %v4169 = vsel %vm1125, %v4114, 0
      %v4172 = vsel %vm1125, %v4115, 0
      %v4175 = vsel %vm1125, %v4116, 0
      %v4178 = vsel %vm1125, %v4117, 0
      %v4181 = vsel %vm1125, %v4118, 0
      %v4184 = vsel %vm1125, %v4119, 0
      %v4187 = vsel %vm1125, %v4120, 0
      %v4190 = vsel %vm1125, %v4121, 0
      %v4193 = vsel %vm1125, %v4122, 0
      %v4196 = vsel %vm1125, %v4123, 0
      %v4199 = vsel %vm1125, %v4124, 0
      %v4202 = vsel %vm1125, %v4125, 0
      %v4205 = vsel %vm1125, %v4126, 0
      %v4208 = vsel %vm1125, %v4127, 0
      %v4211 = vsel %vm1125, %v4128, 0
      %v4214 = vsel %vm1125, %v4129, 0
      %v4217 = vsel %vm1125, %v4130, 0
      %v4220 = vsel %vm1125, %v4131, 0
      %v4223 = vsel %vm1125, %v4132, 0
      %v4226 = vsel %vm1125, %v4133, 0
      %v4229 = vsel %vm1125, %v4134, 0
      %v4232 = vsel %vm1125, %v4135, 0
      %v4235 = vsel %vm1125, %v4136, 0
      %v4238 = vsel %vm1125, %v4137, 0
      %v4241 = vsel %vm1125, %v4138, 0
      %v4244 = vsel %vm1125, %v4139, 0
      %v4247 = vsel %vm1125, %v4140, 0
      %v4250 = vsel %vm1125, %v4141, 0
      %v4253 = vsel %vm1125, %v4142, 0
      %4255 = vmatprep.subr.mxu0 0.0
      %4256 = vmatpush1.msra.mxu0 %v4153
      %4257 = vmatprep.subr.mxu0 0.0
      %4258 = vmatpush1.msra.mxu0 %v4154
      %4259 = vmatprep.subr.mxu0 0.0
      %4260 = vmatpush1.msra.mxu0 %v4155
      %4261 = vmatprep.subr.mxu0 0.0
      %4262 = vmatpush1.msra.mxu0 %v4156
      %4263 = vmatprep.subr.mxu0 0.0
      %4264 = vmatpush1.msra.mxu0 %v4157
      %4265 = vmatprep.subr.mxu0 0.0
      %4266 = vmatpush1.msra.mxu0 %v4158
      %4267 = vmatprep.subr.mxu0 0.0
      %4268 = vmatpush1.msra.mxu0 0.0
      %4269 = vmatprep.subr.mxu0 0.0
      %4270 = vmatpush1.msra.mxu0 0.0
      %4271 = vmatprep.subr.mxu0 0.0
      %4272 = vmatpush1.msra.mxu0 0.0
      %4273 = vmatprep.subr.mxu0 0.0
      %4274 = vmatpush1.msra.mxu0 0.0
      %4275 = vmatprep.subr.mxu0 0.0
      %4276 = vmatpush1.msra.mxu0 0.0
      %4277 = vmatprep.subr.mxu0 0.0
      %4278 = vmatpush1.msra.mxu0 0.0
      %4279 = vmatprep.subr.mxu0 0.0
      %4280 = vmatpush1.msra.mxu0 0.0
      %4281 = vmatprep.subr.mxu0 0.0
      %4282 = vmatpush1.msra.mxu0 0.0
      %4283 = vmatprep.subr.mxu0 0.0
      %4284 = vmatpush1.msra.mxu0 0.0
      %4285 = vmatprep.subr.mxu0 0.0
      %4286 = vmatpush1.msra.mxu0 0.0
      %4287 = vmatprep.subr.mxu0 0.0
      %4288 = vmatpush1.msra.mxu0 0.0
      %4289 = vmatprep.subr.mxu0 0.0
      %4290 = vmatpush1.msra.mxu0 0.0
      %4291 = vmatprep.subr.mxu0 0.0
      %4292 = vmatpush1.msra.mxu0 0.0
      %4293 = vmatprep.subr.mxu0 0.0
      %4294 = vmatpush1.msra.mxu0 0.0
      %4295 = vmatprep.subr.mxu0 0.0
      %4296 = vmatpush1.msra.mxu0 0.0
      %4297 = vmatprep.subr.mxu0 0.0
      %4298 = vmatpush1.msra.mxu0 0.0
      %4299 = vmatprep.subr.mxu0 0.0
      %4300 = vmatpush1.msra.mxu0 0.0
      %4301 = vmatprep.subr.mxu0 0.0
      %4302 = vmatpush1.msra.mxu0 0.0
      %4303 = vmatprep.subr.mxu0 0.0
      %4304 = vmatpush1.msra.mxu0 0.0
      %4305 = vmatprep.subr.mxu0 0.0
      %4306 = vmatpush1.msra.mxu0 0.0
      %4307 = vmatprep.subr.mxu0 0.0
      %4308 = vmatpush1.msra.mxu0 0.0
      %4309 = vmatprep.subr.mxu0 0.0
      %4310 = vmatpush1.msra.mxu0 0.0
      %4311 = vmatprep.subr.mxu0 0.0
      %4312 = vmatpush1.msra.mxu0 0.0
      %4313 = vmatprep.subr.mxu0 0.0
      %4314 = vmatpush1.msra.mxu0 0.0
      %4315 = vmatprep.subr.mxu0 0.0
      %4316 = vmatpush1.msra.mxu0 0.0
      %4317 = vmatprep.subr.mxu0 0.0
      %4318 = vmatpush1.msra.mxu0 0.0
      %4319 = vmatprep.mubr.f32.mxu0 0.0
      %4320 = vmatmul.mubr.f32.gmra.mrb[0].mxu0 %v4160
      %v4321 = vpop.f32.mrb[0].mxu0
      %v4322 = vadd.f32 0.0, %v4321
      %v4323 = vpop.f32.mrb[0].mxu0
      %4324 = vmatprep.mubr.f32.mxu0 0.0
      %4325 = vmatmul.mubr.f32.gmra.mrb[0].mxu0 %v4163
      %v4326 = vpop.f32.mrb[0].mxu0
      %v4327 = vadd.f32 0.0, %v4326
      %v4328 = vpop.f32.mrb[0].mxu0
      %4329 = vmatprep.mubr.f32.mxu0 0.0
      %4330 = vmatmul.mubr.f32.gmra.mrb[0].mxu0 %v4166
      %v4331 = vpop.f32.mrb[0].mxu0
      %v4332 = vadd.f32 0.0, %v4331
      %v4333 = vpop.f32.mrb[0].mxu0
      %4334 = vmatprep.mubr.f32.mxu0 0.0
      %4335 = vmatmul.mubr.f32.gmra.mrb[0].mxu0 %v4169
      %v4336 = vpop.f32.mrb[0].mxu0
      %v4337 = vadd.f32 0.0, %v4336
      %v4338 = vpop.f32.mrb[0].mxu0
      %4339 = vmatprep.mubr.f32.mxu0 0.0
      %4340 = vmatmul.mubr.f32.gmra.mrb[0].mxu0 %v4172
      %v4341 = vpop.f32.mrb[0].mxu0
      %v4342 = vadd.f32 0.0, %v4341
      %v4343 = vpop.f32.mrb[0].mxu0
      %4344 = vmatprep.mubr.f32.mxu0 0.0
      %4345 = vmatmul.mubr.f32.gmra.mrb[0].mxu0 %v4175
      %v4346 = vpop.f32.mrb[0].mxu0
      %v4347 = vadd.f32 0.0, %v4346
      %v4348 = vpop.f32.mrb[0].mxu0
      %4349 = vmatprep.mubr.f32.mxu0 0.0
      %4350 = vmatmul.mubr.f32.gmra.mrb[0].mxu0 %v4178
      %v4351 = vpop.f32.mrb[0].mxu0
      %v4352 = vadd.f32 0.0, %v4351
      %v4353 = vpop.f32.mrb[0].mxu0
      %4354 = vmatprep.mubr.f32.mxu0 0.0
      %4355 = vmatmul.mubr.f32.gmra.mrb[0].mxu0 %v4181
      %v4356 = vpop.f32.mrb[0].mxu0
      %v4357 = vadd.f32 0.0, %v4356
      %v4358 = vpop.f32.mrb[0].mxu0
      %4359 = vmatprep.mubr.f32.mxu0 0.0
      %4360 = vmatmul.mubr.f32.gmra.mrb[0].mxu0 %v4184
      %v4361 = vpop.f32.mrb[0].mxu0
      %v4362 = vadd.f32 0.0, %v4361
      %v4363 = vpop.f32.mrb[0].mxu0
      %4364 = vmatprep.mubr.f32.mxu0 0.0
      %4365 = vmatmul.mubr.f32.gmra.mrb[0].mxu0 %v4187
      %v4366 = vpop.f32.mrb[0].mxu0
      %v4367 = vadd.f32 0.0, %v4366
      %v4368 = vpop.f32.mrb[0].mxu0
      %4369 = vmatprep.mubr.f32.mxu0 0.0
      %4370 = vmatmul.mubr.f32.gmra.mrb[0].mxu0 %v4190
      %v4371 = vpop.f32.mrb[0].mxu0
      %v4372 = vadd.f32 0.0, %v4371
      %v4373 = vpop.f32.mrb[0].mxu0
      %4374 = vmatprep.mubr.f32.mxu0 0.0
      %4375 = vmatmul.mubr.f32.gmra.mrb[0].mxu0 %v4193
      %v4376 = vpop.f32.mrb[0].mxu0
      %v4377 = vadd.f32 0.0, %v4376
      %v4378 = vpop.f32.mrb[0].mxu0
      %4379 = vmatprep.mubr.f32.mxu0 0.0
      %4380 = vmatmul.mubr.f32.gmra.mrb[0].mxu0 %v4196
      %v4381 = vpop.f32.mrb[0].mxu0
      %v4382 = vadd.f32 0.0, %v4381
      %v4383 = vpop.f32.mrb[0].mxu0
      %4384 = vmatprep.mubr.f32.mxu0 0.0
      %4385 = vmatmul.mubr.f32.gmra.mrb[0].mxu0 %v4199
      %v4386 = vpop.f32.mrb[0].mxu0
      %v4387 = vadd.f32 0.0, %v4386
      %v4388 = vpop.f32.mrb[0].mxu0
      %4389 = vmatprep.mubr.f32.mxu0 0.0
      %4390 = vmatmul.mubr.f32.gmra.mrb[0].mxu0 %v4202
      %v4391 = vpop.f32.mrb[0].mxu0
      %v4392 = vadd.f32 0.0, %v4391
      %v4393 = vpop.f32.mrb[0].mxu0
      %4394 = vmatprep.mubr.f32.mxu0 0.0
      %4395 = vmatmul.mubr.f32.gmra.mrb[0].mxu0 %v4205
      %v4396 = vpop.f32.mrb[0].mxu0
      %v4397 = vadd.f32 0.0, %v4396
      %v4398 = vpop.f32.mrb[0].mxu0
      %4399 = vmatprep.mubr.f32.mxu0 0.0
      %4400 = vmatmul.mubr.f32.gmra.mrb[0].mxu0 %v4208
      %v4401 = vpop.f32.mrb[0].mxu0
      %v4402 = vadd.f32 0.0, %v4401
      %v4403 = vpop.f32.mrb[0].mxu0
      %4404 = vmatprep.mubr.f32.mxu0 0.0
      %4405 = vmatmul.mubr.f32.gmra.mrb[0].mxu0 %v4211
      %v4406 = vpop.f32.mrb[0].mxu0
      %v4407 = vadd.f32 0.0, %v4406
      %v4408 = vpop.f32.mrb[0].mxu0
      %4409 = vmatprep.mubr.f32.mxu0 0.0
      %4410 = vmatmul.mubr.f32.gmra.mrb[0].mxu0 %v4214
      %v4411 = vpop.f32.mrb[0].mxu0
      %v4412 = vadd.f32 0.0, %v4411
      %v4413 = vpop.f32.mrb[0].mxu0
      %4414 = vmatprep.mubr.f32.mxu0 0.0
      %4415 = vmatmul.mubr.f32.gmra.mrb[0].mxu0 %v4217
      %v4416 = vpop.f32.mrb[0].mxu0
      %v4417 = vadd.f32 0.0, %v4416
      %v4418 = vpop.f32.mrb[0].mxu0
      %4419 = vmatprep.mubr.f32.mxu0 0.0
      %4420 = vmatmul.mubr.f32.gmra.mrb[0].mxu0 %v4220
      %v4421 = vpop.f32.mrb[0].mxu0
      %v4422 = vadd.f32 0.0, %v4421
      %v4423 = vpop.f32.mrb[0].mxu0
      %4424 = vmatprep.mubr.f32.mxu0 0.0
      %4425 = vmatmul.mubr.f32.gmra.mrb[0].mxu0 %v4223
      %v4426 = vpop.f32.mrb[0].mxu0
      %v4427 = vadd.f32 0.0, %v4426
      %v4428 = vpop.f32.mrb[0].mxu0
      %4429 = vmatprep.mubr.f32.mxu0 0.0
      %4430 = vmatmul.mubr.f32.gmra.mrb[0].mxu0 %v4226
      %v4431 = vpop.f32.mrb[0].mxu0
      %v4432 = vadd.f32 0.0, %v4431
      %v4433 = vpop.f32.mrb[0].mxu0
      %4434 = vmatprep.mubr.f32.mxu0 0.0
      %4435 = vmatmul.mubr.f32.gmra.mrb[0].mxu0 %v4229
      %v4436 = vpop.f32.mrb[0].mxu0
      %v4437 = vadd.f32 0.0, %v4436
      %v4438 = vpop.f32.mrb[0].mxu0
      %4439 = vmatprep.mubr.f32.mxu0 0.0
      %4440 = vmatmul.mubr.f32.gmra.mrb[0].mxu0 %v4232
      %v4441 = vpop.f32.mrb[0].mxu0
      %v4442 = vadd.f32 0.0, %v4441
      %v4443 = vpop.f32.mrb[0].mxu0
      %4444 = vmatprep.mubr.f32.mxu0 0.0
      %4445 = vmatmul.mubr.f32.gmra.mrb[0].mxu0 %v4235
      %v4446 = vpop.f32.mrb[0].mxu0
      %v4447 = vadd.f32 0.0, %v4446
      %v4448 = vpop.f32.mrb[0].mxu0
      %4449 = vmatprep.mubr.f32.mxu0 0.0
      %4450 = vmatmul.mubr.f32.gmra.mrb[0].mxu0 %v4238
      %v4451 = vpop.f32.mrb[0].mxu0
      %v4452 = vadd.f32 0.0, %v4451
      %v4453 = vpop.f32.mrb[0].mxu0
      %4454 = vmatprep.mubr.f32.mxu0 0.0
      %4455 = vmatmul.mubr.f32.gmra.mrb[0].mxu0 %v4241
      %v4456 = vpop.f32.mrb[0].mxu0
      %v4457 = vadd.f32 0.0, %v4456
      %v4458 = vpop.f32.mrb[0].mxu0
      %4459 = vmatprep.mubr.f32.mxu0 0.0
      %4460 = vmatmul.mubr.f32.gmra.mrb[0].mxu0 %v4244
      %v4461 = vpop.f32.mrb[0].mxu0
      %v4462 = vadd.f32 0.0, %v4461
      %v4463 = vpop.f32.mrb[0].mxu0
      %4464 = vmatprep.mubr.f32.mxu0 0.0
      %4465 = vmatmul.mubr.f32.gmra.mrb[0].mxu0 %v4247
      %v4466 = vpop.f32.mrb[0].mxu0
      %v4467 = vadd.f32 0.0, %v4466
      %v4468 = vpop.f32.mrb[0].mxu0
      %4469 = vmatprep.mubr.f32.mxu0 0.0
      %4470 = vmatmul.mubr.f32.gmra.mrb[0].mxu0 %v4250
      %v4471 = vpop.f32.mrb[0].mxu0
      %v4472 = vadd.f32 0.0, %v4471
      %v4473 = vpop.f32.mrb[0].mxu0
      %4474 = vmatprep.mubr.f32.mxu0 0.0
      %4475 = vmatmul.mubr.f32.gmra.mrb[0].mxu0 %v4253
      %v4476 = vpop.f32.mrb[0].mxu0
      %v4477 = vadd.f32 0.0, %v4476
      %v4478 = vpop.f32.mrb[0].mxu0
      %4479 = vdwg.mxu0
      %v4481 = vsel %vm1125, %v4109, 0
      %v4484 = vsel %vm1125, %v4110, 0
      %4486 = vmatprep.subr.mxu0 0.0
      %4487 = vmatpush1.msra.mxu0 %v4146
      %4488 = vmatprep.subr.mxu0 0.0
      %4489 = vmatpush1.msra.mxu0 %v4147
      %4490 = vmatprep.subr.mxu0 0.0
      %4491 = vmatpush1.msra.mxu0 %v4148
      %4492 = vmatprep.subr.mxu0 0.0
      %4493 = vmatpush1.msra.mxu0 %v4149
      %4494 = vmatprep.subr.mxu0 0.0
      %4495 = vmatpush1.msra.mxu0 %v4150
      %4496 = vmatprep.subr.mxu0 0.0
      %4497 = vmatpush1.msra.mxu0 %v4151
      %4498 = vmatprep.subr.mxu0 0.0
      %4499 = vmatpush1.msra.mxu0 0.0
      %4500 = vmatprep.subr.mxu0 0.0
      %4501 = vmatpush1.msra.mxu0 0.0
      %4502 = vmatprep.subr.mxu0 0.0
      %4503 = vmatpush1.msra.mxu0 0.0
      %4504 = vmatprep.subr.mxu0 0.0
      %4505 = vmatpush1.msra.mxu0 0.0
      %4506 = vmatprep.subr.mxu0 0.0
      %4507 = vmatpush1.msra.mxu0 0.0
      %4508 = vmatprep.subr.mxu0 0.0
      %4509 = vmatpush1.msra.mxu0 0.0
      %4510 = vmatprep.subr.mxu0 0.0
      %4511 = vmatpush1.msra.mxu0 0.0
      %4512 = vmatprep.subr.mxu0 0.0
      %4513 = vmatpush1.msra.mxu0 0.0
      %4514 = vmatprep.subr.mxu0 0.0
      %4515 = vmatpush1.msra.mxu0 0.0
      %4516 = vmatprep.subr.mxu0 0.0
      %4517 = vmatpush1.msra.mxu0 0.0
      %4518 = vmatprep.subr.mxu0 0.0
      %4519 = vmatpush1.msra.mxu0 0.0
      %4520 = vmatprep.subr.mxu0 0.0
      %4521 = vmatpush1.msra.mxu0 0.0
      %4522 = vmatprep.subr.mxu0 0.0
      %4523 = vmatpush1.msra.mxu0 0.0
      %4524 = vmatprep.subr.mxu0 0.0
      %4525 = vmatpush1.msra.mxu0 0.0
      %4526 = vmatprep.subr.mxu0 0.0
      %4527 = vmatpush1.msra.mxu0 0.0
      %4528 = vmatprep.subr.mxu0 0.0
      %4529 = vmatpush1.msra.mxu0 0.0
      %4530 = vmatprep.subr.mxu0 0.0
      %4531 = vmatpush1.msra.mxu0 0.0
      %4532 = vmatprep.subr.mxu0 0.0
      %4533 = vmatpush1.msra.mxu0 0.0
      %4534 = vmatprep.subr.mxu0 0.0
      %4535 = vmatpush1.msra.mxu0 0.0
      %4536 = vmatprep.subr.mxu0 0.0
      %4537 = vmatpush1.msra.mxu0 0.0
      %4538 = vmatprep.subr.mxu0 0.0
      %4539 = vmatpush1.msra.mxu0 0.0
      %4540 = vmatprep.subr.mxu0 0.0
      %4541 = vmatpush1.msra.mxu0 0.0
      %4542 = vmatprep.subr.mxu0 0.0
      %4543 = vmatpush1.msra.mxu0 0.0
      %4544 = vmatprep.subr.mxu0 0.0
      %4545 = vmatpush1.msra.mxu0 0.0
      %4546 = vmatprep.subr.mxu0 0.0
      %4547 = vmatpush1.msra.mxu0 0.0
      %4548 = vmatprep.subr.mxu0 0.0
      %4549 = vmatpush1.msra.mxu0 0.0
      %4550 = vmatprep.mubr.f32.mxu0 0.0
      %4551 = vmatmul.mubr.f32.gmra.mrb[0].mxu0 %v4481
      %v4552 = vpop.f32.mrb[0].mxu0
      %v4553 = vadd.f32 %v4322, %v4552
      %v4554 = vpop.f32.mrb[0].mxu0
      %4555 = vmatprep.mubr.f32.mxu0 0.0
      %4556 = vmatmul.mubr.f32.gmra.mrb[0].mxu0 %v4484
      %v4557 = vpop.f32.mrb[0].mxu0
      %v4558 = vadd.f32 %v4327, %v4557
      %v4559 = vpop.f32.mrb[0].mxu0
      %4560 = vmatprep.mubr.f32.mxu0 0.0
      %4561 = vmatmul.mubr.f32.gmra.mrb[0].mxu0 %v4160
      %v4562 = vpop.f32.mrb[0].mxu0
      %v4563 = vadd.f32 %v4332, %v4562
      %v4564 = vpop.f32.mrb[0].mxu0
      %4565 = vmatprep.mubr.f32.mxu0 0.0
      %4566 = vmatmul.mubr.f32.gmra.mrb[0].mxu0 %v4163
      %v4567 = vpop.f32.mrb[0].mxu0
      %v4568 = vadd.f32 %v4337, %v4567
      %v4569 = vpop.f32.mrb[0].mxu0
      %4570 = vmatprep.mubr.f32.mxu0 0.0
      %4571 = vmatmul.mubr.f32.gmra.mrb[0].mxu0 %v4166
      %v4572 = vpop.f32.mrb[0].mxu0
      %v4573 = vadd.f32 %v4342, %v4572
      %v4574 = vpop.f32.mrb[0].mxu0
      %4575 = vmatprep.mubr.f32.mxu0 0.0
      %4576 = vmatmul.mubr.f32.gmra.mrb[0].mxu0 %v4169
      %v4577 = vpop.f32.mrb[0].mxu0
      %v4578 = vadd.f32 %v4347, %v4577
      %v4579 = vpop.f32.mrb[0].mxu0
      %4580 = vmatprep.mubr.f32.mxu0 0.0
      %4581 = vmatmul.mubr.f32.gmra.mrb[0].mxu0 %v4172
      %v4582 = vpop.f32.mrb[0].mxu0
      %v4583 = vadd.f32 %v4352, %v4582
      %v4584 = vpop.f32.mrb[0].mxu0
      %4585 = vmatprep.mubr.f32.mxu0 0.0
      %4586 = vmatmul.mubr.f32.gmra.mrb[0].mxu0 %v4175
      %v4587 = vpop.f32.mrb[0].mxu0
      %v4588 = vadd.f32 %v4357, %v4587
      %v4589 = vpop.f32.mrb[0].mxu0
      %4590 = vmatprep.mubr.f32.mxu0 0.0
      %4591 = vmatmul.mubr.f32.gmra.mrb[0].mxu0 %v4178
      %v4592 = vpop.f32.mrb[0].mxu0
      %v4593 = vadd.f32 %v4362, %v4592
      %v4594 = vpop.f32.mrb[0].mxu0
      %4595 = vmatprep.mubr.f32.mxu0 0.0
      %4596 = vmatmul.mubr.f32.gmra.mrb[0].mxu0 %v4181
      %v4597 = vpop.f32.mrb[0].mxu0
      %v4598 = vadd.f32 %v4367, %v4597
      %v4599 = vpop.f32.mrb[0].mxu0
      %4600 = vmatprep.mubr.f32.mxu0 0.0
      %4601 = vmatmul.mubr.f32.gmra.mrb[0].mxu0 %v4184
      %v4602 = vpop.f32.mrb[0].mxu0
      %v4603 = vadd.f32 %v4372, %v4602
      %v4604 = vpop.f32.mrb[0].mxu0
      %4605 = vmatprep.mubr.f32.mxu0 0.0
      %4606 = vmatmul.mubr.f32.gmra.mrb[0].mxu0 %v4187
      %v4607 = vpop.f32.mrb[0].mxu0
      %v4608 = vadd.f32 %v4377, %v4607
      %v4609 = vpop.f32.mrb[0].mxu0
      %4610 = vmatprep.mubr.f32.mxu0 0.0
      %4611 = vmatmul.mubr.f32.gmra.mrb[0].mxu0 %v4190
      %v4612 = vpop.f32.mrb[0].mxu0
      %v4613 = vadd.f32 %v4382, %v4612
      %v4614 = vpop.f32.mrb[0].mxu0
      %4615 = vmatprep.mubr.f32.mxu0 0.0
      %4616 = vmatmul.mubr.f32.gmra.mrb[0].mxu0 %v4193
      %v4617 = vpop.f32.mrb[0].mxu0
      %v4618 = vadd.f32 %v4387, %v4617
      %v4619 = vpop.f32.mrb[0].mxu0
      %4620 = vmatprep.mubr.f32.mxu0 0.0
      %4621 = vmatmul.mubr.f32.gmra.mrb[0].mxu0 %v4196
      %v4622 = vpop.f32.mrb[0].mxu0
      %v4623 = vadd.f32 %v4392, %v4622
      %v4624 = vpop.f32.mrb[0].mxu0
      %4625 = vmatprep.mubr.f32.mxu0 0.0
      %4626 = vmatmul.mubr.f32.gmra.mrb[0].mxu0 %v4199
      %v4627 = vpop.f32.mrb[0].mxu0
      %v4628 = vadd.f32 %v4397, %v4627
      %v4629 = vpop.f32.mrb[0].mxu0
      %4630 = vmatprep.mubr.f32.mxu0 0.0
      %4631 = vmatmul.mubr.f32.gmra.mrb[0].mxu0 %v4202
      %v4632 = vpop.f32.mrb[0].mxu0
      %v4633 = vadd.f32 %v4402, %v4632
      %v4634 = vpop.f32.mrb[0].mxu0
      %4635 = vmatprep.mubr.f32.mxu0 0.0
      %4636 = vmatmul.mubr.f32.gmra.mrb[0].mxu0 %v4205
      %v4637 = vpop.f32.mrb[0].mxu0
      %v4638 = vadd.f32 %v4407, %v4637
      %v4639 = vpop.f32.mrb[0].mxu0
      %4640 = vmatprep.mubr.f32.mxu0 0.0
      %4641 = vmatmul.mubr.f32.gmra.mrb[0].mxu0 %v4208
      %v4642 = vpop.f32.mrb[0].mxu0
      %v4643 = vadd.f32 %v4412, %v4642
      %v4644 = vpop.f32.mrb[0].mxu0
      %4645 = vmatprep.mubr.f32.mxu0 0.0
      %4646 = vmatmul.mubr.f32.gmra.mrb[0].mxu0 %v4211
      %v4647 = vpop.f32.mrb[0].mxu0
      %v4648 = vadd.f32 %v4417, %v4647
      %v4649 = vpop.f32.mrb[0].mxu0
      %4650 = vmatprep.mubr.f32.mxu0 0.0
      %4651 = vmatmul.mubr.f32.gmra.mrb[0].mxu0 %v4214
      %v4652 = vpop.f32.mrb[0].mxu0
      %v4653 = vadd.f32 %v4422, %v4652
      %v4654 = vpop.f32.mrb[0].mxu0
      %4655 = vmatprep.mubr.f32.mxu0 0.0
      %4656 = vmatmul.mubr.f32.gmra.mrb[0].mxu0 %v4217
      %v4657 = vpop.f32.mrb[0].mxu0
      %v4658 = vadd.f32 %v4427, %v4657
      %v4659 = vpop.f32.mrb[0].mxu0
      %4660 = vmatprep.mubr.f32.mxu0 0.0
      %4661 = vmatmul.mubr.f32.gmra.mrb[0].mxu0 %v4220
      %v4662 = vpop.f32.mrb[0].mxu0
      %v4663 = vadd.f32 %v4432, %v4662
      %v4664 = vpop.f32.mrb[0].mxu0
      %4665 = vmatprep.mubr.f32.mxu0 0.0
      %4666 = vmatmul.mubr.f32.gmra.mrb[0].mxu0 %v4223
      %v4667 = vpop.f32.mrb[0].mxu0
      %v4668 = vadd.f32 %v4437, %v4667
      %v4669 = vpop.f32.mrb[0].mxu0
      %4670 = vmatprep.mubr.f32.mxu0 0.0
      %4671 = vmatmul.mubr.f32.gmra.mrb[0].mxu0 %v4226
      %v4672 = vpop.f32.mrb[0].mxu0
      %v4673 = vadd.f32 %v4442, %v4672
      %v4674 = vpop.f32.mrb[0].mxu0
      %4675 = vmatprep.mubr.f32.mxu0 0.0
      %4676 = vmatmul.mubr.f32.gmra.mrb[0].mxu0 %v4229
      %v4677 = vpop.f32.mrb[0].mxu0
      %v4678 = vadd.f32 %v4447, %v4677
      %v4679 = vpop.f32.mrb[0].mxu0
      %4680 = vmatprep.mubr.f32.mxu0 0.0
      %4681 = vmatmul.mubr.f32.gmra.mrb[0].mxu0 %v4232
      %v4682 = vpop.f32.mrb[0].mxu0
      %v4683 = vadd.f32 %v4452, %v4682
      %v4684 = vpop.f32.mrb[0].mxu0
      %4685 = vmatprep.mubr.f32.mxu0 0.0
      %4686 = vmatmul.mubr.f32.gmra.mrb[0].mxu0 %v4235
      %v4687 = vpop.f32.mrb[0].mxu0
      %v4688 = vadd.f32 %v4457, %v4687
      %v4689 = vpop.f32.mrb[0].mxu0
      %4690 = vmatprep.mubr.f32.mxu0 0.0
      %4691 = vmatmul.mubr.f32.gmra.mrb[0].mxu0 %v4238
      %v4692 = vpop.f32.mrb[0].mxu0
      %v4693 = vadd.f32 %v4462, %v4692
      %v4694 = vpop.f32.mrb[0].mxu0
      %4695 = vmatprep.mubr.f32.mxu0 0.0
      %4696 = vmatmul.mubr.f32.gmra.mrb[0].mxu0 %v4241
      %v4697 = vpop.f32.mrb[0].mxu0
      %v4698 = vadd.f32 %v4467, %v4697
      %v4699 = vpop.f32.mrb[0].mxu0
      %4700 = vmatprep.mubr.f32.mxu0 0.0
      %4701 = vmatmul.mubr.f32.gmra.mrb[0].mxu0 %v4244
      %v4702 = vpop.f32.mrb[0].mxu0
      %v4703 = vadd.f32 %v4472, %v4702
      %v4704 = vpop.f32.mrb[0].mxu0
      %4705 = vmatprep.mubr.f32.mxu0 0.0
      %4706 = vmatmul.mubr.f32.gmra.mrb[0].mxu0 %v4247
      %v4707 = vpop.f32.mrb[0].mxu0
      %v4708 = vadd.f32 %v4477, %v4707
      %v4709 = vpop.f32.mrb[0].mxu0
      %4710 = vdwg.mxu0
      %s4711 = scalar_lea.vmem %s1, 384
      %v4712 = vld [vmem:[%s4711] sm:$0xff]
      %v4713 = vld [vmem:[%s4711 + $0x8] sm:$0xff]
      %v4714 = vld [vmem:[%s4711 + $0x10] sm:$0xff]
      %v4715 = vld [vmem:[%s4711 + $0x18] sm:$0xff]
      %v4716 = vld [vmem:[%s4711 + $0x20] sm:$0xff]
      %v4717 = vld [vmem:[%s4711 + $0x28] sm:$0xff]
      %v4719 = vsel %vm1125, %v4143, 0
      %v4722 = vsel %vm1125, %v4144, 0
      %4724 = vmatprep.subr.mxu0 0.0
      %4725 = vmatpush1.msra.mxu0 %v4712
      %4726 = vmatprep.subr.mxu0 0.0
      %4727 = vmatpush1.msra.mxu0 %v4713
      %4728 = vmatprep.subr.mxu0 0.0
      %4729 = vmatpush1.msra.mxu0 %v4714
      %4730 = vmatprep.subr.mxu0 0.0
      %4731 = vmatpush1.msra.mxu0 %v4715
      %4732 = vmatprep.subr.mxu0 0.0
      %4733 = vmatpush1.msra.mxu0 %v4716
      %4734 = vmatprep.subr.mxu0 0.0
      %4735 = vmatpush1.msra.mxu0 %v4717
      %4736 = vmatprep.subr.mxu0 0.0
      %4737 = vmatpush1.msra.mxu0 0.0
      %4738 = vmatprep.subr.mxu0 0.0
      %4739 = vmatpush1.msra.mxu0 0.0
      %4740 = vmatprep.subr.mxu0 0.0
      %4741 = vmatpush1.msra.mxu0 0.0
      %4742 = vmatprep.subr.mxu0 0.0
      %4743 = vmatpush1.msra.mxu0 0.0
      %4744 = vmatprep.subr.mxu0 0.0
      %4745 = vmatpush1.msra.mxu0 0.0
      %4746 = vmatprep.subr.mxu0 0.0
      %4747 = vmatpush1.msra.mxu0 0.0
      %4748 = vmatprep.subr.mxu0 0.0
      %4749 = vmatpush1.msra.mxu0 0.0
      %4750 = vmatprep.subr.mxu0 0.0
      %4751 = vmatpush1.msra.mxu0 0.0
      %4752 = vmatprep.subr.mxu0 0.0
      %4753 = vmatpush1.msra.mxu0 0.0
      %4754 = vmatprep.subr.mxu0 0.0
      %4755 = vmatpush1.msra.mxu0 0.0
      %4756 = vmatprep.subr.mxu0 0.0
      %4757 = vmatpush1.msra.mxu0 0.0
      %4758 = vmatprep.subr.mxu0 0.0
      %4759 = vmatpush1.msra.mxu0 0.0
      %4760 = vmatprep.subr.mxu0 0.0
      %4761 = vmatpush1.msra.mxu0 0.0
      %4762 = vmatprep.subr.mxu0 0.0
      %4763 = vmatpush1.msra.mxu0 0.0
      %4764 = vmatprep.subr.mxu0 0.0
      %4765 = vmatpush1.msra.mxu0 0.0
      %4766 = vmatprep.subr.mxu0 0.0
      %4767 = vmatpush1.msra.mxu0 0.0
      %4768 = vmatprep.subr.mxu0 0.0
      %4769 = vmatpush1.msra.mxu0 0.0
      %4770 = vmatprep.subr.mxu0 0.0
      %4771 = vmatpush1.msra.mxu0 0.0
      %4772 = vmatprep.subr.mxu0 0.0
      %4773 = vmatpush1.msra.mxu0 0.0
      %4774 = vmatprep.subr.mxu0 0.0
      %4775 = vmatpush1.msra.mxu0 0.0
      %4776 = vmatprep.subr.mxu0 0.0
      %4777 = vmatpush1.msra.mxu0 0.0
      %4778 = vmatprep.subr.mxu0 0.0
      %4779 = vmatpush1.msra.mxu0 0.0
      %4780 = vmatprep.subr.mxu0 0.0
      %4781 = vmatpush1.msra.mxu0 0.0
      %4782 = vmatprep.subr.mxu0 0.0
      %4783 = vmatpush1.msra.mxu0 0.0
      %4784 = vmatprep.subr.mxu0 0.0
      %4785 = vmatpush1.msra.mxu0 0.0
      %4786 = vmatprep.subr.mxu0 0.0
      %4787 = vmatpush1.msra.mxu0 0.0
      %4788 = vmatprep.mubr.f32.mxu0 0.0
      %4789 = vmatmul.mubr.f32.gmra.mrb[0].mxu0 %v4166
      %v4790 = vpop.f32.mrb[0].mxu0
      %v4791 = vadd.f32 0.0, %v4790
      %v4792 = vpop.f32.mrb[0].mxu0
      %4793 = vmatprep.mubr.f32.mxu0 0.0
      %4794 = vmatmul.mubr.f32.gmra.mrb[0].mxu0 %v4169
      %v4795 = vpop.f32.mrb[0].mxu0
      %v4796 = vadd.f32 0.0, %v4795
      %v4797 = vpop.f32.mrb[0].mxu0
      %4798 = vmatprep.mubr.f32.mxu0 0.0
      %4799 = vmatmul.mubr.f32.gmra.mrb[0].mxu0 %v4172
      %v4800 = vpop.f32.mrb[0].mxu0
      %v4801 = vadd.f32 0.0, %v4800
      %v4802 = vpop.f32.mrb[0].mxu0
      %4803 = vmatprep.mubr.f32.mxu0 0.0
      %4804 = vmatmul.mubr.f32.gmra.mrb[0].mxu0 %v4175
      %v4805 = vpop.f32.mrb[0].mxu0
      %v4806 = vadd.f32 0.0, %v4805
      %v4807 = vpop.f32.mrb[0].mxu0
      %4808 = vmatprep.mubr.f32.mxu0 0.0
      %4809 = vmatmul.mubr.f32.gmra.mrb[0].mxu0 %v4178
      %v4810 = vpop.f32.mrb[0].mxu0
      %v4811 = vadd.f32 0.0, %v4810
      %v4812 = vpop.f32.mrb[0].mxu0
      %4813 = vmatprep.mubr.f32.mxu0 0.0
      %4814 = vmatmul.mubr.f32.gmra.mrb[0].mxu0 %v4181
      %v4815 = vpop.f32.mrb[0].mxu0
      %v4816 = vadd.f32 0.0, %v4815
      %v4817 = vpop.f32.mrb[0].mxu0
      %4818 = vmatprep.mubr.f32.mxu0 0.0
      %4819 = vmatmul.mubr.f32.gmra.mrb[0].mxu0 %v4184
      %v4820 = vpop.f32.mrb[0].mxu0
      %v4821 = vadd.f32 0.0, %v4820
      %v4822 = vpop.f32.mrb[0].mxu0
      %4823 = vmatprep.mubr.f32.mxu0 0.0
      %4824 = vmatmul.mubr.f32.gmra.mrb[0].mxu0 %v4187
      %v4825 = vpop.f32.mrb[0].mxu0
      %v4826 = vadd.f32 0.0, %v4825
      %v4827 = vpop.f32.mrb[0].mxu0
      %4828 = vmatprep.mubr.f32.mxu0 0.0
      %4829 = vmatmul.mubr.f32.gmra.mrb[0].mxu0 %v4190
      %v4830 = vpop.f32.mrb[0].mxu0
      %v4831 = vadd.f32 0.0, %v4830
      %v4832 = vpop.f32.mrb[0].mxu0
      %4833 = vmatprep.mubr.f32.mxu0 0.0
      %4834 = vmatmul.mubr.f32.gmra.mrb[0].mxu0 %v4193
      %v4835 = vpop.f32.mrb[0].mxu0
      %v4836 = vadd.f32 0.0, %v4835
      %v4837 = vpop.f32.mrb[0].mxu0
      %4838 = vmatprep.mubr.f32.mxu0 0.0
      %4839 = vmatmul.mubr.f32.gmra.mrb[0].mxu0 %v4196
      %v4840 = vpop.f32.mrb[0].mxu0
      %v4841 = vadd.f32 0.0, %v4840
      %v4842 = vpop.f32.mrb[0].mxu0
      %4843 = vmatprep.mubr.f32.mxu0 0.0
      %4844 = vmatmul.mubr.f32.gmra.mrb[0].mxu0 %v4199
      %v4845 = vpop.f32.mrb[0].mxu0
      %v4846 = vadd.f32 0.0, %v4845
      %v4847 = vpop.f32.mrb[0].mxu0
      %4848 = vmatprep.mubr.f32.mxu0 0.0
      %4849 = vmatmul.mubr.f32.gmra.mrb[0].mxu0 %v4202
      %v4850 = vpop.f32.mrb[0].mxu0
      %v4851 = vadd.f32 0.0, %v4850
      %v4852 = vpop.f32.mrb[0].mxu0
      %4853 = vmatprep.mubr.f32.mxu0 0.0
      %4854 = vmatmul.mubr.f32.gmra.mrb[0].mxu0 %v4205
      %v4855 = vpop.f32.mrb[0].mxu0
      %v4856 = vadd.f32 0.0, %v4855
      %v4857 = vpop.f32.mrb[0].mxu0
      %4858 = vmatprep.mubr.f32.mxu0 0.0
      %4859 = vmatmul.mubr.f32.gmra.mrb[0].mxu0 %v4208
      %v4860 = vpop.f32.mrb[0].mxu0
      %v4861 = vadd.f32 0.0, %v4860
      %v4862 = vpop.f32.mrb[0].mxu0
      %4863 = vmatprep.mubr.f32.mxu0 0.0
      %4864 = vmatmul.mubr.f32.gmra.mrb[0].mxu0 %v4211
      %v4865 = vpop.f32.mrb[0].mxu0
      %v4866 = vadd.f32 0.0, %v4865
      %v4867 = vpop.f32.mrb[0].mxu0
      %4868 = vmatprep.mubr.f32.mxu0 0.0
      %4869 = vmatmul.mubr.f32.gmra.mrb[0].mxu0 %v4214
      %v4870 = vpop.f32.mrb[0].mxu0
      %v4871 = vadd.f32 0.0, %v4870
      %v4872 = vpop.f32.mrb[0].mxu0
      %4873 = vmatprep.mubr.f32.mxu0 0.0
      %4874 = vmatmul.mubr.f32.gmra.mrb[0].mxu0 %v4217
      %v4875 = vpop.f32.mrb[0].mxu0
      %v4876 = vadd.f32 0.0, %v4875
      %v4877 = vpop.f32.mrb[0].mxu0
      %4878 = vmatprep.mubr.f32.mxu0 0.0
      %4879 = vmatmul.mubr.f32.gmra.mrb[0].mxu0 %v4220
      %v4880 = vpop.f32.mrb[0].mxu0
      %v4881 = vadd.f32 0.0, %v4880
      %v4882 = vpop.f32.mrb[0].mxu0
      %4883 = vmatprep.mubr.f32.mxu0 0.0
      %4884 = vmatmul.mubr.f32.gmra.mrb[0].mxu0 %v4223
      %v4885 = vpop.f32.mrb[0].mxu0
      %v4886 = vadd.f32 0.0, %v4885
      %v4887 = vpop.f32.mrb[0].mxu0
      %4888 = vmatprep.mubr.f32.mxu0 0.0
      %4889 = vmatmul.mubr.f32.gmra.mrb[0].mxu0 %v4226
      %v4890 = vpop.f32.mrb[0].mxu0
      %v4891 = vadd.f32 0.0, %v4890
      %v4892 = vpop.f32.mrb[0].mxu0
      %4893 = vmatprep.mubr.f32.mxu0 0.0
      %4894 = vmatmul.mubr.f32.gmra.mrb[0].mxu0 %v4229
      %v4895 = vpop.f32.mrb[0].mxu0
      %v4896 = vadd.f32 0.0, %v4895
      %v4897 = vpop.f32.mrb[0].mxu0
      %4898 = vmatprep.mubr.f32.mxu0 0.0
      %4899 = vmatmul.mubr.f32.gmra.mrb[0].mxu0 %v4232
      %v4900 = vpop.f32.mrb[0].mxu0
      %v4901 = vadd.f32 0.0, %v4900
      %v4902 = vpop.f32.mrb[0].mxu0
      %4903 = vmatprep.mubr.f32.mxu0 0.0
      %4904 = vmatmul.mubr.f32.gmra.mrb[0].mxu0 %v4235
      %v4905 = vpop.f32.mrb[0].mxu0
      %v4906 = vadd.f32 0.0, %v4905
      %v4907 = vpop.f32.mrb[0].mxu0
      %4908 = vmatprep.mubr.f32.mxu0 0.0
      %4909 = vmatmul.mubr.f32.gmra.mrb[0].mxu0 %v4238
      %v4910 = vpop.f32.mrb[0].mxu0
      %v4911 = vadd.f32 0.0, %v4910
      %v4912 = vpop.f32.mrb[0].mxu0
      %4913 = vmatprep.mubr.f32.mxu0 0.0
      %4914 = vmatmul.mubr.f32.gmra.mrb[0].mxu0 %v4241
      %v4915 = vpop.f32.mrb[0].mxu0
      %v4916 = vadd.f32 0.0, %v4915
      %v4917 = vpop.f32.mrb[0].mxu0
      %4918 = vmatprep.mubr.f32.mxu0 0.0
      %4919 = vmatmul.mubr.f32.gmra.mrb[0].mxu0 %v4244
      %v4920 = vpop.f32.mrb[0].mxu0
      %v4921 = vadd.f32 0.0, %v4920
      %v4922 = vpop.f32.mrb[0].mxu0
      %4923 = vmatprep.mubr.f32.mxu0 0.0
      %4924 = vmatmul.mubr.f32.gmra.mrb[0].mxu0 %v4247
      %v4925 = vpop.f32.mrb[0].mxu0
      %v4926 = vadd.f32 0.0, %v4925
      %v4927 = vpop.f32.mrb[0].mxu0
      %4928 = vmatprep.mubr.f32.mxu0 0.0
      %4929 = vmatmul.mubr.f32.gmra.mrb[0].mxu0 %v4250
      %v4930 = vpop.f32.mrb[0].mxu0
      %v4931 = vadd.f32 0.0, %v4930
      %v4932 = vpop.f32.mrb[0].mxu0
      %4933 = vmatprep.mubr.f32.mxu0 0.0
      %4934 = vmatmul.mubr.f32.gmra.mrb[0].mxu0 %v4253
      %v4935 = vpop.f32.mrb[0].mxu0
      %v4936 = vadd.f32 0.0, %v4935
      %v4937 = vpop.f32.mrb[0].mxu0
      %4938 = vmatprep.mubr.f32.mxu0 0.0
      %4939 = vmatmul.mubr.f32.gmra.mrb[0].mxu0 %v4719
      %v4940 = vpop.f32.mrb[0].mxu0
      %v4941 = vadd.f32 0.0, %v4940
      %v4942 = vpop.f32.mrb[0].mxu0
      %4943 = vmatprep.mubr.f32.mxu0 0.0
      %4944 = vmatmul.mubr.f32.gmra.mrb[0].mxu0 %v4722
      %v4945 = vpop.f32.mrb[0].mxu0
      %v4946 = vadd.f32 0.0, %v4945
      %v4947 = vpop.f32.mrb[0].mxu0
      %4948 = vdwg.mxu0
      %v4949 = vadd.f32 %v4553, %v4791
      %v4950 = vadd.f32 %v4558, %v4796
      %v4951 = vadd.f32 %v4563, %v4801
      %v4952 = vadd.f32 %v4568, %v4806
      %v4953 = vadd.f32 %v4573, %v4811
      %v4954 = vadd.f32 %v4578, %v4816
      %v4955 = vadd.f32 %v4583, %v4821
      %v4956 = vadd.f32 %v4588, %v4826
      %v4957 = vadd.f32 %v4593, %v4831
      %v4958 = vadd.f32 %v4598, %v4836
      %v4959 = vadd.f32 %v4603, %v4841
      %v4960 = vadd.f32 %v4608, %v4846
      %v4961 = vadd.f32 %v4613, %v4851
      %v4962 = vadd.f32 %v4618, %v4856
      %v4963 = vadd.f32 %v4623, %v4861
      %v4964 = vadd.f32 %v4628, %v4866
      %v4965 = vadd.f32 %v4633, %v4871
      %v4966 = vadd.f32 %v4638, %v4876
      %v4967 = vadd.f32 %v4643, %v4881
      %v4968 = vadd.f32 %v4648, %v4886
      %v4969 = vadd.f32 %v4653, %v4891
      %v4970 = vadd.f32 %v4658, %v4896
      %v4971 = vadd.f32 %v4663, %v4901
      %v4972 = vadd.f32 %v4668, %v4906
      %v4973 = vadd.f32 %v4673, %v4911
      %v4974 = vadd.f32 %v4678, %v4916
      %v4975 = vadd.f32 %v4683, %v4921
      %v4976 = vadd.f32 %v4688, %v4926
      %v4977 = vadd.f32 %v4693, %v4931
      %v4978 = vadd.f32 %v4698, %v4936
      %v4979 = vadd.f32 %v4703, %v4941
      %v4980 = vadd.f32 %v4708, %v4946
      %s4981 = scalar_lea.vmem %s2, 2
      %v4982 = vld [vmem:[%s4981] sm:$0x1]
      %v4984 = vlaneseq
      %v4985 = vshrl.u32 %v4984, 7
      %v4986 = vsub.s32 0, %v4985
      %v4987 = vrot.slane %v4982, %v4986
      %v4989 = vadd.f32 %v4949, %v4987
      %v4990 = vadd.f32 %v4950, %v4987
      %v4991 = vadd.f32 %v4951, %v4987
      %v4992 = vadd.f32 %v4952, %v4987
      %v4993 = vadd.f32 %v4953, %v4987
      %v4994 = vadd.f32 %v4954, %v4987
      %v4995 = vadd.f32 %v4955, %v4987
      %v4996 = vadd.f32 %v4956, %v4987
      %v4997 = vadd.f32 %v4957, %v4987
      %v4998 = vadd.f32 %v4958, %v4987
      %v4999 = vadd.f32 %v4959, %v4987
      %v5000 = vadd.f32 %v4960, %v4987
      %v5001 = vadd.f32 %v4961, %v4987
      %v5002 = vadd.f32 %v4962, %v4987
      %v5003 = vadd.f32 %v4963, %v4987
      %v5004 = vadd.f32 %v4964, %v4987
      %v5005 = vadd.f32 %v4965, %v4987
      %v5006 = vadd.f32 %v4966, %v4987
      %v5007 = vadd.f32 %v4967, %v4987
      %v5008 = vadd.f32 %v4968, %v4987
      %v5009 = vadd.f32 %v4969, %v4987
      %v5010 = vadd.f32 %v4970, %v4987
      %v5011 = vadd.f32 %v4971, %v4987
      %v5012 = vadd.f32 %v4972, %v4987
      %v5013 = vadd.f32 %v4973, %v4987
      %v5014 = vadd.f32 %v4974, %v4987
      %v5015 = vadd.f32 %v4975, %v4987
      %v5016 = vadd.f32 %v4976, %v4987
      %v5017 = vadd.f32 %v4977, %v4987
      %v5018 = vadd.f32 %v4978, %v4987
      %v5019 = vadd.f32 %v4979, %v4987
      %v5020 = vadd.f32 %v4980, %v4987
      %v5021 = vmax.f32 %v4989, 0.0
      %v5022 = vmax.f32 %v4990, 0.0
      %v5023 = vmax.f32 %v4991, 0.0
      %v5024 = vmax.f32 %v4992, 0.0
      %v5025 = vmax.f32 %v4993, 0.0
      %v5026 = vmax.f32 %v4994, 0.0
      %v5027 = vmax.f32 %v4995, 0.0
      %v5028 = vmax.f32 %v4996, 0.0
      %v5029 = vmax.f32 %v4997, 0.0
      %v5030 = vmax.f32 %v4998, 0.0
      %v5031 = vmax.f32 %v4999, 0.0
      %v5032 = vmax.f32 %v5000, 0.0
      %v5033 = vmax.f32 %v5001, 0.0
      %v5034 = vmax.f32 %v5002, 0.0
      %v5035 = vmax.f32 %v5003, 0.0
      %v5036 = vmax.f32 %v5004, 0.0
      %v5037 = vmax.f32 %v5005, 0.0
      %v5038 = vmax.f32 %v5006, 0.0
      %v5039 = vmax.f32 %v5007, 0.0
      %v5040 = vmax.f32 %v5008, 0.0
      %v5041 = vmax.f32 %v5009, 0.0
      %v5042 = vmax.f32 %v5010, 0.0
      %v5043 = vmax.f32 %v5011, 0.0
      %v5044 = vmax.f32 %v5012, 0.0
      %v5045 = vmax.f32 %v5013, 0.0
      %v5046 = vmax.f32 %v5014, 0.0
      %v5047 = vmax.f32 %v5015, 0.0
      %v5048 = vmax.f32 %v5016, 0.0
      %v5049 = vmax.f32 %v5017, 0.0
      %v5050 = vmax.f32 %v5018, 0.0
      %v5051 = vmax.f32 %v5019, 0.0
      %v5052 = vmax.f32 %v5020, 0.0
      %5053 = vst.msk [vmem:[%s2019 + $0x1] sm:$0xff] %vm225, %v5021
      %5054 = vst.msk [vmem:[%s2019 + $0x9] sm:$0xff] %vm225, %v5022
      %5055 = vst.msk [vmem:[%s2019 + $0x19] sm:$0xff] %vm225, %v5023
      %5056 = vst.msk [vmem:[%s2019 + $0x21] sm:$0xff] %vm225, %v5024
      %5057 = vst.msk [vmem:[%s2019 + $0x31] sm:$0xff] %vm225, %v5025
      %5058 = vst.msk [vmem:[%s2019 + $0x39] sm:$0xff] %vm225, %v5026
      %5059 = vst.msk [vmem:[%s2019 + $0x49] sm:$0xff] %vm225, %v5027
      %5060 = vst.msk [vmem:[%s2019 + $0x51] sm:$0xff] %vm225, %v5028
      %5061 = vst.msk [vmem:[%s2019 + $0x61] sm:$0xff] %vm225, %v5029
      %5062 = vst.msk [vmem:[%s2019 + $0x69] sm:$0xff] %vm225, %v5030
      %5063 = vst.msk [vmem:[%s2019 + $0x79] sm:$0xff] %vm225, %v5031
      %5064 = vst.msk [vmem:[%s2019 + $0x81] sm:$0xff] %vm225, %v5032
      %5065 = vst.msk [vmem:[%s2019 + $0x91] sm:$0xff] %vm225, %v5033
      %5066 = vst.msk [vmem:[%s2019 + $0x99] sm:$0xff] %vm225, %v5034
      %5067 = vst.msk [vmem:[%s2019 + $0xa9] sm:$0xff] %vm225, %v5035
      %5068 = vst.msk [vmem:[%s2019 + $0xb1] sm:$0xff] %vm225, %v5036
      %5069 = vst.msk [vmem:[%s2019 + $0xc1] sm:$0xff] %vm225, %v5037
      %5070 = vst.msk [vmem:[%s2019 + $0xc9] sm:$0xff] %vm225, %v5038
      %5071 = vst.msk [vmem:[%s2019 + $0xd9] sm:$0xff] %vm225, %v5039
      %5072 = vst.msk [vmem:[%s2019 + $0xe1] sm:$0xff] %vm225, %v5040
      %5073 = vst.msk [vmem:[%s2019 + $0xf1] sm:$0xff] %vm225, %v5041
      %5074 = vst.msk [vmem:[%s2019 + $0xf9] sm:$0xff] %vm225, %v5042
      %5075 = vst.msk [vmem:[%s2019 + $0x109] sm:$0xff] %vm225, %v5043
      %5076 = vst.msk [vmem:[%s2019 + $0x111] sm:$0xff] %vm225, %v5044
      %5077 = vst.msk [vmem:[%s2019 + $0x121] sm:$0xff] %vm225, %v5045
      %5078 = vst.msk [vmem:[%s2019 + $0x129] sm:$0xff] %vm225, %v5046
      %5079 = vst.msk [vmem:[%s2019 + $0x139] sm:$0xff] %vm225, %v5047
      %5080 = vst.msk [vmem:[%s2019 + $0x141] sm:$0xff] %vm225, %v5048
      %5081 = vst.msk [vmem:[%s2019 + $0x151] sm:$0xff] %vm225, %v5049
      %5082 = vst.msk [vmem:[%s2019 + $0x159] sm:$0xff] %vm225, %v5050
      %5083 = vst.msk [vmem:[%s2019 + $0x169] sm:$0xff] %vm225, %v5051
      %5084 = vst.msk [vmem:[%s2019 + $0x171] sm:$0xff] %vm225, %v5052
      %v5085 = vld [vmem:[#allocation3] sm:$0xff]
      %v5086 = vld [vmem:[#allocation3 + $0x8] sm:$0xff]
      %v5087 = vld [vmem:[#allocation3 + $0x10] sm:$0x3]
      %v5088 = vld [vmem:[#allocation3 + $0x18] sm:$0xff]
      %v5089 = vld [vmem:[#allocation3 + $0x20] sm:$0xff]
      %v5090 = vld [vmem:[#allocation3 + $0x28] sm:$0x3]
      %v5091 = vld [vmem:[#allocation3 + $0x30] sm:$0xff]
      %v5092 = vld [vmem:[#allocation3 + $0x38] sm:$0xff]
      %v5093 = vld [vmem:[#allocation3 + $0x40] sm:$0x3]
      %v5094 = vld [vmem:[#allocation3 + $0x48] sm:$0xff]
      %v5095 = vld [vmem:[#allocation3 + $0x50] sm:$0xff]
      %v5096 = vld [vmem:[#allocation3 + $0x58] sm:$0x3]
      %v5097 = vld [vmem:[#allocation3 + $0x60] sm:$0xff]
      %v5098 = vld [vmem:[#allocation3 + $0x68] sm:$0xff]
      %v5099 = vld [vmem:[#allocation3 + $0x70] sm:$0x3]
      %v5100 = vld [vmem:[#allocation3 + $0x78] sm:$0xff]
      %v5101 = vld [vmem:[#allocation3 + $0x80] sm:$0xff]
      %v5102 = vld [vmem:[#allocation3 + $0x88] sm:$0x3]
      %v5103 = vld [vmem:[#allocation3 + $0x90] sm:$0xff]
      %v5104 = vld [vmem:[#allocation3 + $0x98] sm:$0xff]
      %v5105 = vld [vmem:[#allocation3 + $0xa0] sm:$0x3]
      %v5106 = vld [vmem:[#allocation3 + $0xa8] sm:$0xff]
      %v5107 = vld [vmem:[#allocation3 + $0xb0] sm:$0xff]
      %v5108 = vld [vmem:[#allocation3 + $0xb8] sm:$0x3]
      %v5109 = vld [vmem:[#allocation3 + $0xc0] sm:$0xff]
      %v5110 = vld [vmem:[#allocation3 + $0xc8] sm:$0xff]
      %v5111 = vld [vmem:[#allocation3 + $0xd0] sm:$0x3]
      %v5112 = vld [vmem:[#allocation3 + $0xd8] sm:$0xff]
      %v5113 = vld [vmem:[#allocation3 + $0xe0] sm:$0xff]
      %v5114 = vld [vmem:[#allocation3 + $0xe8] sm:$0x3]
      %v5115 = vld [vmem:[#allocation3 + $0xf0] sm:$0xff]
      %v5116 = vld [vmem:[#allocation3 + $0xf8] sm:$0xff]
      %v5117 = vld [vmem:[#allocation3 + $0x100] sm:$0x3]
      %v5118 = vld [vmem:[#allocation3 + $0x108] sm:$0xff]
      %v5119 = vld [vmem:[#allocation3 + $0x110] sm:$0xff]
      %v5120 = vld [vmem:[#allocation3 + $0x118] sm:$0x3]
      %v5121 = vld [vmem:[#allocation3 + $0x120] sm:$0xff]
      %v5122 = vld [vmem:[#allocation3 + $0x128] sm:$0xff]
      %v5123 = vld [vmem:[#allocation3 + $0x130] sm:$0x3]
      %v5124 = vld [vmem:[#allocation3 + $0x138] sm:$0xff]
      %v5125 = vld [vmem:[#allocation3 + $0x140] sm:$0xff]
      %v5126 = vld [vmem:[#allocation3 + $0x148] sm:$0x3]
      %v5127 = vld [vmem:[#allocation3 + $0x150] sm:$0xff]
      %v5128 = vld [vmem:[#allocation3 + $0x158] sm:$0xff]
      %v5129 = vld [vmem:[#allocation3 + $0x160] sm:$0x3]
      %v5130 = vld [vmem:[#allocation3 + $0x168] sm:$0xff]
      %v5131 = vld [vmem:[#allocation3 + $0x170] sm:$0xff]
      %v5132 = vld [vmem:[#allocation3 + $0x178] sm:$0x3]
      %v5133 = vld [vmem:[#allocation3 + $0x180] sm:$0xff]
      %v5134 = vld [vmem:[#allocation3 + $0x188] sm:$0xff]
      %v5135 = vld [vmem:[#allocation3 + $0x190] sm:$0x3]
      %v5136 = vld [vmem:[#allocation3 + $0x198] sm:$0xff]
      %v5137 = vld [vmem:[#allocation3 + $0x1a0] sm:$0xff]
      %v5138 = vld [vmem:[#allocation3 + $0x1a8] sm:$0x3]
      %v5193 = vrot.slane %v5085, 1
      %v5194 = vrot.slane %v5086, 1
      %v5195 = vsel %vm641, %v5193, %v5194
      %v5196 = vrot.slane %v5087, 1
      %v5197 = vsel %vm641, %v5194, %v5196
      %v5198 = vrot.slane %v5088, 1
      %v5199 = vrot.slane %v5089, 1
      %v5200 = vsel %vm641, %v5198, %v5199
      %v5201 = vrot.slane %v5090, 1
      %v5202 = vsel %vm641, %v5199, %v5201
      %v5203 = vrot.slane %v5091, 1
      %v5204 = vrot.slane %v5092, 1
      %v5205 = vsel %vm641, %v5203, %v5204
      %v5206 = vrot.slane %v5093, 1
      %v5207 = vsel %vm641, %v5204, %v5206
      %v5208 = vrot.slane %v5094, 1
      %v5209 = vrot.slane %v5095, 1
      %v5210 = vsel %vm641, %v5208, %v5209
      %v5211 = vrot.slane %v5096, 1
      %v5212 = vsel %vm641, %v5209, %v5211
      %v5213 = vrot.slane %v5097, 1
      %v5214 = vrot.slane %v5098, 1
      %v5215 = vsel %vm641, %v5213, %v5214
      %v5216 = vrot.slane %v5099, 1
      %v5217 = vsel %vm641, %v5214, %v5216
      %v5218 = vrot.slane %v5100, 1
      %v5219 = vrot.slane %v5101, 1
      %v5220 = vsel %vm641, %v5218, %v5219
      %v5221 = vrot.slane %v5102, 1
      %v5222 = vsel %vm641, %v5219, %v5221
      %v5223 = vrot.slane %v5103, 1
      %v5224 = vrot.slane %v5104, 1
      %v5225 = vsel %vm641, %v5223, %v5224
      %v5226 = vrot.slane %v5105, 1
      %v5227 = vsel %vm641, %v5224, %v5226
      %v5228 = vrot.slane %v5106, 1
      %v5229 = vrot.slane %v5107, 1
      %v5230 = vsel %vm641, %v5228, %v5229
      %v5231 = vrot.slane %v5108, 1
      %v5232 = vsel %vm641, %v5229, %v5231
      %v5233 = vrot.slane %v5109, 1
      %v5234 = vrot.slane %v5110, 1
      %v5235 = vsel %vm641, %v5233, %v5234
      %v5236 = vrot.slane %v5111, 1
      %v5237 = vsel %vm641, %v5234, %v5236
      %v5238 = vrot.slane %v5112, 1
      %v5239 = vrot.slane %v5113, 1
      %v5240 = vsel %vm641, %v5238, %v5239
      %v5241 = vrot.slane %v5114, 1
      %v5242 = vsel %vm641, %v5239, %v5241
      %v5243 = vrot.slane %v5115, 1
      %v5244 = vrot.slane %v5116, 1
      %v5245 = vsel %vm641, %v5243, %v5244
      %v5246 = vrot.slane %v5117, 1
      %v5247 = vsel %vm641, %v5244, %v5246
      %v5248 = vrot.slane %v5118, 1
      %v5249 = vrot.slane %v5119, 1
      %v5250 = vsel %vm641, %v5248, %v5249
      %v5251 = vrot.slane %v5120, 1
      %v5252 = vsel %vm641, %v5249, %v5251
      %v5253 = vrot.slane %v5121, 1
      %v5254 = vrot.slane %v5122, 1
      %v5255 = vsel %vm641, %v5253, %v5254
      %v5256 = vrot.slane %v5123, 1
      %v5257 = vsel %vm641, %v5254, %v5256
      %v5258 = vrot.slane %v5124, 1
      %v5259 = vrot.slane %v5125, 1
      %v5260 = vsel %vm641, %v5258, %v5259
      %v5261 = vrot.slane %v5126, 1
      %v5262 = vsel %vm641, %v5259, %v5261
      %v5263 = vrot.slane %v5127, 1
      %v5264 = vrot.slane %v5128, 1
      %v5265 = vsel %vm641, %v5263, %v5264
      %v5266 = vrot.slane %v5129, 1
      %v5267 = vsel %vm641, %v5264, %v5266
      %v5268 = vrot.slane %v5130, 1
      %v5269 = vrot.slane %v5131, 1
      %v5270 = vsel %vm641, %v5268, %v5269
      %v5271 = vrot.slane %v5132, 1
      %v5272 = vsel %vm641, %v5269, %v5271
      %v5273 = vrot.slane %v5133, 1
      %v5274 = vrot.slane %v5134, 1
      %v5275 = vsel %vm641, %v5273, %v5274
      %v5276 = vrot.slane %v5135, 1
      %v5277 = vsel %vm641, %v5274, %v5276
      %v5278 = vrot.slane %v5136, 1
      %v5279 = vrot.slane %v5137, 1
      %v5280 = vsel %vm641, %v5278, %v5279
      %v5281 = vrot.slane %v5138, 1
      %v5282 = vsel %vm641, %v5279, %v5281
      %5283 = vrot.lane.b32.xlu0 %v5195, 16
      %v5284 = vpop.permute.xlu0 %5283
      %5285 = vrot.lane.b32.xlu0 %v5197, 16
      %v5286 = vpop.permute.xlu0 %5285
      %5287 = vrot.lane.b32.xlu0 %v5200, 16
      %v5288 = vpop.permute.xlu0 %5287
      %5289 = vrot.lane.b32.xlu0 %v5202, 16
      %v5290 = vpop.permute.xlu0 %5289
      %5291 = vrot.lane.b32.xlu0 %v5205, 16
      %v5292 = vpop.permute.xlu0 %5291
      %5293 = vrot.lane.b32.xlu0 %v5207, 16
      %v5294 = vpop.permute.xlu0 %5293
      %5295 = vrot.lane.b32.xlu0 %v5210, 16
      %v5296 = vpop.permute.xlu0 %5295
      %5297 = vrot.lane.b32.xlu0 %v5212, 16
      %v5298 = vpop.permute.xlu0 %5297
      %5299 = vrot.lane.b32.xlu0 %v5215, 16
      %v5300 = vpop.permute.xlu0 %5299
      %5301 = vrot.lane.b32.xlu0 %v5217, 16
      %v5302 = vpop.permute.xlu0 %5301
      %5303 = vrot.lane.b32.xlu0 %v5220, 16
      %v5304 = vpop.permute.xlu0 %5303
      %5305 = vrot.lane.b32.xlu0 %v5222, 16
      %v5306 = vpop.permute.xlu0 %5305
      %5307 = vrot.lane.b32.xlu0 %v5225, 16
      %v5308 = vpop.permute.xlu0 %5307
      %5309 = vrot.lane.b32.xlu0 %v5227, 16
      %v5310 = vpop.permute.xlu0 %5309
      %5311 = vrot.lane.b32.xlu0 %v5230, 16
      %v5312 = vpop.permute.xlu0 %5311
      %5313 = vrot.lane.b32.xlu0 %v5232, 16
      %v5314 = vpop.permute.xlu0 %5313
      %5315 = vrot.lane.b32.xlu0 %v5235, 16
      %v5316 = vpop.permute.xlu0 %5315
      %5317 = vrot.lane.b32.xlu0 %v5237, 16
      %v5318 = vpop.permute.xlu0 %5317
      %5319 = vrot.lane.b32.xlu0 %v5240, 16
      %v5320 = vpop.permute.xlu0 %5319
      %5321 = vrot.lane.b32.xlu0 %v5242, 16
      %v5322 = vpop.permute.xlu0 %5321
      %5323 = vrot.lane.b32.xlu0 %v5245, 16
      %v5324 = vpop.permute.xlu0 %5323
      %5325 = vrot.lane.b32.xlu0 %v5247, 16
      %v5326 = vpop.permute.xlu0 %5325
      %5327 = vrot.lane.b32.xlu0 %v5250, 16
      %v5328 = vpop.permute.xlu0 %5327
      %5329 = vrot.lane.b32.xlu0 %v5252, 16
      %v5330 = vpop.permute.xlu0 %5329
      %5331 = vrot.lane.b32.xlu0 %v5255, 16
      %v5332 = vpop.permute.xlu0 %5331
      %5333 = vrot.lane.b32.xlu0 %v5257, 16
      %v5334 = vpop.permute.xlu0 %5333
      %5335 = vrot.lane.b32.xlu0 %v5260, 16
      %v5336 = vpop.permute.xlu0 %5335
      %5337 = vrot.lane.b32.xlu0 %v5262, 16
      %v5338 = vpop.permute.xlu0 %5337
      %5339 = vrot.lane.b32.xlu0 %v5265, 16
      %v5340 = vpop.permute.xlu0 %5339
      %5341 = vrot.lane.b32.xlu0 %v5267, 16
      %v5342 = vpop.permute.xlu0 %5341
      %5343 = vrot.lane.b32.xlu0 %v5270, 16
      %v5344 = vpop.permute.xlu0 %5343
      %5345 = vrot.lane.b32.xlu0 %v5272, 16
      %v5346 = vpop.permute.xlu0 %5345
      %5347 = vrot.lane.b32.xlu0 %v5275, 16
      %v5348 = vpop.permute.xlu0 %5347
      %5349 = vrot.lane.b32.xlu0 %v5277, 16
      %v5350 = vpop.permute.xlu0 %5349
      %5351 = vrot.lane.b32.xlu0 %v5280, 16
      %v5352 = vpop.permute.xlu0 %5351
      %5353 = vrot.lane.b32.xlu0 %v5282, 16
      %v5354 = vpop.permute.xlu0 %5353
      %v5391 = vrot.slane %v5085, 2
      %v5392 = vrot.slane %v5086, 2
      %v5393 = vsel %vm840, %v5391, %v5392
      %v5394 = vrot.slane %v5087, 2
      %v5395 = vsel %vm840, %v5392, %v5394
      %v5396 = vrot.slane %v5088, 2
      %v5397 = vrot.slane %v5089, 2
      %v5398 = vsel %vm840, %v5396, %v5397
      %v5399 = vrot.slane %v5090, 2
      %v5400 = vsel %vm840, %v5397, %v5399
      %v5401 = vrot.slane %v5091, 2
      %v5402 = vrot.slane %v5092, 2
      %v5403 = vsel %vm840, %v5401, %v5402
      %v5404 = vrot.slane %v5093, 2
      %v5405 = vsel %vm840, %v5402, %v5404
      %v5406 = vrot.slane %v5094, 2
      %v5407 = vrot.slane %v5095, 2
      %v5408 = vsel %vm840, %v5406, %v5407
      %v5409 = vrot.slane %v5096, 2
      %v5410 = vsel %vm840, %v5407, %v5409
      %v5411 = vrot.slane %v5097, 2
      %v5412 = vrot.slane %v5098, 2
      %v5413 = vsel %vm840, %v5411, %v5412
      %v5414 = vrot.slane %v5099, 2
      %v5415 = vsel %vm840, %v5412, %v5414
      %v5416 = vrot.slane %v5100, 2
      %v5417 = vrot.slane %v5101, 2
      %v5418 = vsel %vm840, %v5416, %v5417
      %v5419 = vrot.slane %v5102, 2
      %v5420 = vsel %vm840, %v5417, %v5419
      %v5421 = vrot.slane %v5103, 2
      %v5422 = vrot.slane %v5104, 2
      %v5423 = vsel %vm840, %v5421, %v5422
      %v5424 = vrot.slane %v5105, 2
      %v5425 = vsel %vm840, %v5422, %v5424
      %v5426 = vrot.slane %v5106, 2
      %v5427 = vrot.slane %v5107, 2
      %v5428 = vsel %vm840, %v5426, %v5427
      %v5429 = vrot.slane %v5108, 2
      %v5430 = vsel %vm840, %v5427, %v5429
      %v5431 = vrot.slane %v5109, 2
      %v5432 = vrot.slane %v5110, 2
      %v5433 = vsel %vm840, %v5431, %v5432
      %v5434 = vrot.slane %v5111, 2
      %v5435 = vsel %vm840, %v5432, %v5434
      %v5436 = vrot.slane %v5112, 2
      %v5437 = vrot.slane %v5113, 2
      %v5438 = vsel %vm840, %v5436, %v5437
      %v5439 = vrot.slane %v5114, 2
      %v5440 = vsel %vm840, %v5437, %v5439
      %v5441 = vrot.slane %v5115, 2
      %v5442 = vrot.slane %v5116, 2
      %v5443 = vsel %vm840, %v5441, %v5442
      %v5444 = vrot.slane %v5117, 2
      %v5445 = vsel %vm840, %v5442, %v5444
      %v5446 = vrot.slane %v5118, 2
      %v5447 = vrot.slane %v5119, 2
      %v5448 = vsel %vm840, %v5446, %v5447
      %v5449 = vrot.slane %v5120, 2
      %v5450 = vsel %vm840, %v5447, %v5449
      %v5451 = vrot.slane %v5121, 2
      %v5452 = vrot.slane %v5122, 2
      %v5453 = vsel %vm840, %v5451, %v5452
      %v5454 = vrot.slane %v5123, 2
      %v5455 = vsel %vm840, %v5452, %v5454
      %v5456 = vrot.slane %v5124, 2
      %v5457 = vrot.slane %v5125, 2
      %v5458 = vsel %vm840, %v5456, %v5457
      %v5459 = vrot.slane %v5126, 2
      %v5460 = vsel %vm840, %v5457, %v5459
      %v5461 = vrot.slane %v5127, 2
      %v5462 = vrot.slane %v5128, 2
      %v5463 = vsel %vm840, %v5461, %v5462
      %v5464 = vrot.slane %v5129, 2
      %v5465 = vsel %vm840, %v5462, %v5464
      %v5466 = vrot.slane %v5130, 2
      %v5467 = vrot.slane %v5131, 2
      %v5468 = vsel %vm840, %v5466, %v5467
      %v5469 = vrot.slane %v5132, 2
      %v5470 = vsel %vm840, %v5467, %v5469
      %v5471 = vrot.slane %v5133, 2
      %v5472 = vrot.slane %v5134, 2
      %v5473 = vsel %vm840, %v5471, %v5472
      %v5474 = vrot.slane %v5135, 2
      %v5475 = vsel %vm840, %v5472, %v5474
      %v5476 = vrot.slane %v5136, 2
      %v5477 = vrot.slane %v5137, 2
      %v5478 = vsel %vm840, %v5476, %v5477
      %v5479 = vrot.slane %v5138, 2
      %v5480 = vsel %vm840, %v5477, %v5479
      %5481 = vrot.lane.b32.xlu0 %v5393, 32
      %v5482 = vpop.permute.xlu0 %5481
      %5483 = vrot.lane.b32.xlu0 %v5395, 32
      %v5484 = vpop.permute.xlu0 %5483
      %5485 = vrot.lane.b32.xlu0 %v5398, 32
      %v5486 = vpop.permute.xlu0 %5485
      %5487 = vrot.lane.b32.xlu0 %v5400, 32
      %v5488 = vpop.permute.xlu0 %5487
      %5489 = vrot.lane.b32.xlu0 %v5403, 32
      %v5490 = vpop.permute.xlu0 %5489
      %5491 = vrot.lane.b32.xlu0 %v5405, 32
      %v5492 = vpop.permute.xlu0 %5491
      %5493 = vrot.lane.b32.xlu0 %v5408, 32
      %v5494 = vpop.permute.xlu0 %5493
      %5495 = vrot.lane.b32.xlu0 %v5410, 32
      %v5496 = vpop.permute.xlu0 %5495
      %5497 = vrot.lane.b32.xlu0 %v5413, 32
      %v5498 = vpop.permute.xlu0 %5497
      %5499 = vrot.lane.b32.xlu0 %v5415, 32
      %v5500 = vpop.permute.xlu0 %5499
      %5501 = vrot.lane.b32.xlu0 %v5418, 32
      %v5502 = vpop.permute.xlu0 %5501
      %5503 = vrot.lane.b32.xlu0 %v5420, 32
      %v5504 = vpop.permute.xlu0 %5503
      %5505 = vrot.lane.b32.xlu0 %v5423, 32
      %v5506 = vpop.permute.xlu0 %5505
      %5507 = vrot.lane.b32.xlu0 %v5425, 32
      %v5508 = vpop.permute.xlu0 %5507
      %5509 = vrot.lane.b32.xlu0 %v5428, 32
      %v5510 = vpop.permute.xlu0 %5509
      %5511 = vrot.lane.b32.xlu0 %v5430, 32
      %v5512 = vpop.permute.xlu0 %5511
      %5513 = vrot.lane.b32.xlu0 %v5433, 32
      %v5514 = vpop.permute.xlu0 %5513
      %5515 = vrot.lane.b32.xlu0 %v5435, 32
      %v5516 = vpop.permute.xlu0 %5515
      %5517 = vrot.lane.b32.xlu0 %v5438, 32
      %v5518 = vpop.permute.xlu0 %5517
      %5519 = vrot.lane.b32.xlu0 %v5440, 32
      %v5520 = vpop.permute.xlu0 %5519
      %5521 = vrot.lane.b32.xlu0 %v5443, 32
      %v5522 = vpop.permute.xlu0 %5521
      %5523 = vrot.lane.b32.xlu0 %v5445, 32
      %v5524 = vpop.permute.xlu0 %5523
      %5525 = vrot.lane.b32.xlu0 %v5448, 32
      %v5526 = vpop.permute.xlu0 %5525
      %5527 = vrot.lane.b32.xlu0 %v5450, 32
      %v5528 = vpop.permute.xlu0 %5527
      %5529 = vrot.lane.b32.xlu0 %v5453, 32
      %v5530 = vpop.permute.xlu0 %5529
      %5531 = vrot.lane.b32.xlu0 %v5455, 32
      %v5532 = vpop.permute.xlu0 %5531
      %5533 = vrot.lane.b32.xlu0 %v5458, 32
      %v5534 = vpop.permute.xlu0 %5533
      %5535 = vrot.lane.b32.xlu0 %v5460, 32
      %v5536 = vpop.permute.xlu0 %5535
      %5537 = vrot.lane.b32.xlu0 %v5463, 32
      %v5538 = vpop.permute.xlu0 %5537
      %5539 = vrot.lane.b32.xlu0 %v5465, 32
      %v5540 = vpop.permute.xlu0 %5539
      %5541 = vrot.lane.b32.xlu0 %v5468, 32
      %v5542 = vpop.permute.xlu0 %5541
      %5543 = vrot.lane.b32.xlu0 %v5470, 32
      %v5544 = vpop.permute.xlu0 %5543
      %5545 = vrot.lane.b32.xlu0 %v5473, 32
      %v5546 = vpop.permute.xlu0 %5545
      %5547 = vrot.lane.b32.xlu0 %v5475, 32
      %v5548 = vpop.permute.xlu0 %5547
      %5549 = vrot.lane.b32.xlu0 %v5478, 32
      %v5550 = vpop.permute.xlu0 %5549
      %5551 = vrot.lane.b32.xlu0 %v5480, 32
      %v5552 = vpop.permute.xlu0 %5551
      %v5589 = vsel %vm225, %v5085, %v5284
      %v5590 = vsel %vm225, %v5086, %v5286
      %v5591 = vsel %vm225, %v5088, %v5288
      %v5592 = vsel %vm225, %v5089, %v5290
      %v5593 = vsel %vm225, %v5091, %v5292
      %v5594 = vsel %vm225, %v5092, %v5294
      %v5595 = vsel %vm225, %v5094, %v5296
      %v5596 = vsel %vm225, %v5095, %v5298
      %v5597 = vsel %vm225, %v5097, %v5300
      %v5598 = vsel %vm225, %v5098, %v5302
      %v5599 = vsel %vm225, %v5100, %v5304
      %v5600 = vsel %vm225, %v5101, %v5306
      %v5601 = vsel %vm225, %v5103, %v5308
      %v5602 = vsel %vm225, %v5104, %v5310
      %v5603 = vsel %vm225, %v5106, %v5312
      %v5604 = vsel %vm225, %v5107, %v5314
      %v5605 = vsel %vm225, %v5109, %v5316
      %v5606 = vsel %vm225, %v5110, %v5318
      %v5607 = vsel %vm225, %v5112, %v5320
      %v5608 = vsel %vm225, %v5113, %v5322
      %v5609 = vsel %vm225, %v5115, %v5324
      %v5610 = vsel %vm225, %v5116, %v5326
      %v5611 = vsel %vm225, %v5118, %v5328
      %v5612 = vsel %vm225, %v5119, %v5330
      %v5613 = vsel %vm225, %v5121, %v5332
      %v5614 = vsel %vm225, %v5122, %v5334
      %v5615 = vsel %vm225, %v5124, %v5336
      %v5616 = vsel %vm225, %v5125, %v5338
      %v5617 = vsel %vm225, %v5127, %v5340
      %v5618 = vsel %vm225, %v5128, %v5342
      %v5619 = vsel %vm225, %v5130, %v5344
      %v5620 = vsel %vm225, %v5131, %v5346
      %v5621 = vsel %vm225, %v5133, %v5348
      %v5622 = vsel %vm225, %v5134, %v5350
      %v5623 = vsel %vm225, %v5136, %v5352
      %v5624 = vsel %vm225, %v5137, %v5354
      %v5625 = vsel %vm1075, %v5589, %v5482
      %v5626 = vsel %vm1075, %v5590, %v5484
      %v5627 = vsel %vm1075, %v5591, %v5486
      %v5628 = vsel %vm1075, %v5592, %v5488
      %v5629 = vsel %vm1075, %v5593, %v5490
      %v5630 = vsel %vm1075, %v5594, %v5492
      %v5631 = vsel %vm1075, %v5595, %v5494
      %v5632 = vsel %vm1075, %v5596, %v5496
      %v5633 = vsel %vm1075, %v5597, %v5498
      %v5634 = vsel %vm1075, %v5598, %v5500
      %v5635 = vsel %vm1075, %v5599, %v5502
      %v5636 = vsel %vm1075, %v5600, %v5504
      %v5637 = vsel %vm1075, %v5601, %v5506
      %v5638 = vsel %vm1075, %v5602, %v5508
      %v5639 = vsel %vm1075, %v5603, %v5510
      %v5640 = vsel %vm1075, %v5604, %v5512
      %v5641 = vsel %vm1075, %v5605, %v5514
      %v5642 = vsel %vm1075, %v5606, %v5516
      %v5643 = vsel %vm1075, %v5607, %v5518
      %v5644 = vsel %vm1075, %v5608, %v5520
      %v5645 = vsel %vm1075, %v5609, %v5522
      %v5646 = vsel %vm1075, %v5610, %v5524
      %v5647 = vsel %vm1075, %v5611, %v5526
      %v5648 = vsel %vm1075, %v5612, %v5528
      %v5649 = vsel %vm1075, %v5613, %v5530
      %v5650 = vsel %vm1075, %v5614, %v5532
      %v5651 = vsel %vm1075, %v5615, %v5534
      %v5652 = vsel %vm1075, %v5616, %v5536
      %v5653 = vsel %vm1075, %v5617, %v5538
      %v5654 = vsel %vm1075, %v5618, %v5540
      %v5655 = vsel %vm1075, %v5619, %v5542
      %v5656 = vsel %vm1075, %v5620, %v5544
      %v5657 = vsel %vm1075, %v5621, %v5546
      %v5658 = vsel %vm1075, %v5622, %v5548
      %v5659 = vsel %vm1075, %v5623, %v5550
      %v5660 = vsel %vm1075, %v5624, %v5552
      %s5661 = scalar_lea.vmem %s1, 432
      %v5662 = vld [vmem:[%s5661] sm:$0xff]
      %v5663 = vld [vmem:[%s5661 + $0x8] sm:$0xff]
      %v5664 = vld [vmem:[%s5661 + $0x10] sm:$0xff]
      %v5665 = vld [vmem:[%s5661 + $0x18] sm:$0xff]
      %v5666 = vld [vmem:[%s5661 + $0x20] sm:$0xff]
      %v5667 = vld [vmem:[%s5661 + $0x28] sm:$0xff]
      %s5668 = scalar_lea.vmem %s1, 480
      %v5669 = vld [vmem:[%s5668] sm:$0xff]
      %v5670 = vld [vmem:[%s5668 + $0x8] sm:$0xff]
      %v5671 = vld [vmem:[%s5668 + $0x10] sm:$0xff]
      %v5672 = vld [vmem:[%s5668 + $0x18] sm:$0xff]
      %v5673 = vld [vmem:[%s5668 + $0x20] sm:$0xff]
      %v5674 = vld [vmem:[%s5668 + $0x28] sm:$0xff]
      %v5676 = vsel %vm1125, %v5627, 0
      %v5679 = vsel %vm1125, %v5628, 0
      %v5682 = vsel %vm1125, %v5629, 0
      %v5685 = vsel %vm1125, %v5630, 0
      %v5688 = vsel %vm1125, %v5631, 0
      %v5691 = vsel %vm1125, %v5632, 0
      %v5694 = vsel %vm1125, %v5633, 0
      %v5697 = vsel %vm1125, %v5634, 0
      %v5700 = vsel %vm1125, %v5635, 0
      %v5703 = vsel %vm1125, %v5636, 0
      %v5706 = vsel %vm1125, %v5637, 0
      %v5709 = vsel %vm1125, %v5638, 0
      %v5712 = vsel %vm1125, %v5639, 0
      %v5715 = vsel %vm1125, %v5640, 0
      %v5718 = vsel %vm1125, %v5641, 0
      %v5721 = vsel %vm1125, %v5642, 0
      %v5724 = vsel %vm1125, %v5643, 0
      %v5727 = vsel %vm1125, %v5644, 0
      %v5730 = vsel %vm1125, %v5645, 0
      %v5733 = vsel %vm1125, %v5646, 0
      %v5736 = vsel %vm1125, %v5647, 0
      %v5739 = vsel %vm1125, %v5648, 0
      %v5742 = vsel %vm1125, %v5649, 0
      %v5745 = vsel %vm1125, %v5650, 0
      %v5748 = vsel %vm1125, %v5651, 0
      %v5751 = vsel %vm1125, %v5652, 0
      %v5754 = vsel %vm1125, %v5653, 0
      %v5757 = vsel %vm1125, %v5654, 0
      %v5760 = vsel %vm1125, %v5655, 0
      %v5763 = vsel %vm1125, %v5656, 0
      %v5766 = vsel %vm1125, %v5657, 0
      %v5769 = vsel %vm1125, %v5658, 0
      %5771 = vmatprep.subr.mxu0 0.0
      %5772 = vmatpush1.msra.mxu0 %v5669
      %5773 = vmatprep.subr.mxu0 0.0
      %5774 = vmatpush1.msra.mxu0 %v5670
      %5775 = vmatprep.subr.mxu0 0.0
      %5776 = vmatpush1.msra.mxu0 %v5671
      %5777 = vmatprep.subr.mxu0 0.0
      %5778 = vmatpush1.msra.mxu0 %v5672
      %5779 = vmatprep.subr.mxu0 0.0
      %5780 = vmatpush1.msra.mxu0 %v5673
      %5781 = vmatprep.subr.mxu0 0.0
      %5782 = vmatpush1.msra.mxu0 %v5674
      %5783 = vmatprep.subr.mxu0 0.0
      %5784 = vmatpush1.msra.mxu0 0.0
      %5785 = vmatprep.subr.mxu0 0.0
      %5786 = vmatpush1.msra.mxu0 0.0
      %5787 = vmatprep.subr.mxu0 0.0
      %5788 = vmatpush1.msra.mxu0 0.0
      %5789 = vmatprep.subr.mxu0 0.0
      %5790 = vmatpush1.msra.mxu0 0.0
      %5791 = vmatprep.subr.mxu0 0.0
      %5792 = vmatpush1.msra.mxu0 0.0
      %5793 = vmatprep.subr.mxu0 0.0
      %5794 = vmatpush1.msra.mxu0 0.0
      %5795 = vmatprep.subr.mxu0 0.0
      %5796 = vmatpush1.msra.mxu0 0.0
      %5797 = vmatprep.subr.mxu0 0.0
      %5798 = vmatpush1.msra.mxu0 0.0
      %5799 = vmatprep.subr.mxu0 0.0
      %5800 = vmatpush1.msra.mxu0 0.0
      %5801 = vmatprep.subr.mxu0 0.0
      %5802 = vmatpush1.msra.mxu0 0.0
      %5803 = vmatprep.subr.mxu0 0.0
      %5804 = vmatpush1.msra.mxu0 0.0
      %5805 = vmatprep.subr.mxu0 0.0
      %5806 = vmatpush1.msra.mxu0 0.0
      %5807 = vmatprep.subr.mxu0 0.0
      %5808 = vmatpush1.msra.mxu0 0.0
      %5809 = vmatprep.subr.mxu0 0.0
      %5810 = vmatpush1.msra.mxu0 0.0
      %5811 = vmatprep.subr.mxu0 0.0
      %5812 = vmatpush1.msra.mxu0 0.0
      %5813 = vmatprep.subr.mxu0 0.0
      %5814 = vmatpush1.msra.mxu0 0.0
      %5815 = vmatprep.subr.mxu0 0.0
      %5816 = vmatpush1.msra.mxu0 0.0
      %5817 = vmatprep.subr.mxu0 0.0
      %5818 = vmatpush1.msra.mxu0 0.0
      %5819 = vmatprep.subr.mxu0 0.0
      %5820 = vmatpush1.msra.mxu0 0.0
      %5821 = vmatprep.subr.mxu0 0.0
      %5822 = vmatpush1.msra.mxu0 0.0
      %5823 = vmatprep.subr.mxu0 0.0
      %5824 = vmatpush1.msra.mxu0 0.0
      %5825 = vmatprep.subr.mxu0 0.0
      %5826 = vmatpush1.msra.mxu0 0.0
      %5827 = vmatprep.subr.mxu0 0.0
      %5828 = vmatpush1.msra.mxu0 0.0
      %5829 = vmatprep.subr.mxu0 0.0
      %5830 = vmatpush1.msra.mxu0 0.0
      %5831 = vmatprep.subr.mxu0 0.0
      %5832 = vmatpush1.msra.mxu0 0.0
      %5833 = vmatprep.subr.mxu0 0.0
      %5834 = vmatpush1.msra.mxu0 0.0
      %5835 = vmatprep.mubr.f32.mxu0 0.0
      %5836 = vmatmul.mubr.f32.gmra.mrb[0].mxu0 %v5676
      %v5837 = vpop.f32.mrb[0].mxu0
      %v5838 = vadd.f32 0.0, %v5837
      %v5839 = vpop.f32.mrb[0].mxu0
      %5840 = vmatprep.mubr.f32.mxu0 0.0
      %5841 = vmatmul.mubr.f32.gmra.mrb[0].mxu0 %v5679
      %v5842 = vpop.f32.mrb[0].mxu0
      %v5843 = vadd.f32 0.0, %v5842
      %v5844 = vpop.f32.mrb[0].mxu0
      %5845 = vmatprep.mubr.f32.mxu0 0.0
      %5846 = vmatmul.mubr.f32.gmra.mrb[0].mxu0 %v5682
      %v5847 = vpop.f32.mrb[0].mxu0
      %v5848 = vadd.f32 0.0, %v5847
      %v5849 = vpop.f32.mrb[0].mxu0
      %5850 = vmatprep.mubr.f32.mxu0 0.0
      %5851 = vmatmul.mubr.f32.gmra.mrb[0].mxu0 %v5685
      %v5852 = vpop.f32.mrb[0].mxu0
      %v5853 = vadd.f32 0.0, %v5852
      %v5854 = vpop.f32.mrb[0].mxu0
      %5855 = vmatprep.mubr.f32.mxu0 0.0
      %5856 = vmatmul.mubr.f32.gmra.mrb[0].mxu0 %v5688
      %v5857 = vpop.f32.mrb[0].mxu0
      %v5858 = vadd.f32 0.0, %v5857
      %v5859 = vpop.f32.mrb[0].mxu0
      %5860 = vmatprep.mubr.f32.mxu0 0.0
      %5861 = vmatmul.mubr.f32.gmra.mrb[0].mxu0 %v5691
      %v5862 = vpop.f32.mrb[0].mxu0
      %v5863 = vadd.f32 0.0, %v5862
      %v5864 = vpop.f32.mrb[0].mxu0
      %5865 = vmatprep.mubr.f32.mxu0 0.0
      %5866 = vmatmul.mubr.f32.gmra.mrb[0].mxu0 %v5694
      %v5867 = vpop.f32.mrb[0].mxu0
      %v5868 = vadd.f32 0.0, %v5867
      %v5869 = vpop.f32.mrb[0].mxu0
      %5870 = vmatprep.mubr.f32.mxu0 0.0
      %5871 = vmatmul.mubr.f32.gmra.mrb[0].mxu0 %v5697
      %v5872 = vpop.f32.mrb[0].mxu0
      %v5873 = vadd.f32 0.0, %v5872
      %v5874 = vpop.f32.mrb[0].mxu0
      %5875 = vmatprep.mubr.f32.mxu0 0.0
      %5876 = vmatmul.mubr.f32.gmra.mrb[0].mxu0 %v5700
      %v5877 = vpop.f32.mrb[0].mxu0
      %v5878 = vadd.f32 0.0, %v5877
      %v5879 = vpop.f32.mrb[0].mxu0
      %5880 = vmatprep.mubr.f32.mxu0 0.0
      %5881 = vmatmul.mubr.f32.gmra.mrb[0].mxu0 %v5703
      %v5882 = vpop.f32.mrb[0].mxu0
      %v5883 = vadd.f32 0.0, %v5882
      %v5884 = vpop.f32.mrb[0].mxu0
      %5885 = vmatprep.mubr.f32.mxu0 0.0
      %5886 = vmatmul.mubr.f32.gmra.mrb[0].mxu0 %v5706
      %v5887 = vpop.f32.mrb[0].mxu0
      %v5888 = vadd.f32 0.0, %v5887
      %v5889 = vpop.f32.mrb[0].mxu0
      %5890 = vmatprep.mubr.f32.mxu0 0.0
      %5891 = vmatmul.mubr.f32.gmra.mrb[0].mxu0 %v5709
      %v5892 = vpop.f32.mrb[0].mxu0
      %v5893 = vadd.f32 0.0, %v5892
      %v5894 = vpop.f32.mrb[0].mxu0
      %5895 = vmatprep.mubr.f32.mxu0 0.0
      %5896 = vmatmul.mubr.f32.gmra.mrb[0].mxu0 %v5712
      %v5897 = vpop.f32.mrb[0].mxu0
      %v5898 = vadd.f32 0.0, %v5897
      %v5899 = vpop.f32.mrb[0].mxu0
      %5900 = vmatprep.mubr.f32.mxu0 0.0
      %5901 = vmatmul.mubr.f32.gmra.mrb[0].mxu0 %v5715
      %v5902 = vpop.f32.mrb[0].mxu0
      %v5903 = vadd.f32 0.0, %v5902
      %v5904 = vpop.f32.mrb[0].mxu0
      %5905 = vmatprep.mubr.f32.mxu0 0.0
      %5906 = vmatmul.mubr.f32.gmra.mrb[0].mxu0 %v5718
      %v5907 = vpop.f32.mrb[0].mxu0
      %v5908 = vadd.f32 0.0, %v5907
      %v5909 = vpop.f32.mrb[0].mxu0
      %5910 = vmatprep.mubr.f32.mxu0 0.0
      %5911 = vmatmul.mubr.f32.gmra.mrb[0].mxu0 %v5721
      %v5912 = vpop.f32.mrb[0].mxu0
      %v5913 = vadd.f32 0.0, %v5912
      %v5914 = vpop.f32.mrb[0].mxu0
      %5915 = vmatprep.mubr.f32.mxu0 0.0
      %5916 = vmatmul.mubr.f32.gmra.mrb[0].mxu0 %v5724
      %v5917 = vpop.f32.mrb[0].mxu0
      %v5918 = vadd.f32 0.0, %v5917
      %v5919 = vpop.f32.mrb[0].mxu0
      %5920 = vmatprep.mubr.f32.mxu0 0.0
      %5921 = vmatmul.mubr.f32.gmra.mrb[0].mxu0 %v5727
      %v5922 = vpop.f32.mrb[0].mxu0
      %v5923 = vadd.f32 0.0, %v5922
      %v5924 = vpop.f32.mrb[0].mxu0
      %5925 = vmatprep.mubr.f32.mxu0 0.0
      %5926 = vmatmul.mubr.f32.gmra.mrb[0].mxu0 %v5730
      %v5927 = vpop.f32.mrb[0].mxu0
      %v5928 = vadd.f32 0.0, %v5927
      %v5929 = vpop.f32.mrb[0].mxu0
      %5930 = vmatprep.mubr.f32.mxu0 0.0
      %5931 = vmatmul.mubr.f32.gmra.mrb[0].mxu0 %v5733
      %v5932 = vpop.f32.mrb[0].mxu0
      %v5933 = vadd.f32 0.0, %v5932
      %v5934 = vpop.f32.mrb[0].mxu0
      %5935 = vmatprep.mubr.f32.mxu0 0.0
      %5936 = vmatmul.mubr.f32.gmra.mrb[0].mxu0 %v5736
      %v5937 = vpop.f32.mrb[0].mxu0
      %v5938 = vadd.f32 0.0, %v5937
      %v5939 = vpop.f32.mrb[0].mxu0
      %5940 = vmatprep.mubr.f32.mxu0 0.0
      %5941 = vmatmul.mubr.f32.gmra.mrb[0].mxu0 %v5739
      %v5942 = vpop.f32.mrb[0].mxu0
      %v5943 = vadd.f32 0.0, %v5942
      %v5944 = vpop.f32.mrb[0].mxu0
      %5945 = vmatprep.mubr.f32.mxu0 0.0
      %5946 = vmatmul.mubr.f32.gmra.mrb[0].mxu0 %v5742
      %v5947 = vpop.f32.mrb[0].mxu0
      %v5948 = vadd.f32 0.0, %v5947
      %v5949 = vpop.f32.mrb[0].mxu0
      %5950 = vmatprep.mubr.f32.mxu0 0.0
      %5951 = vmatmul.mubr.f32.gmra.mrb[0].mxu0 %v5745
      %v5952 = vpop.f32.mrb[0].mxu0
      %v5953 = vadd.f32 0.0, %v5952
      %v5954 = vpop.f32.mrb[0].mxu0
      %5955 = vmatprep.mubr.f32.mxu0 0.0
      %5956 = vmatmul.mubr.f32.gmra.mrb[0].mxu0 %v5748
      %v5957 = vpop.f32.mrb[0].mxu0
      %v5958 = vadd.f32 0.0, %v5957
      %v5959 = vpop.f32.mrb[0].mxu0
      %5960 = vmatprep.mubr.f32.mxu0 0.0
      %5961 = vmatmul.mubr.f32.gmra.mrb[0].mxu0 %v5751
      %v5962 = vpop.f32.mrb[0].mxu0
      %v5963 = vadd.f32 0.0, %v5962
      %v5964 = vpop.f32.mrb[0].mxu0
      %5965 = vmatprep.mubr.f32.mxu0 0.0
      %5966 = vmatmul.mubr.f32.gmra.mrb[0].mxu0 %v5754
      %v5967 = vpop.f32.mrb[0].mxu0
      %v5968 = vadd.f32 0.0, %v5967
      %v5969 = vpop.f32.mrb[0].mxu0
      %5970 = vmatprep.mubr.f32.mxu0 0.0
      %5971 = vmatmul.mubr.f32.gmra.mrb[0].mxu0 %v5757
      %v5972 = vpop.f32.mrb[0].mxu0
      %v5973 = vadd.f32 0.0, %v5972
      %v5974 = vpop.f32.mrb[0].mxu0
      %5975 = vmatprep.mubr.f32.mxu0 0.0
      %5976 = vmatmul.mubr.f32.gmra.mrb[0].mxu0 %v5760
      %v5977 = vpop.f32.mrb[0].mxu0
      %v5978 = vadd.f32 0.0, %v5977
      %v5979 = vpop.f32.mrb[0].mxu0
      %5980 = vmatprep.mubr.f32.mxu0 0.0
      %5981 = vmatmul.mubr.f32.gmra.mrb[0].mxu0 %v5763
      %v5982 = vpop.f32.mrb[0].mxu0
      %v5983 = vadd.f32 0.0, %v5982
      %v5984 = vpop.f32.mrb[0].mxu0
      %5985 = vmatprep.mubr.f32.mxu0 0.0
      %5986 = vmatmul.mubr.f32.gmra.mrb[0].mxu0 %v5766
      %v5987 = vpop.f32.mrb[0].mxu0
      %v5988 = vadd.f32 0.0, %v5987
      %v5989 = vpop.f32.mrb[0].mxu0
      %5990 = vmatprep.mubr.f32.mxu0 0.0
      %5991 = vmatmul.mubr.f32.gmra.mrb[0].mxu0 %v5769
      %v5992 = vpop.f32.mrb[0].mxu0
      %v5993 = vadd.f32 0.0, %v5992
      %v5994 = vpop.f32.mrb[0].mxu0
      %5995 = vdwg.mxu0
      %v5997 = vsel %vm1125, %v5625, 0
      %v6000 = vsel %vm1125, %v5626, 0
      %6002 = vmatprep.subr.mxu0 0.0
      %6003 = vmatpush1.msra.mxu0 %v5662
      %6004 = vmatprep.subr.mxu0 0.0
      %6005 = vmatpush1.msra.mxu0 %v5663
      %6006 = vmatprep.subr.mxu0 0.0
      %6007 = vmatpush1.msra.mxu0 %v5664
      %6008 = vmatprep.subr.mxu0 0.0
      %6009 = vmatpush1.msra.mxu0 %v5665
      %6010 = vmatprep.subr.mxu0 0.0
      %6011 = vmatpush1.msra.mxu0 %v5666
      %6012 = vmatprep.subr.mxu0 0.0
      %6013 = vmatpush1.msra.mxu0 %v5667
      %6014 = vmatprep.subr.mxu0 0.0
      %6015 = vmatpush1.msra.mxu0 0.0
      %6016 = vmatprep.subr.mxu0 0.0
      %6017 = vmatpush1.msra.mxu0 0.0
      %6018 = vmatprep.subr.mxu0 0.0
      %6019 = vmatpush1.msra.mxu0 0.0
      %6020 = vmatprep.subr.mxu0 0.0
      %6021 = vmatpush1.msra.mxu0 0.0
      %6022 = vmatprep.subr.mxu0 0.0
      %6023 = vmatpush1.msra.mxu0 0.0
      %6024 = vmatprep.subr.mxu0 0.0
      %6025 = vmatpush1.msra.mxu0 0.0
      %6026 = vmatprep.subr.mxu0 0.0
      %6027 = vmatpush1.msra.mxu0 0.0
      %6028 = vmatprep.subr.mxu0 0.0
      %6029 = vmatpush1.msra.mxu0 0.0
      %6030 = vmatprep.subr.mxu0 0.0
      %6031 = vmatpush1.msra.mxu0 0.0
      %6032 = vmatprep.subr.mxu0 0.0
      %6033 = vmatpush1.msra.mxu0 0.0
      %6034 = vmatprep.subr.mxu0 0.0
      %6035 = vmatpush1.msra.mxu0 0.0
      %6036 = vmatprep.subr.mxu0 0.0
      %6037 = vmatpush1.msra.mxu0 0.0
      %6038 = vmatprep.subr.mxu0 0.0
      %6039 = vmatpush1.msra.mxu0 0.0
      %6040 = vmatprep.subr.mxu0 0.0
      %6041 = vmatpush1.msra.mxu0 0.0
      %6042 = vmatprep.subr.mxu0 0.0
      %6043 = vmatpush1.msra.mxu0 0.0
      %6044 = vmatprep.subr.mxu0 0.0
      %6045 = vmatpush1.msra.mxu0 0.0
      %6046 = vmatprep.subr.mxu0 0.0
      %6047 = vmatpush1.msra.mxu0 0.0
      %6048 = vmatprep.subr.mxu0 0.0
      %6049 = vmatpush1.msra.mxu0 0.0
      %6050 = vmatprep.subr.mxu0 0.0
      %6051 = vmatpush1.msra.mxu0 0.0
      %6052 = vmatprep.subr.mxu0 0.0
      %6053 = vmatpush1.msra.mxu0 0.0
      %6054 = vmatprep.subr.mxu0 0.0
      %6055 = vmatpush1.msra.mxu0 0.0
      %6056 = vmatprep.subr.mxu0 0.0
      %6057 = vmatpush1.msra.mxu0 0.0
      %6058 = vmatprep.subr.mxu0 0.0
      %6059 = vmatpush1.msra.mxu0 0.0
      %6060 = vmatprep.subr.mxu0 0.0
      %6061 = vmatpush1.msra.mxu0 0.0
      %6062 = vmatprep.subr.mxu0 0.0
      %6063 = vmatpush1.msra.mxu0 0.0
      %6064 = vmatprep.subr.mxu0 0.0
      %6065 = vmatpush1.msra.mxu0 0.0
      %6066 = vmatprep.mubr.f32.mxu0 0.0
      %6067 = vmatmul.mubr.f32.gmra.mrb[0].mxu0 %v5997
      %v6068 = vpop.f32.mrb[0].mxu0
      %v6069 = vadd.f32 %v5838, %v6068
      %v6070 = vpop.f32.mrb[0].mxu0
      %6071 = vmatprep.mubr.f32.mxu0 0.0
      %6072 = vmatmul.mubr.f32.gmra.mrb[0].mxu0 %v6000
      %v6073 = vpop.f32.mrb[0].mxu0
      %v6074 = vadd.f32 %v5843, %v6073
      %v6075 = vpop.f32.mrb[0].mxu0
      %6076 = vmatprep.mubr.f32.mxu0 0.0
      %6077 = vmatmul.mubr.f32.gmra.mrb[0].mxu0 %v5676
      %v6078 = vpop.f32.mrb[0].mxu0
      %v6079 = vadd.f32 %v5848, %v6078
      %v6080 = vpop.f32.mrb[0].mxu0
      %6081 = vmatprep.mubr.f32.mxu0 0.0
      %6082 = vmatmul.mubr.f32.gmra.mrb[0].mxu0 %v5679
      %v6083 = vpop.f32.mrb[0].mxu0
      %v6084 = vadd.f32 %v5853, %v6083
      %v6085 = vpop.f32.mrb[0].mxu0
      %6086 = vmatprep.mubr.f32.mxu0 0.0
      %6087 = vmatmul.mubr.f32.gmra.mrb[0].mxu0 %v5682
      %v6088 = vpop.f32.mrb[0].mxu0
      %v6089 = vadd.f32 %v5858, %v6088
      %v6090 = vpop.f32.mrb[0].mxu0
      %6091 = vmatprep.mubr.f32.mxu0 0.0
      %6092 = vmatmul.mubr.f32.gmra.mrb[0].mxu0 %v5685
      %v6093 = vpop.f32.mrb[0].mxu0
      %v6094 = vadd.f32 %v5863, %v6093
      %v6095 = vpop.f32.mrb[0].mxu0
      %6096 = vmatprep.mubr.f32.mxu0 0.0
      %6097 = vmatmul.mubr.f32.gmra.mrb[0].mxu0 %v5688
      %v6098 = vpop.f32.mrb[0].mxu0
      %v6099 = vadd.f32 %v5868, %v6098
      %v6100 = vpop.f32.mrb[0].mxu0
      %6101 = vmatprep.mubr.f32.mxu0 0.0
      %6102 = vmatmul.mubr.f32.gmra.mrb[0].mxu0 %v5691
      %v6103 = vpop.f32.mrb[0].mxu0
      %v6104 = vadd.f32 %v5873, %v6103
      %v6105 = vpop.f32.mrb[0].mxu0
      %6106 = vmatprep.mubr.f32.mxu0 0.0
      %6107 = vmatmul.mubr.f32.gmra.mrb[0].mxu0 %v5694
      %v6108 = vpop.f32.mrb[0].mxu0
      %v6109 = vadd.f32 %v5878, %v6108
      %v6110 = vpop.f32.mrb[0].mxu0
      %6111 = vmatprep.mubr.f32.mxu0 0.0
      %6112 = vmatmul.mubr.f32.gmra.mrb[0].mxu0 %v5697
      %v6113 = vpop.f32.mrb[0].mxu0
      %v6114 = vadd.f32 %v5883, %v6113
      %v6115 = vpop.f32.mrb[0].mxu0
      %6116 = vmatprep.mubr.f32.mxu0 0.0
      %6117 = vmatmul.mubr.f32.gmra.mrb[0].mxu0 %v5700
      %v6118 = vpop.f32.mrb[0].mxu0
      %v6119 = vadd.f32 %v5888, %v6118
      %v6120 = vpop.f32.mrb[0].mxu0
      %6121 = vmatprep.mubr.f32.mxu0 0.0
      %6122 = vmatmul.mubr.f32.gmra.mrb[0].mxu0 %v5703
      %v6123 = vpop.f32.mrb[0].mxu0
      %v6124 = vadd.f32 %v5893, %v6123
      %v6125 = vpop.f32.mrb[0].mxu0
      %6126 = vmatprep.mubr.f32.mxu0 0.0
      %6127 = vmatmul.mubr.f32.gmra.mrb[0].mxu0 %v5706
      %v6128 = vpop.f32.mrb[0].mxu0
      %v6129 = vadd.f32 %v5898, %v6128
      %v6130 = vpop.f32.mrb[0].mxu0
      %6131 = vmatprep.mubr.f32.mxu0 0.0
      %6132 = vmatmul.mubr.f32.gmra.mrb[0].mxu0 %v5709
      %v6133 = vpop.f32.mrb[0].mxu0
      %v6134 = vadd.f32 %v5903, %v6133
      %v6135 = vpop.f32.mrb[0].mxu0
      %6136 = vmatprep.mubr.f32.mxu0 0.0
      %6137 = vmatmul.mubr.f32.gmra.mrb[0].mxu0 %v5712
      %v6138 = vpop.f32.mrb[0].mxu0
      %v6139 = vadd.f32 %v5908, %v6138
      %v6140 = vpop.f32.mrb[0].mxu0
      %6141 = vmatprep.mubr.f32.mxu0 0.0
      %6142 = vmatmul.mubr.f32.gmra.mrb[0].mxu0 %v5715
      %v6143 = vpop.f32.mrb[0].mxu0
      %v6144 = vadd.f32 %v5913, %v6143
      %v6145 = vpop.f32.mrb[0].mxu0
      %6146 = vmatprep.mubr.f32.mxu0 0.0
      %6147 = vmatmul.mubr.f32.gmra.mrb[0].mxu0 %v5718
      %v6148 = vpop.f32.mrb[0].mxu0
      %v6149 = vadd.f32 %v5918, %v6148
      %v6150 = vpop.f32.mrb[0].mxu0
      %6151 = vmatprep.mubr.f32.mxu0 0.0
      %6152 = vmatmul.mubr.f32.gmra.mrb[0].mxu0 %v5721
      %v6153 = vpop.f32.mrb[0].mxu0
      %v6154 = vadd.f32 %v5923, %v6153
      %v6155 = vpop.f32.mrb[0].mxu0
      %6156 = vmatprep.mubr.f32.mxu0 0.0
      %6157 = vmatmul.mubr.f32.gmra.mrb[0].mxu0 %v5724
      %v6158 = vpop.f32.mrb[0].mxu0
      %v6159 = vadd.f32 %v5928, %v6158
      %v6160 = vpop.f32.mrb[0].mxu0
      %6161 = vmatprep.mubr.f32.mxu0 0.0
      %6162 = vmatmul.mubr.f32.gmra.mrb[0].mxu0 %v5727
      %v6163 = vpop.f32.mrb[0].mxu0
      %v6164 = vadd.f32 %v5933, %v6163
      %v6165 = vpop.f32.mrb[0].mxu0
      %6166 = vmatprep.mubr.f32.mxu0 0.0
      %6167 = vmatmul.mubr.f32.gmra.mrb[0].mxu0 %v5730
      %v6168 = vpop.f32.mrb[0].mxu0
      %v6169 = vadd.f32 %v5938, %v6168
      %v6170 = vpop.f32.mrb[0].mxu0
      %6171 = vmatprep.mubr.f32.mxu0 0.0
      %6172 = vmatmul.mubr.f32.gmra.mrb[0].mxu0 %v5733
      %v6173 = vpop.f32.mrb[0].mxu0
      %v6174 = vadd.f32 %v5943, %v6173
      %v6175 = vpop.f32.mrb[0].mxu0
      %6176 = vmatprep.mubr.f32.mxu0 0.0
      %6177 = vmatmul.mubr.f32.gmra.mrb[0].mxu0 %v5736
      %v6178 = vpop.f32.mrb[0].mxu0
      %v6179 = vadd.f32 %v5948, %v6178
      %v6180 = vpop.f32.mrb[0].mxu0
      %6181 = vmatprep.mubr.f32.mxu0 0.0
      %6182 = vmatmul.mubr.f32.gmra.mrb[0].mxu0 %v5739
      %v6183 = vpop.f32.mrb[0].mxu0
      %v6184 = vadd.f32 %v5953, %v6183
      %v6185 = vpop.f32.mrb[0].mxu0
      %6186 = vmatprep.mubr.f32.mxu0 0.0
      %6187 = vmatmul.mubr.f32.gmra.mrb[0].mxu0 %v5742
      %v6188 = vpop.f32.mrb[0].mxu0
      %v6189 = vadd.f32 %v5958, %v6188
      %v6190 = vpop.f32.mrb[0].mxu0
      %6191 = vmatprep.mubr.f32.mxu0 0.0
      %6192 = vmatmul.mubr.f32.gmra.mrb[0].mxu0 %v5745
      %v6193 = vpop.f32.mrb[0].mxu0
      %v6194 = vadd.f32 %v5963, %v6193
      %v6195 = vpop.f32.mrb[0].mxu0
      %6196 = vmatprep.mubr.f32.mxu0 0.0
      %6197 = vmatmul.mubr.f32.gmra.mrb[0].mxu0 %v5748
      %v6198 = vpop.f32.mrb[0].mxu0
      %v6199 = vadd.f32 %v5968, %v6198
      %v6200 = vpop.f32.mrb[0].mxu0
      %6201 = vmatprep.mubr.f32.mxu0 0.0
      %6202 = vmatmul.mubr.f32.gmra.mrb[0].mxu0 %v5751
      %v6203 = vpop.f32.mrb[0].mxu0
      %v6204 = vadd.f32 %v5973, %v6203
      %v6205 = vpop.f32.mrb[0].mxu0
      %6206 = vmatprep.mubr.f32.mxu0 0.0
      %6207 = vmatmul.mubr.f32.gmra.mrb[0].mxu0 %v5754
      %v6208 = vpop.f32.mrb[0].mxu0
      %v6209 = vadd.f32 %v5978, %v6208
      %v6210 = vpop.f32.mrb[0].mxu0
      %6211 = vmatprep.mubr.f32.mxu0 0.0
      %6212 = vmatmul.mubr.f32.gmra.mrb[0].mxu0 %v5757
      %v6213 = vpop.f32.mrb[0].mxu0
      %v6214 = vadd.f32 %v5983, %v6213
      %v6215 = vpop.f32.mrb[0].mxu0
      %6216 = vmatprep.mubr.f32.mxu0 0.0
      %6217 = vmatmul.mubr.f32.gmra.mrb[0].mxu0 %v5760
      %v6218 = vpop.f32.mrb[0].mxu0
      %v6219 = vadd.f32 %v5988, %v6218
      %v6220 = vpop.f32.mrb[0].mxu0
      %6221 = vmatprep.mubr.f32.mxu0 0.0
      %6222 = vmatmul.mubr.f32.gmra.mrb[0].mxu0 %v5763
      %v6223 = vpop.f32.mrb[0].mxu0
      %v6224 = vadd.f32 %v5993, %v6223
      %v6225 = vpop.f32.mrb[0].mxu0
      %6226 = vdwg.mxu0
      %s6227 = scalar_lea.vmem %s1, 528
      %v6228 = vld [vmem:[%s6227] sm:$0xff]
      %v6229 = vld [vmem:[%s6227 + $0x8] sm:$0xff]
      %v6230 = vld [vmem:[%s6227 + $0x10] sm:$0xff]
      %v6231 = vld [vmem:[%s6227 + $0x18] sm:$0xff]
      %v6232 = vld [vmem:[%s6227 + $0x20] sm:$0xff]
      %v6233 = vld [vmem:[%s6227 + $0x28] sm:$0xff]
      %v6235 = vsel %vm1125, %v5659, 0
      %v6238 = vsel %vm1125, %v5660, 0
      %6240 = vmatprep.subr.mxu0 0.0
      %6241 = vmatpush1.msra.mxu0 %v6228
      %6242 = vmatprep.subr.mxu0 0.0
      %6243 = vmatpush1.msra.mxu0 %v6229
      %6244 = vmatprep.subr.mxu0 0.0
      %6245 = vmatpush1.msra.mxu0 %v6230
      %6246 = vmatprep.subr.mxu0 0.0
      %6247 = vmatpush1.msra.mxu0 %v6231
      %6248 = vmatprep.subr.mxu0 0.0
      %6249 = vmatpush1.msra.mxu0 %v6232
      %6250 = vmatprep.subr.mxu0 0.0
      %6251 = vmatpush1.msra.mxu0 %v6233
      %6252 = vmatprep.subr.mxu0 0.0
      %6253 = vmatpush1.msra.mxu0 0.0
      %6254 = vmatprep.subr.mxu0 0.0
      %6255 = vmatpush1.msra.mxu0 0.0
      %6256 = vmatprep.subr.mxu0 0.0
      %6257 = vmatpush1.msra.mxu0 0.0
      %6258 = vmatprep.subr.mxu0 0.0
      %6259 = vmatpush1.msra.mxu0 0.0
      %6260 = vmatprep.subr.mxu0 0.0
      %6261 = vmatpush1.msra.mxu0 0.0
      %6262 = vmatprep.subr.mxu0 0.0
      %6263 = vmatpush1.msra.mxu0 0.0
      %6264 = vmatprep.subr.mxu0 0.0
      %6265 = vmatpush1.msra.mxu0 0.0
      %6266 = vmatprep.subr.mxu0 0.0
      %6267 = vmatpush1.msra.mxu0 0.0
      %6268 = vmatprep.subr.mxu0 0.0
      %6269 = vmatpush1.msra.mxu0 0.0
      %6270 = vmatprep.subr.mxu0 0.0
      %6271 = vmatpush1.msra.mxu0 0.0
      %6272 = vmatprep.subr.mxu0 0.0
      %6273 = vmatpush1.msra.mxu0 0.0
      %6274 = vmatprep.subr.mxu0 0.0
      %6275 = vmatpush1.msra.mxu0 0.0
      %6276 = vmatprep.subr.mxu0 0.0
      %6277 = vmatpush1.msra.mxu0 0.0
      %6278 = vmatprep.subr.mxu0 0.0
      %6279 = vmatpush1.msra.mxu0 0.0
      %6280 = vmatprep.subr.mxu0 0.0
      %6281 = vmatpush1.msra.mxu0 0.0
      %6282 = vmatprep.subr.mxu0 0.0
      %6283 = vmatpush1.msra.mxu0 0.0
      %6284 = vmatprep.subr.mxu0 0.0
      %6285 = vmatpush1.msra.mxu0 0.0
      %6286 = vmatprep.subr.mxu0 0.0
      %6287 = vmatpush1.msra.mxu0 0.0
      %6288 = vmatprep.subr.mxu0 0.0
      %6289 = vmatpush1.msra.mxu0 0.0
      %6290 = vmatprep.subr.mxu0 0.0
      %6291 = vmatpush1.msra.mxu0 0.0
      %6292 = vmatprep.subr.mxu0 0.0
      %6293 = vmatpush1.msra.mxu0 0.0
      %6294 = vmatprep.subr.mxu0 0.0
      %6295 = vmatpush1.msra.mxu0 0.0
      %6296 = vmatprep.subr.mxu0 0.0
      %6297 = vmatpush1.msra.mxu0 0.0
      %6298 = vmatprep.subr.mxu0 0.0
      %6299 = vmatpush1.msra.mxu0 0.0
      %6300 = vmatprep.subr.mxu0 0.0
      %6301 = vmatpush1.msra.mxu0 0.0
      %6302 = vmatprep.subr.mxu0 0.0
      %6303 = vmatpush1.msra.mxu0 0.0
      %6304 = vmatprep.mubr.f32.mxu0 0.0
      %6305 = vmatmul.mubr.f32.gmra.mrb[0].mxu0 %v5682
      %v6306 = vpop.f32.mrb[0].mxu0
      %v6307 = vadd.f32 0.0, %v6306
      %v6308 = vpop.f32.mrb[0].mxu0
      %6309 = vmatprep.mubr.f32.mxu0 0.0
      %6310 = vmatmul.mubr.f32.gmra.mrb[0].mxu0 %v5685
      %v6311 = vpop.f32.mrb[0].mxu0
      %v6312 = vadd.f32 0.0, %v6311
      %v6313 = vpop.f32.mrb[0].mxu0
      %6314 = vmatprep.mubr.f32.mxu0 0.0
      %6315 = vmatmul.mubr.f32.gmra.mrb[0].mxu0 %v5688
      %v6316 = vpop.f32.mrb[0].mxu0
      %v6317 = vadd.f32 0.0, %v6316
      %v6318 = vpop.f32.mrb[0].mxu0
      %6319 = vmatprep.mubr.f32.mxu0 0.0
      %6320 = vmatmul.mubr.f32.gmra.mrb[0].mxu0 %v5691
      %v6321 = vpop.f32.mrb[0].mxu0
      %v6322 = vadd.f32 0.0, %v6321
      %v6323 = vpop.f32.mrb[0].mxu0
      %6324 = vmatprep.mubr.f32.mxu0 0.0
      %6325 = vmatmul.mubr.f32.gmra.mrb[0].mxu0 %v5694
      %v6326 = vpop.f32.mrb[0].mxu0
      %v6327 = vadd.f32 0.0, %v6326
      %v6328 = vpop.f32.mrb[0].mxu0
      %6329 = vmatprep.mubr.f32.mxu0 0.0
      %6330 = vmatmul.mubr.f32.gmra.mrb[0].mxu0 %v5697
      %v6331 = vpop.f32.mrb[0].mxu0
      %v6332 = vadd.f32 0.0, %v6331
      %v6333 = vpop.f32.mrb[0].mxu0
      %6334 = vmatprep.mubr.f32.mxu0 0.0
      %6335 = vmatmul.mubr.f32.gmra.mrb[0].mxu0 %v5700
      %v6336 = vpop.f32.mrb[0].mxu0
      %v6337 = vadd.f32 0.0, %v6336
      %v6338 = vpop.f32.mrb[0].mxu0
      %6339 = vmatprep.mubr.f32.mxu0 0.0
      %6340 = vmatmul.mubr.f32.gmra.mrb[0].mxu0 %v5703
      %v6341 = vpop.f32.mrb[0].mxu0
      %v6342 = vadd.f32 0.0, %v6341
      %v6343 = vpop.f32.mrb[0].mxu0
      %6344 = vmatprep.mubr.f32.mxu0 0.0
      %6345 = vmatmul.mubr.f32.gmra.mrb[0].mxu0 %v5706
      %v6346 = vpop.f32.mrb[0].mxu0
      %v6347 = vadd.f32 0.0, %v6346
      %v6348 = vpop.f32.mrb[0].mxu0
      %6349 = vmatprep.mubr.f32.mxu0 0.0
      %6350 = vmatmul.mubr.f32.gmra.mrb[0].mxu0 %v5709
      %v6351 = vpop.f32.mrb[0].mxu0
      %v6352 = vadd.f32 0.0, %v6351
      %v6353 = vpop.f32.mrb[0].mxu0
      %6354 = vmatprep.mubr.f32.mxu0 0.0
      %6355 = vmatmul.mubr.f32.gmra.mrb[0].mxu0 %v5712
      %v6356 = vpop.f32.mrb[0].mxu0
      %v6357 = vadd.f32 0.0, %v6356
      %v6358 = vpop.f32.mrb[0].mxu0
      %6359 = vmatprep.mubr.f32.mxu0 0.0
      %6360 = vmatmul.mubr.f32.gmra.mrb[0].mxu0 %v5715
      %v6361 = vpop.f32.mrb[0].mxu0
      %v6362 = vadd.f32 0.0, %v6361
      %v6363 = vpop.f32.mrb[0].mxu0
      %6364 = vmatprep.mubr.f32.mxu0 0.0
      %6365 = vmatmul.mubr.f32.gmra.mrb[0].mxu0 %v5718
      %v6366 = vpop.f32.mrb[0].mxu0
      %v6367 = vadd.f32 0.0, %v6366
      %v6368 = vpop.f32.mrb[0].mxu0
      %6369 = vmatprep.mubr.f32.mxu0 0.0
      %6370 = vmatmul.mubr.f32.gmra.mrb[0].mxu0 %v5721
      %v6371 = vpop.f32.mrb[0].mxu0
      %v6372 = vadd.f32 0.0, %v6371
      %v6373 = vpop.f32.mrb[0].mxu0
      %6374 = vmatprep.mubr.f32.mxu0 0.0
      %6375 = vmatmul.mubr.f32.gmra.mrb[0].mxu0 %v5724
      %v6376 = vpop.f32.mrb[0].mxu0
      %v6377 = vadd.f32 0.0, %v6376
      %v6378 = vpop.f32.mrb[0].mxu0
      %6379 = vmatprep.mubr.f32.mxu0 0.0
      %6380 = vmatmul.mubr.f32.gmra.mrb[0].mxu0 %v5727
      %v6381 = vpop.f32.mrb[0].mxu0
      %v6382 = vadd.f32 0.0, %v6381
      %v6383 = vpop.f32.mrb[0].mxu0
      %6384 = vmatprep.mubr.f32.mxu0 0.0
      %6385 = vmatmul.mubr.f32.gmra.mrb[0].mxu0 %v5730
      %v6386 = vpop.f32.mrb[0].mxu0
      %v6387 = vadd.f32 0.0, %v6386
      %v6388 = vpop.f32.mrb[0].mxu0
      %6389 = vmatprep.mubr.f32.mxu0 0.0
      %6390 = vmatmul.mubr.f32.gmra.mrb[0].mxu0 %v5733
      %v6391 = vpop.f32.mrb[0].mxu0
      %v6392 = vadd.f32 0.0, %v6391
      %v6393 = vpop.f32.mrb[0].mxu0
      %6394 = vmatprep.mubr.f32.mxu0 0.0
      %6395 = vmatmul.mubr.f32.gmra.mrb[0].mxu0 %v5736
      %v6396 = vpop.f32.mrb[0].mxu0
      %v6397 = vadd.f32 0.0, %v6396
      %v6398 = vpop.f32.mrb[0].mxu0
      %6399 = vmatprep.mubr.f32.mxu0 0.0
      %6400 = vmatmul.mubr.f32.gmra.mrb[0].mxu0 %v5739
      %v6401 = vpop.f32.mrb[0].mxu0
      %v6402 = vadd.f32 0.0, %v6401
      %v6403 = vpop.f32.mrb[0].mxu0
      %6404 = vmatprep.mubr.f32.mxu0 0.0
      %6405 = vmatmul.mubr.f32.gmra.mrb[0].mxu0 %v5742
      %v6406 = vpop.f32.mrb[0].mxu0
      %v6407 = vadd.f32 0.0, %v6406
      %v6408 = vpop.f32.mrb[0].mxu0
      %6409 = vmatprep.mubr.f32.mxu0 0.0
      %6410 = vmatmul.mubr.f32.gmra.mrb[0].mxu0 %v5745
      %v6411 = vpop.f32.mrb[0].mxu0
      %v6412 = vadd.f32 0.0, %v6411
      %v6413 = vpop.f32.mrb[0].mxu0
      %6414 = vmatprep.mubr.f32.mxu0 0.0
      %6415 = vmatmul.mubr.f32.gmra.mrb[0].mxu0 %v5748
      %v6416 = vpop.f32.mrb[0].mxu0
      %v6417 = vadd.f32 0.0, %v6416
      %v6418 = vpop.f32.mrb[0].mxu0
      %6419 = vmatprep.mubr.f32.mxu0 0.0
      %6420 = vmatmul.mubr.f32.gmra.mrb[0].mxu0 %v5751
      %v6421 = vpop.f32.mrb[0].mxu0
      %v6422 = vadd.f32 0.0, %v6421
      %v6423 = vpop.f32.mrb[0].mxu0
      %6424 = vmatprep.mubr.f32.mxu0 0.0
      %6425 = vmatmul.mubr.f32.gmra.mrb[0].mxu0 %v5754
      %v6426 = vpop.f32.mrb[0].mxu0
      %v6427 = vadd.f32 0.0, %v6426
      %v6428 = vpop.f32.mrb[0].mxu0
      %6429 = vmatprep.mubr.f32.mxu0 0.0
      %6430 = vmatmul.mubr.f32.gmra.mrb[0].mxu0 %v5757
      %v6431 = vpop.f32.mrb[0].mxu0
      %v6432 = vadd.f32 0.0, %v6431
      %v6433 = vpop.f32.mrb[0].mxu0
      %6434 = vmatprep.mubr.f32.mxu0 0.0
      %6435 = vmatmul.mubr.f32.gmra.mrb[0].mxu0 %v5760
      %v6436 = vpop.f32.mrb[0].mxu0
      %v6437 = vadd.f32 0.0, %v6436
      %v6438 = vpop.f32.mrb[0].mxu0
      %6439 = vmatprep.mubr.f32.mxu0 0.0
      %6440 = vmatmul.mubr.f32.gmra.mrb[0].mxu0 %v5763
      %v6441 = vpop.f32.mrb[0].mxu0
      %v6442 = vadd.f32 0.0, %v6441
      %v6443 = vpop.f32.mrb[0].mxu0
      %6444 = vmatprep.mubr.f32.mxu0 0.0
      %6445 = vmatmul.mubr.f32.gmra.mrb[0].mxu0 %v5766
      %v6446 = vpop.f32.mrb[0].mxu0
      %v6447 = vadd.f32 0.0, %v6446
      %v6448 = vpop.f32.mrb[0].mxu0
      %6449 = vmatprep.mubr.f32.mxu0 0.0
      %6450 = vmatmul.mubr.f32.gmra.mrb[0].mxu0 %v5769
      %v6451 = vpop.f32.mrb[0].mxu0
      %v6452 = vadd.f32 0.0, %v6451
      %v6453 = vpop.f32.mrb[0].mxu0
      %6454 = vmatprep.mubr.f32.mxu0 0.0
      %6455 = vmatmul.mubr.f32.gmra.mrb[0].mxu0 %v6235
      %v6456 = vpop.f32.mrb[0].mxu0
      %v6457 = vadd.f32 0.0, %v6456
      %v6458 = vpop.f32.mrb[0].mxu0
      %6459 = vmatprep.mubr.f32.mxu0 0.0
      %6460 = vmatmul.mubr.f32.gmra.mrb[0].mxu0 %v6238
      %v6461 = vpop.f32.mrb[0].mxu0
      %v6462 = vadd.f32 0.0, %v6461
      %v6463 = vpop.f32.mrb[0].mxu0
      %6464 = vdwg.mxu0
      %v6465 = vadd.f32 %v6069, %v6307
      %v6466 = vadd.f32 %v6074, %v6312
      %v6467 = vadd.f32 %v6079, %v6317
      %v6468 = vadd.f32 %v6084, %v6322
      %v6469 = vadd.f32 %v6089, %v6327
      %v6470 = vadd.f32 %v6094, %v6332
      %v6471 = vadd.f32 %v6099, %v6337
      %v6472 = vadd.f32 %v6104, %v6342
      %v6473 = vadd.f32 %v6109, %v6347
      %v6474 = vadd.f32 %v6114, %v6352
      %v6475 = vadd.f32 %v6119, %v6357
      %v6476 = vadd.f32 %v6124, %v6362
      %v6477 = vadd.f32 %v6129, %v6367
      %v6478 = vadd.f32 %v6134, %v6372
      %v6479 = vadd.f32 %v6139, %v6377
      %v6480 = vadd.f32 %v6144, %v6382
      %v6481 = vadd.f32 %v6149, %v6387
      %v6482 = vadd.f32 %v6154, %v6392
      %v6483 = vadd.f32 %v6159, %v6397
      %v6484 = vadd.f32 %v6164, %v6402
      %v6485 = vadd.f32 %v6169, %v6407
      %v6486 = vadd.f32 %v6174, %v6412
      %v6487 = vadd.f32 %v6179, %v6417
      %v6488 = vadd.f32 %v6184, %v6422
      %v6489 = vadd.f32 %v6189, %v6427
      %v6490 = vadd.f32 %v6194, %v6432
      %v6491 = vadd.f32 %v6199, %v6437
      %v6492 = vadd.f32 %v6204, %v6442
      %v6493 = vadd.f32 %v6209, %v6447
      %v6494 = vadd.f32 %v6214, %v6452
      %v6495 = vadd.f32 %v6219, %v6457
      %v6496 = vadd.f32 %v6224, %v6462
      %s6497 = scalar_lea.vmem %s2, 3
      %v6498 = vld [vmem:[%s6497] sm:$0x1]
      %v6500 = vlaneseq
      %v6501 = vshrl.u32 %v6500, 7
      %v6502 = vsub.s32 0, %v6501
      %v6503 = vrot.slane %v6498, %v6502
      %v6505 = vadd.f32 %v6465, %v6503
      %v6506 = vadd.f32 %v6466, %v6503
      %v6507 = vadd.f32 %v6467, %v6503
      %v6508 = vadd.f32 %v6468, %v6503
      %v6509 = vadd.f32 %v6469, %v6503
      %v6510 = vadd.f32 %v6470, %v6503
      %v6511 = vadd.f32 %v6471, %v6503
      %v6512 = vadd.f32 %v6472, %v6503
      %v6513 = vadd.f32 %v6473, %v6503
      %v6514 = vadd.f32 %v6474, %v6503
      %v6515 = vadd.f32 %v6475, %v6503
      %v6516 = vadd.f32 %v6476, %v6503
      %v6517 = vadd.f32 %v6477, %v6503
      %v6518 = vadd.f32 %v6478, %v6503
      %v6519 = vadd.f32 %v6479, %v6503
      %v6520 = vadd.f32 %v6480, %v6503
      %v6521 = vadd.f32 %v6481, %v6503
      %v6522 = vadd.f32 %v6482, %v6503
      %v6523 = vadd.f32 %v6483, %v6503
      %v6524 = vadd.f32 %v6484, %v6503
      %v6525 = vadd.f32 %v6485, %v6503
      %v6526 = vadd.f32 %v6486, %v6503
      %v6527 = vadd.f32 %v6487, %v6503
      %v6528 = vadd.f32 %v6488, %v6503
      %v6529 = vadd.f32 %v6489, %v6503
      %v6530 = vadd.f32 %v6490, %v6503
      %v6531 = vadd.f32 %v6491, %v6503
      %v6532 = vadd.f32 %v6492, %v6503
      %v6533 = vadd.f32 %v6493, %v6503
      %v6534 = vadd.f32 %v6494, %v6503
      %v6535 = vadd.f32 %v6495, %v6503
      %v6536 = vadd.f32 %v6496, %v6503
      %v6537 = vld [vmem:[%s500 + $0x1] sm:$0xff]
      %v6538 = vld [vmem:[%s500 + $0x9] sm:$0xff]
      %v6539 = vld [vmem:[%s500 + $0x19] sm:$0xff]
      %v6540 = vld [vmem:[%s500 + $0x21] sm:$0xff]
      %v6541 = vld [vmem:[%s500 + $0x31] sm:$0xff]
      %v6542 = vld [vmem:[%s500 + $0x39] sm:$0xff]
      %v6543 = vld [vmem:[%s500 + $0x49] sm:$0xff]
      %v6544 = vld [vmem:[%s500 + $0x51] sm:$0xff]
      %v6545 = vld [vmem:[%s500 + $0x61] sm:$0xff]
      %v6546 = vld [vmem:[%s500 + $0x69] sm:$0xff]
      %v6547 = vld [vmem:[%s500 + $0x79] sm:$0xff]
      %v6548 = vld [vmem:[%s500 + $0x81] sm:$0xff]
      %v6549 = vld [vmem:[%s500 + $0x91] sm:$0xff]
      %v6550 = vld [vmem:[%s500 + $0x99] sm:$0xff]
      %v6551 = vld [vmem:[%s500 + $0xa9] sm:$0xff]
      %v6552 = vld [vmem:[%s500 + $0xb1] sm:$0xff]
      %v6553 = vld [vmem:[%s500 + $0xc1] sm:$0xff]
      %v6554 = vld [vmem:[%s500 + $0xc9] sm:$0xff]
      %v6555 = vld [vmem:[%s500 + $0xd9] sm:$0xff]
      %v6556 = vld [vmem:[%s500 + $0xe1] sm:$0xff]
      %v6557 = vld [vmem:[%s500 + $0xf1] sm:$0xff]
      %v6558 = vld [vmem:[%s500 + $0xf9] sm:$0xff]
      %v6559 = vld [vmem:[%s500 + $0x109] sm:$0xff]
      %v6560 = vld [vmem:[%s500 + $0x111] sm:$0xff]
      %v6561 = vld [vmem:[%s500 + $0x121] sm:$0xff]
      %v6562 = vld [vmem:[%s500 + $0x129] sm:$0xff]
      %v6563 = vld [vmem:[%s500 + $0x139] sm:$0xff]
      %v6564 = vld [vmem:[%s500 + $0x141] sm:$0xff]
      %v6565 = vld [vmem:[%s500 + $0x151] sm:$0xff]
      %v6566 = vld [vmem:[%s500 + $0x159] sm:$0xff]
      %v6567 = vld [vmem:[%s500 + $0x169] sm:$0xff]
      %v6568 = vld [vmem:[%s500 + $0x171] sm:$0xff]
      %v6569 = vadd.f32 %v6505, %v6537
      %v6570 = vadd.f32 %v6506, %v6538
      %v6571 = vadd.f32 %v6507, %v6539
      %v6572 = vadd.f32 %v6508, %v6540
      %v6573 = vadd.f32 %v6509, %v6541
      %v6574 = vadd.f32 %v6510, %v6542
      %v6575 = vadd.f32 %v6511, %v6543
      %v6576 = vadd.f32 %v6512, %v6544
      %v6577 = vadd.f32 %v6513, %v6545
      %v6578 = vadd.f32 %v6514, %v6546
      %v6579 = vadd.f32 %v6515, %v6547
      %v6580 = vadd.f32 %v6516, %v6548
      %v6581 = vadd.f32 %v6517, %v6549
      %v6582 = vadd.f32 %v6518, %v6550
      %v6583 = vadd.f32 %v6519, %v6551
      %v6584 = vadd.f32 %v6520, %v6552
      %v6585 = vadd.f32 %v6521, %v6553
      %v6586 = vadd.f32 %v6522, %v6554
      %v6587 = vadd.f32 %v6523, %v6555
      %v6588 = vadd.f32 %v6524, %v6556
      %v6589 = vadd.f32 %v6525, %v6557
      %v6590 = vadd.f32 %v6526, %v6558
      %v6591 = vadd.f32 %v6527, %v6559
      %v6592 = vadd.f32 %v6528, %v6560
      %v6593 = vadd.f32 %v6529, %v6561
      %v6594 = vadd.f32 %v6530, %v6562
      %v6595 = vadd.f32 %v6531, %v6563
      %v6596 = vadd.f32 %v6532, %v6564
      %v6597 = vadd.f32 %v6533, %v6565
      %v6598 = vadd.f32 %v6534, %v6566
      %v6599 = vadd.f32 %v6535, %v6567
      %v6600 = vadd.f32 %v6536, %v6568
      %v6601 = vld [vmem:[%s4] sm:$0x1]
      %v6603 = vlaneseq
      %v6604 = vshrl.u32 %v6603, 7
      %v6605 = vsub.s32 0, %v6604
      %v6606 = vrot.slane %v6601, %v6605
      %v6608 = vmul.f32 %v6569, %v6606
      %v6609 = vmul.f32 %v6570, %v6606
      %v6610 = vmul.f32 %v6571, %v6606
      %v6611 = vmul.f32 %v6572, %v6606
      %v6612 = vmul.f32 %v6573, %v6606
      %v6613 = vmul.f32 %v6574, %v6606
      %v6614 = vmul.f32 %v6575, %v6606
      %v6615 = vmul.f32 %v6576, %v6606
      %v6616 = vmul.f32 %v6577, %v6606
      %v6617 = vmul.f32 %v6578, %v6606
      %v6618 = vmul.f32 %v6579, %v6606
      %v6619 = vmul.f32 %v6580, %v6606
      %v6620 = vmul.f32 %v6581, %v6606
      %v6621 = vmul.f32 %v6582, %v6606
      %v6622 = vmul.f32 %v6583, %v6606
      %v6623 = vmul.f32 %v6584, %v6606
      %v6624 = vmul.f32 %v6585, %v6606
      %v6625 = vmul.f32 %v6586, %v6606
      %v6626 = vmul.f32 %v6587, %v6606
      %v6627 = vmul.f32 %v6588, %v6606
      %v6628 = vmul.f32 %v6589, %v6606
      %v6629 = vmul.f32 %v6590, %v6606
      %v6630 = vmul.f32 %v6591, %v6606
      %v6631 = vmul.f32 %v6592, %v6606
      %v6632 = vmul.f32 %v6593, %v6606
      %v6633 = vmul.f32 %v6594, %v6606
      %v6634 = vmul.f32 %v6595, %v6606
      %v6635 = vmul.f32 %v6596, %v6606
      %v6636 = vmul.f32 %v6597, %v6606
      %v6637 = vmul.f32 %v6598, %v6606
      %v6638 = vmul.f32 %v6599, %v6606
      %v6639 = vmul.f32 %v6600, %v6606
      %s6640 = scalar_lea.vmem %s4, 1
      %v6641 = vld [vmem:[%s6640] sm:$0x1]
      %v6643 = vlaneseq
      %v6644 = vshrl.u32 %v6643, 7
      %v6645 = vsub.s32 0, %v6644
      %v6646 = vrot.slane %v6641, %v6645
      %v6648 = vadd.f32 %v6608, %v6646
      %v6649 = vadd.f32 %v6609, %v6646
      %v6650 = vadd.f32 %v6610, %v6646
      %v6651 = vadd.f32 %v6611, %v6646
      %v6652 = vadd.f32 %v6612, %v6646
      %v6653 = vadd.f32 %v6613, %v6646
      %v6654 = vadd.f32 %v6614, %v6646
      %v6655 = vadd.f32 %v6615, %v6646
      %v6656 = vadd.f32 %v6616, %v6646
      %v6657 = vadd.f32 %v6617, %v6646
      %v6658 = vadd.f32 %v6618, %v6646
      %v6659 = vadd.f32 %v6619, %v6646
      %v6660 = vadd.f32 %v6620, %v6646
      %v6661 = vadd.f32 %v6621, %v6646
      %v6662 = vadd.f32 %v6622, %v6646
      %v6663 = vadd.f32 %v6623, %v6646
      %v6664 = vadd.f32 %v6624, %v6646
      %v6665 = vadd.f32 %v6625, %v6646
      %v6666 = vadd.f32 %v6626, %v6646
      %v6667 = vadd.f32 %v6627, %v6646
      %v6668 = vadd.f32 %v6628, %v6646
      %v6669 = vadd.f32 %v6629, %v6646
      %v6670 = vadd.f32 %v6630, %v6646
      %v6671 = vadd.f32 %v6631, %v6646
      %v6672 = vadd.f32 %v6632, %v6646
      %v6673 = vadd.f32 %v6633, %v6646
      %v6674 = vadd.f32 %v6634, %v6646
      %v6675 = vadd.f32 %v6635, %v6646
      %v6676 = vadd.f32 %v6636, %v6646
      %v6677 = vadd.f32 %v6637, %v6646
      %v6678 = vadd.f32 %v6638, %v6646
      %v6679 = vadd.f32 %v6639, %v6646
      %vm6680 = vcmask 23552
      %6681 = vst.msk [vmem:[%s224] sm:$0xff] %vm6680, %v6648
      %6682 = vst.msk [vmem:[%s224 + $0x8] sm:$0xff] %vm6680, %v6649
      %6683 = vst.msk [vmem:[%s224 + $0x10] sm:$0xff] %vm6680, %v6650
      %6684 = vst.msk [vmem:[%s224 + $0x18] sm:$0xff] %vm6680, %v6651
      %6685 = vst.msk [vmem:[%s224 + $0x20] sm:$0xff] %vm6680, %v6652
      %6686 = vst.msk [vmem:[%s224 + $0x28] sm:$0xff] %vm6680, %v6653
      %6687 = vst.msk [vmem:[%s224 + $0x30] sm:$0xff] %vm6680, %v6654
      %6688 = vst.msk [vmem:[%s224 + $0x38] sm:$0xff] %vm6680, %v6655
      %6689 = vst.msk [vmem:[%s224 + $0x40] sm:$0xff] %vm6680, %v6656
      %6690 = vst.msk [vmem:[%s224 + $0x48] sm:$0xff] %vm6680, %v6657
      %6691 = vst.msk [vmem:[%s224 + $0x50] sm:$0xff] %vm6680, %v6658
      %6692 = vst.msk [vmem:[%s224 + $0x58] sm:$0xff] %vm6680, %v6659
      %6693 = vst.msk [vmem:[%s224 + $0x60] sm:$0xff] %vm6680, %v6660
      %6694 = vst.msk [vmem:[%s224 + $0x68] sm:$0xff] %vm6680, %v6661
      %6695 = vst.msk [vmem:[%s224 + $0x70] sm:$0xff] %vm6680, %v6662
      %6696 = vst.msk [vmem:[%s224 + $0x78] sm:$0xff] %vm6680, %v6663
      %6697 = vst.msk [vmem:[%s224 + $0x80] sm:$0xff] %vm6680, %v6664
      %6698 = vst.msk [vmem:[%s224 + $0x88] sm:$0xff] %vm6680, %v6665
      %6699 = vst.msk [vmem:[%s224 + $0x90] sm:$0xff] %vm6680, %v6666
      %6700 = vst.msk [vmem:[%s224 + $0x98] sm:$0xff] %vm6680, %v6667
      %6701 = vst.msk [vmem:[%s224 + $0xa0] sm:$0xff] %vm6680, %v6668
      %6702 = vst.msk [vmem:[%s224 + $0xa8] sm:$0xff] %vm6680, %v6669
      %6703 = vst.msk [vmem:[%s224 + $0xb0] sm:$0xff] %vm6680, %v6670
      %6704 = vst.msk [vmem:[%s224 + $0xb8] sm:$0xff] %vm6680, %v6671
      %6705 = vst.msk [vmem:[%s224 + $0xc0] sm:$0xff] %vm6680, %v6672
      %6706 = vst.msk [vmem:[%s224 + $0xc8] sm:$0xff] %vm6680, %v6673
      %6707 = vst.msk [vmem:[%s224 + $0xd0] sm:$0xff] %vm6680, %v6674
      %6708 = vst.msk [vmem:[%s224 + $0xd8] sm:$0xff] %vm6680, %v6675
      %6709 = vst.msk [vmem:[%s224 + $0xe0] sm:$0xff] %vm6680, %v6676
      %6710 = vst.msk [vmem:[%s224 + $0xe8] sm:$0xff] %vm6680, %v6677
      %6711 = vst.msk [vmem:[%s224 + $0xf0] sm:$0xff] %vm6680, %v6678
      %6712 = vst.msk [vmem:[%s224 + $0xf8] sm:$0xff] %vm6680, %v6679
      %p6713 = scmp.lt.s32.totalorder %s16, 1
      %s6714 = scalar_select %p6713, %s16, 1
      %s6715 = smul.addr %s6714, 32
      %s6716 = smul.addr %s6715, 8
      %s6717 = scalar_lea.vmem %s5, %s6716
      // Predicated region
      $region41: #{_lambda_.1} parent=39 // pred_check
        %p6718 = pneg %p144
      $region42: #{_lambda_.1} parent=39 // pred_check_branch
        %6720 = sbr.rel (%p6718) target = $region44
      $region43: #{_lambda_.1} parent=39 // pred_region
        _
      $region44: #{_lambda_.1} parent=39 // pred_fallthru
        _
    $region40: #{_lambda_.1} parent=5 // pred_fallthru
      _
    %p6721 = scmp.le.s32.totalorder 2, %s11
    // Predicated region
    $region45: #{_lambda_.1} parent=5 // pred_check
      %p6722 = pneg %p6721
    $region46: #{_lambda_.1} parent=5 // pred_check_branch
      %6724 = sbr.rel (%p6722) target = $region48
    $region47: #{_lambda_.1} parent=5 // pred_region
      %s6725 = ssub.s32 %s11, 2
      // Predicated region
      $region49: #{_lambda_.1} parent=47 // pred_check
        %p6726 = pneg %p150
      $region50: #{_lambda_.1} parent=47 // pred_check_branch
        %6728 = sbr.rel (%p6726) target = $region52
      $region51: #{_lambda_.1} parent=47 // pred_region
        %p6729 = scmp.lt.s32.totalorder %s17, 1
        %s6730 = scalar_select %p6729, %s17, 1
        %s6731 = smul.addr %s6730, 32
        %s6732 = smul.addr %s6731, 8
        %s6733 = scalar_lea.vmem %s5, %s6732
      $region52: #{_lambda_.1} parent=47 // pred_fallthru
        _
    $region48: #{_lambda_.1} parent=5 // pred_fallthru
      _
  $region6: #{_lambda_.1} parent=0 // loop_footer
    %s15 = sadd.s32 1, %s11
  $region7: #{_lambda_.1} parent=0 // loop_footer_branch
    %10 = sbr.rel target = $region3
  $region8: #{_lambda_.1} parent=0 // loop_exit
    _

</llo_original>
